<compile_context>
chip_gen: v7x
topology: tpu7x:2x2x1
jax: 0.10.0
libtpu: 0.0.40
codegen_flags: <defaults>
</compile_context>

<pallas_src>
import jax
import jax.numpy as jnp
from jax.experimental import pallas as pl
from jax.experimental.pallas import tpu as pltpu

# ----------------------------- mini-BERT config ------------------------------
VOCAB = 100
TYPE_VOCAB = 2
MAX_POS = 16
HIDDEN = 128
NUM_HEADS = 4
HEAD_DIM = HIDDEN // NUM_HEADS
FFN = 4 * HIDDEN
NUM_LAYERS = 4          # must be >= 4 so hidden_states[-1..-4] are transformer layers
OUTPUT_DIM = 8
OUT_PAD = 128           # lane-dense padded classifier output width
LN_EPS = 1e-12


# ------------------------------ kernel helpers --------------------------------
def _layernorm(x, gamma, beta):
    mu = jnp.mean(x, axis=-1, keepdims=True)
    var = jnp.mean((x - mu) ** 2, axis=-1, keepdims=True)
    return (x - mu) * jax.lax.rsqrt(var + LN_EPS) * gamma + beta


def _gelu(x):
    # tanh-approximate GELU (EUP tanh). HF BERT uses erf-GELU; close enough for
    # this stand-in model.
    c = 0.7978845608028654  # sqrt(2/pi)
    return 0.5 * x * (1.0 + jnp.tanh(c * (x + 0.044715 * x * x * x)))


# --------------------- fully fused encoder + classifier kernel ----------------
def gen0_fused_kernel(x_ref, amask_ref,
                      wqkv_ref, bqkv_ref, wo_ref, bo_ref,
                      ln1g_ref, ln1b_ref, w1_ref, b1_ref, w2_ref, b2_ref,
                      ln2g_ref, ln2b_ref, clsw_ref, clsb_ref,
                      out_ref):
    # Per grid step: BB batch elements (whole batch on 1-TC chips).
    BB, S, H = x_ref.shape
    M = BB * S                                   # matmul row count
    G = BB * NUM_HEADS                           # attention batch (g = h*BB + b)

    x = x_ref[...].reshape(M, H)                 # [M, H] f32 (embeddings)

    # Additive mask, broadcast hoisted ONCE outside the layer loop
    # (JAX does not CSE broadcast_in_dim):  [BB,1,S] -> [G,S,S], g = h*BB + b.
    amask = jnp.broadcast_to(amask_ref[...], (BB, S, S))
    amask_g = jnp.broadcast_to(amask[None], (NUM_HEADS, BB, S, S)).reshape(G, S, S)

    def to_heads(t):
        # [M, H] (heads on lanes, head-major) -> [G, S, HEAD_DIM], g = h*BB + b.
        t3 = t.reshape(BB, S, H)                                  # tile-aligned split
        return jnp.concatenate(
            [t3[:, :, h * HEAD_DIM:(h + 1) * HEAD_DIM] for h in range(NUM_HEADS)],
            axis=0)

    cls_rows = []                                # per-layer [CLS] rows, [BB, H]

    for l in range(NUM_LAYERS):                  # static unroll (4 layers)
        xb = x.astype(jnp.bfloat16)

        # ---- fused lane-dense QKV: one [M,H] x [H,3H] MXU push ----
        # (1/sqrt(HEAD_DIM) already folded into the Q columns host-side)
        qkv = jnp.dot(xb, wqkv_ref[l],
                      preferred_element_type=jnp.float32) + bqkv_ref[l]
        q = qkv[:, 0 * H:1 * H].astype(jnp.bfloat16)   # full 128-lane slabs
        k = qkv[:, 1 * H:2 * H].astype(jnp.bfloat16)
        v = qkv[:, 2 * H:3 * H].astype(jnp.bfloat16)

        qg, kg, vg = to_heads(q), to_heads(k), to_heads(v)        # [G, S, HD]

        # ---- all heads/batches at once: scores, masked softmax, context ----
        s = jnp.einsum('gqd,gkd->gqk', qg, kg,
                       preferred_element_type=jnp.float32) + amask_g
        s = s - jnp.max(s, axis=-1, keepdims=True)
        p = jnp.exp(s)
        p = p * pl.reciprocal(jnp.sum(p, axis=-1, keepdims=True), approx=True)
        ctx = jnp.einsum('gqk,gkd->gqd', p.astype(jnp.bfloat16), vg,
                         preferred_element_type=jnp.float32)      # [G, S, HD]

        # ---- fused output projection + head-sum: single K=128 matmul ----
        ctx4 = ctx.reshape(NUM_HEADS, BB, S, HEAD_DIM)
        ctx2 = jnp.concatenate([ctx4[h] for h in range(NUM_HEADS)],
                               axis=-1).reshape(M, H)             # heads -> lanes
        attn = jnp.dot(ctx2.astype(jnp.bfloat16), wo_ref[l],
                       preferred_element_type=jnp.float32) + bo_ref[l]
        h1 = _layernorm(x + attn, ln1g_ref[l], ln1b_ref[l])

        # ---- FFN ----
        ff = jnp.dot(h1.astype(jnp.bfloat16), w1_ref[l],
                     preferred_element_type=jnp.float32) + b1_ref[l]
        ff = _gelu(ff)
        ff = jnp.dot(ff.astype(jnp.bfloat16), w2_ref[l],
                     preferred_element_type=jnp.float32) + b2_ref[l]
        x = _layernorm(h1 + ff, ln2g_ref[l], ln2b_ref[l])         # [M, H]

        # collect this layer's [CLS] row per batch element (rows b*S)
        cls_rows.append(jnp.concatenate(
            [x[b * S:b * S + 1, :] for b in range(BB)], axis=0))  # [BB, H]

    # ---- classifier, once, after the loop ----
    # concat(last-4 CLS) in layer order; cls_w rows were restacked host-side to
    # match (chunk order of torch.cat([-1,-2,-3,-4]) handled there).
    cls_cat = jnp.concatenate(cls_rows, axis=-1).astype(jnp.bfloat16)   # [BB, 4H]
    logits = jnp.dot(cls_cat, clsw_ref[...],
                     preferred_element_type=jnp.float32) + clsb_ref[...]
    out_ref[...] = logits[:, None, :].astype(out_ref.dtype)       # [BB, 1, OUT_PAD]


# ----------------------------- parameter init ---------------------------------
def init_params(key):
    std = 0.02

    def norm(k, shape):
        return std * jax.random.normal(k, shape, dtype=jnp.float32)

    keys = jax.random.split(key, 4 + NUM_LAYERS)
    params = {
        'word_emb': norm(keys[0], (VOCAB, HIDDEN)),
        'pos_emb': norm(keys[1], (MAX_POS, HIDDEN)),
        'type_emb': norm(keys[2], (TYPE_VOCAB, HIDDEN)),
        'emb_ln_g': jnp.ones((1, HIDDEN), jnp.float32),
        'emb_ln_b': jnp.zeros((1, HIDDEN), jnp.float32),
    }

    # Classifier on concat([hidden_states[-1], -2, -3, -4]): chunk j of the 4*H
    # weight rows pairs with layer output index (NUM_LAYERS-1-j).  The kernel
    # concatenates CLS rows in layer order l=0..3, so restack rows accordingly
    # and pad the output dim to 128 lanes (lane-dense store).
    # NOTE: with NUM_LAYERS=4 this correctly excludes hidden_states[0] (the
    # embedding output); keep this invariant when swapping configs.
    cls_w = norm(keys[3], (4 * HIDDEN, OUTPUT_DIM))
    chunks = [cls_w[j * HIDDEN:(j + 1) * HIDDEN] for j in range(4)]
    clsw = jnp.concatenate([chunks[NUM_LAYERS - 1 - l] for l in range(NUM_LAYERS)], 0)
    clsw_pad = jnp.zeros((4 * HIDDEN, OUT_PAD), jnp.float32).at[:, :OUTPUT_DIM].set(clsw)
    params['cls_w'] = clsw_pad.astype(jnp.bfloat16)               # [4H, 128]
    params['cls_b'] = jnp.zeros((1, OUT_PAD), jnp.float32)

    scale = 1.0 / float(HEAD_DIM) ** 0.5
    wqkv_l, bqkv_l, wo_l, bo_l = [], [], [], []
    ln1g_l, ln1b_l, w1_l, b1_l, w2_l, b2_l, ln2g_l, ln2b_l = ([] for _ in range(8))
    for l in range(NUM_LAYERS):
        lk = jax.random.split(keys[4 + l], 6)
        # 1/sqrt(HEAD_DIM) folded into the Q projection (the Q bias, zero here,
        # would be scaled identically).
        wq = norm(lk[0], (HIDDEN, HIDDEN)) * scale
        wk = norm(lk[1], (HIDDEN, HIDDEN))
        wv = norm(lk[2], (HIDDEN, HIDDEN))
        wo = norm(lk[3], (HIDDEN, HIDDEN))
        # lane-dense fused QKV weight: [H, 3H] = [Q(128) | K(128) | V(128)],
        # each slab already head-major on lanes (natural layout of wq/wk/wv).
        wqkv_l.append(jnp.concatenate([wq, wk, wv], axis=1))
        bqkv_l.append(jnp.zeros((1, 3 * HIDDEN), jnp.float32))
        wo_l.append(wo)                                            # [H, H]
        bo_l.append(jnp.zeros((1, HIDDEN), jnp.float32))
        ln1g_l.append(jnp.ones((1, HIDDEN), jnp.float32))
        ln1b_l.append(jnp.zeros((1, HIDDEN), jnp.float32))
        w1_l.append(norm(lk[4], (HIDDEN, FFN)))
        b1_l.append(jnp.zeros((1, FFN), jnp.float32))
        w2_l.append(norm(lk[5], (FFN, HIDDEN)))
        b2_l.append(jnp.zeros((1, HIDDEN), jnp.float32))
        ln2g_l.append(jnp.ones((1, HIDDEN), jnp.float32))
        ln2b_l.append(jnp.zeros((1, HIDDEN), jnp.float32))

    params['wqkv'] = jnp.stack(wqkv_l).astype(jnp.bfloat16)       # [L, H, 3H]
    params['bqkv'] = jnp.stack(bqkv_l)                            # [L, 1, 3H]
    params['wo'] = jnp.stack(wo_l).astype(jnp.bfloat16)           # [L, H, H]
    params['bo'] = jnp.stack(bo_l)                                # [L, 1, H]
    params['ln1_g'] = jnp.stack(ln1g_l)
    params['ln1_b'] = jnp.stack(ln1b_l)
    params['w1'] = jnp.stack(w1_l).astype(jnp.bfloat16)           # [L, H, FFN]
    params['b1'] = jnp.stack(b1_l)                                # [L, 1, FFN]
    params['w2'] = jnp.stack(w2_l).astype(jnp.bfloat16)           # [L, FFN, H]
    params['b2'] = jnp.stack(b2_l)                                # [L, 1, H]
    params['ln2_g'] = jnp.stack(ln2g_l)
    params['ln2_b'] = jnp.stack(ln2b_l)
    return params


# -------------------------------- forward -------------------------------------
def _grid_splits(batch):
    # v7x has 2 TensorCores/chip: split the batch across a "parallel" grid.
    # v5e/v6e have 1 TC: a multi-step grid would just be a serial loop paying
    # ~0.35us/step with tiny (M=S) matmuls, so fold the whole batch into M.
    try:
        kind = jax.devices()[0].device_kind.lower()
    except Exception:
        kind = ""
    return 2 if ("v7" in kind and batch % 2 == 0) else 1


@jax.jit
def gen0_forward(params, input_ids, token_type_ids, attention_mask):
    B, S = input_ids.shape
    # Embedding lookup + embedding LayerNorm (glue, not the hot path).
    positions = jnp.arange(S)
    emb = (params['word_emb'][input_ids]
           + params['pos_emb'][positions][None, :, :]
           + params['type_emb'][token_type_ids])
    mu = jnp.mean(emb, -1, keepdims=True)
    var = jnp.mean((emb - mu) ** 2, -1, keepdims=True)
    h0 = ((emb - mu) * jax.lax.rsqrt(var + LN_EPS)
          * params['emb_ln_g'] + params['emb_ln_b'])              # [B, S, H]

    # Additive attention mask, computed once: [B, 1, S]
    amask = ((1.0 - attention_mask.astype(jnp.float32)) * -1e9)[:, None, :]

    splits = _grid_splits(B)            # 1 on v5e/v6e (batch folded into M), 2 on v7x
    BB = B // splits

    # Constant-index weight blocks; at ~2 MiB total their double-buffering is
    # irrelevant today (single-buffering / streaming only matters for the
    # bert-base swap, see TODO above).
    full = lambda a: pl.BlockSpec(a.shape, lambda i, _r=a.ndim: (0,) * _r)

    logits_pad = pl.pallas_call(
        gen0_fused_kernel,
        out_shape=jax.ShapeDtypeStruct((B, 1, OUT_PAD), jnp.float32),
        grid=(splits,),
        in_specs=[
            pl.BlockSpec((BB, S, HIDDEN), lambda i: (i, 0, 0)),    # h0
            pl.BlockSpec((BB, 1, S), lambda i: (i, 0, 0)),         # additive mask
            full(params['wqkv']), full(params['bqkv']),
            full(params['wo']), full(params['bo']),
            full(params['ln1_g']), full(params['ln1_b']),
            full(params['w1']), full(params['b1']),
            full(params['w2']), full(params['b2']),
            full(params['ln2_g']), full(params['ln2_b']),
            full(params['cls_w']), full(params['cls_b']),
        ],
        out_specs=pl.BlockSpec((BB, 1, OUT_PAD), lambda i: (i, 0, 0)),
        compiler_params=pltpu.CompilerParams(
            dimension_semantics=("parallel",)),                    # v7x: 2 TCs
    )(h0, amask,
      params['wqkv'], params['bqkv'], params['wo'], params['bo'],
      params['ln1_g'], params['ln1_b'], params['w1'], params['b1'],
      params['w2'], params['b2'], params['ln2_g'], params['ln2_b'],
      params['cls_w'], params['cls_b'])

    # Dropout is identity at inference. Slice lane-padded logits to output_dim.
    return logits_pad[:, 0, :OUTPUT_DIM]


# --------------------------------- main ----------------------------------------
if __name__ == "__main__":
    key = jax.random.PRNGKey(0)
    k_ids, k_param = jax.random.split(key, 2)

    B, S = 2, 8
    input_ids = jax.random.randint(k_ids, (B, S), 0, VOCAB, dtype=jnp.int32)
    token_type_ids = jnp.zeros((B, S), dtype=jnp.int32)
    attention_mask = jnp.ones((B, S), dtype=jnp.int32).at[1, 6:].set(0)

    params = init_params(k_param)
    out = gen0_forward(params, input_ids, token_type_ids, attention_mask)
    jax.block_until_ready(out)
    assert out.shape == (B, OUTPUT_DIM) and out.dtype == jnp.float32
    print("KERNEL_OK")
</pallas_src>

<mosaic_0001>
module attributes {stable_mosaic.version = 11 : i64} {
  func.func @gen0_fused_kernel(%arg0: i32, %arg1: memref<2x8x128xf32, #tpu.memory_space<vmem>>, %arg2: memref<2x1x8xf32, #tpu.memory_space<vmem>>, %arg3: memref<4x128x384xbf16, #tpu.memory_space<vmem>>, %arg4: memref<4x1x384xf32, #tpu.memory_space<vmem>>, %arg5: memref<4x128x128xbf16, #tpu.memory_space<vmem>>, %arg6: memref<4x1x128xf32, #tpu.memory_space<vmem>>, %arg7: memref<4x1x128xf32, #tpu.memory_space<vmem>>, %arg8: memref<4x1x128xf32, #tpu.memory_space<vmem>>, %arg9: memref<4x128x512xbf16, #tpu.memory_space<vmem>>, %arg10: memref<4x1x512xf32, #tpu.memory_space<vmem>>, %arg11: memref<4x512x128xbf16, #tpu.memory_space<vmem>>, %arg12: memref<4x1x128xf32, #tpu.memory_space<vmem>>, %arg13: memref<4x1x128xf32, #tpu.memory_space<vmem>>, %arg14: memref<4x1x128xf32, #tpu.memory_space<vmem>>, %arg15: memref<512x128xbf16, #tpu.memory_space<vmem>>, %arg16: memref<1x128xf32, #tpu.memory_space<vmem>>, %arg17: memref<2x1x128xf32, #tpu.memory_space<vmem>>) attributes {dimension_semantics = [#tpu.dimension_semantics<parallel>], iteration_bounds = array<i64: 1>, scalar_prefetch = 0 : i64, scratch_operands = 0 : i64, tpu.core_type = #tpu.core_type<tc>, window_params = [{transform_indices = @transform_0, window_bounds = array<i64: 2, 8, 128>}, {transform_indices = @transform_1, window_bounds = array<i64: 2, 1, 8>}, {pipeline_mode = #tpu.pipeline_mode<synchronous>, transform_indices = @transform_2, window_bounds = array<i64: 4, 128, 384>}, {pipeline_mode = #tpu.pipeline_mode<synchronous>, transform_indices = @transform_3, window_bounds = array<i64: 4, 1, 384>}, {pipeline_mode = #tpu.pipeline_mode<synchronous>, transform_indices = @transform_4, window_bounds = array<i64: 4, 128, 128>}, {pipeline_mode = #tpu.pipeline_mode<synchronous>, transform_indices = @transform_5, window_bounds = array<i64: 4, 1, 128>}, {pipeline_mode = #tpu.pipeline_mode<synchronous>, transform_indices = @transform_6, window_bounds = array<i64: 4, 1, 128>}, {pipeline_mode = #tpu.pipeline_mode<synchronous>, transform_indices = @transform_7, window_bounds = array<i64: 4, 1, 128>}, {pipeline_mode = #tpu.pipeline_mode<synchronous>, transform_indices = @transform_8, window_bounds = array<i64: 4, 128, 512>}, {pipeline_mode = #tpu.pipeline_mode<synchronous>, transform_indices = @transform_9, window_bounds = array<i64: 4, 1, 512>}, {pipeline_mode = #tpu.pipeline_mode<synchronous>, transform_indices = @transform_10, window_bounds = array<i64: 4, 512, 128>}, {pipeline_mode = #tpu.pipeline_mode<synchronous>, transform_indices = @transform_11, window_bounds = array<i64: 4, 1, 128>}, {pipeline_mode = #tpu.pipeline_mode<synchronous>, transform_indices = @transform_12, window_bounds = array<i64: 4, 1, 128>}, {pipeline_mode = #tpu.pipeline_mode<synchronous>, transform_indices = @transform_13, window_bounds = array<i64: 4, 1, 128>}, {pipeline_mode = #tpu.pipeline_mode<synchronous>, transform_indices = @transform_14, window_bounds = array<i64: 512, 128>}, {pipeline_mode = #tpu.pipeline_mode<synchronous>, transform_indices = @transform_15, window_bounds = array<i64: 1, 128>}, {transform_indices = @transform_16, window_bounds = array<i64: 2, 1, 128>}]} {
    %c0 = arith.constant 0 : index
    %c0_0 = arith.constant 0 : index
    %c0_1 = arith.constant 0 : index
    %0 = vector.load %arg1[%c0, %c0_0, %c0_1] : memref<2x8x128xf32, #tpu.memory_space<vmem>>, vector<2x8x128xf32>
    %1 = vector.shape_cast %0 : vector<2x8x128xf32> to vector<16x128xf32>
    %c0_2 = arith.constant 0 : index
    %c0_3 = arith.constant 0 : index
    %c0_4 = arith.constant 0 : index
    %2 = vector.load %arg2[%c0_2, %c0_3, %c0_4] : memref<2x1x8xf32, #tpu.memory_space<vmem>>, vector<2x1x8xf32>
    %3 = vector.shape_cast %2 : vector<2x1x8xf32> to vector<2x1x8xf32>
    %4 = vector.broadcast %3 : vector<2x1x8xf32> to vector<2x8x8xf32>
    %5 = vector.shape_cast %4 : vector<2x8x8xf32> to vector<1x2x8x8xf32>
    %6 = vector.shape_cast %5 : vector<1x2x8x8xf32> to vector<1x2x8x8xf32>
    %7 = vector.broadcast %6 : vector<1x2x8x8xf32> to vector<4x2x8x8xf32>
    %8 = vector.shape_cast %7 : vector<4x2x8x8xf32> to vector<8x8x8xf32>
    %9 = arith.truncf %1 : vector<16x128xf32> to vector<16x128xbf16>
    %c0_5 = arith.constant 0 : index
    %c0_6 = arith.constant 0 : index
    %c0_7 = arith.constant 0 : index
    %10 = vector.load %arg3[%c0_5, %c0_6, %c0_7] : memref<4x128x384xbf16, #tpu.memory_space<vmem>>, vector<1x128x384xbf16>
    %11 = vector.shape_cast %10 : vector<1x128x384xbf16> to vector<128x384xbf16>
    %cst = arith.constant dense<0.000000e+00> : vector<16x384xf32>
    %12 = tpu.matmul %9, %11, %cst {dimension_numbers = #tpu.dot_dimension_numbers<[1], [0], [0], [1], [0, 0, 1, 1], [], []>} : vector<16x128xbf16>, vector<128x384xbf16>, vector<16x384xf32> -> vector<16x384xf32>
    %c0_8 = arith.constant 0 : index
    %c0_9 = arith.constant 0 : index
    %c0_10 = arith.constant 0 : index
    %13 = vector.load %arg4[%c0_8, %c0_9, %c0_10] : memref<4x1x384xf32, #tpu.memory_space<vmem>>, vector<1x1x384xf32>
    %14 = vector.shape_cast %13 : vector<1x1x384xf32> to vector<1x384xf32>
    %15 = vector.broadcast %14 : vector<1x384xf32> to vector<16x384xf32>
    %16 = arith.addf %12, %15 : vector<16x384xf32>
    %17 = vector.extract_strided_slice %16 {offsets = [0, 0], sizes = [16, 128], strides = [1, 1]} : vector<16x384xf32> to vector<16x128xf32>
    %18 = arith.truncf %17 : vector<16x128xf32> to vector<16x128xbf16>
    %19 = vector.extract_strided_slice %16 {offsets = [0, 128], sizes = [16, 128], strides = [1, 1]} : vector<16x384xf32> to vector<16x128xf32>
    %20 = arith.truncf %19 : vector<16x128xf32> to vector<16x128xbf16>
    %21 = vector.extract_strided_slice %16 {offsets = [0, 256], sizes = [16, 128], strides = [1, 1]} : vector<16x384xf32> to vector<16x128xf32>
    %22 = arith.truncf %21 : vector<16x128xf32> to vector<16x128xbf16>
    %23 = vector.shape_cast %18 : vector<16x128xbf16> to vector<2x8x128xbf16>
    %24 = vector.extract_strided_slice %23 {offsets = [0, 0, 0], sizes = [2, 8, 32], strides = [1, 1, 1]} : vector<2x8x128xbf16> to vector<2x8x32xbf16>
    %25 = vector.extract_strided_slice %23 {offsets = [0, 0, 32], sizes = [2, 8, 32], strides = [1, 1, 1]} : vector<2x8x128xbf16> to vector<2x8x32xbf16>
    %26 = vector.extract_strided_slice %23 {offsets = [0, 0, 64], sizes = [2, 8, 32], strides = [1, 1, 1]} : vector<2x8x128xbf16> to vector<2x8x32xbf16>
    %27 = vector.extract_strided_slice %23 {offsets = [0, 0, 96], sizes = [2, 8, 32], strides = [1, 1, 1]} : vector<2x8x128xbf16> to vector<2x8x32xbf16>
    %28 = tpu.concatenate %24, %25, %26, %27 in 0 : vector<2x8x32xbf16>, vector<2x8x32xbf16>, vector<2x8x32xbf16>, vector<2x8x32xbf16> -> vector<8x8x32xbf16>
    %29 = vector.shape_cast %20 : vector<16x128xbf16> to vector<2x8x128xbf16>
    %30 = vector.extract_strided_slice %29 {offsets = [0, 0, 0], sizes = [2, 8, 32], strides = [1, 1, 1]} : vector<2x8x128xbf16> to vector<2x8x32xbf16>
    %31 = vector.extract_strided_slice %29 {offsets = [0, 0, 32], sizes = [2, 8, 32], strides = [1, 1, 1]} : vector<2x8x128xbf16> to vector<2x8x32xbf16>
    %32 = vector.extract_strided_slice %29 {offsets = [0, 0, 64], sizes = [2, 8, 32], strides = [1, 1, 1]} : vector<2x8x128xbf16> to vector<2x8x32xbf16>
    %33 = vector.extract_strided_slice %29 {offsets = [0, 0, 96], sizes = [2, 8, 32], strides = [1, 1, 1]} : vector<2x8x128xbf16> to vector<2x8x32xbf16>
    %34 = tpu.concatenate %30, %31, %32, %33 in 0 : vector<2x8x32xbf16>, vector<2x8x32xbf16>, vector<2x8x32xbf16>, vector<2x8x32xbf16> -> vector<8x8x32xbf16>
    %35 = vector.shape_cast %22 : vector<16x128xbf16> to vector<2x8x128xbf16>
    %36 = vector.extract_strided_slice %35 {offsets = [0, 0, 0], sizes = [2, 8, 32], strides = [1, 1, 1]} : vector<2x8x128xbf16> to vector<2x8x32xbf16>
    %37 = vector.extract_strided_slice %35 {offsets = [0, 0, 32], sizes = [2, 8, 32], strides = [1, 1, 1]} : vector<2x8x128xbf16> to vector<2x8x32xbf16>
    %38 = vector.extract_strided_slice %35 {offsets = [0, 0, 64], sizes = [2, 8, 32], strides = [1, 1, 1]} : vector<2x8x128xbf16> to vector<2x8x32xbf16>
    %39 = vector.extract_strided_slice %35 {offsets = [0, 0, 96], sizes = [2, 8, 32], strides = [1, 1, 1]} : vector<2x8x128xbf16> to vector<2x8x32xbf16>
    %40 = tpu.concatenate %36, %37, %38, %39 in 0 : vector<2x8x32xbf16>, vector<2x8x32xbf16>, vector<2x8x32xbf16>, vector<2x8x32xbf16> -> vector<8x8x32xbf16>
    "tpu.trace_start"() <{level = 10 : i32, message = "gqd,gkd->gqk"}> : () -> ()
    %cst_11 = arith.constant dense<0.000000e+00> : vector<8x8x8xf32>
    %41 = tpu.matmul %28, %34, %cst_11 {dimension_numbers = #tpu.dot_dimension_numbers<[2], [2], [1], [1], [0, 0, 0, 1, 1, 1], [0], [0]>} : vector<8x8x32xbf16>, vector<8x8x32xbf16>, vector<8x8x8xf32> -> vector<8x8x8xf32>
    "tpu.trace_stop"() : () -> ()
    %42 = arith.addf %41, %8 : vector<8x8x8xf32>
    %cst_12 = arith.constant dense<0xFF800000> : vector<8x8xf32>
    %43 = vector.multi_reduction <maximumf>, %42, %cst_12 [2] : vector<8x8x8xf32> to vector<8x8xf32>
    %44 = vector.shape_cast %43 : vector<8x8xf32> to vector<8x8x1xf32>
    %45 = vector.broadcast %44 : vector<8x8x1xf32> to vector<8x8x8xf32>
    %46 = arith.subf %42, %45 : vector<8x8x8xf32>
    %47 = math.exp %46 : vector<8x8x8xf32>
    %cst_13 = arith.constant dense<0.000000e+00> : vector<8x8xf32>
    %48 = vector.multi_reduction <add>, %47, %cst_13 [2] : vector<8x8x8xf32> to vector<8x8xf32>
    %49 = vector.shape_cast %48 : vector<8x8xf32> to vector<8x8x1xf32>
    %50 = tpu.reciprocal %49 {approx = true} : vector<8x8x1xf32> -> vector<8x8x1xf32>
    %51 = vector.broadcast %50 : vector<8x8x1xf32> to vector<8x8x8xf32>
    %52 = arith.mulf %47, %51 : vector<8x8x8xf32>
    %53 = arith.truncf %52 : vector<8x8x8xf32> to vector<8x8x8xbf16>
    "tpu.trace_start"() <{level = 10 : i32, message = "gqk,gkd->gqd"}> : () -> ()
    %cst_14 = arith.constant dense<0.000000e+00> : vector<8x8x32xf32>
    %54 = tpu.matmul %53, %40, %cst_14 {dimension_numbers = #tpu.dot_dimension_numbers<[2], [1], [1], [2], [0, 0, 0, 1, 1, 2], [0], [0]>} : vector<8x8x8xbf16>, vector<8x8x32xbf16>, vector<8x8x32xf32> -> vector<8x8x32xf32>
    "tpu.trace_stop"() : () -> ()
    %55 = vector.shape_cast %54 : vector<8x8x32xf32> to vector<4x2x8x32xf32>
    %56 = vector.extract_strided_slice %55 {offsets = [0, 0, 0, 0], sizes = [1, 2, 8, 32], strides = [1, 1, 1, 1]} : vector<4x2x8x32xf32> to vector<1x2x8x32xf32>
    %57 = vector.shape_cast %56 : vector<1x2x8x32xf32> to vector<2x8x32xf32>
    %58 = vector.extract_strided_slice %55 {offsets = [1, 0, 0, 0], sizes = [1, 2, 8, 32], strides = [1, 1, 1, 1]} : vector<4x2x8x32xf32> to vector<1x2x8x32xf32>
    %59 = vector.shape_cast %58 : vector<1x2x8x32xf32> to vector<2x8x32xf32>
    %60 = vector.extract_strided_slice %55 {offsets = [2, 0, 0, 0], sizes = [1, 2, 8, 32], strides = [1, 1, 1, 1]} : vector<4x2x8x32xf32> to vector<1x2x8x32xf32>
    %61 = vector.shape_cast %60 : vector<1x2x8x32xf32> to vector<2x8x32xf32>
    %62 = vector.extract_strided_slice %55 {offsets = [3, 0, 0, 0], sizes = [1, 2, 8, 32], strides = [1, 1, 1, 1]} : vector<4x2x8x32xf32> to vector<1x2x8x32xf32>
    %63 = vector.shape_cast %62 : vector<1x2x8x32xf32> to vector<2x8x32xf32>
    %64 = tpu.concatenate %57, %59, %61, %63 in 2 : vector<2x8x32xf32>, vector<2x8x32xf32>, vector<2x8x32xf32>, vector<2x8x32xf32> -> vector<2x8x128xf32>
    %65 = vector.shape_cast %64 : vector<2x8x128xf32> to vector<16x128xf32>
    %66 = arith.truncf %65 : vector<16x128xf32> to vector<16x128xbf16>
    %c0_15 = arith.constant 0 : index
    %c0_16 = arith.constant 0 : index
    %c0_17 = arith.constant 0 : index
    %67 = vector.load %arg5[%c0_15, %c0_16, %c0_17] : memref<4x128x128xbf16, #tpu.memory_space<vmem>>, vector<1x128x128xbf16>
    %68 = vector.shape_cast %67 : vector<1x128x128xbf16> to vector<128x128xbf16>
    %cst_18 = arith.constant dense<0.000000e+00> : vector<16x128xf32>
    %69 = tpu.matmul %66, %68, %cst_18 {dimension_numbers = #tpu.dot_dimension_numbers<[1], [0], [0], [1], [0, 0, 1, 1], [], []>} : vector<16x128xbf16>, vector<128x128xbf16>, vector<16x128xf32> -> vector<16x128xf32>
    %c0_19 = arith.constant 0 : index
    %c0_20 = arith.constant 0 : index
    %c0_21 = arith.constant 0 : index
    %70 = vector.load %arg6[%c0_19, %c0_20, %c0_21] : memref<4x1x128xf32, #tpu.memory_space<vmem>>, vector<1x1x128xf32>
    %71 = vector.shape_cast %70 : vector<1x1x128xf32> to vector<1x128xf32>
    %72 = vector.broadcast %71 : vector<1x128xf32> to vector<16x128xf32>
    %73 = arith.addf %69, %72 : vector<16x128xf32>
    %74 = arith.addf %1, %73 : vector<16x128xf32>
    %c0_22 = arith.constant 0 : index
    %c0_23 = arith.constant 0 : index
    %c0_24 = arith.constant 0 : index
    %75 = vector.load %arg7[%c0_22, %c0_23, %c0_24] : memref<4x1x128xf32, #tpu.memory_space<vmem>>, vector<1x1x128xf32>
    %76 = vector.shape_cast %75 : vector<1x1x128xf32> to vector<1x128xf32>
    %c0_25 = arith.constant 0 : index
    %c0_26 = arith.constant 0 : index
    %c0_27 = arith.constant 0 : index
    %77 = vector.load %arg8[%c0_25, %c0_26, %c0_27] : memref<4x1x128xf32, #tpu.memory_space<vmem>>, vector<1x1x128xf32>
    %78 = vector.shape_cast %77 : vector<1x1x128xf32> to vector<1x128xf32>
    %cst_28 = arith.constant dense<0.000000e+00> : vector<16xf32>
    %79 = vector.multi_reduction <add>, %74, %cst_28 [1] : vector<16x128xf32> to vector<16xf32>
    %80 = vector.shape_cast %79 : vector<16xf32> to vector<16x1xf32>
    %cst_29 = arith.constant 1.280000e+02 : f32
    %81 = vector.broadcast %cst_29 : f32 to vector<16x1xf32>
    %82 = arith.divf %80, %81 : vector<16x1xf32>
    %83 = vector.broadcast %82 : vector<16x1xf32> to vector<16x128xf32>
    %84 = arith.subf %74, %83 : vector<16x128xf32>
    %85 = arith.mulf %84, %84 : vector<16x128xf32>
    %cst_30 = arith.constant dense<0.000000e+00> : vector<16xf32>
    %86 = vector.multi_reduction <add>, %85, %cst_30 [1] : vector<16x128xf32> to vector<16xf32>
    %87 = vector.shape_cast %86 : vector<16xf32> to vector<16x1xf32>
    %cst_31 = arith.constant 1.280000e+02 : f32
    %88 = vector.broadcast %cst_31 : f32 to vector<16x1xf32>
    %89 = arith.divf %87, %88 : vector<16x1xf32>
    %90 = vector.broadcast %82 : vector<16x1xf32> to vector<16x128xf32>
    %91 = arith.subf %74, %90 : vector<16x128xf32>
    %cst_32 = arith.constant 9.99999996E-13 : f32
    %92 = vector.broadcast %cst_32 : f32 to vector<16x1xf32>
    %93 = arith.addf %89, %92 : vector<16x1xf32>
    %94 = math.rsqrt %93 : vector<16x1xf32>
    %95 = vector.broadcast %94 : vector<16x1xf32> to vector<16x128xf32>
    %96 = arith.mulf %91, %95 : vector<16x128xf32>
    %97 = vector.broadcast %76 : vector<1x128xf32> to vector<16x128xf32>
    %98 = arith.mulf %96, %97 : vector<16x128xf32>
    %99 = vector.broadcast %78 : vector<1x128xf32> to vector<16x128xf32>
    %100 = arith.addf %98, %99 : vector<16x128xf32>
    %101 = arith.truncf %100 : vector<16x128xf32> to vector<16x128xbf16>
    %c0_33 = arith.constant 0 : index
    %c0_34 = arith.constant 0 : index
    %c0_35 = arith.constant 0 : index
    %102 = vector.load %arg9[%c0_33, %c0_34, %c0_35] : memref<4x128x512xbf16, #tpu.memory_space<vmem>>, vector<1x128x512xbf16>
    %103 = vector.shape_cast %102 : vector<1x128x512xbf16> to vector<128x512xbf16>
    %cst_36 = arith.constant dense<0.000000e+00> : vector<16x512xf32>
    %104 = tpu.matmul %101, %103, %cst_36 {dimension_numbers = #tpu.dot_dimension_numbers<[1], [0], [0], [1], [0, 0, 1, 1], [], []>} : vector<16x128xbf16>, vector<128x512xbf16>, vector<16x512xf32> -> vector<16x512xf32>
    %c0_37 = arith.constant 0 : index
    %c0_38 = arith.constant 0 : index
    %c0_39 = arith.constant 0 : index
    %105 = vector.load %arg10[%c0_37, %c0_38, %c0_39] : memref<4x1x512xf32, #tpu.memory_space<vmem>>, vector<1x1x512xf32>
    %106 = vector.shape_cast %105 : vector<1x1x512xf32> to vector<1x512xf32>
    %107 = vector.broadcast %106 : vector<1x512xf32> to vector<16x512xf32>
    %108 = arith.addf %104, %107 : vector<16x512xf32>
    %cst_40 = arith.constant 5.000000e-01 : f32
    %109 = vector.broadcast %cst_40 : f32 to vector<16x512xf32>
    %110 = arith.mulf %109, %108 : vector<16x512xf32>
    %cst_41 = arith.constant 4.471500e-02 : f32
    %111 = vector.broadcast %cst_41 : f32 to vector<16x512xf32>
    %112 = arith.mulf %111, %108 : vector<16x512xf32>
    %113 = arith.mulf %112, %108 : vector<16x512xf32>
    %114 = arith.mulf %113, %108 : vector<16x512xf32>
    %115 = arith.addf %108, %114 : vector<16x512xf32>
    %cst_42 = arith.constant 0.797884583 : f32
    %116 = vector.broadcast %cst_42 : f32 to vector<16x512xf32>
    %117 = arith.mulf %116, %115 : vector<16x512xf32>
    %118 = math.tanh %117 : vector<16x512xf32>
    %cst_43 = arith.constant 1.000000e+00 : f32
    %119 = vector.broadcast %cst_43 : f32 to vector<16x512xf32>
    %120 = arith.addf %119, %118 : vector<16x512xf32>
    %121 = arith.mulf %110, %120 : vector<16x512xf32>
    %122 = arith.truncf %121 : vector<16x512xf32> to vector<16x512xbf16>
    %c0_44 = arith.constant 0 : index
    %c0_45 = arith.constant 0 : index
    %c0_46 = arith.constant 0 : index
    %123 = vector.load %arg11[%c0_44, %c0_45, %c0_46] : memref<4x512x128xbf16, #tpu.memory_space<vmem>>, vector<1x512x128xbf16>
    %124 = vector.shape_cast %123 : vector<1x512x128xbf16> to vector<512x128xbf16>
    %cst_47 = arith.constant dense<0.000000e+00> : vector<16x128xf32>
    %125 = tpu.matmul %122, %124, %cst_47 {dimension_numbers = #tpu.dot_dimension_numbers<[1], [0], [0], [1], [0, 0, 1, 1], [], []>} : vector<16x512xbf16>, vector<512x128xbf16>, vector<16x128xf32> -> vector<16x128xf32>
    %c0_48 = arith.constant 0 : index
    %c0_49 = arith.constant 0 : index
    %c0_50 = arith.constant 0 : index
    %126 = vector.load %arg12[%c0_48, %c0_49, %c0_50] : memref<4x1x128xf32, #tpu.memory_space<vmem>>, vector<1x1x128xf32>
    %127 = vector.shape_cast %126 : vector<1x1x128xf32> to vector<1x128xf32>
    %128 = vector.broadcast %127 : vector<1x128xf32> to vector<16x128xf32>
    %129 = arith.addf %125, %128 : vector<16x128xf32>
    %130 = arith.addf %100, %129 : vector<16x128xf32>
    %c0_51 = arith.constant 0 : index
    %c0_52 = arith.constant 0 : index
    %c0_53 = arith.constant 0 : index
    %131 = vector.load %arg13[%c0_51, %c0_52, %c0_53] : memref<4x1x128xf32, #tpu.memory_space<vmem>>, vector<1x1x128xf32>
    %132 = vector.shape_cast %131 : vector<1x1x128xf32> to vector<1x128xf32>
    %c0_54 = arith.constant 0 : index
    %c0_55 = arith.constant 0 : index
    %c0_56 = arith.constant 0 : index
    %133 = vector.load %arg14[%c0_54, %c0_55, %c0_56] : memref<4x1x128xf32, #tpu.memory_space<vmem>>, vector<1x1x128xf32>
    %134 = vector.shape_cast %133 : vector<1x1x128xf32> to vector<1x128xf32>
    %cst_57 = arith.constant dense<0.000000e+00> : vector<16xf32>
    %135 = vector.multi_reduction <add>, %130, %cst_57 [1] : vector<16x128xf32> to vector<16xf32>
    %136 = vector.shape_cast %135 : vector<16xf32> to vector<16x1xf32>
    %cst_58 = arith.constant 1.280000e+02 : f32
    %137 = vector.broadcast %cst_58 : f32 to vector<16x1xf32>
    %138 = arith.divf %136, %137 : vector<16x1xf32>
    %139 = vector.broadcast %138 : vector<16x1xf32> to vector<16x128xf32>
    %140 = arith.subf %130, %139 : vector<16x128xf32>
    %141 = arith.mulf %140, %140 : vector<16x128xf32>
    %cst_59 = arith.constant dense<0.000000e+00> : vector<16xf32>
    %142 = vector.multi_reduction <add>, %141, %cst_59 [1] : vector<16x128xf32> to vector<16xf32>
    %143 = vector.shape_cast %142 : vector<16xf32> to vector<16x1xf32>
    %cst_60 = arith.constant 1.280000e+02 : f32
    %144 = vector.broadcast %cst_60 : f32 to vector<16x1xf32>
    %145 = arith.divf %143, %144 : vector<16x1xf32>
    %146 = vector.broadcast %138 : vector<16x1xf32> to vector<16x128xf32>
    %147 = arith.subf %130, %146 : vector<16x128xf32>
    %cst_61 = arith.constant 9.99999996E-13 : f32
    %148 = vector.broadcast %cst_61 : f32 to vector<16x1xf32>
    %149 = arith.addf %145, %148 : vector<16x1xf32>
    %150 = math.rsqrt %149 : vector<16x1xf32>
    %151 = vector.broadcast %150 : vector<16x1xf32> to vector<16x128xf32>
    %152 = arith.mulf %147, %151 : vector<16x128xf32>
    %153 = vector.broadcast %132 : vector<1x128xf32> to vector<16x128xf32>
    %154 = arith.mulf %152, %153 : vector<16x128xf32>
    %155 = vector.broadcast %134 : vector<1x128xf32> to vector<16x128xf32>
    %156 = arith.addf %154, %155 : vector<16x128xf32>
    %157 = vector.extract_strided_slice %156 {offsets = [0, 0], sizes = [1, 128], strides = [1, 1]} : vector<16x128xf32> to vector<1x128xf32>
    %158 = vector.extract_strided_slice %156 {offsets = [8, 0], sizes = [1, 128], strides = [1, 1]} : vector<16x128xf32> to vector<1x128xf32>
    %159 = tpu.concatenate %157, %158 in 0 : vector<1x128xf32>, vector<1x128xf32> -> vector<2x128xf32>
    %160 = arith.truncf %156 : vector<16x128xf32> to vector<16x128xbf16>
    %c1 = arith.constant 1 : index
    %c0_62 = arith.constant 0 : index
    %c0_63 = arith.constant 0 : index
    %161 = vector.load %arg3[%c1, %c0_62, %c0_63] : memref<4x128x384xbf16, #tpu.memory_space<vmem>>, vector<1x128x384xbf16>
    %162 = vector.shape_cast %161 : vector<1x128x384xbf16> to vector<128x384xbf16>
    %cst_64 = arith.constant dense<0.000000e+00> : vector<16x384xf32>
    %163 = tpu.matmul %160, %162, %cst_64 {dimension_numbers = #tpu.dot_dimension_numbers<[1], [0], [0], [1], [0, 0, 1, 1], [], []>} : vector<16x128xbf16>, vector<128x384xbf16>, vector<16x384xf32> -> vector<16x384xf32>
    %c1_65 = arith.constant 1 : index
    %c0_66 = arith.constant 0 : index
    %c0_67 = arith.constant 0 : index
    %164 = vector.load %arg4[%c1_65, %c0_66, %c0_67] : memref<4x1x384xf32, #tpu.memory_space<vmem>>, vector<1x1x384xf32>
    %165 = vector.shape_cast %164 : vector<1x1x384xf32> to vector<1x384xf32>
    %166 = vector.broadcast %165 : vector<1x384xf32> to vector<16x384xf32>
    %167 = arith.addf %163, %166 : vector<16x384xf32>
    %168 = vector.extract_strided_slice %167 {offsets = [0, 0], sizes = [16, 128], strides = [1, 1]} : vector<16x384xf32> to vector<16x128xf32>
    %169 = arith.truncf %168 : vector<16x128xf32> to vector<16x128xbf16>
    %170 = vector.extract_strided_slice %167 {offsets = [0, 128], sizes = [16, 128], strides = [1, 1]} : vector<16x384xf32> to vector<16x128xf32>
    %171 = arith.truncf %170 : vector<16x128xf32> to vector<16x128xbf16>
    %172 = vector.extract_strided_slice %167 {offsets = [0, 256], sizes = [16, 128], strides = [1, 1]} : vector<16x384xf32> to vector<16x128xf32>
    %173 = arith.truncf %172 : vector<16x128xf32> to vector<16x128xbf16>
    %174 = vector.shape_cast %169 : vector<16x128xbf16> to vector<2x8x128xbf16>
    %175 = vector.extract_strided_slice %174 {offsets = [0, 0, 0], sizes = [2, 8, 32], strides = [1, 1, 1]} : vector<2x8x128xbf16> to vector<2x8x32xbf16>
    %176 = vector.extract_strided_slice %174 {offsets = [0, 0, 32], sizes = [2, 8, 32], strides = [1, 1, 1]} : vector<2x8x128xbf16> to vector<2x8x32xbf16>
    %177 = vector.extract_strided_slice %174 {offsets = [0, 0, 64], sizes = [2, 8, 32], strides = [1, 1, 1]} : vector<2x8x128xbf16> to vector<2x8x32xbf16>
    %178 = vector.extract_strided_slice %174 {offsets = [0, 0, 96], sizes = [2, 8, 32], strides = [1, 1, 1]} : vector<2x8x128xbf16> to vector<2x8x32xbf16>
    %179 = tpu.concatenate %175, %176, %177, %178 in 0 : vector<2x8x32xbf16>, vector<2x8x32xbf16>, vector<2x8x32xbf16>, vector<2x8x32xbf16> -> vector<8x8x32xbf16>
    %180 = vector.shape_cast %171 : vector<16x128xbf16> to vector<2x8x128xbf16>
    %181 = vector.extract_strided_slice %180 {offsets = [0, 0, 0], sizes = [2, 8, 32], strides = [1, 1, 1]} : vector<2x8x128xbf16> to vector<2x8x32xbf16>
    %182 = vector.extract_strided_slice %180 {offsets = [0, 0, 32], sizes = [2, 8, 32], strides = [1, 1, 1]} : vector<2x8x128xbf16> to vector<2x8x32xbf16>
    %183 = vector.extract_strided_slice %180 {offsets = [0, 0, 64], sizes = [2, 8, 32], strides = [1, 1, 1]} : vector<2x8x128xbf16> to vector<2x8x32xbf16>
    %184 = vector.extract_strided_slice %180 {offsets = [0, 0, 96], sizes = [2, 8, 32], strides = [1, 1, 1]} : vector<2x8x128xbf16> to vector<2x8x32xbf16>
    %185 = tpu.concatenate %181, %182, %183, %184 in 0 : vector<2x8x32xbf16>, vector<2x8x32xbf16>, vector<2x8x32xbf16>, vector<2x8x32xbf16> -> vector<8x8x32xbf16>
    %186 = vector.shape_cast %173 : vector<16x128xbf16> to vector<2x8x128xbf16>
    %187 = vector.extract_strided_slice %186 {offsets = [0, 0, 0], sizes = [2, 8, 32], strides = [1, 1, 1]} : vector<2x8x128xbf16> to vector<2x8x32xbf16>
    %188 = vector.extract_strided_slice %186 {offsets = [0, 0, 32], sizes = [2, 8, 32], strides = [1, 1, 1]} : vector<2x8x128xbf16> to vector<2x8x32xbf16>
    %189 = vector.extract_strided_slice %186 {offsets = [0, 0, 64], sizes = [2, 8, 32], strides = [1, 1, 1]} : vector<2x8x128xbf16> to vector<2x8x32xbf16>
    %190 = vector.extract_strided_slice %186 {offsets = [0, 0, 96], sizes = [2, 8, 32], strides = [1, 1, 1]} : vector<2x8x128xbf16> to vector<2x8x32xbf16>
    %191 = tpu.concatenate %187, %188, %189, %190 in 0 : vector<2x8x32xbf16>, vector<2x8x32xbf16>, vector<2x8x32xbf16>, vector<2x8x32xbf16> -> vector<8x8x32xbf16>
    "tpu.trace_start"() <{level = 10 : i32, message = "gqd,gkd->gqk"}> : () -> ()
    %cst_68 = arith.constant dense<0.000000e+00> : vector<8x8x8xf32>
    %192 = tpu.matmul %179, %185, %cst_68 {dimension_numbers = #tpu.dot_dimension_numbers<[2], [2], [1], [1], [0, 0, 0, 1, 1, 1], [0], [0]>} : vector<8x8x32xbf16>, vector<8x8x32xbf16>, vector<8x8x8xf32> -> vector<8x8x8xf32>
    "tpu.trace_stop"() : () -> ()
    %193 = arith.addf %192, %8 : vector<8x8x8xf32>
    %cst_69 = arith.constant dense<0xFF800000> : vector<8x8xf32>
    %194 = vector.multi_reduction <maximumf>, %193, %cst_69 [2] : vector<8x8x8xf32> to vector<8x8xf32>
    %195 = vector.shape_cast %194 : vector<8x8xf32> to vector<8x8x1xf32>
    %196 = vector.broadcast %195 : vector<8x8x1xf32> to vector<8x8x8xf32>
    %197 = arith.subf %193, %196 : vector<8x8x8xf32>
    %198 = math.exp %197 : vector<8x8x8xf32>
    %cst_70 = arith.constant dense<0.000000e+00> : vector<8x8xf32>
    %199 = vector.multi_reduction <add>, %198, %cst_70 [2] : vector<8x8x8xf32> to vector<8x8xf32>
    %200 = vector.shape_cast %199 : vector<8x8xf32> to vector<8x8x1xf32>
    %201 = tpu.reciprocal %200 {approx = true} : vector<8x8x1xf32> -> vector<8x8x1xf32>
    %202 = vector.broadcast %201 : vector<8x8x1xf32> to vector<8x8x8xf32>
    %203 = arith.mulf %198, %202 : vector<8x8x8xf32>
    %204 = arith.truncf %203 : vector<8x8x8xf32> to vector<8x8x8xbf16>
    "tpu.trace_start"() <{level = 10 : i32, message = "gqk,gkd->gqd"}> : () -> ()
    %cst_71 = arith.constant dense<0.000000e+00> : vector<8x8x32xf32>
    %205 = tpu.matmul %204, %191, %cst_71 {dimension_numbers = #tpu.dot_dimension_numbers<[2], [1], [1], [2], [0, 0, 0, 1, 1, 2], [0], [0]>} : vector<8x8x8xbf16>, vector<8x8x32xbf16>, vector<8x8x32xf32> -> vector<8x8x32xf32>
    "tpu.trace_stop"() : () -> ()
    %206 = vector.shape_cast %205 : vector<8x8x32xf32> to vector<4x2x8x32xf32>
    %207 = vector.extract_strided_slice %206 {offsets = [0, 0, 0, 0], sizes = [1, 2, 8, 32], strides = [1, 1, 1, 1]} : vector<4x2x8x32xf32> to vector<1x2x8x32xf32>
    %208 = vector.shape_cast %207 : vector<1x2x8x32xf32> to vector<2x8x32xf32>
    %209 = vector.extract_strided_slice %206 {offsets = [1, 0, 0, 0], sizes = [1, 2, 8, 32], strides = [1, 1, 1, 1]} : vector<4x2x8x32xf32> to vector<1x2x8x32xf32>
    %210 = vector.shape_cast %209 : vector<1x2x8x32xf32> to vector<2x8x32xf32>
    %211 = vector.extract_strided_slice %206 {offsets = [2, 0, 0, 0], sizes = [1, 2, 8, 32], strides = [1, 1, 1, 1]} : vector<4x2x8x32xf32> to vector<1x2x8x32xf32>
    %212 = vector.shape_cast %211 : vector<1x2x8x32xf32> to vector<2x8x32xf32>
    %213 = vector.extract_strided_slice %206 {offsets = [3, 0, 0, 0], sizes = [1, 2, 8, 32], strides = [1, 1, 1, 1]} : vector<4x2x8x32xf32> to vector<1x2x8x32xf32>
    %214 = vector.shape_cast %213 : vector<1x2x8x32xf32> to vector<2x8x32xf32>
    %215 = tpu.concatenate %208, %210, %212, %214 in 2 : vector<2x8x32xf32>, vector<2x8x32xf32>, vector<2x8x32xf32>, vector<2x8x32xf32> -> vector<2x8x128xf32>
    %216 = vector.shape_cast %215 : vector<2x8x128xf32> to vector<16x128xf32>
    %217 = arith.truncf %216 : vector<16x128xf32> to vector<16x128xbf16>
    %c1_72 = arith.constant 1 : index
    %c0_73 = arith.constant 0 : index
    %c0_74 = arith.constant 0 : index
    %218 = vector.load %arg5[%c1_72, %c0_73, %c0_74] : memref<4x128x128xbf16, #tpu.memory_space<vmem>>, vector<1x128x128xbf16>
    %219 = vector.shape_cast %218 : vector<1x128x128xbf16> to vector<128x128xbf16>
    %cst_75 = arith.constant dense<0.000000e+00> : vector<16x128xf32>
    %220 = tpu.matmul %217, %219, %cst_75 {dimension_numbers = #tpu.dot_dimension_numbers<[1], [0], [0], [1], [0, 0, 1, 1], [], []>} : vector<16x128xbf16>, vector<128x128xbf16>, vector<16x128xf32> -> vector<16x128xf32>
    %c1_76 = arith.constant 1 : index
    %c0_77 = arith.constant 0 : index
    %c0_78 = arith.constant 0 : index
    %221 = vector.load %arg6[%c1_76, %c0_77, %c0_78] : memref<4x1x128xf32, #tpu.memory_space<vmem>>, vector<1x1x128xf32>
    %222 = vector.shape_cast %221 : vector<1x1x128xf32> to vector<1x128xf32>
    %223 = vector.broadcast %222 : vector<1x128xf32> to vector<16x128xf32>
    %224 = arith.addf %220, %223 : vector<16x128xf32>
    %225 = arith.addf %156, %224 : vector<16x128xf32>
    %c1_79 = arith.constant 1 : index
    %c0_80 = arith.constant 0 : index
    %c0_81 = arith.constant 0 : index
    %226 = vector.load %arg7[%c1_79, %c0_80, %c0_81] : memref<4x1x128xf32, #tpu.memory_space<vmem>>, vector<1x1x128xf32>
    %227 = vector.shape_cast %226 : vector<1x1x128xf32> to vector<1x128xf32>
    %c1_82 = arith.constant 1 : index
    %c0_83 = arith.constant 0 : index
    %c0_84 = arith.constant 0 : index
    %228 = vector.load %arg8[%c1_82, %c0_83, %c0_84] : memref<4x1x128xf32, #tpu.memory_space<vmem>>, vector<1x1x128xf32>
    %229 = vector.shape_cast %228 : vector<1x1x128xf32> to vector<1x128xf32>
    %cst_85 = arith.constant dense<0.000000e+00> : vector<16xf32>
    %230 = vector.multi_reduction <add>, %225, %cst_85 [1] : vector<16x128xf32> to vector<16xf32>
    %231 = vector.shape_cast %230 : vector<16xf32> to vector<16x1xf32>
    %cst_86 = arith.constant 1.280000e+02 : f32
    %232 = vector.broadcast %cst_86 : f32 to vector<16x1xf32>
    %233 = arith.divf %231, %232 : vector<16x1xf32>
    %234 = vector.broadcast %233 : vector<16x1xf32> to vector<16x128xf32>
    %235 = arith.subf %225, %234 : vector<16x128xf32>
    %236 = arith.mulf %235, %235 : vector<16x128xf32>
    %cst_87 = arith.constant dense<0.000000e+00> : vector<16xf32>
    %237 = vector.multi_reduction <add>, %236, %cst_87 [1] : vector<16x128xf32> to vector<16xf32>
    %238 = vector.shape_cast %237 : vector<16xf32> to vector<16x1xf32>
    %cst_88 = arith.constant 1.280000e+02 : f32
    %239 = vector.broadcast %cst_88 : f32 to vector<16x1xf32>
    %240 = arith.divf %238, %239 : vector<16x1xf32>
    %241 = vector.broadcast %233 : vector<16x1xf32> to vector<16x128xf32>
    %242 = arith.subf %225, %241 : vector<16x128xf32>
    %cst_89 = arith.constant 9.99999996E-13 : f32
    %243 = vector.broadcast %cst_89 : f32 to vector<16x1xf32>
    %244 = arith.addf %240, %243 : vector<16x1xf32>
    %245 = math.rsqrt %244 : vector<16x1xf32>
    %246 = vector.broadcast %245 : vector<16x1xf32> to vector<16x128xf32>
    %247 = arith.mulf %242, %246 : vector<16x128xf32>
    %248 = vector.broadcast %227 : vector<1x128xf32> to vector<16x128xf32>
    %249 = arith.mulf %247, %248 : vector<16x128xf32>
    %250 = vector.broadcast %229 : vector<1x128xf32> to vector<16x128xf32>
    %251 = arith.addf %249, %250 : vector<16x128xf32>
    %252 = arith.truncf %251 : vector<16x128xf32> to vector<16x128xbf16>
    %c1_90 = arith.constant 1 : index
    %c0_91 = arith.constant 0 : index
    %c0_92 = arith.constant 0 : index
    %253 = vector.load %arg9[%c1_90, %c0_91, %c0_92] : memref<4x128x512xbf16, #tpu.memory_space<vmem>>, vector<1x128x512xbf16>
    %254 = vector.shape_cast %253 : vector<1x128x512xbf16> to vector<128x512xbf16>
    %cst_93 = arith.constant dense<0.000000e+00> : vector<16x512xf32>
    %255 = tpu.matmul %252, %254, %cst_93 {dimension_numbers = #tpu.dot_dimension_numbers<[1], [0], [0], [1], [0, 0, 1, 1], [], []>} : vector<16x128xbf16>, vector<128x512xbf16>, vector<16x512xf32> -> vector<16x512xf32>
    %c1_94 = arith.constant 1 : index
    %c0_95 = arith.constant 0 : index
    %c0_96 = arith.constant 0 : index
    %256 = vector.load %arg10[%c1_94, %c0_95, %c0_96] : memref<4x1x512xf32, #tpu.memory_space<vmem>>, vector<1x1x512xf32>
    %257 = vector.shape_cast %256 : vector<1x1x512xf32> to vector<1x512xf32>
    %258 = vector.broadcast %257 : vector<1x512xf32> to vector<16x512xf32>
    %259 = arith.addf %255, %258 : vector<16x512xf32>
    %cst_97 = arith.constant 5.000000e-01 : f32
    %260 = vector.broadcast %cst_97 : f32 to vector<16x512xf32>
    %261 = arith.mulf %260, %259 : vector<16x512xf32>
    %cst_98 = arith.constant 4.471500e-02 : f32
    %262 = vector.broadcast %cst_98 : f32 to vector<16x512xf32>
    %263 = arith.mulf %262, %259 : vector<16x512xf32>
    %264 = arith.mulf %263, %259 : vector<16x512xf32>
    %265 = arith.mulf %264, %259 : vector<16x512xf32>
    %266 = arith.addf %259, %265 : vector<16x512xf32>
    %cst_99 = arith.constant 0.797884583 : f32
    %267 = vector.broadcast %cst_99 : f32 to vector<16x512xf32>
    %268 = arith.mulf %267, %266 : vector<16x512xf32>
    %269 = math.tanh %268 : vector<16x512xf32>
    %cst_100 = arith.constant 1.000000e+00 : f32
    %270 = vector.broadcast %cst_100 : f32 to vector<16x512xf32>
    %271 = arith.addf %270, %269 : vector<16x512xf32>
    %272 = arith.mulf %261, %271 : vector<16x512xf32>
    %273 = arith.truncf %272 : vector<16x512xf32> to vector<16x512xbf16>
    %c1_101 = arith.constant 1 : index
    %c0_102 = arith.constant 0 : index
    %c0_103 = arith.constant 0 : index
    %274 = vector.load %arg11[%c1_101, %c0_102, %c0_103] : memref<4x512x128xbf16, #tpu.memory_space<vmem>>, vector<1x512x128xbf16>
    %275 = vector.shape_cast %274 : vector<1x512x128xbf16> to vector<512x128xbf16>
    %cst_104 = arith.constant dense<0.000000e+00> : vector<16x128xf32>
    %276 = tpu.matmul %273, %275, %cst_104 {dimension_numbers = #tpu.dot_dimension_numbers<[1], [0], [0], [1], [0, 0, 1, 1], [], []>} : vector<16x512xbf16>, vector<512x128xbf16>, vector<16x128xf32> -> vector<16x128xf32>
    %c1_105 = arith.constant 1 : index
    %c0_106 = arith.constant 0 : index
    %c0_107 = arith.constant 0 : index
    %277 = vector.load %arg12[%c1_105, %c0_106, %c0_107] : memref<4x1x128xf32, #tpu.memory_space<vmem>>, vector<1x1x128xf32>
    %278 = vector.shape_cast %277 : vector<1x1x128xf32> to vector<1x128xf32>
    %279 = vector.broadcast %278 : vector<1x128xf32> to vector<16x128xf32>
    %280 = arith.addf %276, %279 : vector<16x128xf32>
    %281 = arith.addf %251, %280 : vector<16x128xf32>
    %c1_108 = arith.constant 1 : index
    %c0_109 = arith.constant 0 : index
    %c0_110 = arith.constant 0 : index
    %282 = vector.load %arg13[%c1_108, %c0_109, %c0_110] : memref<4x1x128xf32, #tpu.memory_space<vmem>>, vector<1x1x128xf32>
    %283 = vector.shape_cast %282 : vector<1x1x128xf32> to vector<1x128xf32>
    %c1_111 = arith.constant 1 : index
    %c0_112 = arith.constant 0 : index
    %c0_113 = arith.constant 0 : index
    %284 = vector.load %arg14[%c1_111, %c0_112, %c0_113] : memref<4x1x128xf32, #tpu.memory_space<vmem>>, vector<1x1x128xf32>
    %285 = vector.shape_cast %284 : vector<1x1x128xf32> to vector<1x128xf32>
    %cst_114 = arith.constant dense<0.000000e+00> : vector<16xf32>
    %286 = vector.multi_reduction <add>, %281, %cst_114 [1] : vector<16x128xf32> to vector<16xf32>
    %287 = vector.shape_cast %286 : vector<16xf32> to vector<16x1xf32>
    %cst_115 = arith.constant 1.280000e+02 : f32
    %288 = vector.broadcast %cst_115 : f32 to vector<16x1xf32>
    %289 = arith.divf %287, %288 : vector<16x1xf32>
    %290 = vector.broadcast %289 : vector<16x1xf32> to vector<16x128xf32>
    %291 = arith.subf %281, %290 : vector<16x128xf32>
    %292 = arith.mulf %291, %291 : vector<16x128xf32>
    %cst_116 = arith.constant dense<0.000000e+00> : vector<16xf32>
    %293 = vector.multi_reduction <add>, %292, %cst_116 [1] : vector<16x128xf32> to vector<16xf32>
    %294 = vector.shape_cast %293 : vector<16xf32> to vector<16x1xf32>
    %cst_117 = arith.constant 1.280000e+02 : f32
    %295 = vector.broadcast %cst_117 : f32 to vector<16x1xf32>
    %296 = arith.divf %294, %295 : vector<16x1xf32>
    %297 = vector.broadcast %289 : vector<16x1xf32> to vector<16x128xf32>
    %298 = arith.subf %281, %297 : vector<16x128xf32>
    %cst_118 = arith.constant 9.99999996E-13 : f32
    %299 = vector.broadcast %cst_118 : f32 to vector<16x1xf32>
    %300 = arith.addf %296, %299 : vector<16x1xf32>
    %301 = math.rsqrt %300 : vector<16x1xf32>
    %302 = vector.broadcast %301 : vector<16x1xf32> to vector<16x128xf32>
    %303 = arith.mulf %298, %302 : vector<16x128xf32>
    %304 = vector.broadcast %283 : vector<1x128xf32> to vector<16x128xf32>
    %305 = arith.mulf %303, %304 : vector<16x128xf32>
    %306 = vector.broadcast %285 : vector<1x128xf32> to vector<16x128xf32>
    %307 = arith.addf %305, %306 : vector<16x128xf32>
    %308 = vector.extract_strided_slice %307 {offsets = [0, 0], sizes = [1, 128], strides = [1, 1]} : vector<16x128xf32> to vector<1x128xf32>
    %309 = vector.extract_strided_slice %307 {offsets = [8, 0], sizes = [1, 128], strides = [1, 1]} : vector<16x128xf32> to vector<1x128xf32>
    %310 = tpu.concatenate %308, %309 in 0 : vector<1x128xf32>, vector<1x128xf32> -> vector<2x128xf32>
    %311 = arith.truncf %307 : vector<16x128xf32> to vector<16x128xbf16>
    %c2 = arith.constant 2 : index
    %c0_119 = arith.constant 0 : index
    %c0_120 = arith.constant 0 : index
    %312 = vector.load %arg3[%c2, %c0_119, %c0_120] : memref<4x128x384xbf16, #tpu.memory_space<vmem>>, vector<1x128x384xbf16>
    %313 = vector.shape_cast %312 : vector<1x128x384xbf16> to vector<128x384xbf16>
    %cst_121 = arith.constant dense<0.000000e+00> : vector<16x384xf32>
    %314 = tpu.matmul %311, %313, %cst_121 {dimension_numbers = #tpu.dot_dimension_numbers<[1], [0], [0], [1], [0, 0, 1, 1], [], []>} : vector<16x128xbf16>, vector<128x384xbf16>, vector<16x384xf32> -> vector<16x384xf32>
    %c2_122 = arith.constant 2 : index
    %c0_123 = arith.constant 0 : index
    %c0_124 = arith.constant 0 : index
    %315 = vector.load %arg4[%c2_122, %c0_123, %c0_124] : memref<4x1x384xf32, #tpu.memory_space<vmem>>, vector<1x1x384xf32>
    %316 = vector.shape_cast %315 : vector<1x1x384xf32> to vector<1x384xf32>
    %317 = vector.broadcast %316 : vector<1x384xf32> to vector<16x384xf32>
    %318 = arith.addf %314, %317 : vector<16x384xf32>
    %319 = vector.extract_strided_slice %318 {offsets = [0, 0], sizes = [16, 128], strides = [1, 1]} : vector<16x384xf32> to vector<16x128xf32>
    %320 = arith.truncf %319 : vector<16x128xf32> to vector<16x128xbf16>
    %321 = vector.extract_strided_slice %318 {offsets = [0, 128], sizes = [16, 128], strides = [1, 1]} : vector<16x384xf32> to vector<16x128xf32>
    %322 = arith.truncf %321 : vector<16x128xf32> to vector<16x128xbf16>
    %323 = vector.extract_strided_slice %318 {offsets = [0, 256], sizes = [16, 128], strides = [1, 1]} : vector<16x384xf32> to vector<16x128xf32>
    %324 = arith.truncf %323 : vector<16x128xf32> to vector<16x128xbf16>
    %325 = vector.shape_cast %320 : vector<16x128xbf16> to vector<2x8x128xbf16>
    %326 = vector.extract_strided_slice %325 {offsets = [0, 0, 0], sizes = [2, 8, 32], strides = [1, 1, 1]} : vector<2x8x128xbf16> to vector<2x8x32xbf16>
    %327 = vector.extract_strided_slice %325 {offsets = [0, 0, 32], sizes = [2, 8, 32], strides = [1, 1, 1]} : vector<2x8x128xbf16> to vector<2x8x32xbf16>
    %328 = vector.extract_strided_slice %325 {offsets = [0, 0, 64], sizes = [2, 8, 32], strides = [1, 1, 1]} : vector<2x8x128xbf16> to vector<2x8x32xbf16>
    %329 = vector.extract_strided_slice %325 {offsets = [0, 0, 96], sizes = [2, 8, 32], strides = [1, 1, 1]} : vector<2x8x128xbf16> to vector<2x8x32xbf16>
    %330 = tpu.concatenate %326, %327, %328, %329 in 0 : vector<2x8x32xbf16>, vector<2x8x32xbf16>, vector<2x8x32xbf16>, vector<2x8x32xbf16> -> vector<8x8x32xbf16>
    %331 = vector.shape_cast %322 : vector<16x128xbf16> to vector<2x8x128xbf16>
    %332 = vector.extract_strided_slice %331 {offsets = [0, 0, 0], sizes = [2, 8, 32], strides = [1, 1, 1]} : vector<2x8x128xbf16> to vector<2x8x32xbf16>
    %333 = vector.extract_strided_slice %331 {offsets = [0, 0, 32], sizes = [2, 8, 32], strides = [1, 1, 1]} : vector<2x8x128xbf16> to vector<2x8x32xbf16>
    %334 = vector.extract_strided_slice %331 {offsets = [0, 0, 64], sizes = [2, 8, 32], strides = [1, 1, 1]} : vector<2x8x128xbf16> to vector<2x8x32xbf16>
    %335 = vector.extract_strided_slice %331 {offsets = [0, 0, 96], sizes = [2, 8, 32], strides = [1, 1, 1]} : vector<2x8x128xbf16> to vector<2x8x32xbf16>
    %336 = tpu.concatenate %332, %333, %334, %335 in 0 : vector<2x8x32xbf16>, vector<2x8x32xbf16>, vector<2x8x32xbf16>, vector<2x8x32xbf16> -> vector<8x8x32xbf16>
    %337 = vector.shape_cast %324 : vector<16x128xbf16> to vector<2x8x128xbf16>
    %338 = vector.extract_strided_slice %337 {offsets = [0, 0, 0], sizes = [2, 8, 32], strides = [1, 1, 1]} : vector<2x8x128xbf16> to vector<2x8x32xbf16>
    %339 = vector.extract_strided_slice %337 {offsets = [0, 0, 32], sizes = [2, 8, 32], strides = [1, 1, 1]} : vector<2x8x128xbf16> to vector<2x8x32xbf16>
    %340 = vector.extract_strided_slice %337 {offsets = [0, 0, 64], sizes = [2, 8, 32], strides = [1, 1, 1]} : vector<2x8x128xbf16> to vector<2x8x32xbf16>
    %341 = vector.extract_strided_slice %337 {offsets = [0, 0, 96], sizes = [2, 8, 32], strides = [1, 1, 1]} : vector<2x8x128xbf16> to vector<2x8x32xbf16>
    %342 = tpu.concatenate %338, %339, %340, %341 in 0 : vector<2x8x32xbf16>, vector<2x8x32xbf16>, vector<2x8x32xbf16>, vector<2x8x32xbf16> -> vector<8x8x32xbf16>
    "tpu.trace_start"() <{level = 10 : i32, message = "gqd,gkd->gqk"}> : () -> ()
    %cst_125 = arith.constant dense<0.000000e+00> : vector<8x8x8xf32>
    %343 = tpu.matmul %330, %336, %cst_125 {dimension_numbers = #tpu.dot_dimension_numbers<[2], [2], [1], [1], [0, 0, 0, 1, 1, 1], [0], [0]>} : vector<8x8x32xbf16>, vector<8x8x32xbf16>, vector<8x8x8xf32> -> vector<8x8x8xf32>
    "tpu.trace_stop"() : () -> ()
    %344 = arith.addf %343, %8 : vector<8x8x8xf32>
    %cst_126 = arith.constant dense<0xFF800000> : vector<8x8xf32>
    %345 = vector.multi_reduction <maximumf>, %344, %cst_126 [2] : vector<8x8x8xf32> to vector<8x8xf32>
    %346 = vector.shape_cast %345 : vector<8x8xf32> to vector<8x8x1xf32>
    %347 = vector.broadcast %346 : vector<8x8x1xf32> to vector<8x8x8xf32>
    %348 = arith.subf %344, %347 : vector<8x8x8xf32>
    %349 = math.exp %348 : vector<8x8x8xf32>
    %cst_127 = arith.constant dense<0.000000e+00> : vector<8x8xf32>
    %350 = vector.multi_reduction <add>, %349, %cst_127 [2] : vector<8x8x8xf32> to vector<8x8xf32>
    %351 = vector.shape_cast %350 : vector<8x8xf32> to vector<8x8x1xf32>
    %352 = tpu.reciprocal %351 {approx = true} : vector<8x8x1xf32> -> vector<8x8x1xf32>
    %353 = vector.broadcast %352 : vector<8x8x1xf32> to vector<8x8x8xf32>
    %354 = arith.mulf %349, %353 : vector<8x8x8xf32>
    %355 = arith.truncf %354 : vector<8x8x8xf32> to vector<8x8x8xbf16>
    "tpu.trace_start"() <{level = 10 : i32, message = "gqk,gkd->gqd"}> : () -> ()
    %cst_128 = arith.constant dense<0.000000e+00> : vector<8x8x32xf32>
    %356 = tpu.matmul %355, %342, %cst_128 {dimension_numbers = #tpu.dot_dimension_numbers<[2], [1], [1], [2], [0, 0, 0, 1, 1, 2], [0], [0]>} : vector<8x8x8xbf16>, vector<8x8x32xbf16>, vector<8x8x32xf32> -> vector<8x8x32xf32>
    "tpu.trace_stop"() : () -> ()
    %357 = vector.shape_cast %356 : vector<8x8x32xf32> to vector<4x2x8x32xf32>
    %358 = vector.extract_strided_slice %357 {offsets = [0, 0, 0, 0], sizes = [1, 2, 8, 32], strides = [1, 1, 1, 1]} : vector<4x2x8x32xf32> to vector<1x2x8x32xf32>
    %359 = vector.shape_cast %358 : vector<1x2x8x32xf32> to vector<2x8x32xf32>
    %360 = vector.extract_strided_slice %357 {offsets = [1, 0, 0, 0], sizes = [1, 2, 8, 32], strides = [1, 1, 1, 1]} : vector<4x2x8x32xf32> to vector<1x2x8x32xf32>
    %361 = vector.shape_cast %360 : vector<1x2x8x32xf32> to vector<2x8x32xf32>
    %362 = vector.extract_strided_slice %357 {offsets = [2, 0, 0, 0], sizes = [1, 2, 8, 32], strides = [1, 1, 1, 1]} : vector<4x2x8x32xf32> to vector<1x2x8x32xf32>
    %363 = vector.shape_cast %362 : vector<1x2x8x32xf32> to vector<2x8x32xf32>
    %364 = vector.extract_strided_slice %357 {offsets = [3, 0, 0, 0], sizes = [1, 2, 8, 32], strides = [1, 1, 1, 1]} : vector<4x2x8x32xf32> to vector<1x2x8x32xf32>
    %365 = vector.shape_cast %364 : vector<1x2x8x32xf32> to vector<2x8x32xf32>
    %366 = tpu.concatenate %359, %361, %363, %365 in 2 : vector<2x8x32xf32>, vector<2x8x32xf32>, vector<2x8x32xf32>, vector<2x8x32xf32> -> vector<2x8x128xf32>
    %367 = vector.shape_cast %366 : vector<2x8x128xf32> to vector<16x128xf32>
    %368 = arith.truncf %367 : vector<16x128xf32> to vector<16x128xbf16>
    %c2_129 = arith.constant 2 : index
    %c0_130 = arith.constant 0 : index
    %c0_131 = arith.constant 0 : index
    %369 = vector.load %arg5[%c2_129, %c0_130, %c0_131] : memref<4x128x128xbf16, #tpu.memory_space<vmem>>, vector<1x128x128xbf16>
    %370 = vector.shape_cast %369 : vector<1x128x128xbf16> to vector<128x128xbf16>
    %cst_132 = arith.constant dense<0.000000e+00> : vector<16x128xf32>
    %371 = tpu.matmul %368, %370, %cst_132 {dimension_numbers = #tpu.dot_dimension_numbers<[1], [0], [0], [1], [0, 0, 1, 1], [], []>} : vector<16x128xbf16>, vector<128x128xbf16>, vector<16x128xf32> -> vector<16x128xf32>
    %c2_133 = arith.constant 2 : index
    %c0_134 = arith.constant 0 : index
    %c0_135 = arith.constant 0 : index
    %372 = vector.load %arg6[%c2_133, %c0_134, %c0_135] : memref<4x1x128xf32, #tpu.memory_space<vmem>>, vector<1x1x128xf32>
    %373 = vector.shape_cast %372 : vector<1x1x128xf32> to vector<1x128xf32>
    %374 = vector.broadcast %373 : vector<1x128xf32> to vector<16x128xf32>
    %375 = arith.addf %371, %374 : vector<16x128xf32>
    %376 = arith.addf %307, %375 : vector<16x128xf32>
    %c2_136 = arith.constant 2 : index
    %c0_137 = arith.constant 0 : index
    %c0_138 = arith.constant 0 : index
    %377 = vector.load %arg7[%c2_136, %c0_137, %c0_138] : memref<4x1x128xf32, #tpu.memory_space<vmem>>, vector<1x1x128xf32>
    %378 = vector.shape_cast %377 : vector<1x1x128xf32> to vector<1x128xf32>
    %c2_139 = arith.constant 2 : index
    %c0_140 = arith.constant 0 : index
    %c0_141 = arith.constant 0 : index
    %379 = vector.load %arg8[%c2_139, %c0_140, %c0_141] : memref<4x1x128xf32, #tpu.memory_space<vmem>>, vector<1x1x128xf32>
    %380 = vector.shape_cast %379 : vector<1x1x128xf32> to vector<1x128xf32>
    %cst_142 = arith.constant dense<0.000000e+00> : vector<16xf32>
    %381 = vector.multi_reduction <add>, %376, %cst_142 [1] : vector<16x128xf32> to vector<16xf32>
    %382 = vector.shape_cast %381 : vector<16xf32> to vector<16x1xf32>
    %cst_143 = arith.constant 1.280000e+02 : f32
    %383 = vector.broadcast %cst_143 : f32 to vector<16x1xf32>
    %384 = arith.divf %382, %383 : vector<16x1xf32>
    %385 = vector.broadcast %384 : vector<16x1xf32> to vector<16x128xf32>
    %386 = arith.subf %376, %385 : vector<16x128xf32>
    %387 = arith.mulf %386, %386 : vector<16x128xf32>
    %cst_144 = arith.constant dense<0.000000e+00> : vector<16xf32>
    %388 = vector.multi_reduction <add>, %387, %cst_144 [1] : vector<16x128xf32> to vector<16xf32>
    %389 = vector.shape_cast %388 : vector<16xf32> to vector<16x1xf32>
    %cst_145 = arith.constant 1.280000e+02 : f32
    %390 = vector.broadcast %cst_145 : f32 to vector<16x1xf32>
    %391 = arith.divf %389, %390 : vector<16x1xf32>
    %392 = vector.broadcast %384 : vector<16x1xf32> to vector<16x128xf32>
    %393 = arith.subf %376, %392 : vector<16x128xf32>
    %cst_146 = arith.constant 9.99999996E-13 : f32
    %394 = vector.broadcast %cst_146 : f32 to vector<16x1xf32>
    %395 = arith.addf %391, %394 : vector<16x1xf32>
    %396 = math.rsqrt %395 : vector<16x1xf32>
    %397 = vector.broadcast %396 : vector<16x1xf32> to vector<16x128xf32>
    %398 = arith.mulf %393, %397 : vector<16x128xf32>
    %399 = vector.broadcast %378 : vector<1x128xf32> to vector<16x128xf32>
    %400 = arith.mulf %398, %399 : vector<16x128xf32>
    %401 = vector.broadcast %380 : vector<1x128xf32> to vector<16x128xf32>
    %402 = arith.addf %400, %401 : vector<16x128xf32>
    %403 = arith.truncf %402 : vector<16x128xf32> to vector<16x128xbf16>
    %c2_147 = arith.constant 2 : index
    %c0_148 = arith.constant 0 : index
    %c0_149 = arith.constant 0 : index
    %404 = vector.load %arg9[%c2_147, %c0_148, %c0_149] : memref<4x128x512xbf16, #tpu.memory_space<vmem>>, vector<1x128x512xbf16>
    %405 = vector.shape_cast %404 : vector<1x128x512xbf16> to vector<128x512xbf16>
    %cst_150 = arith.constant dense<0.000000e+00> : vector<16x512xf32>
    %406 = tpu.matmul %403, %405, %cst_150 {dimension_numbers = #tpu.dot_dimension_numbers<[1], [0], [0], [1], [0, 0, 1, 1], [], []>} : vector<16x128xbf16>, vector<128x512xbf16>, vector<16x512xf32> -> vector<16x512xf32>
    %c2_151 = arith.constant 2 : index
    %c0_152 = arith.constant 0 : index
    %c0_153 = arith.constant 0 : index
    %407 = vector.load %arg10[%c2_151, %c0_152, %c0_153] : memref<4x1x512xf32, #tpu.memory_space<vmem>>, vector<1x1x512xf32>
    %408 = vector.shape_cast %407 : vector<1x1x512xf32> to vector<1x512xf32>
    %409 = vector.broadcast %408 : vector<1x512xf32> to vector<16x512xf32>
    %410 = arith.addf %406, %409 : vector<16x512xf32>
    %cst_154 = arith.constant 5.000000e-01 : f32
    %411 = vector.broadcast %cst_154 : f32 to vector<16x512xf32>
    %412 = arith.mulf %411, %410 : vector<16x512xf32>
    %cst_155 = arith.constant 4.471500e-02 : f32
    %413 = vector.broadcast %cst_155 : f32 to vector<16x512xf32>
    %414 = arith.mulf %413, %410 : vector<16x512xf32>
    %415 = arith.mulf %414, %410 : vector<16x512xf32>
    %416 = arith.mulf %415, %410 : vector<16x512xf32>
    %417 = arith.addf %410, %416 : vector<16x512xf32>
    %cst_156 = arith.constant 0.797884583 : f32
    %418 = vector.broadcast %cst_156 : f32 to vector<16x512xf32>
    %419 = arith.mulf %418, %417 : vector<16x512xf32>
    %420 = math.tanh %419 : vector<16x512xf32>
    %cst_157 = arith.constant 1.000000e+00 : f32
    %421 = vector.broadcast %cst_157 : f32 to vector<16x512xf32>
    %422 = arith.addf %421, %420 : vector<16x512xf32>
    %423 = arith.mulf %412, %422 : vector<16x512xf32>
    %424 = arith.truncf %423 : vector<16x512xf32> to vector<16x512xbf16>
    %c2_158 = arith.constant 2 : index
    %c0_159 = arith.constant 0 : index
    %c0_160 = arith.constant 0 : index
    %425 = vector.load %arg11[%c2_158, %c0_159, %c0_160] : memref<4x512x128xbf16, #tpu.memory_space<vmem>>, vector<1x512x128xbf16>
    %426 = vector.shape_cast %425 : vector<1x512x128xbf16> to vector<512x128xbf16>
    %cst_161 = arith.constant dense<0.000000e+00> : vector<16x128xf32>
    %427 = tpu.matmul %424, %426, %cst_161 {dimension_numbers = #tpu.dot_dimension_numbers<[1], [0], [0], [1], [0, 0, 1, 1], [], []>} : vector<16x512xbf16>, vector<512x128xbf16>, vector<16x128xf32> -> vector<16x128xf32>
    %c2_162 = arith.constant 2 : index
    %c0_163 = arith.constant 0 : index
    %c0_164 = arith.constant 0 : index
    %428 = vector.load %arg12[%c2_162, %c0_163, %c0_164] : memref<4x1x128xf32, #tpu.memory_space<vmem>>, vector<1x1x128xf32>
    %429 = vector.shape_cast %428 : vector<1x1x128xf32> to vector<1x128xf32>
    %430 = vector.broadcast %429 : vector<1x128xf32> to vector<16x128xf32>
    %431 = arith.addf %427, %430 : vector<16x128xf32>
    %432 = arith.addf %402, %431 : vector<16x128xf32>
    %c2_165 = arith.constant 2 : index
    %c0_166 = arith.constant 0 : index
    %c0_167 = arith.constant 0 : index
    %433 = vector.load %arg13[%c2_165, %c0_166, %c0_167] : memref<4x1x128xf32, #tpu.memory_space<vmem>>, vector<1x1x128xf32>
    %434 = vector.shape_cast %433 : vector<1x1x128xf32> to vector<1x128xf32>
    %c2_168 = arith.constant 2 : index
    %c0_169 = arith.constant 0 : index
    %c0_170 = arith.constant 0 : index
    %435 = vector.load %arg14[%c2_168, %c0_169, %c0_170] : memref<4x1x128xf32, #tpu.memory_space<vmem>>, vector<1x1x128xf32>
    %436 = vector.shape_cast %435 : vector<1x1x128xf32> to vector<1x128xf32>
    %cst_171 = arith.constant dense<0.000000e+00> : vector<16xf32>
    %437 = vector.multi_reduction <add>, %432, %cst_171 [1] : vector<16x128xf32> to vector<16xf32>
    %438 = vector.shape_cast %437 : vector<16xf32> to vector<16x1xf32>
    %cst_172 = arith.constant 1.280000e+02 : f32
    %439 = vector.broadcast %cst_172 : f32 to vector<16x1xf32>
    %440 = arith.divf %438, %439 : vector<16x1xf32>
    %441 = vector.broadcast %440 : vector<16x1xf32> to vector<16x128xf32>
    %442 = arith.subf %432, %441 : vector<16x128xf32>
    %443 = arith.mulf %442, %442 : vector<16x128xf32>
    %cst_173 = arith.constant dense<0.000000e+00> : vector<16xf32>
    %444 = vector.multi_reduction <add>, %443, %cst_173 [1] : vector<16x128xf32> to vector<16xf32>
    %445 = vector.shape_cast %444 : vector<16xf32> to vector<16x1xf32>
    %cst_174 = arith.constant 1.280000e+02 : f32
    %446 = vector.broadcast %cst_174 : f32 to vector<16x1xf32>
    %447 = arith.divf %445, %446 : vector<16x1xf32>
    %448 = vector.broadcast %440 : vector<16x1xf32> to vector<16x128xf32>
    %449 = arith.subf %432, %448 : vector<16x128xf32>
    %cst_175 = arith.constant 9.99999996E-13 : f32
    %450 = vector.broadcast %cst_175 : f32 to vector<16x1xf32>
    %451 = arith.addf %447, %450 : vector<16x1xf32>
    %452 = math.rsqrt %451 : vector<16x1xf32>
    %453 = vector.broadcast %452 : vector<16x1xf32> to vector<16x128xf32>
    %454 = arith.mulf %449, %453 : vector<16x128xf32>
    %455 = vector.broadcast %434 : vector<1x128xf32> to vector<16x128xf32>
    %456 = arith.mulf %454, %455 : vector<16x128xf32>
    %457 = vector.broadcast %436 : vector<1x128xf32> to vector<16x128xf32>
    %458 = arith.addf %456, %457 : vector<16x128xf32>
    %459 = vector.extract_strided_slice %458 {offsets = [0, 0], sizes = [1, 128], strides = [1, 1]} : vector<16x128xf32> to vector<1x128xf32>
    %460 = vector.extract_strided_slice %458 {offsets = [8, 0], sizes = [1, 128], strides = [1, 1]} : vector<16x128xf32> to vector<1x128xf32>
    %461 = tpu.concatenate %459, %460 in 0 : vector<1x128xf32>, vector<1x128xf32> -> vector<2x128xf32>
    %462 = arith.truncf %458 : vector<16x128xf32> to vector<16x128xbf16>
    %c3 = arith.constant 3 : index
    %c0_176 = arith.constant 0 : index
    %c0_177 = arith.constant 0 : index
    %463 = vector.load %arg3[%c3, %c0_176, %c0_177] : memref<4x128x384xbf16, #tpu.memory_space<vmem>>, vector<1x128x384xbf16>
    %464 = vector.shape_cast %463 : vector<1x128x384xbf16> to vector<128x384xbf16>
    %cst_178 = arith.constant dense<0.000000e+00> : vector<16x384xf32>
    %465 = tpu.matmul %462, %464, %cst_178 {dimension_numbers = #tpu.dot_dimension_numbers<[1], [0], [0], [1], [0, 0, 1, 1], [], []>} : vector<16x128xbf16>, vector<128x384xbf16>, vector<16x384xf32> -> vector<16x384xf32>
    %c3_179 = arith.constant 3 : index
    %c0_180 = arith.constant 0 : index
    %c0_181 = arith.constant 0 : index
    %466 = vector.load %arg4[%c3_179, %c0_180, %c0_181] : memref<4x1x384xf32, #tpu.memory_space<vmem>>, vector<1x1x384xf32>
    %467 = vector.shape_cast %466 : vector<1x1x384xf32> to vector<1x384xf32>
    %468 = vector.broadcast %467 : vector<1x384xf32> to vector<16x384xf32>
    %469 = arith.addf %465, %468 : vector<16x384xf32>
    %470 = vector.extract_strided_slice %469 {offsets = [0, 0], sizes = [16, 128], strides = [1, 1]} : vector<16x384xf32> to vector<16x128xf32>
    %471 = arith.truncf %470 : vector<16x128xf32> to vector<16x128xbf16>
    %472 = vector.extract_strided_slice %469 {offsets = [0, 128], sizes = [16, 128], strides = [1, 1]} : vector<16x384xf32> to vector<16x128xf32>
    %473 = arith.truncf %472 : vector<16x128xf32> to vector<16x128xbf16>
    %474 = vector.extract_strided_slice %469 {offsets = [0, 256], sizes = [16, 128], strides = [1, 1]} : vector<16x384xf32> to vector<16x128xf32>
    %475 = arith.truncf %474 : vector<16x128xf32> to vector<16x128xbf16>
    %476 = vector.shape_cast %471 : vector<16x128xbf16> to vector<2x8x128xbf16>
    %477 = vector.extract_strided_slice %476 {offsets = [0, 0, 0], sizes = [2, 8, 32], strides = [1, 1, 1]} : vector<2x8x128xbf16> to vector<2x8x32xbf16>
    %478 = vector.extract_strided_slice %476 {offsets = [0, 0, 32], sizes = [2, 8, 32], strides = [1, 1, 1]} : vector<2x8x128xbf16> to vector<2x8x32xbf16>
    %479 = vector.extract_strided_slice %476 {offsets = [0, 0, 64], sizes = [2, 8, 32], strides = [1, 1, 1]} : vector<2x8x128xbf16> to vector<2x8x32xbf16>
    %480 = vector.extract_strided_slice %476 {offsets = [0, 0, 96], sizes = [2, 8, 32], strides = [1, 1, 1]} : vector<2x8x128xbf16> to vector<2x8x32xbf16>
    %481 = tpu.concatenate %477, %478, %479, %480 in 0 : vector<2x8x32xbf16>, vector<2x8x32xbf16>, vector<2x8x32xbf16>, vector<2x8x32xbf16> -> vector<8x8x32xbf16>
    %482 = vector.shape_cast %473 : vector<16x128xbf16> to vector<2x8x128xbf16>
    %483 = vector.extract_strided_slice %482 {offsets = [0, 0, 0], sizes = [2, 8, 32], strides = [1, 1, 1]} : vector<2x8x128xbf16> to vector<2x8x32xbf16>
    %484 = vector.extract_strided_slice %482 {offsets = [0, 0, 32], sizes = [2, 8, 32], strides = [1, 1, 1]} : vector<2x8x128xbf16> to vector<2x8x32xbf16>
    %485 = vector.extract_strided_slice %482 {offsets = [0, 0, 64], sizes = [2, 8, 32], strides = [1, 1, 1]} : vector<2x8x128xbf16> to vector<2x8x32xbf16>
    %486 = vector.extract_strided_slice %482 {offsets = [0, 0, 96], sizes = [2, 8, 32], strides = [1, 1, 1]} : vector<2x8x128xbf16> to vector<2x8x32xbf16>
    %487 = tpu.concatenate %483, %484, %485, %486 in 0 : vector<2x8x32xbf16>, vector<2x8x32xbf16>, vector<2x8x32xbf16>, vector<2x8x32xbf16> -> vector<8x8x32xbf16>
    %488 = vector.shape_cast %475 : vector<16x128xbf16> to vector<2x8x128xbf16>
    %489 = vector.extract_strided_slice %488 {offsets = [0, 0, 0], sizes = [2, 8, 32], strides = [1, 1, 1]} : vector<2x8x128xbf16> to vector<2x8x32xbf16>
    %490 = vector.extract_strided_slice %488 {offsets = [0, 0, 32], sizes = [2, 8, 32], strides = [1, 1, 1]} : vector<2x8x128xbf16> to vector<2x8x32xbf16>
    %491 = vector.extract_strided_slice %488 {offsets = [0, 0, 64], sizes = [2, 8, 32], strides = [1, 1, 1]} : vector<2x8x128xbf16> to vector<2x8x32xbf16>
    %492 = vector.extract_strided_slice %488 {offsets = [0, 0, 96], sizes = [2, 8, 32], strides = [1, 1, 1]} : vector<2x8x128xbf16> to vector<2x8x32xbf16>
    %493 = tpu.concatenate %489, %490, %491, %492 in 0 : vector<2x8x32xbf16>, vector<2x8x32xbf16>, vector<2x8x32xbf16>, vector<2x8x32xbf16> -> vector<8x8x32xbf16>
    "tpu.trace_start"() <{level = 10 : i32, message = "gqd,gkd->gqk"}> : () -> ()
    %cst_182 = arith.constant dense<0.000000e+00> : vector<8x8x8xf32>
    %494 = tpu.matmul %481, %487, %cst_182 {dimension_numbers = #tpu.dot_dimension_numbers<[2], [2], [1], [1], [0, 0, 0, 1, 1, 1], [0], [0]>} : vector<8x8x32xbf16>, vector<8x8x32xbf16>, vector<8x8x8xf32> -> vector<8x8x8xf32>
    "tpu.trace_stop"() : () -> ()
    %495 = arith.addf %494, %8 : vector<8x8x8xf32>
    %cst_183 = arith.constant dense<0xFF800000> : vector<8x8xf32>
    %496 = vector.multi_reduction <maximumf>, %495, %cst_183 [2] : vector<8x8x8xf32> to vector<8x8xf32>
    %497 = vector.shape_cast %496 : vector<8x8xf32> to vector<8x8x1xf32>
    %498 = vector.broadcast %497 : vector<8x8x1xf32> to vector<8x8x8xf32>
    %499 = arith.subf %495, %498 : vector<8x8x8xf32>
    %500 = math.exp %499 : vector<8x8x8xf32>
    %cst_184 = arith.constant dense<0.000000e+00> : vector<8x8xf32>
    %501 = vector.multi_reduction <add>, %500, %cst_184 [2] : vector<8x8x8xf32> to vector<8x8xf32>
    %502 = vector.shape_cast %501 : vector<8x8xf32> to vector<8x8x1xf32>
    %503 = tpu.reciprocal %502 {approx = true} : vector<8x8x1xf32> -> vector<8x8x1xf32>
    %504 = vector.broadcast %503 : vector<8x8x1xf32> to vector<8x8x8xf32>
    %505 = arith.mulf %500, %504 : vector<8x8x8xf32>
    %506 = arith.truncf %505 : vector<8x8x8xf32> to vector<8x8x8xbf16>
    "tpu.trace_start"() <{level = 10 : i32, message = "gqk,gkd->gqd"}> : () -> ()
    %cst_185 = arith.constant dense<0.000000e+00> : vector<8x8x32xf32>
    %507 = tpu.matmul %506, %493, %cst_185 {dimension_numbers = #tpu.dot_dimension_numbers<[2], [1], [1], [2], [0, 0, 0, 1, 1, 2], [0], [0]>} : vector<8x8x8xbf16>, vector<8x8x32xbf16>, vector<8x8x32xf32> -> vector<8x8x32xf32>
    "tpu.trace_stop"() : () -> ()
    %508 = vector.shape_cast %507 : vector<8x8x32xf32> to vector<4x2x8x32xf32>
    %509 = vector.extract_strided_slice %508 {offsets = [0, 0, 0, 0], sizes = [1, 2, 8, 32], strides = [1, 1, 1, 1]} : vector<4x2x8x32xf32> to vector<1x2x8x32xf32>
    %510 = vector.shape_cast %509 : vector<1x2x8x32xf32> to vector<2x8x32xf32>
    %511 = vector.extract_strided_slice %508 {offsets = [1, 0, 0, 0], sizes = [1, 2, 8, 32], strides = [1, 1, 1, 1]} : vector<4x2x8x32xf32> to vector<1x2x8x32xf32>
    %512 = vector.shape_cast %511 : vector<1x2x8x32xf32> to vector<2x8x32xf32>
    %513 = vector.extract_strided_slice %508 {offsets = [2, 0, 0, 0], sizes = [1, 2, 8, 32], strides = [1, 1, 1, 1]} : vector<4x2x8x32xf32> to vector<1x2x8x32xf32>
    %514 = vector.shape_cast %513 : vector<1x2x8x32xf32> to vector<2x8x32xf32>
    %515 = vector.extract_strided_slice %508 {offsets = [3, 0, 0, 0], sizes = [1, 2, 8, 32], strides = [1, 1, 1, 1]} : vector<4x2x8x32xf32> to vector<1x2x8x32xf32>
    %516 = vector.shape_cast %515 : vector<1x2x8x32xf32> to vector<2x8x32xf32>
    %517 = tpu.concatenate %510, %512, %514, %516 in 2 : vector<2x8x32xf32>, vector<2x8x32xf32>, vector<2x8x32xf32>, vector<2x8x32xf32> -> vector<2x8x128xf32>
    %518 = vector.shape_cast %517 : vector<2x8x128xf32> to vector<16x128xf32>
    %519 = arith.truncf %518 : vector<16x128xf32> to vector<16x128xbf16>
    %c3_186 = arith.constant 3 : index
    %c0_187 = arith.constant 0 : index
    %c0_188 = arith.constant 0 : index
    %520 = vector.load %arg5[%c3_186, %c0_187, %c0_188] : memref<4x128x128xbf16, #tpu.memory_space<vmem>>, vector<1x128x128xbf16>
    %521 = vector.shape_cast %520 : vector<1x128x128xbf16> to vector<128x128xbf16>
    %cst_189 = arith.constant dense<0.000000e+00> : vector<16x128xf32>
    %522 = tpu.matmul %519, %521, %cst_189 {dimension_numbers = #tpu.dot_dimension_numbers<[1], [0], [0], [1], [0, 0, 1, 1], [], []>} : vector<16x128xbf16>, vector<128x128xbf16>, vector<16x128xf32> -> vector<16x128xf32>
    %c3_190 = arith.constant 3 : index
    %c0_191 = arith.constant 0 : index
    %c0_192 = arith.constant 0 : index
    %523 = vector.load %arg6[%c3_190, %c0_191, %c0_192] : memref<4x1x128xf32, #tpu.memory_space<vmem>>, vector<1x1x128xf32>
    %524 = vector.shape_cast %523 : vector<1x1x128xf32> to vector<1x128xf32>
    %525 = vector.broadcast %524 : vector<1x128xf32> to vector<16x128xf32>
    %526 = arith.addf %522, %525 : vector<16x128xf32>
    %527 = arith.addf %458, %526 : vector<16x128xf32>
    %c3_193 = arith.constant 3 : index
    %c0_194 = arith.constant 0 : index
    %c0_195 = arith.constant 0 : index
    %528 = vector.load %arg7[%c3_193, %c0_194, %c0_195] : memref<4x1x128xf32, #tpu.memory_space<vmem>>, vector<1x1x128xf32>
    %529 = vector.shape_cast %528 : vector<1x1x128xf32> to vector<1x128xf32>
    %c3_196 = arith.constant 3 : index
    %c0_197 = arith.constant 0 : index
    %c0_198 = arith.constant 0 : index
    %530 = vector.load %arg8[%c3_196, %c0_197, %c0_198] : memref<4x1x128xf32, #tpu.memory_space<vmem>>, vector<1x1x128xf32>
    %531 = vector.shape_cast %530 : vector<1x1x128xf32> to vector<1x128xf32>
    %cst_199 = arith.constant dense<0.000000e+00> : vector<16xf32>
    %532 = vector.multi_reduction <add>, %527, %cst_199 [1] : vector<16x128xf32> to vector<16xf32>
    %533 = vector.shape_cast %532 : vector<16xf32> to vector<16x1xf32>
    %cst_200 = arith.constant 1.280000e+02 : f32
    %534 = vector.broadcast %cst_200 : f32 to vector<16x1xf32>
    %535 = arith.divf %533, %534 : vector<16x1xf32>
    %536 = vector.broadcast %535 : vector<16x1xf32> to vector<16x128xf32>
    %537 = arith.subf %527, %536 : vector<16x128xf32>
    %538 = arith.mulf %537, %537 : vector<16x128xf32>
    %cst_201 = arith.constant dense<0.000000e+00> : vector<16xf32>
    %539 = vector.multi_reduction <add>, %538, %cst_201 [1] : vector<16x128xf32> to vector<16xf32>
    %540 = vector.shape_cast %539 : vector<16xf32> to vector<16x1xf32>
    %cst_202 = arith.constant 1.280000e+02 : f32
    %541 = vector.broadcast %cst_202 : f32 to vector<16x1xf32>
    %542 = arith.divf %540, %541 : vector<16x1xf32>
    %543 = vector.broadcast %535 : vector<16x1xf32> to vector<16x128xf32>
    %544 = arith.subf %527, %543 : vector<16x128xf32>
    %cst_203 = arith.constant 9.99999996E-13 : f32
    %545 = vector.broadcast %cst_203 : f32 to vector<16x1xf32>
    %546 = arith.addf %542, %545 : vector<16x1xf32>
    %547 = math.rsqrt %546 : vector<16x1xf32>
    %548 = vector.broadcast %547 : vector<16x1xf32> to vector<16x128xf32>
    %549 = arith.mulf %544, %548 : vector<16x128xf32>
    %550 = vector.broadcast %529 : vector<1x128xf32> to vector<16x128xf32>
    %551 = arith.mulf %549, %550 : vector<16x128xf32>
    %552 = vector.broadcast %531 : vector<1x128xf32> to vector<16x128xf32>
    %553 = arith.addf %551, %552 : vector<16x128xf32>
    %554 = arith.truncf %553 : vector<16x128xf32> to vector<16x128xbf16>
    %c3_204 = arith.constant 3 : index
    %c0_205 = arith.constant 0 : index
    %c0_206 = arith.constant 0 : index
    %555 = vector.load %arg9[%c3_204, %c0_205, %c0_206] : memref<4x128x512xbf16, #tpu.memory_space<vmem>>, vector<1x128x512xbf16>
    %556 = vector.shape_cast %555 : vector<1x128x512xbf16> to vector<128x512xbf16>
    %cst_207 = arith.constant dense<0.000000e+00> : vector<16x512xf32>
    %557 = tpu.matmul %554, %556, %cst_207 {dimension_numbers = #tpu.dot_dimension_numbers<[1], [0], [0], [1], [0, 0, 1, 1], [], []>} : vector<16x128xbf16>, vector<128x512xbf16>, vector<16x512xf32> -> vector<16x512xf32>
    %c3_208 = arith.constant 3 : index
    %c0_209 = arith.constant 0 : index
    %c0_210 = arith.constant 0 : index
    %558 = vector.load %arg10[%c3_208, %c0_209, %c0_210] : memref<4x1x512xf32, #tpu.memory_space<vmem>>, vector<1x1x512xf32>
    %559 = vector.shape_cast %558 : vector<1x1x512xf32> to vector<1x512xf32>
    %560 = vector.broadcast %559 : vector<1x512xf32> to vector<16x512xf32>
    %561 = arith.addf %557, %560 : vector<16x512xf32>
    %cst_211 = arith.constant 5.000000e-01 : f32
    %562 = vector.broadcast %cst_211 : f32 to vector<16x512xf32>
    %563 = arith.mulf %562, %561 : vector<16x512xf32>
    %cst_212 = arith.constant 4.471500e-02 : f32
    %564 = vector.broadcast %cst_212 : f32 to vector<16x512xf32>
    %565 = arith.mulf %564, %561 : vector<16x512xf32>
    %566 = arith.mulf %565, %561 : vector<16x512xf32>
    %567 = arith.mulf %566, %561 : vector<16x512xf32>
    %568 = arith.addf %561, %567 : vector<16x512xf32>
    %cst_213 = arith.constant 0.797884583 : f32
    %569 = vector.broadcast %cst_213 : f32 to vector<16x512xf32>
    %570 = arith.mulf %569, %568 : vector<16x512xf32>
    %571 = math.tanh %570 : vector<16x512xf32>
    %cst_214 = arith.constant 1.000000e+00 : f32
    %572 = vector.broadcast %cst_214 : f32 to vector<16x512xf32>
    %573 = arith.addf %572, %571 : vector<16x512xf32>
    %574 = arith.mulf %563, %573 : vector<16x512xf32>
    %575 = arith.truncf %574 : vector<16x512xf32> to vector<16x512xbf16>
    %c3_215 = arith.constant 3 : index
    %c0_216 = arith.constant 0 : index
    %c0_217 = arith.constant 0 : index
    %576 = vector.load %arg11[%c3_215, %c0_216, %c0_217] : memref<4x512x128xbf16, #tpu.memory_space<vmem>>, vector<1x512x128xbf16>
    %577 = vector.shape_cast %576 : vector<1x512x128xbf16> to vector<512x128xbf16>
    %cst_218 = arith.constant dense<0.000000e+00> : vector<16x128xf32>
    %578 = tpu.matmul %575, %577, %cst_218 {dimension_numbers = #tpu.dot_dimension_numbers<[1], [0], [0], [1], [0, 0, 1, 1], [], []>} : vector<16x512xbf16>, vector<512x128xbf16>, vector<16x128xf32> -> vector<16x128xf32>
    %c3_219 = arith.constant 3 : index
    %c0_220 = arith.constant 0 : index
    %c0_221 = arith.constant 0 : index
    %579 = vector.load %arg12[%c3_219, %c0_220, %c0_221] : memref<4x1x128xf32, #tpu.memory_space<vmem>>, vector<1x1x128xf32>
    %580 = vector.shape_cast %579 : vector<1x1x128xf32> to vector<1x128xf32>
    %581 = vector.broadcast %580 : vector<1x128xf32> to vector<16x128xf32>
    %582 = arith.addf %578, %581 : vector<16x128xf32>
    %583 = arith.addf %553, %582 : vector<16x128xf32>
    %c3_222 = arith.constant 3 : index
    %c0_223 = arith.constant 0 : index
    %c0_224 = arith.constant 0 : index
    %584 = vector.load %arg13[%c3_222, %c0_223, %c0_224] : memref<4x1x128xf32, #tpu.memory_space<vmem>>, vector<1x1x128xf32>
    %585 = vector.shape_cast %584 : vector<1x1x128xf32> to vector<1x128xf32>
    %c3_225 = arith.constant 3 : index
    %c0_226 = arith.constant 0 : index
    %c0_227 = arith.constant 0 : index
    %586 = vector.load %arg14[%c3_225, %c0_226, %c0_227] : memref<4x1x128xf32, #tpu.memory_space<vmem>>, vector<1x1x128xf32>
    %587 = vector.shape_cast %586 : vector<1x1x128xf32> to vector<1x128xf32>
    %cst_228 = arith.constant dense<0.000000e+00> : vector<16xf32>
    %588 = vector.multi_reduction <add>, %583, %cst_228 [1] : vector<16x128xf32> to vector<16xf32>
    %589 = vector.shape_cast %588 : vector<16xf32> to vector<16x1xf32>
    %cst_229 = arith.constant 1.280000e+02 : f32
    %590 = vector.broadcast %cst_229 : f32 to vector<16x1xf32>
    %591 = arith.divf %589, %590 : vector<16x1xf32>
    %592 = vector.broadcast %591 : vector<16x1xf32> to vector<16x128xf32>
    %593 = arith.subf %583, %592 : vector<16x128xf32>
    %594 = arith.mulf %593, %593 : vector<16x128xf32>
    %cst_230 = arith.constant dense<0.000000e+00> : vector<16xf32>
    %595 = vector.multi_reduction <add>, %594, %cst_230 [1] : vector<16x128xf32> to vector<16xf32>
    %596 = vector.shape_cast %595 : vector<16xf32> to vector<16x1xf32>
    %cst_231 = arith.constant 1.280000e+02 : f32
    %597 = vector.broadcast %cst_231 : f32 to vector<16x1xf32>
    %598 = arith.divf %596, %597 : vector<16x1xf32>
    %599 = vector.broadcast %591 : vector<16x1xf32> to vector<16x128xf32>
    %600 = arith.subf %583, %599 : vector<16x128xf32>
    %cst_232 = arith.constant 9.99999996E-13 : f32
    %601 = vector.broadcast %cst_232 : f32 to vector<16x1xf32>
    %602 = arith.addf %598, %601 : vector<16x1xf32>
    %603 = math.rsqrt %602 : vector<16x1xf32>
    %604 = vector.broadcast %603 : vector<16x1xf32> to vector<16x128xf32>
    %605 = arith.mulf %600, %604 : vector<16x128xf32>
    %606 = vector.broadcast %585 : vector<1x128xf32> to vector<16x128xf32>
    %607 = arith.mulf %605, %606 : vector<16x128xf32>
    %608 = vector.broadcast %587 : vector<1x128xf32> to vector<16x128xf32>
    %609 = arith.addf %607, %608 : vector<16x128xf32>
    %610 = vector.extract_strided_slice %609 {offsets = [0, 0], sizes = [1, 128], strides = [1, 1]} : vector<16x128xf32> to vector<1x128xf32>
    %611 = vector.extract_strided_slice %609 {offsets = [8, 0], sizes = [1, 128], strides = [1, 1]} : vector<16x128xf32> to vector<1x128xf32>
    %612 = tpu.concatenate %610, %611 in 0 : vector<1x128xf32>, vector<1x128xf32> -> vector<2x128xf32>
    %613 = tpu.concatenate %159, %310, %461, %612 in 1 : vector<2x128xf32>, vector<2x128xf32>, vector<2x128xf32>, vector<2x128xf32> -> vector<2x512xf32>
    %614 = arith.truncf %613 : vector<2x512xf32> to vector<2x512xbf16>
    %c0_233 = arith.constant 0 : index
    %c0_234 = arith.constant 0 : index
    %615 = vector.load %arg15[%c0_233, %c0_234] : memref<512x128xbf16, #tpu.memory_space<vmem>>, vector<512x128xbf16>
    %cst_235 = arith.constant dense<0.000000e+00> : vector<2x128xf32>
    %616 = tpu.matmul %614, %615, %cst_235 {dimension_numbers = #tpu.dot_dimension_numbers<[1], [0], [0], [1], [0, 0, 1, 1], [], []>} : vector<2x512xbf16>, vector<512x128xbf16>, vector<2x128xf32> -> vector<2x128xf32>
    %c0_236 = arith.constant 0 : index
    %c0_237 = arith.constant 0 : index
    %617 = vector.load %arg16[%c0_236, %c0_237] : memref<1x128xf32, #tpu.memory_space<vmem>>, vector<1x128xf32>
    %618 = vector.broadcast %617 : vector<1x128xf32> to vector<2x128xf32>
    %619 = arith.addf %616, %618 : vector<2x128xf32>
    %620 = vector.shape_cast %619 : vector<2x128xf32> to vector<2x1x128xf32>
    %c0_238 = arith.constant 0 : index
    %c0_239 = arith.constant 0 : index
    %c0_240 = arith.constant 0 : index
    %621 = vector.load %arg17[%c0_238, %c0_239, %c0_240] : memref<2x1x128xf32, #tpu.memory_space<vmem>>, vector<2x1x128xf32>
    tpu.vector_store %arg17[%c0_238, %c0_239, %c0_240], %620 {strides = array<i32>} : memref<2x1x128xf32, #tpu.memory_space<vmem>>, vector<2x1x128xf32>,
    return
  }
  func.func @transform_0(%arg0: i32) -> (i32, i32, i32) {
    %c0_i32 = arith.constant 0 : i32
    %c0_i32_0 = arith.constant 0 : i32
    %c0_i32_1 = arith.constant 0 : i32
    return %arg0, %c0_i32, %c0_i32_0 : i32, i32, i32
  }
  func.func @transform_1(%arg0: i32) -> (i32, i32, i32) {
    %c0_i32 = arith.constant 0 : i32
    %c0_i32_0 = arith.constant 0 : i32
    %c0_i32_1 = arith.constant 0 : i32
    return %arg0, %c0_i32, %c0_i32_0 : i32, i32, i32
  }
  func.func @transform_2(%arg0: i32) -> (i32, i32, i32) {
    %c0_i32 = arith.constant 0 : i32
    %c0_i32_0 = arith.constant 0 : i32
    %c0_i32_1 = arith.constant 0 : i32
    %c0_i32_2 = arith.constant 0 : i32
    return %c0_i32, %c0_i32_0, %c0_i32_1 : i32, i32, i32
  }
  func.func @transform_3(%arg0: i32) -> (i32, i32, i32) {
    %c0_i32 = arith.constant 0 : i32
    %c0_i32_0 = arith.constant 0 : i32
    %c0_i32_1 = arith.constant 0 : i32
    %c0_i32_2 = arith.constant 0 : i32
    return %c0_i32, %c0_i32_0, %c0_i32_1 : i32, i32, i32
  }
  func.func @transform_4(%arg0: i32) -> (i32, i32, i32) {
    %c0_i32 = arith.constant 0 : i32
    %c0_i32_0 = arith.constant 0 : i32
    %c0_i32_1 = arith.constant 0 : i32
    %c0_i32_2 = arith.constant 0 : i32
    return %c0_i32, %c0_i32_0, %c0_i32_1 : i32, i32, i32
  }
  func.func @transform_5(%arg0: i32) -> (i32, i32, i32) {
    %c0_i32 = arith.constant 0 : i32
    %c0_i32_0 = arith.constant 0 : i32
    %c0_i32_1 = arith.constant 0 : i32
    %c0_i32_2 = arith.constant 0 : i32
    return %c0_i32, %c0_i32_0, %c0_i32_1 : i32, i32, i32
  }
  func.func @transform_6(%arg0: i32) -> (i32, i32, i32) {
    %c0_i32 = arith.constant 0 : i32
    %c0_i32_0 = arith.constant 0 : i32
    %c0_i32_1 = arith.constant 0 : i32
    %c0_i32_2 = arith.constant 0 : i32
    return %c0_i32, %c0_i32_0, %c0_i32_1 : i32, i32, i32
  }
  func.func @transform_7(%arg0: i32) -> (i32, i32, i32) {
    %c0_i32 = arith.constant 0 : i32
    %c0_i32_0 = arith.constant 0 : i32
    %c0_i32_1 = arith.constant 0 : i32
    %c0_i32_2 = arith.constant 0 : i32
    return %c0_i32, %c0_i32_0, %c0_i32_1 : i32, i32, i32
  }
  func.func @transform_8(%arg0: i32) -> (i32, i32, i32) {
    %c0_i32 = arith.constant 0 : i32
    %c0_i32_0 = arith.constant 0 : i32
    %c0_i32_1 = arith.constant 0 : i32
    %c0_i32_2 = arith.constant 0 : i32
    return %c0_i32, %c0_i32_0, %c0_i32_1 : i32, i32, i32
  }
  func.func @transform_9(%arg0: i32) -> (i32, i32, i32) {
    %c0_i32 = arith.constant 0 : i32
    %c0_i32_0 = arith.constant 0 : i32
    %c0_i32_1 = arith.constant 0 : i32
    %c0_i32_2 = arith.constant 0 : i32
    return %c0_i32, %c0_i32_0, %c0_i32_1 : i32, i32, i32
  }
  func.func @transform_10(%arg0: i32) -> (i32, i32, i32) {
    %c0_i32 = arith.constant 0 : i32
    %c0_i32_0 = arith.constant 0 : i32
    %c0_i32_1 = arith.constant 0 : i32
    %c0_i32_2 = arith.constant 0 : i32
    return %c0_i32, %c0_i32_0, %c0_i32_1 : i32, i32, i32
  }
  func.func @transform_11(%arg0: i32) -> (i32, i32, i32) {
    %c0_i32 = arith.constant 0 : i32
    %c0_i32_0 = arith.constant 0 : i32
    %c0_i32_1 = arith.constant 0 : i32
    %c0_i32_2 = arith.constant 0 : i32
    return %c0_i32, %c0_i32_0, %c0_i32_1 : i32, i32, i32
  }
  func.func @transform_12(%arg0: i32) -> (i32, i32, i32) {
    %c0_i32 = arith.constant 0 : i32
    %c0_i32_0 = arith.constant 0 : i32
    %c0_i32_1 = arith.constant 0 : i32
    %c0_i32_2 = arith.constant 0 : i32
    return %c0_i32, %c0_i32_0, %c0_i32_1 : i32, i32, i32
  }
  func.func @transform_13(%arg0: i32) -> (i32, i32, i32) {
    %c0_i32 = arith.constant 0 : i32
    %c0_i32_0 = arith.constant 0 : i32
    %c0_i32_1 = arith.constant 0 : i32
    %c0_i32_2 = arith.constant 0 : i32
    return %c0_i32, %c0_i32_0, %c0_i32_1 : i32, i32, i32
  }
  func.func @transform_14(%arg0: i32) -> (i32, i32) {
    %c0_i32 = arith.constant 0 : i32
    %c0_i32_0 = arith.constant 0 : i32
    %c0_i32_1 = arith.constant 0 : i32
    return %c0_i32, %c0_i32_0 : i32, i32
  }
  func.func @transform_15(%arg0: i32) -> (i32, i32) {
    %c0_i32 = arith.constant 0 : i32
    %c0_i32_0 = arith.constant 0 : i32
    %c0_i32_1 = arith.constant 0 : i32
    return %c0_i32, %c0_i32_0 : i32, i32
  }
  func.func @transform_16(%arg0: i32) -> (i32, i32, i32) {
    %c0_i32 = arith.constant 0 : i32
    %c0_i32_0 = arith.constant 0 : i32
    %c0_i32_1 = arith.constant 0 : i32
    return %arg0, %c0_i32, %c0_i32_0 : i32, i32, i32
  }
}

</mosaic_0001>

<llo_original>
// kernel: gen0_forward.1
$region0: #{gen0_forward.1}
  #allocation0 [shape = 'u32[]', space=smem, size = 0x4, offset = 0x4, fixed_abs, tag = 'smem constant byte address 0x4 - core index']
  #allocation1 [shape = 'u32[144,128]{1,0:T(1,128)}', space=vmem, size = 0x12000, scoped, tag = 'internal scratch']
  %s0 = inlined_call_operand.vmem [shape: f32[2,8,128], index: 0, kind: input, shape index: {}]
  %s1 = inlined_call_operand.vmem [shape: f32[2,1,8], index: 1, kind: input, shape index: {}]
  %s2 = inlined_call_operand.hbm [shape: bf16[4,128,384], index: 2, kind: input, shape index: {}]
  %s3 = inlined_call_operand.vmem [shape: f32[4,1,384], index: 3, kind: input, shape index: {}]
  %s4 = inlined_call_operand.vmem [shape: bf16[4,128,128], index: 4, kind: input, shape index: {}]
  %s5 = inlined_call_operand.vmem [shape: f32[4,1,128], index: 5, kind: input, shape index: {}]
  %s6 = inlined_call_operand.vmem [shape: f32[4,1,128], index: 6, kind: input, shape index: {}]
  %s7 = inlined_call_operand.vmem [shape: f32[4,1,128], index: 7, kind: input, shape index: {}]
  %s8 = inlined_call_operand.hbm [shape: bf16[4,128,512], index: 8, kind: input, shape index: {}]
  %s9 = inlined_call_operand.vmem [shape: f32[4,1,512], index: 9, kind: input, shape index: {}]
  %s10 = inlined_call_operand.hbm [shape: bf16[4,512,128], index: 10, kind: input, shape index: {}]
  %s11 = inlined_call_operand.vmem [shape: f32[4,1,128], index: 11, kind: input, shape index: {}]
  %s12 = inlined_call_operand.vmem [shape: f32[4,1,128], index: 12, kind: input, shape index: {}]
  %s13 = inlined_call_operand.vmem [shape: f32[4,1,128], index: 13, kind: input, shape index: {}]
  %s14 = inlined_call_operand.hbm [shape: bf16[512,128], index: 14, kind: input, shape index: {}]
  %s15 = inlined_call_operand.vmem [shape: f32[1,128], index: 15, kind: input, shape index: {}]
  %s16 = inlined_call_operand.hbm [shape: f32[2,1,128], index: 16, kind: output, shape index: {}]
  %s17 = sld [smem:[#allocation0]]
  $region90: #{gen0_forward.1} parent=0
    _
  %s19 = ssub.s32 1, %s17
  %s20 = scalar_select 0, %s19, %s17
  $region1: #{gen0_forward.1} parent=0
    #allocation2 [shape = 'u8[393216]{0}', space=vmem, size = 0x60000, scoped, tag = 'input window, operand 2, single buffered']
    #allocation3 [shape = 's32[1]{0}', space=sflag, size = 0x4, scoped, tag = 'scoped memory for gen0_forward.1']
    #allocation4 [shape = 's32[1]{0}', space=sflag, size = 0x4, scoped, tag = 'scoped memory for gen0_forward.1']
    #allocation5 [shape = 'u8[524288]{0}', space=vmem, size = 0x80000, scoped, tag = 'input window, operand 8, single buffered']
    #allocation6 [shape = 's32[1]{0}', space=sflag, size = 0x4, scoped, tag = 'scoped memory for gen0_forward.1']
    #allocation7 [shape = 'u8[524288]{0}', space=vmem, size = 0x80000, scoped, tag = 'input window, operand 10, single buffered']
    #allocation8 [shape = 'u8[131072]{0}', space=vmem, size = 0x20000, scoped, tag = 'input window, operand 14, single buffered']
    #allocation9 [shape = 's32[1]{0}', space=sflag, size = 0x4, scoped, tag = 'scoped memory for gen0_forward.1']
    #allocation10 [shape = 'u8[1024]{0}', space=vmem, size = 0x400, scoped, tag = 'output window, operand 0, single buffered']
    %21 = vsyncpa [#allocation3], 0
    %22 = vsyncpa [#allocation6], 0
    %23 = vsyncpa [#allocation9], 0
    %24 = vsyncpa [#allocation4], 0
    // Predicated region
    $region2: #{gen0_forward.1} parent=1 // pred_check
      _
    $region3: #{gen0_forward.1} parent=1 // pred_check_branch
      %26 = sbr.rel (0) target = $region5
    $region4: #{gen0_forward.1} parent=1 // pred_region
      _
    $region5: #{gen0_forward.1} parent=1 // pred_fallthru
      _
    // Predicated region
    $region6: #{gen0_forward.1} parent=1 // pred_check
      _
    $region7: #{gen0_forward.1} parent=1 // pred_check_branch
      %28 = sbr.rel (0) target = $region9
    $region8: #{gen0_forward.1} parent=1 // pred_region
      _
    $region9: #{gen0_forward.1} parent=1 // pred_fallthru
      _
    // Predicated region
    $region10: #{gen0_forward.1} parent=1 // pred_check
      _
    $region11: #{gen0_forward.1} parent=1 // pred_check_branch
      %30 = sbr.rel (0) target = $region13
    $region12: #{gen0_forward.1} parent=1 // pred_region
      %s32 = ssub.s32 12288, 12288
      %33 = vsyncadd [#allocation3], %s32
      %s34 = sshll.u32 [#allocation2], 4
      %s35 = int_to_ptr.vmem [resolvable:$true] %s34
      %40 = dma.hbm_to_vmem [thread:$0]  %s2, 12288, %s35, [#allocation3], 192, 192, 12
    $region13: #{gen0_forward.1} parent=1 // pred_fallthru
      _
    // Predicated region
    $region14: #{gen0_forward.1} parent=1 // pred_check
      _
    $region15: #{gen0_forward.1} parent=1 // pred_check_branch
      %42 = sbr.rel (0) target = $region17
    $region16: #{gen0_forward.1} parent=1 // pred_region
      _
    $region17: #{gen0_forward.1} parent=1 // pred_fallthru
      _
    // Predicated region
    $region18: #{gen0_forward.1} parent=1 // pred_check
      _
    $region19: #{gen0_forward.1} parent=1 // pred_check_branch
      %44 = sbr.rel (0) target = $region21
    $region20: #{gen0_forward.1} parent=1 // pred_region
      _
    $region21: #{gen0_forward.1} parent=1 // pred_fallthru
      _
    // Predicated region
    $region22: #{gen0_forward.1} parent=1 // pred_check
      _
    $region23: #{gen0_forward.1} parent=1 // pred_check_branch
      %46 = sbr.rel (0) target = $region25
    $region24: #{gen0_forward.1} parent=1 // pred_region
      _
    $region25: #{gen0_forward.1} parent=1 // pred_fallthru
      _
    // Predicated region
    $region26: #{gen0_forward.1} parent=1 // pred_check
      _
    $region27: #{gen0_forward.1} parent=1 // pred_check_branch
      %48 = sbr.rel (0) target = $region29
    $region28: #{gen0_forward.1} parent=1 // pred_region
      _
    $region29: #{gen0_forward.1} parent=1 // pred_fallthru
      _
    // Predicated region
    $region30: #{gen0_forward.1} parent=1 // pred_check
      _
    $region31: #{gen0_forward.1} parent=1 // pred_check_branch
      %50 = sbr.rel (0) target = $region33
    $region32: #{gen0_forward.1} parent=1 // pred_region
      _
    $region33: #{gen0_forward.1} parent=1 // pred_fallthru
      _
    // Predicated region
    $region34: #{gen0_forward.1} parent=1 // pred_check
      _
    $region35: #{gen0_forward.1} parent=1 // pred_check_branch
      %52 = sbr.rel (0) target = $region37
    $region36: #{gen0_forward.1} parent=1 // pred_region
      %s54 = ssub.s32 16384, 16384
      %55 = vsyncadd [#allocation6], %s54
      %s56 = sshll.u32 [#allocation5], 4
      %s57 = int_to_ptr.vmem [resolvable:$true] %s56
      %62 = dma.hbm_to_vmem [thread:$0]  %s8, 16384, %s57, [#allocation6], 256, 256, 16
    $region37: #{gen0_forward.1} parent=1 // pred_fallthru
      _
    // Predicated region
    $region38: #{gen0_forward.1} parent=1 // pred_check
      _
    $region39: #{gen0_forward.1} parent=1 // pred_check_branch
      %64 = sbr.rel (0) target = $region41
    $region40: #{gen0_forward.1} parent=1 // pred_region
      _
    $region41: #{gen0_forward.1} parent=1 // pred_fallthru
      _
    // Predicated region
    $region42: #{gen0_forward.1} parent=1 // pred_check
      _
    $region43: #{gen0_forward.1} parent=1 // pred_check_branch
      %66 = sbr.rel (0) target = $region45
    $region44: #{gen0_forward.1} parent=1 // pred_region
      %s68 = ssub.s32 16384, 16384
      %69 = vsyncadd [#allocation6], %s68
      %s70 = sshll.u32 [#allocation7], 4
      %s71 = int_to_ptr.vmem [resolvable:$true] %s70
      %76 = dma.hbm_to_vmem [thread:$0]  %s10, 16384, %s71, [#allocation6], 64, 64, 4
    $region45: #{gen0_forward.1} parent=1 // pred_fallthru
      _
    // Predicated region
    $region46: #{gen0_forward.1} parent=1 // pred_check
      _
    $region47: #{gen0_forward.1} parent=1 // pred_check_branch
      %78 = sbr.rel (0) target = $region49
    $region48: #{gen0_forward.1} parent=1 // pred_region
      _
    $region49: #{gen0_forward.1} parent=1 // pred_fallthru
      _
    // Predicated region
    $region50: #{gen0_forward.1} parent=1 // pred_check
      _
    $region51: #{gen0_forward.1} parent=1 // pred_check_branch
      %80 = sbr.rel (0) target = $region53
    $region52: #{gen0_forward.1} parent=1 // pred_region
      _
    $region53: #{gen0_forward.1} parent=1 // pred_fallthru
      _
    // Predicated region
    $region54: #{gen0_forward.1} parent=1 // pred_check
      _
    $region55: #{gen0_forward.1} parent=1 // pred_check_branch
      %82 = sbr.rel (0) target = $region57
    $region56: #{gen0_forward.1} parent=1 // pred_region
      _
    $region57: #{gen0_forward.1} parent=1 // pred_fallthru
      _
    // Predicated region
    $region58: #{gen0_forward.1} parent=1 // pred_check
      _
    $region59: #{gen0_forward.1} parent=1 // pred_check_branch
      %84 = sbr.rel (0) target = $region61
    $region60: #{gen0_forward.1} parent=1 // pred_region
      %s86 = ssub.s32 4096, 4096
      %87 = vsyncadd [#allocation9], %s86
      %s88 = sshll.u32 [#allocation8], 4
      %s89 = int_to_ptr.vmem [resolvable:$true] %s88
      %94 = dma.hbm_to_vmem [thread:$0]  %s14, 4096, %s89, [#allocation9], 64, 64, 4
    $region61: #{gen0_forward.1} parent=1 // pred_fallthru
      _
    // Predicated region
    $region62: #{gen0_forward.1} parent=1 // pred_check
      _
    $region63: #{gen0_forward.1} parent=1 // pred_check_branch
      %96 = sbr.rel (0) target = $region65
    $region64: #{gen0_forward.1} parent=1 // pred_region
      _
    $region65: #{gen0_forward.1} parent=1 // pred_fallthru
      _
    // Predicated region
    $region66: #{gen0_forward.1} parent=1 // pred_check
      _
    $region67: #{gen0_forward.1} parent=1 // pred_check_branch
      %98 = sbr.rel (0) target = $region69
    $region68: #{gen0_forward.1} parent=1 // pred_region
      %99 = dma.done [#allocation3], 12288
    $region69: #{gen0_forward.1} parent=1 // pred_fallthru
      _
    // Predicated region
    $region70: #{gen0_forward.1} parent=1 // pred_check
      _
    $region71: #{gen0_forward.1} parent=1 // pred_check_branch
      %101 = sbr.rel (0) target = $region73
    $region72: #{gen0_forward.1} parent=1 // pred_region
      %102 = dma.done [#allocation6], 16384
    $region73: #{gen0_forward.1} parent=1 // pred_fallthru
      _
    // Predicated region
    $region74: #{gen0_forward.1} parent=1 // pred_check
      _
    $region75: #{gen0_forward.1} parent=1 // pred_check_branch
      %104 = sbr.rel (0) target = $region77
    $region76: #{gen0_forward.1} parent=1 // pred_region
      %105 = dma.done [#allocation6], 16384
    $region77: #{gen0_forward.1} parent=1 // pred_fallthru
      _
    // Predicated region
    $region78: #{gen0_forward.1} parent=1 // pred_check
      _
    $region79: #{gen0_forward.1} parent=1 // pred_check_branch
      %107 = sbr.rel (0) target = $region81
    $region80: #{gen0_forward.1} parent=1 // pred_region
      %108 = dma.done [#allocation9], 4096
    $region81: #{gen0_forward.1} parent=1 // pred_fallthru
      _
    %v110 = vld [vmem:[%s0] sm:$0xff]
    %v111 = vld [vmem:[%s0 + $0x8] sm:$0xff]
    %v112 = vld [vmem:[%s1] sm:$0x1]
    %v113 = vld [vmem:[%s1 + $0x1] sm:$0x1]
    %v116 = vlaneseq
    %v117 = vshrl.u32 %v116, 7
    %v118 = vsub.s32 0, %v117
    %v119 = vrot.slane %v112, %v118
    %v120 = vlaneseq
    %v121 = vshrl.u32 %v120, 7
    %v122 = vsub.s32 0, %v121
    %v123 = vrot.slane %v113, %v122
    %v126 = vpack.c.bf16 %v111, %v110
    %v127 = vld [vmem:[#allocation2] sm:$0xff]
    %v128 = vld [vmem:[#allocation2 + $0x8] sm:$0xf]
    %v129 = vld [vmem:[#allocation2 + $0xc] sm:$0xff]
    %v130 = vld [vmem:[#allocation2 + $0x14] sm:$0xf]
    %v131 = vld [vmem:[#allocation2 + $0x18] sm:$0xff]
    %v132 = vld [vmem:[#allocation2 + $0x20] sm:$0xf]
    %v133 = vld [vmem:[#allocation2 + $0x24] sm:$0xff]
    %v134 = vld [vmem:[#allocation2 + $0x2c] sm:$0xf]
    %v135 = vld [vmem:[#allocation2 + $0x30] sm:$0xff]
    %v136 = vld [vmem:[#allocation2 + $0x38] sm:$0xf]
    %v137 = vld [vmem:[#allocation2 + $0x3c] sm:$0xff]
    %v138 = vld [vmem:[#allocation2 + $0x44] sm:$0xf]
    %v139 = vld [vmem:[#allocation2 + $0x48] sm:$0xff]
    %v140 = vld [vmem:[#allocation2 + $0x50] sm:$0xf]
    %v141 = vld [vmem:[#allocation2 + $0x54] sm:$0xff]
    %v142 = vld [vmem:[#allocation2 + $0x5c] sm:$0xf]
    %v143 = vld [vmem:[#allocation2 + $0x60] sm:$0xff]
    %v144 = vld [vmem:[#allocation2 + $0x68] sm:$0xf]
    %v145 = vld [vmem:[#allocation2 + $0x6c] sm:$0xff]
    %v146 = vld [vmem:[#allocation2 + $0x74] sm:$0xf]
    %v147 = vld [vmem:[#allocation2 + $0x78] sm:$0xff]
    %v148 = vld [vmem:[#allocation2 + $0x80] sm:$0xf]
    %v149 = vld [vmem:[#allocation2 + $0x84] sm:$0xff]
    %v150 = vld [vmem:[#allocation2 + $0x8c] sm:$0xf]
    %v151 = vld [vmem:[#allocation2 + $0x90] sm:$0xff]
    %v152 = vld [vmem:[#allocation2 + $0x98] sm:$0xf]
    %v153 = vld [vmem:[#allocation2 + $0x9c] sm:$0xff]
    %v154 = vld [vmem:[#allocation2 + $0xa4] sm:$0xf]
    %v155 = vld [vmem:[#allocation2 + $0xa8] sm:$0xff]
    %v156 = vld [vmem:[#allocation2 + $0xb0] sm:$0xf]
    %v157 = vld [vmem:[#allocation2 + $0xb4] sm:$0xff]
    %v158 = vld [vmem:[#allocation2 + $0xbc] sm:$0xf]
    %v159 = vld [vmem:[%s3] sm:$0x7]
    %v161 = vlaneseq
    %v162 = vshrl.u32 %v161, 7
    %v163 = vsub.s32 0, %v162
    %v164 = vrot.slane %v159, %v163
    %v165 = vlaneseq
    %v166 = vshrl.u32 %v165, 7
    %v167 = vsub.s32 1, %v166
    %v168 = vrot.slane %v159, %v167
    %v169 = vlaneseq
    %v170 = vshrl.u32 %v169, 7
    %v171 = vsub.s32 2, %v170
    %v172 = vrot.slane %v159, %v171
    %v208 = vunpack.c.l.b16 %v127
    %v209 = vunpack.c.h.b16 %v127
    %v210 = vunpack.c.l.b16 %v128
    %v211 = vunpack.c.l.b16 %v129
    %v212 = vunpack.c.h.b16 %v129
    %v213 = vunpack.c.l.b16 %v130
    %v214 = vunpack.c.l.b16 %v131
    %v215 = vunpack.c.h.b16 %v131
    %v216 = vunpack.c.l.b16 %v132
    %v217 = vunpack.c.l.b16 %v133
    %v218 = vunpack.c.h.b16 %v133
    %v219 = vunpack.c.l.b16 %v134
    %v220 = vunpack.c.l.b16 %v135
    %v221 = vunpack.c.h.b16 %v135
    %v222 = vunpack.c.l.b16 %v136
    %v223 = vunpack.c.l.b16 %v137
    %v224 = vunpack.c.h.b16 %v137
    %v225 = vunpack.c.l.b16 %v138
    %v226 = vunpack.c.l.b16 %v139
    %v227 = vunpack.c.h.b16 %v139
    %v228 = vunpack.c.l.b16 %v140
    %v229 = vunpack.c.l.b16 %v141
    %v230 = vunpack.c.h.b16 %v141
    %v231 = vunpack.c.l.b16 %v142
    %v232 = vunpack.c.l.b16 %v143
    %v233 = vunpack.c.h.b16 %v143
    %v234 = vunpack.c.l.b16 %v144
    %v235 = vunpack.c.l.b16 %v145
    %v236 = vunpack.c.h.b16 %v145
    %v237 = vunpack.c.l.b16 %v146
    %v238 = vunpack.c.l.b16 %v147
    %v239 = vunpack.c.h.b16 %v147
    %v240 = vunpack.c.l.b16 %v148
    %v241 = vunpack.c.l.b16 %v149
    %v242 = vunpack.c.h.b16 %v149
    %v243 = vunpack.c.l.b16 %v150
    %v244 = vunpack.c.l.b16 %v151
    %v245 = vunpack.c.h.b16 %v151
    %v246 = vunpack.c.l.b16 %v152
    %v247 = vunpack.c.l.b16 %v153
    %v248 = vunpack.c.h.b16 %v153
    %v249 = vunpack.c.l.b16 %v154
    %v250 = vunpack.c.l.b16 %v155
    %v251 = vunpack.c.h.b16 %v155
    %v252 = vunpack.c.l.b16 %v156
    %v253 = vunpack.c.l.b16 %v157
    %v254 = vunpack.c.h.b16 %v157
    %v255 = vunpack.c.l.b16 %v158
    %v256 = vpack.c.b16 %v211, %v208
    %v257 = vpack.c.b16 %v212, %v209
    %v258 = vpack.c.b16 %v213, %v210
    %v259 = vpack.c.b16 %v217, %v214
    %v260 = vpack.c.b16 %v218, %v215
    %v261 = vpack.c.b16 %v219, %v216
    %v262 = vpack.c.b16 %v223, %v220
    %v263 = vpack.c.b16 %v224, %v221
    %v264 = vpack.c.b16 %v225, %v222
    %v265 = vpack.c.b16 %v229, %v226
    %v266 = vpack.c.b16 %v230, %v227
    %v267 = vpack.c.b16 %v231, %v228
    %v268 = vpack.c.b16 %v235, %v232
    %v269 = vpack.c.b16 %v236, %v233
    %v270 = vpack.c.b16 %v237, %v234
    %v271 = vpack.c.b16 %v241, %v238
    %v272 = vpack.c.b16 %v242, %v239
    %v273 = vpack.c.b16 %v243, %v240
    %v274 = vpack.c.b16 %v247, %v244
    %v275 = vpack.c.b16 %v248, %v245
    %v276 = vpack.c.b16 %v249, %v246
    %v277 = vpack.c.b16 %v253, %v250
    %v278 = vpack.c.b16 %v254, %v251
    %v279 = vpack.c.b16 %v255, %v252
    %304 = vmatprep.subr.bf16.mxu0 %v257
    %305 = vmatpush1.bf16.msra.mxu0 %v256
    %306 = vmatprep.subr.bf16.mxu0 %v260
    %307 = vmatpush1.bf16.msra.mxu0 %v259
    %308 = vmatprep.subr.bf16.mxu0 %v263
    %309 = vmatpush1.bf16.msra.mxu0 %v262
    %310 = vmatprep.subr.bf16.mxu0 %v266
    %311 = vmatpush1.bf16.msra.mxu0 %v265
    %312 = vmatprep.subr.bf16.mxu0 %v269
    %313 = vmatpush1.bf16.msra.mxu0 %v268
    %314 = vmatprep.subr.bf16.mxu0 %v272
    %315 = vmatpush1.bf16.msra.mxu0 %v271
    %316 = vmatprep.subr.bf16.mxu0 %v275
    %317 = vmatpush1.bf16.msra.mxu0 %v274
    %318 = vmatprep.subr.bf16.mxu0 %v278
    %319 = vmatpush1.bf16.msra.mxu0 %v277
    %320 = vmatprep.subr.bf16.mxu0 0
    %321 = vmatpush1.bf16.msra.mxu0 0
    %322 = vmatprep.subr.bf16.mxu0 0
    %323 = vmatpush1.bf16.msra.mxu0 0
    %324 = vmatprep.subr.bf16.mxu0 0
    %325 = vmatpush1.bf16.msra.mxu0 0
    %326 = vmatprep.subr.bf16.mxu0 0
    %327 = vmatpush1.bf16.msra.mxu0 0
    %328 = vmatprep.subr.bf16.mxu0 0
    %329 = vmatpush1.bf16.msra.mxu0 0
    %330 = vmatprep.subr.bf16.mxu0 0
    %331 = vmatpush1.bf16.msra.mxu0 0
    %332 = vmatprep.subr.bf16.mxu0 0
    %333 = vmatpush1.bf16.msra.mxu0 0
    %334 = vmatprep.subr.bf16.mxu0 0
    %335 = vmatpush1.bf16.msra.mxu0 0
    %336 = vmatprep.mubr.bf16.mxu0 0
    %337 = vmatmul.mubr.bf16.gmra.mrb[0].mxu0 %v126
    %v338 = vpop.f32.mrb[0].mxu0
    %v339 = vadd.f32 %v164, %v338
    %v340 = vpop.f32.mrb[0].mxu0
    %v341 = vadd.f32 %v168, %v340
    %v342 = vpop.f32.mrb[0].mxu0
    %v343 = vadd.f32 %v164, %v342
    %v344 = vpop.f32.mrb[0].mxu0
    %v345 = vadd.f32 %v168, %v344
    %346 = vdwg.mxu0
    %347 = vmatprep.subr.bf16.mxu0 0
    %348 = vmatpush1.bf16.msra.mxu0 %v258
    %349 = vmatprep.subr.bf16.mxu0 0
    %350 = vmatpush1.bf16.msra.mxu0 %v261
    %351 = vmatprep.subr.bf16.mxu0 0
    %352 = vmatpush1.bf16.msra.mxu0 %v264
    %353 = vmatprep.subr.bf16.mxu0 0
    %354 = vmatpush1.bf16.msra.mxu0 %v267
    %355 = vmatprep.subr.bf16.mxu0 0
    %356 = vmatpush1.bf16.msra.mxu0 %v270
    %357 = vmatprep.subr.bf16.mxu0 0
    %358 = vmatpush1.bf16.msra.mxu0 %v273
    %359 = vmatprep.subr.bf16.mxu0 0
    %360 = vmatpush1.bf16.msra.mxu0 %v276
    %361 = vmatprep.subr.bf16.mxu0 0
    %362 = vmatpush1.bf16.msra.mxu0 %v279
    %363 = vmatprep.subr.bf16.mxu0 0
    %364 = vmatpush1.bf16.msra.mxu0 0
    %365 = vmatprep.subr.bf16.mxu0 0
    %366 = vmatpush1.bf16.msra.mxu0 0
    %367 = vmatprep.subr.bf16.mxu0 0
    %368 = vmatpush1.bf16.msra.mxu0 0
    %369 = vmatprep.subr.bf16.mxu0 0
    %370 = vmatpush1.bf16.msra.mxu0 0
    %371 = vmatprep.subr.bf16.mxu0 0
    %372 = vmatpush1.bf16.msra.mxu0 0
    %373 = vmatprep.subr.bf16.mxu0 0
    %374 = vmatpush1.bf16.msra.mxu0 0
    %375 = vmatprep.subr.bf16.mxu0 0
    %376 = vmatpush1.bf16.msra.mxu0 0
    %377 = vmatprep.subr.bf16.mxu0 0
    %378 = vmatpush1.bf16.msra.mxu0 0
    %379 = vmatprep.mubr.bf16.mxu0 0
    %380 = vmatmul.mubr.bf16.gmra.mrb[0].mxu0 %v126
    %v381 = vpop.f32.mrb[0].mxu0
    %v382 = vadd.f32 %v172, %v381
    %v383 = vpop.f32.mrb[0].mxu0
    %v384 = vpop.f32.mrb[0].mxu0
    %v385 = vadd.f32 %v172, %v384
    %v386 = vpop.f32.mrb[0].mxu0
    %387 = vdwg.mxu0
    %v388 = vpack.c.bf16 %v343, %v339
    %v389 = vpack.c.bf16 %v345, %v341
    %v390 = vpack.c.bf16 %v385, %v382
    %v392 = vunpack.c.l.b16 %v388
    %v393 = vunpack.c.h.b16 %v388
    %v394 = vpack.c.b16 %v392, %v392
    %v395 = vpack.c.b16 %v393, %v393
    %396 = vrot.lane.b32.xlu0 %v394, 96
    %v397 = vpop.permute.xlu0 %396
    %398 = vrot.lane.b32.xlu0 %v395, 96
    %v399 = vpop.permute.xlu0 %398
    %400 = vrot.lane.b32.xlu0 %v394, 64
    %v401 = vpop.permute.xlu0 %400
    %402 = vrot.lane.b32.xlu0 %v395, 64
    %v403 = vpop.permute.xlu0 %402
    %404 = vrot.lane.b32.xlu0 %v394, 32
    %v405 = vpop.permute.xlu0 %404
    %406 = vrot.lane.b32.xlu0 %v395, 32
    %v407 = vpop.permute.xlu0 %406
    %v409 = vunpack.c.l.b16 %v389
    %v410 = vunpack.c.h.b16 %v389
    %v411 = vpack.c.b16 %v409, %v409
    %v412 = vpack.c.b16 %v410, %v410
    %413 = vrot.lane.b32.xlu0 %v411, 96
    %v414 = vpop.permute.xlu0 %413
    %415 = vrot.lane.b32.xlu0 %v412, 96
    %v416 = vpop.permute.xlu0 %415
    %417 = vrot.lane.b32.xlu0 %v411, 64
    %v418 = vpop.permute.xlu0 %417
    %419 = vrot.lane.b32.xlu0 %v412, 64
    %v420 = vpop.permute.xlu0 %419
    %421 = vrot.lane.b32.xlu0 %v411, 32
    %v422 = vpop.permute.xlu0 %421
    %423 = vrot.lane.b32.xlu0 %v412, 32
    %v424 = vpop.permute.xlu0 %423
    %v426 = vunpack.c.l.b16 %v390
    %v427 = vunpack.c.h.b16 %v390
    %v428 = vpack.c.b16 %v426, %v426
    %v429 = vpack.c.b16 %v427, %v427
    %430 = vrot.lane.b32.xlu0 %v428, 96
    %v431 = vpop.permute.xlu0 %430
    %432 = vrot.lane.b32.xlu0 %v429, 96
    %v433 = vpop.permute.xlu0 %432
    %434 = vrot.lane.b32.xlu0 %v428, 64
    %v435 = vpop.permute.xlu0 %434
    %436 = vrot.lane.b32.xlu0 %v429, 64
    %v437 = vpop.permute.xlu0 %436
    %438 = vrot.lane.b32.xlu0 %v428, 32
    %v439 = vpop.permute.xlu0 %438
    %440 = vrot.lane.b32.xlu0 %v429, 32
    %v441 = vpop.permute.xlu0 %440
    %vm442 = vcmask 261120
    %v444 = vsel %vm442, %v394, 0
    %v447 = vsel %vm442, %v411, 0
    %449 = vmatprep.subr.bf16.mxu0 0
    %450 = vmatpush1.bf16.xpose.msra.mxu0 %v447
    %451 = vmatprep.subr.bf16.mxu0 0
    %452 = vmatpush1.bf16.xpose.msra.mxu0 0
    %453 = vmatprep.subr.bf16.mxu0 0
    %454 = vmatpush1.bf16.xpose.msra.mxu0 0
    %455 = vmatprep.subr.bf16.mxu0 0
    %456 = vmatpush1.bf16.xpose.msra.mxu0 0
    %457 = vmatprep.subr.bf16.mxu0 0
    %458 = vmatpush1.bf16.xpose.msra.mxu0 0
    %459 = vmatprep.subr.bf16.mxu0 0
    %460 = vmatpush1.bf16.xpose.msra.mxu0 0
    %461 = vmatprep.subr.bf16.mxu0 0
    %462 = vmatpush1.bf16.xpose.msra.mxu0 0
    %463 = vmatprep.subr.bf16.mxu0 0
    %464 = vmatpush1.bf16.xpose.msra.mxu0 0
    %465 = vmatprep.subr.bf16.mxu0 0
    %466 = vmatpush1.bf16.xpose.msra.mxu0 0
    %467 = vmatprep.subr.bf16.mxu0 0
    %468 = vmatpush1.bf16.xpose.msra.mxu0 0
    %469 = vmatprep.subr.bf16.mxu0 0
    %470 = vmatpush1.bf16.xpose.msra.mxu0 0
    %471 = vmatprep.subr.bf16.mxu0 0
    %472 = vmatpush1.bf16.xpose.msra.mxu0 0
    %473 = vmatprep.subr.bf16.mxu0 0
    %474 = vmatpush1.bf16.xpose.msra.mxu0 0
    %475 = vmatprep.subr.bf16.mxu0 0
    %476 = vmatpush1.bf16.xpose.msra.mxu0 0
    %477 = vmatprep.subr.bf16.mxu0 0
    %478 = vmatpush1.bf16.xpose.msra.mxu0 0
    %479 = vmatprep.subr.bf16.mxu0 0
    %480 = vmatpush1.bf16.xpose.msra.mxu0 0
    %481 = vmatprep.mubr.bf16.mxu0 0
    %482 = vmatmul.mubr.bf16.gmra.mrb[0].mxu0 %v444
    %v483 = vpop.f32.mrb[0].mxu0
    %v484 = vadd.f32 %v119, %v483
    %v485 = vpop.f32.mrb[0].mxu0
    %v486 = vpop.f32.mrb[0].mxu0
    %v487 = vpop.f32.mrb[0].mxu0
    %488 = vdwg.mxu0
    %v490 = vsel %vm442, %v395, 0
    %v493 = vsel %vm442, %v412, 0
    %495 = vmatprep.subr.bf16.mxu0 0
    %496 = vmatpush1.bf16.xpose.msra.mxu0 %v493
    %497 = vmatprep.subr.bf16.mxu0 0
    %498 = vmatpush1.bf16.xpose.msra.mxu0 0
    %499 = vmatprep.subr.bf16.mxu0 0
    %500 = vmatpush1.bf16.xpose.msra.mxu0 0
    %501 = vmatprep.subr.bf16.mxu0 0
    %502 = vmatpush1.bf16.xpose.msra.mxu0 0
    %503 = vmatprep.subr.bf16.mxu0 0
    %504 = vmatpush1.bf16.xpose.msra.mxu0 0
    %505 = vmatprep.subr.bf16.mxu0 0
    %506 = vmatpush1.bf16.xpose.msra.mxu0 0
    %507 = vmatprep.subr.bf16.mxu0 0
    %508 = vmatpush1.bf16.xpose.msra.mxu0 0
    %509 = vmatprep.subr.bf16.mxu0 0
    %510 = vmatpush1.bf16.xpose.msra.mxu0 0
    %511 = vmatprep.subr.bf16.mxu0 0
    %512 = vmatpush1.bf16.xpose.msra.mxu0 0
    %513 = vmatprep.subr.bf16.mxu0 0
    %514 = vmatpush1.bf16.xpose.msra.mxu0 0
    %515 = vmatprep.subr.bf16.mxu0 0
    %516 = vmatpush1.bf16.xpose.msra.mxu0 0
    %517 = vmatprep.subr.bf16.mxu0 0
    %518 = vmatpush1.bf16.xpose.msra.mxu0 0
    %519 = vmatprep.subr.bf16.mxu0 0
    %520 = vmatpush1.bf16.xpose.msra.mxu0 0
    %521 = vmatprep.subr.bf16.mxu0 0
    %522 = vmatpush1.bf16.xpose.msra.mxu0 0
    %523 = vmatprep.subr.bf16.mxu0 0
    %524 = vmatpush1.bf16.xpose.msra.mxu0 0
    %525 = vmatprep.subr.bf16.mxu0 0
    %526 = vmatpush1.bf16.xpose.msra.mxu0 0
    %527 = vmatprep.mubr.bf16.mxu0 0
    %528 = vmatmul.mubr.bf16.gmra.mrb[0].mxu0 %v490
    %v529 = vpop.f32.mrb[0].mxu0
    %v530 = vadd.f32 %v123, %v529
    %v531 = vpop.f32.mrb[0].mxu0
    %v532 = vpop.f32.mrb[0].mxu0
    %v533 = vpop.f32.mrb[0].mxu0
    %534 = vdwg.mxu0
    %v536 = vsel %vm442, %v397, 0
    %v539 = vsel %vm442, %v414, 0
    %541 = vmatprep.subr.bf16.mxu0 0
    %542 = vmatpush1.bf16.xpose.msra.mxu0 %v539
    %543 = vmatprep.subr.bf16.mxu0 0
    %544 = vmatpush1.bf16.xpose.msra.mxu0 0
    %545 = vmatprep.subr.bf16.mxu0 0
    %546 = vmatpush1.bf16.xpose.msra.mxu0 0
    %547 = vmatprep.subr.bf16.mxu0 0
    %548 = vmatpush1.bf16.xpose.msra.mxu0 0
    %549 = vmatprep.subr.bf16.mxu0 0
    %550 = vmatpush1.bf16.xpose.msra.mxu0 0
    %551 = vmatprep.subr.bf16.mxu0 0
    %552 = vmatpush1.bf16.xpose.msra.mxu0 0
    %553 = vmatprep.subr.bf16.mxu0 0
    %554 = vmatpush1.bf16.xpose.msra.mxu0 0
    %555 = vmatprep.subr.bf16.mxu0 0
    %556 = vmatpush1.bf16.xpose.msra.mxu0 0
    %557 = vmatprep.subr.bf16.mxu0 0
    %558 = vmatpush1.bf16.xpose.msra.mxu0 0
    %559 = vmatprep.subr.bf16.mxu0 0
    %560 = vmatpush1.bf16.xpose.msra.mxu0 0
    %561 = vmatprep.subr.bf16.mxu0 0
    %562 = vmatpush1.bf16.xpose.msra.mxu0 0
    %563 = vmatprep.subr.bf16.mxu0 0
    %564 = vmatpush1.bf16.xpose.msra.mxu0 0
    %565 = vmatprep.subr.bf16.mxu0 0
    %566 = vmatpush1.bf16.xpose.msra.mxu0 0
    %567 = vmatprep.subr.bf16.mxu0 0
    %568 = vmatpush1.bf16.xpose.msra.mxu0 0
    %569 = vmatprep.subr.bf16.mxu0 0
    %570 = vmatpush1.bf16.xpose.msra.mxu0 0
    %571 = vmatprep.subr.bf16.mxu0 0
    %572 = vmatpush1.bf16.xpose.msra.mxu0 0
    %573 = vmatprep.mubr.bf16.mxu0 0
    %574 = vmatmul.mubr.bf16.gmra.mrb[0].mxu0 %v536
    %v575 = vpop.f32.mrb[0].mxu0
    %v576 = vadd.f32 %v119, %v575
    %v577 = vpop.f32.mrb[0].mxu0
    %v578 = vpop.f32.mrb[0].mxu0
    %v579 = vpop.f32.mrb[0].mxu0
    %580 = vdwg.mxu0
    %v582 = vsel %vm442, %v399, 0
    %v585 = vsel %vm442, %v416, 0
    %587 = vmatprep.subr.bf16.mxu0 0
    %588 = vmatpush1.bf16.xpose.msra.mxu0 %v585
    %589 = vmatprep.subr.bf16.mxu0 0
    %590 = vmatpush1.bf16.xpose.msra.mxu0 0
    %591 = vmatprep.subr.bf16.mxu0 0
    %592 = vmatpush1.bf16.xpose.msra.mxu0 0
    %593 = vmatprep.subr.bf16.mxu0 0
    %594 = vmatpush1.bf16.xpose.msra.mxu0 0
    %595 = vmatprep.subr.bf16.mxu0 0
    %596 = vmatpush1.bf16.xpose.msra.mxu0 0
    %597 = vmatprep.subr.bf16.mxu0 0
    %598 = vmatpush1.bf16.xpose.msra.mxu0 0
    %599 = vmatprep.subr.bf16.mxu0 0
    %600 = vmatpush1.bf16.xpose.msra.mxu0 0
    %601 = vmatprep.subr.bf16.mxu0 0
    %602 = vmatpush1.bf16.xpose.msra.mxu0 0
    %603 = vmatprep.subr.bf16.mxu0 0
    %604 = vmatpush1.bf16.xpose.msra.mxu0 0
    %605 = vmatprep.subr.bf16.mxu0 0
    %606 = vmatpush1.bf16.xpose.msra.mxu0 0
    %607 = vmatprep.subr.bf16.mxu0 0
    %608 = vmatpush1.bf16.xpose.msra.mxu0 0
    %609 = vmatprep.subr.bf16.mxu0 0
    %610 = vmatpush1.bf16.xpose.msra.mxu0 0
    %611 = vmatprep.subr.bf16.mxu0 0
    %612 = vmatpush1.bf16.xpose.msra.mxu0 0
    %613 = vmatprep.subr.bf16.mxu0 0
    %614 = vmatpush1.bf16.xpose.msra.mxu0 0
    %615 = vmatprep.subr.bf16.mxu0 0
    %616 = vmatpush1.bf16.xpose.msra.mxu0 0
    %617 = vmatprep.subr.bf16.mxu0 0
    %618 = vmatpush1.bf16.xpose.msra.mxu0 0
    %619 = vmatprep.mubr.bf16.mxu0 0
    %620 = vmatmul.mubr.bf16.gmra.mrb[0].mxu0 %v582
    %v621 = vpop.f32.mrb[0].mxu0
    %v622 = vadd.f32 %v123, %v621
    %v623 = vpop.f32.mrb[0].mxu0
    %v624 = vpop.f32.mrb[0].mxu0
    %v625 = vpop.f32.mrb[0].mxu0
    %626 = vdwg.mxu0
    %v628 = vsel %vm442, %v401, 0
    %v631 = vsel %vm442, %v418, 0
    %633 = vmatprep.subr.bf16.mxu0 0
    %634 = vmatpush1.bf16.xpose.msra.mxu0 %v631
    %635 = vmatprep.subr.bf16.mxu0 0
    %636 = vmatpush1.bf16.xpose.msra.mxu0 0
    %637 = vmatprep.subr.bf16.mxu0 0
    %638 = vmatpush1.bf16.xpose.msra.mxu0 0
    %639 = vmatprep.subr.bf16.mxu0 0
    %640 = vmatpush1.bf16.xpose.msra.mxu0 0
    %641 = vmatprep.subr.bf16.mxu0 0
    %642 = vmatpush1.bf16.xpose.msra.mxu0 0
    %643 = vmatprep.subr.bf16.mxu0 0
    %644 = vmatpush1.bf16.xpose.msra.mxu0 0
    %645 = vmatprep.subr.bf16.mxu0 0
    %646 = vmatpush1.bf16.xpose.msra.mxu0 0
    %647 = vmatprep.subr.bf16.mxu0 0
    %648 = vmatpush1.bf16.xpose.msra.mxu0 0
    %649 = vmatprep.subr.bf16.mxu0 0
    %650 = vmatpush1.bf16.xpose.msra.mxu0 0
    %651 = vmatprep.subr.bf16.mxu0 0
    %652 = vmatpush1.bf16.xpose.msra.mxu0 0
    %653 = vmatprep.subr.bf16.mxu0 0
    %654 = vmatpush1.bf16.xpose.msra.mxu0 0
    %655 = vmatprep.subr.bf16.mxu0 0
    %656 = vmatpush1.bf16.xpose.msra.mxu0 0
    %657 = vmatprep.subr.bf16.mxu0 0
    %658 = vmatpush1.bf16.xpose.msra.mxu0 0
    %659 = vmatprep.subr.bf16.mxu0 0
    %660 = vmatpush1.bf16.xpose.msra.mxu0 0
    %661 = vmatprep.subr.bf16.mxu0 0
    %662 = vmatpush1.bf16.xpose.msra.mxu0 0
    %663 = vmatprep.subr.bf16.mxu0 0
    %664 = vmatpush1.bf16.xpose.msra.mxu0 0
    %665 = vmatprep.mubr.bf16.mxu0 0
    %666 = vmatmul.mubr.bf16.gmra.mrb[0].mxu0 %v628
    %v667 = vpop.f32.mrb[0].mxu0
    %v668 = vadd.f32 %v119, %v667
    %v669 = vpop.f32.mrb[0].mxu0
    %v670 = vpop.f32.mrb[0].mxu0
    %v671 = vpop.f32.mrb[0].mxu0
    %672 = vdwg.mxu0
    %v674 = vsel %vm442, %v403, 0
    %v677 = vsel %vm442, %v420, 0
    %679 = vmatprep.subr.bf16.mxu0 0
    %680 = vmatpush1.bf16.xpose.msra.mxu0 %v677
    %681 = vmatprep.subr.bf16.mxu0 0
    %682 = vmatpush1.bf16.xpose.msra.mxu0 0
    %683 = vmatprep.subr.bf16.mxu0 0
    %684 = vmatpush1.bf16.xpose.msra.mxu0 0
    %685 = vmatprep.subr.bf16.mxu0 0
    %686 = vmatpush1.bf16.xpose.msra.mxu0 0
    %687 = vmatprep.subr.bf16.mxu0 0
    %688 = vmatpush1.bf16.xpose.msra.mxu0 0
    %689 = vmatprep.subr.bf16.mxu0 0
    %690 = vmatpush1.bf16.xpose.msra.mxu0 0
    %691 = vmatprep.subr.bf16.mxu0 0
    %692 = vmatpush1.bf16.xpose.msra.mxu0 0
    %693 = vmatprep.subr.bf16.mxu0 0
    %694 = vmatpush1.bf16.xpose.msra.mxu0 0
    %695 = vmatprep.subr.bf16.mxu0 0
    %696 = vmatpush1.bf16.xpose.msra.mxu0 0
    %697 = vmatprep.subr.bf16.mxu0 0
    %698 = vmatpush1.bf16.xpose.msra.mxu0 0
    %699 = vmatprep.subr.bf16.mxu0 0
    %700 = vmatpush1.bf16.xpose.msra.mxu0 0
    %701 = vmatprep.subr.bf16.mxu0 0
    %702 = vmatpush1.bf16.xpose.msra.mxu0 0
    %703 = vmatprep.subr.bf16.mxu0 0
    %704 = vmatpush1.bf16.xpose.msra.mxu0 0
    %705 = vmatprep.subr.bf16.mxu0 0
    %706 = vmatpush1.bf16.xpose.msra.mxu0 0
    %707 = vmatprep.subr.bf16.mxu0 0
    %708 = vmatpush1.bf16.xpose.msra.mxu0 0
    %709 = vmatprep.subr.bf16.mxu0 0
    %710 = vmatpush1.bf16.xpose.msra.mxu0 0
    %711 = vmatprep.mubr.bf16.mxu0 0
    %712 = vmatmul.mubr.bf16.gmra.mrb[0].mxu0 %v674
    %v713 = vpop.f32.mrb[0].mxu0
    %v714 = vadd.f32 %v123, %v713
    %v715 = vpop.f32.mrb[0].mxu0
    %v716 = vpop.f32.mrb[0].mxu0
    %v717 = vpop.f32.mrb[0].mxu0
    %718 = vdwg.mxu0
    %v720 = vsel %vm442, %v405, 0
    %v723 = vsel %vm442, %v422, 0
    %725 = vmatprep.subr.bf16.mxu0 0
    %726 = vmatpush1.bf16.xpose.msra.mxu0 %v723
    %727 = vmatprep.subr.bf16.mxu0 0
    %728 = vmatpush1.bf16.xpose.msra.mxu0 0
    %729 = vmatprep.subr.bf16.mxu0 0
    %730 = vmatpush1.bf16.xpose.msra.mxu0 0
    %731 = vmatprep.subr.bf16.mxu0 0
    %732 = vmatpush1.bf16.xpose.msra.mxu0 0
    %733 = vmatprep.subr.bf16.mxu0 0
    %734 = vmatpush1.bf16.xpose.msra.mxu0 0
    %735 = vmatprep.subr.bf16.mxu0 0
    %736 = vmatpush1.bf16.xpose.msra.mxu0 0
    %737 = vmatprep.subr.bf16.mxu0 0
    %738 = vmatpush1.bf16.xpose.msra.mxu0 0
    %739 = vmatprep.subr.bf16.mxu0 0
    %740 = vmatpush1.bf16.xpose.msra.mxu0 0
    %741 = vmatprep.subr.bf16.mxu0 0
    %742 = vmatpush1.bf16.xpose.msra.mxu0 0
    %743 = vmatprep.subr.bf16.mxu0 0
    %744 = vmatpush1.bf16.xpose.msra.mxu0 0
    %745 = vmatprep.subr.bf16.mxu0 0
    %746 = vmatpush1.bf16.xpose.msra.mxu0 0
    %747 = vmatprep.subr.bf16.mxu0 0
    %748 = vmatpush1.bf16.xpose.msra.mxu0 0
    %749 = vmatprep.subr.bf16.mxu0 0
    %750 = vmatpush1.bf16.xpose.msra.mxu0 0
    %751 = vmatprep.subr.bf16.mxu0 0
    %752 = vmatpush1.bf16.xpose.msra.mxu0 0
    %753 = vmatprep.subr.bf16.mxu0 0
    %754 = vmatpush1.bf16.xpose.msra.mxu0 0
    %755 = vmatprep.subr.bf16.mxu0 0
    %756 = vmatpush1.bf16.xpose.msra.mxu0 0
    %757 = vmatprep.mubr.bf16.mxu0 0
    %758 = vmatmul.mubr.bf16.gmra.mrb[0].mxu0 %v720
    %v759 = vpop.f32.mrb[0].mxu0
    %v760 = vadd.f32 %v119, %v759
    %v761 = vpop.f32.mrb[0].mxu0
    %v762 = vpop.f32.mrb[0].mxu0
    %v763 = vpop.f32.mrb[0].mxu0
    %764 = vdwg.mxu0
    %v766 = vsel %vm442, %v407, 0
    %v769 = vsel %vm442, %v424, 0
    %771 = vmatprep.subr.bf16.mxu0 0
    %772 = vmatpush1.bf16.xpose.msra.mxu0 %v769
    %773 = vmatprep.subr.bf16.mxu0 0
    %774 = vmatpush1.bf16.xpose.msra.mxu0 0
    %775 = vmatprep.subr.bf16.mxu0 0
    %776 = vmatpush1.bf16.xpose.msra.mxu0 0
    %777 = vmatprep.subr.bf16.mxu0 0
    %778 = vmatpush1.bf16.xpose.msra.mxu0 0
    %779 = vmatprep.subr.bf16.mxu0 0
    %780 = vmatpush1.bf16.xpose.msra.mxu0 0
    %781 = vmatprep.subr.bf16.mxu0 0
    %782 = vmatpush1.bf16.xpose.msra.mxu0 0
    %783 = vmatprep.subr.bf16.mxu0 0
    %784 = vmatpush1.bf16.xpose.msra.mxu0 0
    %785 = vmatprep.subr.bf16.mxu0 0
    %786 = vmatpush1.bf16.xpose.msra.mxu0 0
    %787 = vmatprep.subr.bf16.mxu0 0
    %788 = vmatpush1.bf16.xpose.msra.mxu0 0
    %789 = vmatprep.subr.bf16.mxu0 0
    %790 = vmatpush1.bf16.xpose.msra.mxu0 0
    %791 = vmatprep.subr.bf16.mxu0 0
    %792 = vmatpush1.bf16.xpose.msra.mxu0 0
    %793 = vmatprep.subr.bf16.mxu0 0
    %794 = vmatpush1.bf16.xpose.msra.mxu0 0
    %795 = vmatprep.subr.bf16.mxu0 0
    %796 = vmatpush1.bf16.xpose.msra.mxu0 0
    %797 = vmatprep.subr.bf16.mxu0 0
    %798 = vmatpush1.bf16.xpose.msra.mxu0 0
    %799 = vmatprep.subr.bf16.mxu0 0
    %800 = vmatpush1.bf16.xpose.msra.mxu0 0
    %801 = vmatprep.subr.bf16.mxu0 0
    %802 = vmatpush1.bf16.xpose.msra.mxu0 0
    %803 = vmatprep.mubr.bf16.mxu0 0
    %804 = vmatmul.mubr.bf16.gmra.mrb[0].mxu0 %v766
    %v805 = vpop.f32.mrb[0].mxu0
    %v806 = vadd.f32 %v123, %v805
    %v807 = vpop.f32.mrb[0].mxu0
    %v808 = vpop.f32.mrb[0].mxu0
    %v809 = vpop.f32.mrb[0].mxu0
    %810 = vdwg.mxu0
    %vm811 = vcmask 64512
    %v812 = vsel %vm811, %v484, -inf
    %813 = vmax.xlane.f32.xlu0 %v812
    %v814 = vpop.xlane.xlu0 %813
    %v815 = vsel %vm811, %v530, -inf
    %816 = vmax.xlane.f32.xlu0 %v815
    %v817 = vpop.xlane.xlu0 %816
    %v818 = vsel %vm811, %v576, -inf
    %819 = vmax.xlane.f32.xlu0 %v818
    %v820 = vpop.xlane.xlu0 %819
    %v821 = vsel %vm811, %v622, -inf
    %822 = vmax.xlane.f32.xlu0 %v821
    %v823 = vpop.xlane.xlu0 %822
    %v824 = vsel %vm811, %v668, -inf
    %825 = vmax.xlane.f32.xlu0 %v824
    %v826 = vpop.xlane.xlu0 %825
    %v827 = vsel %vm811, %v714, -inf
    %828 = vmax.xlane.f32.xlu0 %v827
    %v829 = vpop.xlane.xlu0 %828
    %v830 = vsel %vm811, %v760, -inf
    %831 = vmax.xlane.f32.xlu0 %v830
    %v832 = vpop.xlane.xlu0 %831
    %v833 = vsel %vm811, %v806, -inf
    %834 = vmax.xlane.f32.xlu0 %v833
    %v835 = vpop.xlane.xlu0 %834
    %v836 = vsub.f32 %v484, %v814
    %v837 = vsub.f32 %v530, %v817
    %v838 = vsub.f32 %v576, %v820
    %v839 = vsub.f32 %v622, %v823
    %v840 = vsub.f32 %v668, %v826
    %v841 = vsub.f32 %v714, %v829
    %v842 = vsub.f32 %v760, %v832
    %v843 = vsub.f32 %v806, %v835
    %v844 = vmul.f32 %v836, 1.442695
    %v845 = vpow.pop %v844
    %v846 = vmul.f32 %v837, 1.442695
    %v847 = vpow.pop %v846
    %v848 = vmul.f32 %v838, 1.442695
    %v849 = vpow.pop %v848
    %v850 = vmul.f32 %v839, 1.442695
    %v851 = vpow.pop %v850
    %v852 = vmul.f32 %v840, 1.442695
    %v853 = vpow.pop %v852
    %v854 = vmul.f32 %v841, 1.442695
    %v855 = vpow.pop %v854
    %v856 = vmul.f32 %v842, 1.442695
    %v857 = vpow.pop %v856
    %v858 = vmul.f32 %v843, 1.442695
    %v859 = vpow.pop %v858
    %v860 = vsel %vm811, %v845, 0.0
    %861 = vadd.xlane.f32.xlu0 %v860
    %v862 = vpop.xlane.xlu0 %861
    %v863 = vsel %vm811, %v847, 0.0
    %864 = vadd.xlane.f32.xlu0 %v863
    %v865 = vpop.xlane.xlu0 %864
    %v866 = vsel %vm811, %v849, 0.0
    %867 = vadd.xlane.f32.xlu0 %v866
    %v868 = vpop.xlane.xlu0 %867
    %v869 = vsel %vm811, %v851, 0.0
    %870 = vadd.xlane.f32.xlu0 %v869
    %v871 = vpop.xlane.xlu0 %870
    %v872 = vsel %vm811, %v853, 0.0
    %873 = vadd.xlane.f32.xlu0 %v872
    %v874 = vpop.xlane.xlu0 %873
    %v875 = vsel %vm811, %v855, 0.0
    %876 = vadd.xlane.f32.xlu0 %v875
    %v877 = vpop.xlane.xlu0 %876
    %v878 = vsel %vm811, %v857, 0.0
    %879 = vadd.xlane.f32.xlu0 %v878
    %v880 = vpop.xlane.xlu0 %879
    %v881 = vsel %vm811, %v859, 0.0
    %882 = vadd.xlane.f32.xlu0 %v881
    %v883 = vpop.xlane.xlu0 %882
    %v884 = vrcp.pop %v862
    %v885 = vrcp.pop %v865
    %v886 = vrcp.pop %v868
    %v887 = vrcp.pop %v871
    %v888 = vrcp.pop %v874
    %v889 = vrcp.pop %v877
    %v890 = vrcp.pop %v880
    %v891 = vrcp.pop %v883
    %v892 = vmul.f32 %v845, %v884
    %v893 = vmul.f32 %v847, %v885
    %v894 = vmul.f32 %v849, %v886
    %v895 = vmul.f32 %v851, %v887
    %v896 = vmul.f32 %v853, %v888
    %v897 = vmul.f32 %v855, %v889
    %v898 = vmul.f32 %v857, %v890
    %v899 = vmul.f32 %v859, %v891
    %v900 = vpack.c.bf16 %v892, %v892
    %v901 = vpack.c.bf16 %v893, %v893
    %v902 = vpack.c.bf16 %v894, %v894
    %v903 = vpack.c.bf16 %v895, %v895
    %v904 = vpack.c.bf16 %v896, %v896
    %v905 = vpack.c.bf16 %v897, %v897
    %v906 = vpack.c.bf16 %v898, %v898
    %v907 = vpack.c.bf16 %v899, %v899
    %v909 = vsel %vm811, %v900, 0
    %vm911 = vcmask 1043456
    %v913 = vsel %vm911, %v428, 0
    %915 = vmatprep.subr.bf16.mxu0 0
    %916 = vmatpush1.bf16.msra.mxu0 %v913
    %917 = vmatprep.subr.bf16.mxu0 0
    %918 = vmatpush1.bf16.msra.mxu0 0
    %919 = vmatprep.subr.bf16.mxu0 0
    %920 = vmatpush1.bf16.msra.mxu0 0
    %921 = vmatprep.subr.bf16.mxu0 0
    %922 = vmatpush1.bf16.msra.mxu0 0
    %923 = vmatprep.subr.bf16.mxu0 0
    %924 = vmatpush1.bf16.msra.mxu0 0
    %925 = vmatprep.subr.bf16.mxu0 0
    %926 = vmatpush1.bf16.msra.mxu0 0
    %927 = vmatprep.subr.bf16.mxu0 0
    %928 = vmatpush1.bf16.msra.mxu0 0
    %929 = vmatprep.subr.bf16.mxu0 0
    %930 = vmatpush1.bf16.msra.mxu0 0
    %931 = vmatprep.subr.bf16.mxu0 0
    %932 = vmatpush1.bf16.msra.mxu0 0
    %933 = vmatprep.subr.bf16.mxu0 0
    %934 = vmatpush1.bf16.msra.mxu0 0
    %935 = vmatprep.subr.bf16.mxu0 0
    %936 = vmatpush1.bf16.msra.mxu0 0
    %937 = vmatprep.subr.bf16.mxu0 0
    %938 = vmatpush1.bf16.msra.mxu0 0
    %939 = vmatprep.subr.bf16.mxu0 0
    %940 = vmatpush1.bf16.msra.mxu0 0
    %941 = vmatprep.subr.bf16.mxu0 0
    %942 = vmatpush1.bf16.msra.mxu0 0
    %943 = vmatprep.subr.bf16.mxu0 0
    %944 = vmatpush1.bf16.msra.mxu0 0
    %945 = vmatprep.subr.bf16.mxu0 0
    %946 = vmatpush1.bf16.msra.mxu0 0
    %947 = vmatprep.mubr.bf16.mxu0 0
    %948 = vmatmul.mubr.bf16.gmra.mrb[0].mxu0 %v909
    %v949 = vpop.f32.mrb[0].mxu0
    %v950 = vadd.f32 0.0, %v949
    %v951 = vpop.f32.mrb[0].mxu0
    %v952 = vpop.f32.mrb[0].mxu0
    %v953 = vpop.f32.mrb[0].mxu0
    %954 = vdwg.mxu0
    %v956 = vsel %vm811, %v901, 0
    %v959 = vsel %vm911, %v429, 0
    %961 = vmatprep.subr.bf16.mxu0 0
    %962 = vmatpush1.bf16.msra.mxu0 %v959
    %963 = vmatprep.subr.bf16.mxu0 0
    %964 = vmatpush1.bf16.msra.mxu0 0
    %965 = vmatprep.subr.bf16.mxu0 0
    %966 = vmatpush1.bf16.msra.mxu0 0
    %967 = vmatprep.subr.bf16.mxu0 0
    %968 = vmatpush1.bf16.msra.mxu0 0
    %969 = vmatprep.subr.bf16.mxu0 0
    %970 = vmatpush1.bf16.msra.mxu0 0
    %971 = vmatprep.subr.bf16.mxu0 0
    %972 = vmatpush1.bf16.msra.mxu0 0
    %973 = vmatprep.subr.bf16.mxu0 0
    %974 = vmatpush1.bf16.msra.mxu0 0
    %975 = vmatprep.subr.bf16.mxu0 0
    %976 = vmatpush1.bf16.msra.mxu0 0
    %977 = vmatprep.subr.bf16.mxu0 0
    %978 = vmatpush1.bf16.msra.mxu0 0
    %979 = vmatprep.subr.bf16.mxu0 0
    %980 = vmatpush1.bf16.msra.mxu0 0
    %981 = vmatprep.subr.bf16.mxu0 0
    %982 = vmatpush1.bf16.msra.mxu0 0
    %983 = vmatprep.subr.bf16.mxu0 0
    %984 = vmatpush1.bf16.msra.mxu0 0
    %985 = vmatprep.subr.bf16.mxu0 0
    %986 = vmatpush1.bf16.msra.mxu0 0
    %987 = vmatprep.subr.bf16.mxu0 0
    %988 = vmatpush1.bf16.msra.mxu0 0
    %989 = vmatprep.subr.bf16.mxu0 0
    %990 = vmatpush1.bf16.msra.mxu0 0
    %991 = vmatprep.subr.bf16.mxu0 0
    %992 = vmatpush1.bf16.msra.mxu0 0
    %993 = vmatprep.mubr.bf16.mxu0 0
    %994 = vmatmul.mubr.bf16.gmra.mrb[0].mxu0 %v956
    %v995 = vpop.f32.mrb[0].mxu0
    %v996 = vadd.f32 0.0, %v995
    %v997 = vpop.f32.mrb[0].mxu0
    %v998 = vpop.f32.mrb[0].mxu0
    %v999 = vpop.f32.mrb[0].mxu0
    %1000 = vdwg.mxu0
    %v1002 = vsel %vm811, %v902, 0
    %v1005 = vsel %vm911, %v431, 0
    %1007 = vmatprep.subr.bf16.mxu0 0
    %1008 = vmatpush1.bf16.msra.mxu0 %v1005
    %1009 = vmatprep.subr.bf16.mxu0 0
    %1010 = vmatpush1.bf16.msra.mxu0 0
    %1011 = vmatprep.subr.bf16.mxu0 0
    %1012 = vmatpush1.bf16.msra.mxu0 0
    %1013 = vmatprep.subr.bf16.mxu0 0
    %1014 = vmatpush1.bf16.msra.mxu0 0
    %1015 = vmatprep.subr.bf16.mxu0 0
    %1016 = vmatpush1.bf16.msra.mxu0 0
    %1017 = vmatprep.subr.bf16.mxu0 0
    %1018 = vmatpush1.bf16.msra.mxu0 0
    %1019 = vmatprep.subr.bf16.mxu0 0
    %1020 = vmatpush1.bf16.msra.mxu0 0
    %1021 = vmatprep.subr.bf16.mxu0 0
    %1022 = vmatpush1.bf16.msra.mxu0 0
    %1023 = vmatprep.subr.bf16.mxu0 0
    %1024 = vmatpush1.bf16.msra.mxu0 0
    %1025 = vmatprep.subr.bf16.mxu0 0
    %1026 = vmatpush1.bf16.msra.mxu0 0
    %1027 = vmatprep.subr.bf16.mxu0 0
    %1028 = vmatpush1.bf16.msra.mxu0 0
    %1029 = vmatprep.subr.bf16.mxu0 0
    %1030 = vmatpush1.bf16.msra.mxu0 0
    %1031 = vmatprep.subr.bf16.mxu0 0
    %1032 = vmatpush1.bf16.msra.mxu0 0
    %1033 = vmatprep.subr.bf16.mxu0 0
    %1034 = vmatpush1.bf16.msra.mxu0 0
    %1035 = vmatprep.subr.bf16.mxu0 0
    %1036 = vmatpush1.bf16.msra.mxu0 0
    %1037 = vmatprep.subr.bf16.mxu0 0
    %1038 = vmatpush1.bf16.msra.mxu0 0
    %1039 = vmatprep.mubr.bf16.mxu0 0
    %1040 = vmatmul.mubr.bf16.gmra.mrb[0].mxu0 %v1002
    %v1041 = vpop.f32.mrb[0].mxu0
    %v1042 = vadd.f32 0.0, %v1041
    %v1043 = vpop.f32.mrb[0].mxu0
    %v1044 = vpop.f32.mrb[0].mxu0
    %v1045 = vpop.f32.mrb[0].mxu0
    %1046 = vdwg.mxu0
    %v1048 = vsel %vm811, %v903, 0
    %v1051 = vsel %vm911, %v433, 0
    %1053 = vmatprep.subr.bf16.mxu0 0
    %1054 = vmatpush1.bf16.msra.mxu0 %v1051
    %1055 = vmatprep.subr.bf16.mxu0 0
    %1056 = vmatpush1.bf16.msra.mxu0 0
    %1057 = vmatprep.subr.bf16.mxu0 0
    %1058 = vmatpush1.bf16.msra.mxu0 0
    %1059 = vmatprep.subr.bf16.mxu0 0
    %1060 = vmatpush1.bf16.msra.mxu0 0
    %1061 = vmatprep.subr.bf16.mxu0 0
    %1062 = vmatpush1.bf16.msra.mxu0 0
    %1063 = vmatprep.subr.bf16.mxu0 0
    %1064 = vmatpush1.bf16.msra.mxu0 0
    %1065 = vmatprep.subr.bf16.mxu0 0
    %1066 = vmatpush1.bf16.msra.mxu0 0
    %1067 = vmatprep.subr.bf16.mxu0 0
    %1068 = vmatpush1.bf16.msra.mxu0 0
    %1069 = vmatprep.subr.bf16.mxu0 0
    %1070 = vmatpush1.bf16.msra.mxu0 0
    %1071 = vmatprep.subr.bf16.mxu0 0
    %1072 = vmatpush1.bf16.msra.mxu0 0
    %1073 = vmatprep.subr.bf16.mxu0 0
    %1074 = vmatpush1.bf16.msra.mxu0 0
    %1075 = vmatprep.subr.bf16.mxu0 0
    %1076 = vmatpush1.bf16.msra.mxu0 0
    %1077 = vmatprep.subr.bf16.mxu0 0
    %1078 = vmatpush1.bf16.msra.mxu0 0
    %1079 = vmatprep.subr.bf16.mxu0 0
    %1080 = vmatpush1.bf16.msra.mxu0 0
    %1081 = vmatprep.subr.bf16.mxu0 0
    %1082 = vmatpush1.bf16.msra.mxu0 0
    %1083 = vmatprep.subr.bf16.mxu0 0
    %1084 = vmatpush1.bf16.msra.mxu0 0
    %1085 = vmatprep.mubr.bf16.mxu0 0
    %1086 = vmatmul.mubr.bf16.gmra.mrb[0].mxu0 %v1048
    %v1087 = vpop.f32.mrb[0].mxu0
    %v1088 = vadd.f32 0.0, %v1087
    %v1089 = vpop.f32.mrb[0].mxu0
    %v1090 = vpop.f32.mrb[0].mxu0
    %v1091 = vpop.f32.mrb[0].mxu0
    %1092 = vdwg.mxu0
    %v1094 = vsel %vm811, %v904, 0
    %v1097 = vsel %vm911, %v435, 0
    %1099 = vmatprep.subr.bf16.mxu0 0
    %1100 = vmatpush1.bf16.msra.mxu0 %v1097
    %1101 = vmatprep.subr.bf16.mxu0 0
    %1102 = vmatpush1.bf16.msra.mxu0 0
    %1103 = vmatprep.subr.bf16.mxu0 0
    %1104 = vmatpush1.bf16.msra.mxu0 0
    %1105 = vmatprep.subr.bf16.mxu0 0
    %1106 = vmatpush1.bf16.msra.mxu0 0
    %1107 = vmatprep.subr.bf16.mxu0 0
    %1108 = vmatpush1.bf16.msra.mxu0 0
    %1109 = vmatprep.subr.bf16.mxu0 0
    %1110 = vmatpush1.bf16.msra.mxu0 0
    %1111 = vmatprep.subr.bf16.mxu0 0
    %1112 = vmatpush1.bf16.msra.mxu0 0
    %1113 = vmatprep.subr.bf16.mxu0 0
    %1114 = vmatpush1.bf16.msra.mxu0 0
    %1115 = vmatprep.subr.bf16.mxu0 0
    %1116 = vmatpush1.bf16.msra.mxu0 0
    %1117 = vmatprep.subr.bf16.mxu0 0
    %1118 = vmatpush1.bf16.msra.mxu0 0
    %1119 = vmatprep.subr.bf16.mxu0 0
    %1120 = vmatpush1.bf16.msra.mxu0 0
    %1121 = vmatprep.subr.bf16.mxu0 0
    %1122 = vmatpush1.bf16.msra.mxu0 0
    %1123 = vmatprep.subr.bf16.mxu0 0
    %1124 = vmatpush1.bf16.msra.mxu0 0
    %1125 = vmatprep.subr.bf16.mxu0 0
    %1126 = vmatpush1.bf16.msra.mxu0 0
    %1127 = vmatprep.subr.bf16.mxu0 0
    %1128 = vmatpush1.bf16.msra.mxu0 0
    %1129 = vmatprep.subr.bf16.mxu0 0
    %1130 = vmatpush1.bf16.msra.mxu0 0
    %1131 = vmatprep.mubr.bf16.mxu0 0
    %1132 = vmatmul.mubr.bf16.gmra.mrb[0].mxu0 %v1094
    %v1133 = vpop.f32.mrb[0].mxu0
    %v1134 = vadd.f32 0.0, %v1133
    %v1135 = vpop.f32.mrb[0].mxu0
    %v1136 = vpop.f32.mrb[0].mxu0
    %v1137 = vpop.f32.mrb[0].mxu0
    %1138 = vdwg.mxu0
    %v1140 = vsel %vm811, %v905, 0
    %v1143 = vsel %vm911, %v437, 0
    %1145 = vmatprep.subr.bf16.mxu0 0
    %1146 = vmatpush1.bf16.msra.mxu0 %v1143
    %1147 = vmatprep.subr.bf16.mxu0 0
    %1148 = vmatpush1.bf16.msra.mxu0 0
    %1149 = vmatprep.subr.bf16.mxu0 0
    %1150 = vmatpush1.bf16.msra.mxu0 0
    %1151 = vmatprep.subr.bf16.mxu0 0
    %1152 = vmatpush1.bf16.msra.mxu0 0
    %1153 = vmatprep.subr.bf16.mxu0 0
    %1154 = vmatpush1.bf16.msra.mxu0 0
    %1155 = vmatprep.subr.bf16.mxu0 0
    %1156 = vmatpush1.bf16.msra.mxu0 0
    %1157 = vmatprep.subr.bf16.mxu0 0
    %1158 = vmatpush1.bf16.msra.mxu0 0
    %1159 = vmatprep.subr.bf16.mxu0 0
    %1160 = vmatpush1.bf16.msra.mxu0 0
    %1161 = vmatprep.subr.bf16.mxu0 0
    %1162 = vmatpush1.bf16.msra.mxu0 0
    %1163 = vmatprep.subr.bf16.mxu0 0
    %1164 = vmatpush1.bf16.msra.mxu0 0
    %1165 = vmatprep.subr.bf16.mxu0 0
    %1166 = vmatpush1.bf16.msra.mxu0 0
    %1167 = vmatprep.subr.bf16.mxu0 0
    %1168 = vmatpush1.bf16.msra.mxu0 0
    %1169 = vmatprep.subr.bf16.mxu0 0
    %1170 = vmatpush1.bf16.msra.mxu0 0
    %1171 = vmatprep.subr.bf16.mxu0 0
    %1172 = vmatpush1.bf16.msra.mxu0 0
    %1173 = vmatprep.subr.bf16.mxu0 0
    %1174 = vmatpush1.bf16.msra.mxu0 0
    %1175 = vmatprep.subr.bf16.mxu0 0
    %1176 = vmatpush1.bf16.msra.mxu0 0
    %1177 = vmatprep.mubr.bf16.mxu0 0
    %1178 = vmatmul.mubr.bf16.gmra.mrb[0].mxu0 %v1140
    %v1179 = vpop.f32.mrb[0].mxu0
    %v1180 = vadd.f32 0.0, %v1179
    %v1181 = vpop.f32.mrb[0].mxu0
    %v1182 = vpop.f32.mrb[0].mxu0
    %v1183 = vpop.f32.mrb[0].mxu0
    %1184 = vdwg.mxu0
    %v1186 = vsel %vm811, %v906, 0
    %v1189 = vsel %vm911, %v439, 0
    %1191 = vmatprep.subr.bf16.mxu0 0
    %1192 = vmatpush1.bf16.msra.mxu0 %v1189
    %1193 = vmatprep.subr.bf16.mxu0 0
    %1194 = vmatpush1.bf16.msra.mxu0 0
    %1195 = vmatprep.subr.bf16.mxu0 0
    %1196 = vmatpush1.bf16.msra.mxu0 0
    %1197 = vmatprep.subr.bf16.mxu0 0
    %1198 = vmatpush1.bf16.msra.mxu0 0
    %1199 = vmatprep.subr.bf16.mxu0 0
    %1200 = vmatpush1.bf16.msra.mxu0 0
    %1201 = vmatprep.subr.bf16.mxu0 0
    %1202 = vmatpush1.bf16.msra.mxu0 0
    %1203 = vmatprep.subr.bf16.mxu0 0
    %1204 = vmatpush1.bf16.msra.mxu0 0
    %1205 = vmatprep.subr.bf16.mxu0 0
    %1206 = vmatpush1.bf16.msra.mxu0 0
    %1207 = vmatprep.subr.bf16.mxu0 0
    %1208 = vmatpush1.bf16.msra.mxu0 0
    %1209 = vmatprep.subr.bf16.mxu0 0
    %1210 = vmatpush1.bf16.msra.mxu0 0
    %1211 = vmatprep.subr.bf16.mxu0 0
    %1212 = vmatpush1.bf16.msra.mxu0 0
    %1213 = vmatprep.subr.bf16.mxu0 0
    %1214 = vmatpush1.bf16.msra.mxu0 0
    %1215 = vmatprep.subr.bf16.mxu0 0
    %1216 = vmatpush1.bf16.msra.mxu0 0
    %1217 = vmatprep.subr.bf16.mxu0 0
    %1218 = vmatpush1.bf16.msra.mxu0 0
    %1219 = vmatprep.subr.bf16.mxu0 0
    %1220 = vmatpush1.bf16.msra.mxu0 0
    %1221 = vmatprep.subr.bf16.mxu0 0
    %1222 = vmatpush1.bf16.msra.mxu0 0
    %1223 = vmatprep.mubr.bf16.mxu0 0
    %1224 = vmatmul.mubr.bf16.gmra.mrb[0].mxu0 %v1186
    %v1225 = vpop.f32.mrb[0].mxu0
    %v1226 = vadd.f32 0.0, %v1225
    %v1227 = vpop.f32.mrb[0].mxu0
    %v1228 = vpop.f32.mrb[0].mxu0
    %v1229 = vpop.f32.mrb[0].mxu0
    %1230 = vdwg.mxu0
    %v1232 = vsel %vm811, %v907, 0
    %v1235 = vsel %vm911, %v441, 0
    %1237 = vmatprep.subr.bf16.mxu0 0
    %1238 = vmatpush1.bf16.msra.mxu0 %v1235
    %1239 = vmatprep.subr.bf16.mxu0 0
    %1240 = vmatpush1.bf16.msra.mxu0 0
    %1241 = vmatprep.subr.bf16.mxu0 0
    %1242 = vmatpush1.bf16.msra.mxu0 0
    %1243 = vmatprep.subr.bf16.mxu0 0
    %1244 = vmatpush1.bf16.msra.mxu0 0
    %1245 = vmatprep.subr.bf16.mxu0 0
    %1246 = vmatpush1.bf16.msra.mxu0 0
    %1247 = vmatprep.subr.bf16.mxu0 0
    %1248 = vmatpush1.bf16.msra.mxu0 0
    %1249 = vmatprep.subr.bf16.mxu0 0
    %1250 = vmatpush1.bf16.msra.mxu0 0
    %1251 = vmatprep.subr.bf16.mxu0 0
    %1252 = vmatpush1.bf16.msra.mxu0 0
    %1253 = vmatprep.subr.bf16.mxu0 0
    %1254 = vmatpush1.bf16.msra.mxu0 0
    %1255 = vmatprep.subr.bf16.mxu0 0
    %1256 = vmatpush1.bf16.msra.mxu0 0
    %1257 = vmatprep.subr.bf16.mxu0 0
    %1258 = vmatpush1.bf16.msra.mxu0 0
    %1259 = vmatprep.subr.bf16.mxu0 0
    %1260 = vmatpush1.bf16.msra.mxu0 0
    %1261 = vmatprep.subr.bf16.mxu0 0
    %1262 = vmatpush1.bf16.msra.mxu0 0
    %1263 = vmatprep.subr.bf16.mxu0 0
    %1264 = vmatpush1.bf16.msra.mxu0 0
    %1265 = vmatprep.subr.bf16.mxu0 0
    %1266 = vmatpush1.bf16.msra.mxu0 0
    %1267 = vmatprep.subr.bf16.mxu0 0
    %1268 = vmatpush1.bf16.msra.mxu0 0
    %1269 = vmatprep.mubr.bf16.mxu0 0
    %1270 = vmatmul.mubr.bf16.gmra.mrb[0].mxu0 %v1232
    %v1271 = vpop.f32.mrb[0].mxu0
    %v1272 = vadd.f32 0.0, %v1271
    %v1273 = vpop.f32.mrb[0].mxu0
    %v1274 = vpop.f32.mrb[0].mxu0
    %v1275 = vpop.f32.mrb[0].mxu0
    %1276 = vdwg.mxu0
    %1279 = vrot.lane.b32.xlu0 %v1042, 32
    %v1280 = vpop.permute.xlu0 %1279
    %1281 = vrot.lane.b32.xlu0 %v1088, 32
    %v1282 = vpop.permute.xlu0 %1281
    %1287 = vrot.lane.b32.xlu0 %v1134, 64
    %v1288 = vpop.permute.xlu0 %1287
    %1289 = vrot.lane.b32.xlu0 %v1180, 64
    %v1290 = vpop.permute.xlu0 %1289
    %1295 = vrot.lane.b32.xlu0 %v1226, 96
    %v1296 = vpop.permute.xlu0 %1295
    %1297 = vrot.lane.b32.xlu0 %v1272, 96
    %v1298 = vpop.permute.xlu0 %1297
    %v1301 = vsel %vm442, %v950, %v1280
    %v1302 = vsel %vm442, %v996, %v1282
    %vm1303 = vcmask 523264
    %v1304 = vsel %vm1303, %v1301, %v1288
    %v1305 = vsel %vm1303, %v1302, %v1290
    %vm1306 = vcmask 785408
    %v1307 = vsel %vm1306, %v1304, %v1296
    %v1308 = vsel %vm1306, %v1305, %v1298
    %v1309 = vpack.c.bf16 %v1308, %v1307
    %v1310 = vld [vmem:[%s4] sm:$0xf]
    %v1311 = vld [vmem:[%s4 + $0x4] sm:$0xf]
    %v1312 = vld [vmem:[%s4 + $0x8] sm:$0xf]
    %v1313 = vld [vmem:[%s4 + $0xc] sm:$0xf]
    %v1314 = vld [vmem:[%s4 + $0x10] sm:$0xf]
    %v1315 = vld [vmem:[%s4 + $0x14] sm:$0xf]
    %v1316 = vld [vmem:[%s4 + $0x18] sm:$0xf]
    %v1317 = vld [vmem:[%s4 + $0x1c] sm:$0xf]
    %v1318 = vld [vmem:[%s4 + $0x20] sm:$0xf]
    %v1319 = vld [vmem:[%s4 + $0x24] sm:$0xf]
    %v1320 = vld [vmem:[%s4 + $0x28] sm:$0xf]
    %v1321 = vld [vmem:[%s4 + $0x2c] sm:$0xf]
    %v1322 = vld [vmem:[%s4 + $0x30] sm:$0xf]
    %v1323 = vld [vmem:[%s4 + $0x34] sm:$0xf]
    %v1324 = vld [vmem:[%s4 + $0x38] sm:$0xf]
    %v1325 = vld [vmem:[%s4 + $0x3c] sm:$0xf]
    %v1326 = vld [vmem:[%s5] sm:$0x1]
    %v1328 = vlaneseq
    %v1329 = vshrl.u32 %v1328, 7
    %v1330 = vsub.s32 0, %v1329
    %v1331 = vrot.slane %v1326, %v1330
    %v1349 = vunpack.c.l.b16 %v1310
    %v1350 = vunpack.c.l.b16 %v1311
    %v1351 = vunpack.c.l.b16 %v1312
    %v1352 = vunpack.c.l.b16 %v1313
    %v1353 = vunpack.c.l.b16 %v1314
    %v1354 = vunpack.c.l.b16 %v1315
    %v1355 = vunpack.c.l.b16 %v1316
    %v1356 = vunpack.c.l.b16 %v1317
    %v1357 = vunpack.c.l.b16 %v1318
    %v1358 = vunpack.c.l.b16 %v1319
    %v1359 = vunpack.c.l.b16 %v1320
    %v1360 = vunpack.c.l.b16 %v1321
    %v1361 = vunpack.c.l.b16 %v1322
    %v1362 = vunpack.c.l.b16 %v1323
    %v1363 = vunpack.c.l.b16 %v1324
    %v1364 = vunpack.c.l.b16 %v1325
    %v1365 = vpack.c.b16 %v1350, %v1349
    %v1366 = vpack.c.b16 %v1352, %v1351
    %v1367 = vpack.c.b16 %v1354, %v1353
    %v1368 = vpack.c.b16 %v1356, %v1355
    %v1369 = vpack.c.b16 %v1358, %v1357
    %v1370 = vpack.c.b16 %v1360, %v1359
    %v1371 = vpack.c.b16 %v1362, %v1361
    %v1372 = vpack.c.b16 %v1364, %v1363
    %1381 = vmatprep.subr.bf16.mxu0 0
    %1382 = vmatpush1.bf16.msra.mxu0 %v1365
    %1383 = vmatprep.subr.bf16.mxu0 0
    %1384 = vmatpush1.bf16.msra.mxu0 %v1366
    %1385 = vmatprep.subr.bf16.mxu0 0
    %1386 = vmatpush1.bf16.msra.mxu0 %v1367
    %1387 = vmatprep.subr.bf16.mxu0 0
    %1388 = vmatpush1.bf16.msra.mxu0 %v1368
    %1389 = vmatprep.subr.bf16.mxu0 0
    %1390 = vmatpush1.bf16.msra.mxu0 %v1369
    %1391 = vmatprep.subr.bf16.mxu0 0
    %1392 = vmatpush1.bf16.msra.mxu0 %v1370
    %1393 = vmatprep.subr.bf16.mxu0 0
    %1394 = vmatpush1.bf16.msra.mxu0 %v1371
    %1395 = vmatprep.subr.bf16.mxu0 0
    %1396 = vmatpush1.bf16.msra.mxu0 %v1372
    %1397 = vmatprep.subr.bf16.mxu0 0
    %1398 = vmatpush1.bf16.msra.mxu0 0
    %1399 = vmatprep.subr.bf16.mxu0 0
    %1400 = vmatpush1.bf16.msra.mxu0 0
    %1401 = vmatprep.subr.bf16.mxu0 0
    %1402 = vmatpush1.bf16.msra.mxu0 0
    %1403 = vmatprep.subr.bf16.mxu0 0
    %1404 = vmatpush1.bf16.msra.mxu0 0
    %1405 = vmatprep.subr.bf16.mxu0 0
    %1406 = vmatpush1.bf16.msra.mxu0 0
    %1407 = vmatprep.subr.bf16.mxu0 0
    %1408 = vmatpush1.bf16.msra.mxu0 0
    %1409 = vmatprep.subr.bf16.mxu0 0
    %1410 = vmatpush1.bf16.msra.mxu0 0
    %1411 = vmatprep.subr.bf16.mxu0 0
    %1412 = vmatpush1.bf16.msra.mxu0 0
    %1413 = vmatprep.mubr.bf16.mxu0 0
    %1414 = vmatmul.mubr.bf16.gmra.mrb[0].mxu0 %v1309
    %v1415 = vpop.f32.mrb[0].mxu0
    %v1416 = vadd.f32 %v1331, %v1415
    %v1417 = vpop.f32.mrb[0].mxu0
    %v1418 = vpop.f32.mrb[0].mxu0
    %v1419 = vadd.f32 %v1331, %v1418
    %v1420 = vpop.f32.mrb[0].mxu0
    %1421 = vdwg.mxu0
    %v1422 = vadd.f32 %v110, %v1416
    %v1423 = vadd.f32 %v111, %v1419
    %v1424 = vld [vmem:[%s6] sm:$0x1]
    %v1425 = vld [vmem:[%s7] sm:$0x1]
    %1426 = vadd.xlane.f32.xlu0 %v1422
    %v1427 = vpop.xlane.xlu0 %1426
    %1428 = vadd.xlane.f32.xlu0 %v1423
    %v1429 = vpop.xlane.xlu0 %1428
    %v1430 = vrcp.pop 128.0
    %v1431 = vmul.f32 %v1427, %v1430
    %v1432 = vmul.f32 %v1429, %v1430
    %v1433 = vsub.f32 %v1422, %v1431
    %v1434 = vsub.f32 %v1423, %v1432
    %v1435 = vmul.f32 %v1433, %v1433
    %v1436 = vmul.f32 %v1434, %v1434
    %1437 = vadd.xlane.f32.xlu0 %v1435
    %v1438 = vpop.xlane.xlu0 %1437
    %1439 = vadd.xlane.f32.xlu0 %v1436
    %v1440 = vpop.xlane.xlu0 %1439
    %v1441 = vmul.f32 %v1438, %v1430
    %v1442 = vmul.f32 %v1440, %v1430
    %v1443 = vadd.f32 %v1441, 1e-12
    %v1444 = vadd.f32 %v1442, 1e-12
    %v1445 = vrsqrt.pop %v1443
    %v1446 = vrsqrt.pop %v1444
    %v1447 = vmul.f32 %v1433, %v1445
    %v1448 = vmul.f32 %v1434, %v1446
    %v1450 = vlaneseq
    %v1451 = vshrl.u32 %v1450, 7
    %v1452 = vsub.s32 0, %v1451
    %v1453 = vrot.slane %v1424, %v1452
    %v1455 = vmul.f32 %v1447, %v1453
    %v1456 = vmul.f32 %v1448, %v1453
    %v1458 = vlaneseq
    %v1459 = vshrl.u32 %v1458, 7
    %v1460 = vsub.s32 0, %v1459
    %v1461 = vrot.slane %v1425, %v1460
    %v1463 = vadd.f32 %v1455, %v1461
    %v1464 = vadd.f32 %v1456, %v1461
    %v1465 = vpack.c.bf16 %v1464, %v1463
    %v1466 = vld [vmem:[#allocation5] sm:$0xff]
    %v1467 = vld [vmem:[#allocation5 + $0x8] sm:$0xff]
    %v1468 = vld [vmem:[#allocation5 + $0x10] sm:$0xff]
    %v1469 = vld [vmem:[#allocation5 + $0x18] sm:$0xff]
    %v1470 = vld [vmem:[#allocation5 + $0x20] sm:$0xff]
    %v1471 = vld [vmem:[#allocation5 + $0x28] sm:$0xff]
    %v1472 = vld [vmem:[#allocation5 + $0x30] sm:$0xff]
    %v1473 = vld [vmem:[#allocation5 + $0x38] sm:$0xff]
    %v1474 = vld [vmem:[#allocation5 + $0x40] sm:$0xff]
    %v1475 = vld [vmem:[#allocation5 + $0x48] sm:$0xff]
    %v1476 = vld [vmem:[#allocation5 + $0x50] sm:$0xff]
    %v1477 = vld [vmem:[#allocation5 + $0x58] sm:$0xff]
    %v1478 = vld [vmem:[#allocation5 + $0x60] sm:$0xff]
    %v1479 = vld [vmem:[#allocation5 + $0x68] sm:$0xff]
    %v1480 = vld [vmem:[#allocation5 + $0x70] sm:$0xff]
    %v1481 = vld [vmem:[#allocation5 + $0x78] sm:$0xff]
    %v1482 = vld [vmem:[#allocation5 + $0x80] sm:$0xff]
    %v1483 = vld [vmem:[#allocation5 + $0x88] sm:$0xff]
    %v1484 = vld [vmem:[#allocation5 + $0x90] sm:$0xff]
    %v1485 = vld [vmem:[#allocation5 + $0x98] sm:$0xff]
    %v1486 = vld [vmem:[#allocation5 + $0xa0] sm:$0xff]
    %v1487 = vld [vmem:[#allocation5 + $0xa8] sm:$0xff]
    %v1488 = vld [vmem:[#allocation5 + $0xb0] sm:$0xff]
    %v1489 = vld [vmem:[#allocation5 + $0xb8] sm:$0xff]
    %v1490 = vld [vmem:[#allocation5 + $0xc0] sm:$0xff]
    %v1491 = vld [vmem:[#allocation5 + $0xc8] sm:$0xff]
    %v1492 = vld [vmem:[#allocation5 + $0xd0] sm:$0xff]
    %v1493 = vld [vmem:[#allocation5 + $0xd8] sm:$0xff]
    %v1494 = vld [vmem:[#allocation5 + $0xe0] sm:$0xff]
    %v1495 = vld [vmem:[#allocation5 + $0xe8] sm:$0xff]
    %v1496 = vld [vmem:[#allocation5 + $0xf0] sm:$0xff]
    %v1497 = vld [vmem:[#allocation5 + $0xf8] sm:$0xff]
    %v1498 = vld [vmem:[%s9] sm:$0xf]
    %v1500 = vlaneseq
    %v1501 = vshrl.u32 %v1500, 7
    %v1502 = vsub.s32 0, %v1501
    %v1503 = vrot.slane %v1498, %v1502
    %v1504 = vlaneseq
    %v1505 = vshrl.u32 %v1504, 7
    %v1506 = vsub.s32 1, %v1505
    %v1507 = vrot.slane %v1498, %v1506
    %v1508 = vlaneseq
    %v1509 = vshrl.u32 %v1508, 7
    %v1510 = vsub.s32 2, %v1509
    %v1511 = vrot.slane %v1498, %v1510
    %v1512 = vlaneseq
    %v1513 = vshrl.u32 %v1512, 7
    %v1514 = vsub.s32 3, %v1513
    %v1515 = vrot.slane %v1498, %v1514
    %v1552 = vunpack.c.l.b16 %v1466
    %v1553 = vunpack.c.h.b16 %v1466
    %v1554 = vunpack.c.l.b16 %v1467
    %v1555 = vunpack.c.h.b16 %v1467
    %v1556 = vunpack.c.l.b16 %v1468
    %v1557 = vunpack.c.h.b16 %v1468
    %v1558 = vunpack.c.l.b16 %v1469
    %v1559 = vunpack.c.h.b16 %v1469
    %v1560 = vunpack.c.l.b16 %v1470
    %v1561 = vunpack.c.h.b16 %v1470
    %v1562 = vunpack.c.l.b16 %v1471
    %v1563 = vunpack.c.h.b16 %v1471
    %v1564 = vunpack.c.l.b16 %v1472
    %v1565 = vunpack.c.h.b16 %v1472
    %v1566 = vunpack.c.l.b16 %v1473
    %v1567 = vunpack.c.h.b16 %v1473
    %v1568 = vunpack.c.l.b16 %v1474
    %v1569 = vunpack.c.h.b16 %v1474
    %v1570 = vunpack.c.l.b16 %v1475
    %v1571 = vunpack.c.h.b16 %v1475
    %v1572 = vunpack.c.l.b16 %v1476
    %v1573 = vunpack.c.h.b16 %v1476
    %v1574 = vunpack.c.l.b16 %v1477
    %v1575 = vunpack.c.h.b16 %v1477
    %v1576 = vunpack.c.l.b16 %v1478
    %v1577 = vunpack.c.h.b16 %v1478
    %v1578 = vunpack.c.l.b16 %v1479
    %v1579 = vunpack.c.h.b16 %v1479
    %v1580 = vunpack.c.l.b16 %v1480
    %v1581 = vunpack.c.h.b16 %v1480
    %v1582 = vunpack.c.l.b16 %v1481
    %v1583 = vunpack.c.h.b16 %v1481
    %v1584 = vunpack.c.l.b16 %v1482
    %v1585 = vunpack.c.h.b16 %v1482
    %v1586 = vunpack.c.l.b16 %v1483
    %v1587 = vunpack.c.h.b16 %v1483
    %v1588 = vunpack.c.l.b16 %v1484
    %v1589 = vunpack.c.h.b16 %v1484
    %v1590 = vunpack.c.l.b16 %v1485
    %v1591 = vunpack.c.h.b16 %v1485
    %v1592 = vunpack.c.l.b16 %v1486
    %v1593 = vunpack.c.h.b16 %v1486
    %v1594 = vunpack.c.l.b16 %v1487
    %v1595 = vunpack.c.h.b16 %v1487
    %v1596 = vunpack.c.l.b16 %v1488
    %v1597 = vunpack.c.h.b16 %v1488
    %v1598 = vunpack.c.l.b16 %v1489
    %v1599 = vunpack.c.h.b16 %v1489
    %v1600 = vunpack.c.l.b16 %v1490
    %v1601 = vunpack.c.h.b16 %v1490
    %v1602 = vunpack.c.l.b16 %v1491
    %v1603 = vunpack.c.h.b16 %v1491
    %v1604 = vunpack.c.l.b16 %v1492
    %v1605 = vunpack.c.h.b16 %v1492
    %v1606 = vunpack.c.l.b16 %v1493
    %v1607 = vunpack.c.h.b16 %v1493
    %v1608 = vunpack.c.l.b16 %v1494
    %v1609 = vunpack.c.h.b16 %v1494
    %v1610 = vunpack.c.l.b16 %v1495
    %v1611 = vunpack.c.h.b16 %v1495
    %v1612 = vunpack.c.l.b16 %v1496
    %v1613 = vunpack.c.h.b16 %v1496
    %v1614 = vunpack.c.l.b16 %v1497
    %v1615 = vunpack.c.h.b16 %v1497
    %v1616 = vpack.c.b16 %v1556, %v1552
    %v1617 = vpack.c.b16 %v1557, %v1553
    %v1618 = vpack.c.b16 %v1558, %v1554
    %v1619 = vpack.c.b16 %v1559, %v1555
    %v1620 = vpack.c.b16 %v1564, %v1560
    %v1621 = vpack.c.b16 %v1565, %v1561
    %v1622 = vpack.c.b16 %v1566, %v1562
    %v1623 = vpack.c.b16 %v1567, %v1563
    %v1624 = vpack.c.b16 %v1572, %v1568
    %v1625 = vpack.c.b16 %v1573, %v1569
    %v1626 = vpack.c.b16 %v1574, %v1570
    %v1627 = vpack.c.b16 %v1575, %v1571
    %v1628 = vpack.c.b16 %v1580, %v1576
    %v1629 = vpack.c.b16 %v1581, %v1577
    %v1630 = vpack.c.b16 %v1582, %v1578
    %v1631 = vpack.c.b16 %v1583, %v1579
    %v1632 = vpack.c.b16 %v1588, %v1584
    %v1633 = vpack.c.b16 %v1589, %v1585
    %v1634 = vpack.c.b16 %v1590, %v1586
    %v1635 = vpack.c.b16 %v1591, %v1587
    %v1636 = vpack.c.b16 %v1596, %v1592
    %v1637 = vpack.c.b16 %v1597, %v1593
    %v1638 = vpack.c.b16 %v1598, %v1594
    %v1639 = vpack.c.b16 %v1599, %v1595
    %v1640 = vpack.c.b16 %v1604, %v1600
    %v1641 = vpack.c.b16 %v1605, %v1601
    %v1642 = vpack.c.b16 %v1606, %v1602
    %v1643 = vpack.c.b16 %v1607, %v1603
    %v1644 = vpack.c.b16 %v1612, %v1608
    %v1645 = vpack.c.b16 %v1613, %v1609
    %v1646 = vpack.c.b16 %v1614, %v1610
    %v1647 = vpack.c.b16 %v1615, %v1611
    %1680 = vmatprep.subr.bf16.mxu0 %v1617
    %1681 = vmatpush1.bf16.msra.mxu0 %v1616
    %1682 = vmatprep.subr.bf16.mxu0 %v1621
    %1683 = vmatpush1.bf16.msra.mxu0 %v1620
    %1684 = vmatprep.subr.bf16.mxu0 %v1625
    %1685 = vmatpush1.bf16.msra.mxu0 %v1624
    %1686 = vmatprep.subr.bf16.mxu0 %v1629
    %1687 = vmatpush1.bf16.msra.mxu0 %v1628
    %1688 = vmatprep.subr.bf16.mxu0 %v1633
    %1689 = vmatpush1.bf16.msra.mxu0 %v1632
    %1690 = vmatprep.subr.bf16.mxu0 %v1637
    %1691 = vmatpush1.bf16.msra.mxu0 %v1636
    %1692 = vmatprep.subr.bf16.mxu0 %v1641
    %1693 = vmatpush1.bf16.msra.mxu0 %v1640
    %1694 = vmatprep.subr.bf16.mxu0 %v1645
    %1695 = vmatpush1.bf16.msra.mxu0 %v1644
    %1696 = vmatprep.subr.bf16.mxu0 0
    %1697 = vmatpush1.bf16.msra.mxu0 0
    %1698 = vmatprep.subr.bf16.mxu0 0
    %1699 = vmatpush1.bf16.msra.mxu0 0
    %1700 = vmatprep.subr.bf16.mxu0 0
    %1701 = vmatpush1.bf16.msra.mxu0 0
    %1702 = vmatprep.subr.bf16.mxu0 0
    %1703 = vmatpush1.bf16.msra.mxu0 0
    %1704 = vmatprep.subr.bf16.mxu0 0
    %1705 = vmatpush1.bf16.msra.mxu0 0
    %1706 = vmatprep.subr.bf16.mxu0 0
    %1707 = vmatpush1.bf16.msra.mxu0 0
    %1708 = vmatprep.subr.bf16.mxu0 0
    %1709 = vmatpush1.bf16.msra.mxu0 0
    %1710 = vmatprep.subr.bf16.mxu0 0
    %1711 = vmatpush1.bf16.msra.mxu0 0
    %1712 = vmatprep.mubr.bf16.mxu0 0
    %1713 = vmatmul.mubr.bf16.gmra.mrb[0].mxu0 %v1465
    %v1714 = vpop.f32.mrb[0].mxu0
    %v1715 = vadd.f32 %v1503, %v1714
    %v1716 = vpop.f32.mrb[0].mxu0
    %v1717 = vadd.f32 %v1507, %v1716
    %v1718 = vpop.f32.mrb[0].mxu0
    %v1719 = vadd.f32 %v1503, %v1718
    %v1720 = vpop.f32.mrb[0].mxu0
    %v1721 = vadd.f32 %v1507, %v1720
    %1722 = vdwg.mxu0
    %1723 = vmatprep.subr.bf16.mxu0 %v1619
    %1724 = vmatpush1.bf16.msra.mxu0 %v1618
    %1725 = vmatprep.subr.bf16.mxu0 %v1623
    %1726 = vmatpush1.bf16.msra.mxu0 %v1622
    %1727 = vmatprep.subr.bf16.mxu0 %v1627
    %1728 = vmatpush1.bf16.msra.mxu0 %v1626
    %1729 = vmatprep.subr.bf16.mxu0 %v1631
    %1730 = vmatpush1.bf16.msra.mxu0 %v1630
    %1731 = vmatprep.subr.bf16.mxu0 %v1635
    %1732 = vmatpush1.bf16.msra.mxu0 %v1634
    %1733 = vmatprep.subr.bf16.mxu0 %v1639
    %1734 = vmatpush1.bf16.msra.mxu0 %v1638
    %1735 = vmatprep.subr.bf16.mxu0 %v1643
    %1736 = vmatpush1.bf16.msra.mxu0 %v1642
    %1737 = vmatprep.subr.bf16.mxu0 %v1647
    %1738 = vmatpush1.bf16.msra.mxu0 %v1646
    %1739 = vmatprep.subr.bf16.mxu0 0
    %1740 = vmatpush1.bf16.msra.mxu0 0
    %1741 = vmatprep.subr.bf16.mxu0 0
    %1742 = vmatpush1.bf16.msra.mxu0 0
    %1743 = vmatprep.subr.bf16.mxu0 0
    %1744 = vmatpush1.bf16.msra.mxu0 0
    %1745 = vmatprep.subr.bf16.mxu0 0
    %1746 = vmatpush1.bf16.msra.mxu0 0
    %1747 = vmatprep.subr.bf16.mxu0 0
    %1748 = vmatpush1.bf16.msra.mxu0 0
    %1749 = vmatprep.subr.bf16.mxu0 0
    %1750 = vmatpush1.bf16.msra.mxu0 0
    %1751 = vmatprep.subr.bf16.mxu0 0
    %1752 = vmatpush1.bf16.msra.mxu0 0
    %1753 = vmatprep.subr.bf16.mxu0 0
    %1754 = vmatpush1.bf16.msra.mxu0 0
    %1755 = vmatprep.mubr.bf16.mxu0 0
    %1756 = vmatmul.mubr.bf16.gmra.mrb[0].mxu0 %v1465
    %v1757 = vpop.f32.mrb[0].mxu0
    %v1758 = vadd.f32 %v1511, %v1757
    %v1759 = vpop.f32.mrb[0].mxu0
    %v1760 = vadd.f32 %v1515, %v1759
    %v1761 = vpop.f32.mrb[0].mxu0
    %v1762 = vadd.f32 %v1511, %v1761
    %v1763 = vpop.f32.mrb[0].mxu0
    %v1764 = vadd.f32 %v1515, %v1763
    %1765 = vdwg.mxu0
    %v1766 = vmul.f32 %v1715, 0.5
    %v1767 = vmul.f32 %v1717, 0.5
    %v1768 = vmul.f32 %v1758, 0.5
    %v1769 = vmul.f32 %v1760, 0.5
    %v1770 = vmul.f32 %v1719, 0.5
    %v1771 = vmul.f32 %v1721, 0.5
    %v1772 = vmul.f32 %v1762, 0.5
    %v1773 = vmul.f32 %v1764, 0.5
    %v1774 = vmul.f32 %v1715, 0.044715
    %v1775 = vmul.f32 %v1717, 0.044715
    %v1776 = vmul.f32 %v1758, 0.044715
    %v1777 = vmul.f32 %v1760, 0.044715
    %v1778 = vmul.f32 %v1719, 0.044715
    %v1779 = vmul.f32 %v1721, 0.044715
    %v1780 = vmul.f32 %v1762, 0.044715
    %v1781 = vmul.f32 %v1764, 0.044715
    %v1782 = vmul.f32 %v1774, %v1715
    %v1783 = vmul.f32 %v1775, %v1717
    %v1784 = vmul.f32 %v1776, %v1758
    %v1785 = vmul.f32 %v1777, %v1760
    %v1786 = vmul.f32 %v1778, %v1719
    %v1787 = vmul.f32 %v1779, %v1721
    %v1788 = vmul.f32 %v1780, %v1762
    %v1789 = vmul.f32 %v1781, %v1764
    %v1790 = vmul.f32 %v1782, %v1715
    %v1791 = vmul.f32 %v1783, %v1717
    %v1792 = vmul.f32 %v1784, %v1758
    %v1793 = vmul.f32 %v1785, %v1760
    %v1794 = vmul.f32 %v1786, %v1719
    %v1795 = vmul.f32 %v1787, %v1721
    %v1796 = vmul.f32 %v1788, %v1762
    %v1797 = vmul.f32 %v1789, %v1764
    %v1798 = vadd.f32 %v1715, %v1790
    %v1799 = vadd.f32 %v1717, %v1791
    %v1800 = vadd.f32 %v1758, %v1792
    %v1801 = vadd.f32 %v1760, %v1793
    %v1802 = vadd.f32 %v1719, %v1794
    %v1803 = vadd.f32 %v1721, %v1795
    %v1804 = vadd.f32 %v1762, %v1796
    %v1805 = vadd.f32 %v1764, %v1797
    %v1806 = vmul.f32 %v1798, 0.7978846
    %v1807 = vmul.f32 %v1799, 0.7978846
    %v1808 = vmul.f32 %v1800, 0.7978846
    %v1809 = vmul.f32 %v1801, 0.7978846
    %v1810 = vmul.f32 %v1802, 0.7978846
    %v1811 = vmul.f32 %v1803, 0.7978846
    %v1812 = vmul.f32 %v1804, 0.7978846
    %v1813 = vmul.f32 %v1805, 0.7978846
    %v1814 = vtanh.pop %v1806
    %v1815 = vtanh.pop %v1807
    %v1816 = vtanh.pop %v1808
    %v1817 = vtanh.pop %v1809
    %v1818 = vtanh.pop %v1810
    %v1819 = vtanh.pop %v1811
    %v1820 = vtanh.pop %v1812
    %v1821 = vtanh.pop %v1813
    %v1822 = vadd.f32 %v1814, 1.0
    %v1823 = vadd.f32 %v1815, 1.0
    %v1824 = vadd.f32 %v1816, 1.0
    %v1825 = vadd.f32 %v1817, 1.0
    %v1826 = vadd.f32 %v1818, 1.0
    %v1827 = vadd.f32 %v1819, 1.0
    %v1828 = vadd.f32 %v1820, 1.0
    %v1829 = vadd.f32 %v1821, 1.0
    %v1830 = vmul.f32 %v1766, %v1822
    %v1831 = vmul.f32 %v1767, %v1823
    %v1832 = vmul.f32 %v1768, %v1824
    %v1833 = vmul.f32 %v1769, %v1825
    %v1834 = vmul.f32 %v1770, %v1826
    %v1835 = vmul.f32 %v1771, %v1827
    %v1836 = vmul.f32 %v1772, %v1828
    %v1837 = vmul.f32 %v1773, %v1829
    %v1838 = vpack.c.bf16 %v1834, %v1830
    %v1839 = vpack.c.bf16 %v1835, %v1831
    %v1840 = vpack.c.bf16 %v1836, %v1832
    %v1841 = vpack.c.bf16 %v1837, %v1833
    %v1842 = vld [vmem:[#allocation7] sm:$0xf]
    %v1843 = vld [vmem:[#allocation7 + $0x4] sm:$0xf]
    %v1844 = vld [vmem:[#allocation7 + $0x8] sm:$0xf]
    %v1845 = vld [vmem:[#allocation7 + $0xc] sm:$0xf]
    %v1846 = vld [vmem:[#allocation7 + $0x10] sm:$0xf]
    %v1847 = vld [vmem:[#allocation7 + $0x14] sm:$0xf]
    %v1848 = vld [vmem:[#allocation7 + $0x18] sm:$0xf]
    %v1849 = vld [vmem:[#allocation7 + $0x1c] sm:$0xf]
    %v1850 = vld [vmem:[#allocation7 + $0x20] sm:$0xf]
    %v1851 = vld [vmem:[#allocation7 + $0x24] sm:$0xf]
    %v1852 = vld [vmem:[#allocation7 + $0x28] sm:$0xf]
    %v1853 = vld [vmem:[#allocation7 + $0x2c] sm:$0xf]
    %v1854 = vld [vmem:[#allocation7 + $0x30] sm:$0xf]
    %v1855 = vld [vmem:[#allocation7 + $0x34] sm:$0xf]
    %v1856 = vld [vmem:[#allocation7 + $0x38] sm:$0xf]
    %v1857 = vld [vmem:[#allocation7 + $0x3c] sm:$0xf]
    %v1858 = vld [vmem:[#allocation7 + $0x40] sm:$0xf]
    %v1859 = vld [vmem:[#allocation7 + $0x44] sm:$0xf]
    %v1860 = vld [vmem:[#allocation7 + $0x48] sm:$0xf]
    %v1861 = vld [vmem:[#allocation7 + $0x4c] sm:$0xf]
    %v1862 = vld [vmem:[#allocation7 + $0x50] sm:$0xf]
    %v1863 = vld [vmem:[#allocation7 + $0x54] sm:$0xf]
    %v1864 = vld [vmem:[#allocation7 + $0x58] sm:$0xf]
    %v1865 = vld [vmem:[#allocation7 + $0x5c] sm:$0xf]
    %v1866 = vld [vmem:[#allocation7 + $0x60] sm:$0xf]
    %v1867 = vld [vmem:[#allocation7 + $0x64] sm:$0xf]
    %v1868 = vld [vmem:[#allocation7 + $0x68] sm:$0xf]
    %v1869 = vld [vmem:[#allocation7 + $0x6c] sm:$0xf]
    %v1870 = vld [vmem:[#allocation7 + $0x70] sm:$0xf]
    %v1871 = vld [vmem:[#allocation7 + $0x74] sm:$0xf]
    %v1872 = vld [vmem:[#allocation7 + $0x78] sm:$0xf]
    %v1873 = vld [vmem:[#allocation7 + $0x7c] sm:$0xf]
    %v1874 = vld [vmem:[#allocation7 + $0x80] sm:$0xf]
    %v1875 = vld [vmem:[#allocation7 + $0x84] sm:$0xf]
    %v1876 = vld [vmem:[#allocation7 + $0x88] sm:$0xf]
    %v1877 = vld [vmem:[#allocation7 + $0x8c] sm:$0xf]
    %v1878 = vld [vmem:[#allocation7 + $0x90] sm:$0xf]
    %v1879 = vld [vmem:[#allocation7 + $0x94] sm:$0xf]
    %v1880 = vld [vmem:[#allocation7 + $0x98] sm:$0xf]
    %v1881 = vld [vmem:[#allocation7 + $0x9c] sm:$0xf]
    %v1882 = vld [vmem:[#allocation7 + $0xa0] sm:$0xf]
    %v1883 = vld [vmem:[#allocation7 + $0xa4] sm:$0xf]
    %v1884 = vld [vmem:[#allocation7 + $0xa8] sm:$0xf]
    %v1885 = vld [vmem:[#allocation7 + $0xac] sm:$0xf]
    %v1886 = vld [vmem:[#allocation7 + $0xb0] sm:$0xf]
    %v1887 = vld [vmem:[#allocation7 + $0xb4] sm:$0xf]
    %v1888 = vld [vmem:[#allocation7 + $0xb8] sm:$0xf]
    %v1889 = vld [vmem:[#allocation7 + $0xbc] sm:$0xf]
    %v1890 = vld [vmem:[#allocation7 + $0xc0] sm:$0xf]
    %v1891 = vld [vmem:[#allocation7 + $0xc4] sm:$0xf]
    %v1892 = vld [vmem:[#allocation7 + $0xc8] sm:$0xf]
    %v1893 = vld [vmem:[#allocation7 + $0xcc] sm:$0xf]
    %v1894 = vld [vmem:[#allocation7 + $0xd0] sm:$0xf]
    %v1895 = vld [vmem:[#allocation7 + $0xd4] sm:$0xf]
    %v1896 = vld [vmem:[#allocation7 + $0xd8] sm:$0xf]
    %v1897 = vld [vmem:[#allocation7 + $0xdc] sm:$0xf]
    %v1898 = vld [vmem:[#allocation7 + $0xe0] sm:$0xf]
    %v1899 = vld [vmem:[#allocation7 + $0xe4] sm:$0xf]
    %v1900 = vld [vmem:[#allocation7 + $0xe8] sm:$0xf]
    %v1901 = vld [vmem:[#allocation7 + $0xec] sm:$0xf]
    %v1902 = vld [vmem:[#allocation7 + $0xf0] sm:$0xf]
    %v1903 = vld [vmem:[#allocation7 + $0xf4] sm:$0xf]
    %v1904 = vld [vmem:[#allocation7 + $0xf8] sm:$0xf]
    %v1905 = vld [vmem:[#allocation7 + $0xfc] sm:$0xf]
    %v1906 = vld [vmem:[%s11] sm:$0x1]
    %v1908 = vlaneseq
    %v1909 = vshrl.u32 %v1908, 7
    %v1910 = vsub.s32 0, %v1909
    %v1911 = vrot.slane %v1906, %v1910
    %v1977 = vunpack.c.l.b16 %v1842
    %v1978 = vunpack.c.l.b16 %v1843
    %v1979 = vunpack.c.l.b16 %v1844
    %v1980 = vunpack.c.l.b16 %v1845
    %v1981 = vunpack.c.l.b16 %v1846
    %v1982 = vunpack.c.l.b16 %v1847
    %v1983 = vunpack.c.l.b16 %v1848
    %v1984 = vunpack.c.l.b16 %v1849
    %v1985 = vunpack.c.l.b16 %v1850
    %v1986 = vunpack.c.l.b16 %v1851
    %v1987 = vunpack.c.l.b16 %v1852
    %v1988 = vunpack.c.l.b16 %v1853
    %v1989 = vunpack.c.l.b16 %v1854
    %v1990 = vunpack.c.l.b16 %v1855
    %v1991 = vunpack.c.l.b16 %v1856
    %v1992 = vunpack.c.l.b16 %v1857
    %v1993 = vunpack.c.l.b16 %v1858
    %v1994 = vunpack.c.l.b16 %v1859
    %v1995 = vunpack.c.l.b16 %v1860
    %v1996 = vunpack.c.l.b16 %v1861
    %v1997 = vunpack.c.l.b16 %v1862
    %v1998 = vunpack.c.l.b16 %v1863
    %v1999 = vunpack.c.l.b16 %v1864
    %v2000 = vunpack.c.l.b16 %v1865
    %v2001 = vunpack.c.l.b16 %v1866
    %v2002 = vunpack.c.l.b16 %v1867
    %v2003 = vunpack.c.l.b16 %v1868
    %v2004 = vunpack.c.l.b16 %v1869
    %v2005 = vunpack.c.l.b16 %v1870
    %v2006 = vunpack.c.l.b16 %v1871
    %v2007 = vunpack.c.l.b16 %v1872
    %v2008 = vunpack.c.l.b16 %v1873
    %v2009 = vunpack.c.l.b16 %v1874
    %v2010 = vunpack.c.l.b16 %v1875
    %v2011 = vunpack.c.l.b16 %v1876
    %v2012 = vunpack.c.l.b16 %v1877
    %v2013 = vunpack.c.l.b16 %v1878
    %v2014 = vunpack.c.l.b16 %v1879
    %v2015 = vunpack.c.l.b16 %v1880
    %v2016 = vunpack.c.l.b16 %v1881
    %v2017 = vunpack.c.l.b16 %v1882
    %v2018 = vunpack.c.l.b16 %v1883
    %v2019 = vunpack.c.l.b16 %v1884
    %v2020 = vunpack.c.l.b16 %v1885
    %v2021 = vunpack.c.l.b16 %v1886
    %v2022 = vunpack.c.l.b16 %v1887
    %v2023 = vunpack.c.l.b16 %v1888
    %v2024 = vunpack.c.l.b16 %v1889
    %v2025 = vunpack.c.l.b16 %v1890
    %v2026 = vunpack.c.l.b16 %v1891
    %v2027 = vunpack.c.l.b16 %v1892
    %v2028 = vunpack.c.l.b16 %v1893
    %v2029 = vunpack.c.l.b16 %v1894
    %v2030 = vunpack.c.l.b16 %v1895
    %v2031 = vunpack.c.l.b16 %v1896
    %v2032 = vunpack.c.l.b16 %v1897
    %v2033 = vunpack.c.l.b16 %v1898
    %v2034 = vunpack.c.l.b16 %v1899
    %v2035 = vunpack.c.l.b16 %v1900
    %v2036 = vunpack.c.l.b16 %v1901
    %v2037 = vunpack.c.l.b16 %v1902
    %v2038 = vunpack.c.l.b16 %v1903
    %v2039 = vunpack.c.l.b16 %v1904
    %v2040 = vunpack.c.l.b16 %v1905
    %v2041 = vpack.c.b16 %v1978, %v1977
    %v2042 = vpack.c.b16 %v1980, %v1979
    %v2043 = vpack.c.b16 %v1982, %v1981
    %v2044 = vpack.c.b16 %v1984, %v1983
    %v2045 = vpack.c.b16 %v1986, %v1985
    %v2046 = vpack.c.b16 %v1988, %v1987
    %v2047 = vpack.c.b16 %v1990, %v1989
    %v2048 = vpack.c.b16 %v1992, %v1991
    %v2049 = vpack.c.b16 %v1994, %v1993
    %v2050 = vpack.c.b16 %v1996, %v1995
    %v2051 = vpack.c.b16 %v1998, %v1997
    %v2052 = vpack.c.b16 %v2000, %v1999
    %v2053 = vpack.c.b16 %v2002, %v2001
    %v2054 = vpack.c.b16 %v2004, %v2003
    %v2055 = vpack.c.b16 %v2006, %v2005
    %v2056 = vpack.c.b16 %v2008, %v2007
    %v2057 = vpack.c.b16 %v2010, %v2009
    %v2058 = vpack.c.b16 %v2012, %v2011
    %v2059 = vpack.c.b16 %v2014, %v2013
    %v2060 = vpack.c.b16 %v2016, %v2015
    %v2061 = vpack.c.b16 %v2018, %v2017
    %v2062 = vpack.c.b16 %v2020, %v2019
    %v2063 = vpack.c.b16 %v2022, %v2021
    %v2064 = vpack.c.b16 %v2024, %v2023
    %v2065 = vpack.c.b16 %v2026, %v2025
    %v2066 = vpack.c.b16 %v2028, %v2027
    %v2067 = vpack.c.b16 %v2030, %v2029
    %v2068 = vpack.c.b16 %v2032, %v2031
    %v2069 = vpack.c.b16 %v2034, %v2033
    %v2070 = vpack.c.b16 %v2036, %v2035
    %v2071 = vpack.c.b16 %v2038, %v2037
    %v2072 = vpack.c.b16 %v2040, %v2039
    %2105 = vmatprep.subr.bf16.mxu0 0
    %2106 = vmatpush1.bf16.msra.mxu0 %v2041
    %2107 = vmatprep.subr.bf16.mxu0 0
    %2108 = vmatpush1.bf16.msra.mxu0 %v2042
    %2109 = vmatprep.subr.bf16.mxu0 0
    %2110 = vmatpush1.bf16.msra.mxu0 %v2043
    %2111 = vmatprep.subr.bf16.mxu0 0
    %2112 = vmatpush1.bf16.msra.mxu0 %v2044
    %2113 = vmatprep.subr.bf16.mxu0 0
    %2114 = vmatpush1.bf16.msra.mxu0 %v2045
    %2115 = vmatprep.subr.bf16.mxu0 0
    %2116 = vmatpush1.bf16.msra.mxu0 %v2046
    %2117 = vmatprep.subr.bf16.mxu0 0
    %2118 = vmatpush1.bf16.msra.mxu0 %v2047
    %2119 = vmatprep.subr.bf16.mxu0 0
    %2120 = vmatpush1.bf16.msra.mxu0 %v2048
    %2121 = vmatprep.subr.bf16.mxu0 0
    %2122 = vmatpush1.bf16.msra.mxu0 %v2049
    %2123 = vmatprep.subr.bf16.mxu0 0
    %2124 = vmatpush1.bf16.msra.mxu0 %v2050
    %2125 = vmatprep.subr.bf16.mxu0 0
    %2126 = vmatpush1.bf16.msra.mxu0 %v2051
    %2127 = vmatprep.subr.bf16.mxu0 0
    %2128 = vmatpush1.bf16.msra.mxu0 %v2052
    %2129 = vmatprep.subr.bf16.mxu0 0
    %2130 = vmatpush1.bf16.msra.mxu0 %v2053
    %2131 = vmatprep.subr.bf16.mxu0 0
    %2132 = vmatpush1.bf16.msra.mxu0 %v2054
    %2133 = vmatprep.subr.bf16.mxu0 0
    %2134 = vmatpush1.bf16.msra.mxu0 %v2055
    %2135 = vmatprep.subr.bf16.mxu0 0
    %2136 = vmatpush1.bf16.msra.mxu0 %v2056
    %2137 = vmatprep.mubr.bf16.mxu0 %v1839
    %2138 = vmatmul.mubr.bf16.gmra.mrb[0].mxu0 %v1838
    %v2139 = vpop.f32.mrb[0].mxu0
    %v2140 = vadd.f32 %v1911, %v2139
    %v2141 = vpop.f32.mrb[0].mxu0
    %v2142 = vpop.f32.mrb[0].mxu0
    %v2143 = vadd.f32 %v1911, %v2142
    %v2144 = vpop.f32.mrb[0].mxu0
    %2145 = vdwg.mxu0
    %2146 = vmatprep.subr.bf16.mxu0 0
    %2147 = vmatpush1.bf16.msra.mxu0 %v2057
    %2148 = vmatprep.subr.bf16.mxu0 0
    %2149 = vmatpush1.bf16.msra.mxu0 %v2058
    %2150 = vmatprep.subr.bf16.mxu0 0
    %2151 = vmatpush1.bf16.msra.mxu0 %v2059
    %2152 = vmatprep.subr.bf16.mxu0 0
    %2153 = vmatpush1.bf16.msra.mxu0 %v2060
    %2154 = vmatprep.subr.bf16.mxu0 0
    %2155 = vmatpush1.bf16.msra.mxu0 %v2061
    %2156 = vmatprep.subr.bf16.mxu0 0
    %2157 = vmatpush1.bf16.msra.mxu0 %v2062
    %2158 = vmatprep.subr.bf16.mxu0 0
    %2159 = vmatpush1.bf16.msra.mxu0 %v2063
    %2160 = vmatprep.subr.bf16.mxu0 0
    %2161 = vmatpush1.bf16.msra.mxu0 %v2064
    %2162 = vmatprep.subr.bf16.mxu0 0
    %2163 = vmatpush1.bf16.msra.mxu0 %v2065
    %2164 = vmatprep.subr.bf16.mxu0 0
    %2165 = vmatpush1.bf16.msra.mxu0 %v2066
    %2166 = vmatprep.subr.bf16.mxu0 0
    %2167 = vmatpush1.bf16.msra.mxu0 %v2067
    %2168 = vmatprep.subr.bf16.mxu0 0
    %2169 = vmatpush1.bf16.msra.mxu0 %v2068
    %2170 = vmatprep.subr.bf16.mxu0 0
    %2171 = vmatpush1.bf16.msra.mxu0 %v2069
    %2172 = vmatprep.subr.bf16.mxu0 0
    %2173 = vmatpush1.bf16.msra.mxu0 %v2070
    %2174 = vmatprep.subr.bf16.mxu0 0
    %2175 = vmatpush1.bf16.msra.mxu0 %v2071
    %2176 = vmatprep.subr.bf16.mxu0 0
    %2177 = vmatpush1.bf16.msra.mxu0 %v2072
    %2178 = vmatprep.mubr.bf16.mxu0 %v1841
    %2179 = vmatmul.mubr.bf16.gmra.mrb[0].mxu0 %v1840
    %v2180 = vpop.f32.mrb[0].mxu0
    %v2181 = vadd.f32 %v2140, %v2180
    %v2182 = vpop.f32.mrb[0].mxu0
    %v2183 = vpop.f32.mrb[0].mxu0
    %v2184 = vadd.f32 %v2143, %v2183
    %v2185 = vpop.f32.mrb[0].mxu0
    %2186 = vdwg.mxu0
    %v2187 = vadd.f32 %v1463, %v2181
    %v2188 = vadd.f32 %v1464, %v2184
    %v2189 = vld [vmem:[%s12] sm:$0x1]
    %v2190 = vld [vmem:[%s13] sm:$0x1]
    %2191 = vadd.xlane.f32.xlu0 %v2187
    %v2192 = vpop.xlane.xlu0 %2191
    %2193 = vadd.xlane.f32.xlu0 %v2188
    %v2194 = vpop.xlane.xlu0 %2193
    %v2195 = vmul.f32 %v2192, %v1430
    %v2196 = vmul.f32 %v2194, %v1430
    %v2197 = vsub.f32 %v2187, %v2195
    %v2198 = vsub.f32 %v2188, %v2196
    %v2199 = vmul.f32 %v2197, %v2197
    %v2200 = vmul.f32 %v2198, %v2198
    %2201 = vadd.xlane.f32.xlu0 %v2199
    %v2202 = vpop.xlane.xlu0 %2201
    %2203 = vadd.xlane.f32.xlu0 %v2200
    %v2204 = vpop.xlane.xlu0 %2203
    %v2205 = vmul.f32 %v2202, %v1430
    %v2206 = vmul.f32 %v2204, %v1430
    %v2207 = vadd.f32 %v2205, 1e-12
    %v2208 = vadd.f32 %v2206, 1e-12
    %v2209 = vrsqrt.pop %v2207
    %v2210 = vrsqrt.pop %v2208
    %v2211 = vmul.f32 %v2197, %v2209
    %v2212 = vmul.f32 %v2198, %v2210
    %v2214 = vlaneseq
    %v2215 = vshrl.u32 %v2214, 7
    %v2216 = vsub.s32 0, %v2215
    %v2217 = vrot.slane %v2189, %v2216
    %v2219 = vmul.f32 %v2211, %v2217
    %v2220 = vmul.f32 %v2212, %v2217
    %v2222 = vlaneseq
    %v2223 = vshrl.u32 %v2222, 7
    %v2224 = vsub.s32 0, %v2223
    %v2225 = vrot.slane %v2190, %v2224
    %v2227 = vadd.f32 %v2219, %v2225
    %v2228 = vadd.f32 %v2220, %v2225
    %v2230 = vrot.slane %v2228, 7
    %vm2232 = vcmask 1040384
    %v2233 = vsel %vm2232, %v2227, %v2230
    %v2234 = vpack.c.bf16 %v2228, %v2227
    %s2235 = scalar_lea.vmem [#allocation2], 192
    %v2236 = vld [vmem:[%s2235] sm:$0xff]
    %v2237 = vld [vmem:[%s2235 + $0x8] sm:$0xf]
    %v2238 = vld [vmem:[%s2235 + $0xc] sm:$0xff]
    %v2239 = vld [vmem:[%s2235 + $0x14] sm:$0xf]
    %v2240 = vld [vmem:[%s2235 + $0x18] sm:$0xff]
    %v2241 = vld [vmem:[%s2235 + $0x20] sm:$0xf]
    %v2242 = vld [vmem:[%s2235 + $0x24] sm:$0xff]
    %v2243 = vld [vmem:[%s2235 + $0x2c] sm:$0xf]
    %v2244 = vld [vmem:[%s2235 + $0x30] sm:$0xff]
    %v2245 = vld [vmem:[%s2235 + $0x38] sm:$0xf]
    %v2246 = vld [vmem:[%s2235 + $0x3c] sm:$0xff]
    %v2247 = vld [vmem:[%s2235 + $0x44] sm:$0xf]
    %v2248 = vld [vmem:[%s2235 + $0x48] sm:$0xff]
    %v2249 = vld [vmem:[%s2235 + $0x50] sm:$0xf]
    %v2250 = vld [vmem:[%s2235 + $0x54] sm:$0xff]
    %v2251 = vld [vmem:[%s2235 + $0x5c] sm:$0xf]
    %v2252 = vld [vmem:[%s2235 + $0x60] sm:$0xff]
    %v2253 = vld [vmem:[%s2235 + $0x68] sm:$0xf]
    %v2254 = vld [vmem:[%s2235 + $0x6c] sm:$0xff]
    %v2255 = vld [vmem:[%s2235 + $0x74] sm:$0xf]
    %v2256 = vld [vmem:[%s2235 + $0x78] sm:$0xff]
    %v2257 = vld [vmem:[%s2235 + $0x80] sm:$0xf]
    %v2258 = vld [vmem:[%s2235 + $0x84] sm:$0xff]
    %v2259 = vld [vmem:[%s2235 + $0x8c] sm:$0xf]
    %v2260 = vld [vmem:[%s2235 + $0x90] sm:$0xff]
    %v2261 = vld [vmem:[%s2235 + $0x98] sm:$0xf]
    %v2262 = vld [vmem:[%s2235 + $0x9c] sm:$0xff]
    %v2263 = vld [vmem:[%s2235 + $0xa4] sm:$0xf]
    %v2264 = vld [vmem:[%s2235 + $0xa8] sm:$0xff]
    %v2265 = vld [vmem:[%s2235 + $0xb0] sm:$0xf]
    %v2266 = vld [vmem:[%s2235 + $0xb4] sm:$0xff]
    %v2267 = vld [vmem:[%s2235 + $0xbc] sm:$0xf]
    %s2268 = scalar_lea.vmem %s3, 3
    %v2269 = vld [vmem:[%s2268] sm:$0x7]
    %v2271 = vlaneseq
    %v2272 = vshrl.u32 %v2271, 7
    %v2273 = vsub.s32 0, %v2272
    %v2274 = vrot.slane %v2269, %v2273
    %v2275 = vlaneseq
    %v2276 = vshrl.u32 %v2275, 7
    %v2277 = vsub.s32 1, %v2276
    %v2278 = vrot.slane %v2269, %v2277
    %v2279 = vlaneseq
    %v2280 = vshrl.u32 %v2279, 7
    %v2281 = vsub.s32 2, %v2280
    %v2282 = vrot.slane %v2269, %v2281
    %v2318 = vunpack.c.l.b16 %v2236
    %v2319 = vunpack.c.h.b16 %v2236
    %v2320 = vunpack.c.l.b16 %v2237
    %v2321 = vunpack.c.l.b16 %v2238
    %v2322 = vunpack.c.h.b16 %v2238
    %v2323 = vunpack.c.l.b16 %v2239
    %v2324 = vunpack.c.l.b16 %v2240
    %v2325 = vunpack.c.h.b16 %v2240
    %v2326 = vunpack.c.l.b16 %v2241
    %v2327 = vunpack.c.l.b16 %v2242
    %v2328 = vunpack.c.h.b16 %v2242
    %v2329 = vunpack.c.l.b16 %v2243
    %v2330 = vunpack.c.l.b16 %v2244
    %v2331 = vunpack.c.h.b16 %v2244
    %v2332 = vunpack.c.l.b16 %v2245
    %v2333 = vunpack.c.l.b16 %v2246
    %v2334 = vunpack.c.h.b16 %v2246
    %v2335 = vunpack.c.l.b16 %v2247
    %v2336 = vunpack.c.l.b16 %v2248
    %v2337 = vunpack.c.h.b16 %v2248
    %v2338 = vunpack.c.l.b16 %v2249
    %v2339 = vunpack.c.l.b16 %v2250
    %v2340 = vunpack.c.h.b16 %v2250
    %v2341 = vunpack.c.l.b16 %v2251
    %v2342 = vunpack.c.l.b16 %v2252
    %v2343 = vunpack.c.h.b16 %v2252
    %v2344 = vunpack.c.l.b16 %v2253
    %v2345 = vunpack.c.l.b16 %v2254
    %v2346 = vunpack.c.h.b16 %v2254
    %v2347 = vunpack.c.l.b16 %v2255
    %v2348 = vunpack.c.l.b16 %v2256
    %v2349 = vunpack.c.h.b16 %v2256
    %v2350 = vunpack.c.l.b16 %v2257
    %v2351 = vunpack.c.l.b16 %v2258
    %v2352 = vunpack.c.h.b16 %v2258
    %v2353 = vunpack.c.l.b16 %v2259
    %v2354 = vunpack.c.l.b16 %v2260
    %v2355 = vunpack.c.h.b16 %v2260
    %v2356 = vunpack.c.l.b16 %v2261
    %v2357 = vunpack.c.l.b16 %v2262
    %v2358 = vunpack.c.h.b16 %v2262
    %v2359 = vunpack.c.l.b16 %v2263
    %v2360 = vunpack.c.l.b16 %v2264
    %v2361 = vunpack.c.h.b16 %v2264
    %v2362 = vunpack.c.l.b16 %v2265
    %v2363 = vunpack.c.l.b16 %v2266
    %v2364 = vunpack.c.h.b16 %v2266
    %v2365 = vunpack.c.l.b16 %v2267
    %v2366 = vpack.c.b16 %v2321, %v2318
    %v2367 = vpack.c.b16 %v2322, %v2319
    %v2368 = vpack.c.b16 %v2323, %v2320
    %v2369 = vpack.c.b16 %v2327, %v2324
    %v2370 = vpack.c.b16 %v2328, %v2325
    %v2371 = vpack.c.b16 %v2329, %v2326
    %v2372 = vpack.c.b16 %v2333, %v2330
    %v2373 = vpack.c.b16 %v2334, %v2331
    %v2374 = vpack.c.b16 %v2335, %v2332
    %v2375 = vpack.c.b16 %v2339, %v2336
    %v2376 = vpack.c.b16 %v2340, %v2337
    %v2377 = vpack.c.b16 %v2341, %v2338
    %v2378 = vpack.c.b16 %v2345, %v2342
    %v2379 = vpack.c.b16 %v2346, %v2343
    %v2380 = vpack.c.b16 %v2347, %v2344
    %v2381 = vpack.c.b16 %v2351, %v2348
    %v2382 = vpack.c.b16 %v2352, %v2349
    %v2383 = vpack.c.b16 %v2353, %v2350
    %v2384 = vpack.c.b16 %v2357, %v2354
    %v2385 = vpack.c.b16 %v2358, %v2355
    %v2386 = vpack.c.b16 %v2359, %v2356
    %v2387 = vpack.c.b16 %v2363, %v2360
    %v2388 = vpack.c.b16 %v2364, %v2361
    %v2389 = vpack.c.b16 %v2365, %v2362
    %2414 = vmatprep.subr.bf16.mxu0 %v2367
    %2415 = vmatpush1.bf16.msra.mxu0 %v2366
    %2416 = vmatprep.subr.bf16.mxu0 %v2370
    %2417 = vmatpush1.bf16.msra.mxu0 %v2369
    %2418 = vmatprep.subr.bf16.mxu0 %v2373
    %2419 = vmatpush1.bf16.msra.mxu0 %v2372
    %2420 = vmatprep.subr.bf16.mxu0 %v2376
    %2421 = vmatpush1.bf16.msra.mxu0 %v2375
    %2422 = vmatprep.subr.bf16.mxu0 %v2379
    %2423 = vmatpush1.bf16.msra.mxu0 %v2378
    %2424 = vmatprep.subr.bf16.mxu0 %v2382
    %2425 = vmatpush1.bf16.msra.mxu0 %v2381
    %2426 = vmatprep.subr.bf16.mxu0 %v2385
    %2427 = vmatpush1.bf16.msra.mxu0 %v2384
    %2428 = vmatprep.subr.bf16.mxu0 %v2388
    %2429 = vmatpush1.bf16.msra.mxu0 %v2387
    %2430 = vmatprep.subr.bf16.mxu0 0
    %2431 = vmatpush1.bf16.msra.mxu0 0
    %2432 = vmatprep.subr.bf16.mxu0 0
    %2433 = vmatpush1.bf16.msra.mxu0 0
    %2434 = vmatprep.subr.bf16.mxu0 0
    %2435 = vmatpush1.bf16.msra.mxu0 0
    %2436 = vmatprep.subr.bf16.mxu0 0
    %2437 = vmatpush1.bf16.msra.mxu0 0
    %2438 = vmatprep.subr.bf16.mxu0 0
    %2439 = vmatpush1.bf16.msra.mxu0 0
    %2440 = vmatprep.subr.bf16.mxu0 0
    %2441 = vmatpush1.bf16.msra.mxu0 0
    %2442 = vmatprep.subr.bf16.mxu0 0
    %2443 = vmatpush1.bf16.msra.mxu0 0
    %2444 = vmatprep.subr.bf16.mxu0 0
    %2445 = vmatpush1.bf16.msra.mxu0 0
    %2446 = vmatprep.mubr.bf16.mxu0 0
    %2447 = vmatmul.mubr.bf16.gmra.mrb[0].mxu0 %v2234
    %v2448 = vpop.f32.mrb[0].mxu0
    %v2449 = vadd.f32 %v2274, %v2448
    %v2450 = vpop.f32.mrb[0].mxu0
    %v2451 = vadd.f32 %v2278, %v2450
    %v2452 = vpop.f32.mrb[0].mxu0
    %v2453 = vadd.f32 %v2274, %v2452
    %v2454 = vpop.f32.mrb[0].mxu0
    %v2455 = vadd.f32 %v2278, %v2454
    %2456 = vdwg.mxu0
    %2457 = vmatprep.subr.bf16.mxu0 0
    %2458 = vmatpush1.bf16.msra.mxu0 %v2368
    %2459 = vmatprep.subr.bf16.mxu0 0
    %2460 = vmatpush1.bf16.msra.mxu0 %v2371
    %2461 = vmatprep.subr.bf16.mxu0 0
    %2462 = vmatpush1.bf16.msra.mxu0 %v2374
    %2463 = vmatprep.subr.bf16.mxu0 0
    %2464 = vmatpush1.bf16.msra.mxu0 %v2377
    %2465 = vmatprep.subr.bf16.mxu0 0
    %2466 = vmatpush1.bf16.msra.mxu0 %v2380
    %2467 = vmatprep.subr.bf16.mxu0 0
    %2468 = vmatpush1.bf16.msra.mxu0 %v2383
    %2469 = vmatprep.subr.bf16.mxu0 0
    %2470 = vmatpush1.bf16.msra.mxu0 %v2386
    %2471 = vmatprep.subr.bf16.mxu0 0
    %2472 = vmatpush1.bf16.msra.mxu0 %v2389
    %2473 = vmatprep.subr.bf16.mxu0 0
    %2474 = vmatpush1.bf16.msra.mxu0 0
    %2475 = vmatprep.subr.bf16.mxu0 0
    %2476 = vmatpush1.bf16.msra.mxu0 0
    %2477 = vmatprep.subr.bf16.mxu0 0
    %2478 = vmatpush1.bf16.msra.mxu0 0
    %2479 = vmatprep.subr.bf16.mxu0 0
    %2480 = vmatpush1.bf16.msra.mxu0 0
    %2481 = vmatprep.subr.bf16.mxu0 0
    %2482 = vmatpush1.bf16.msra.mxu0 0
    %2483 = vmatprep.subr.bf16.mxu0 0
    %2484 = vmatpush1.bf16.msra.mxu0 0
    %2485 = vmatprep.subr.bf16.mxu0 0
    %2486 = vmatpush1.bf16.msra.mxu0 0
    %2487 = vmatprep.subr.bf16.mxu0 0
    %2488 = vmatpush1.bf16.msra.mxu0 0
    %2489 = vmatprep.mubr.bf16.mxu0 0
    %2490 = vmatmul.mubr.bf16.gmra.mrb[0].mxu0 %v2234
    %v2491 = vpop.f32.mrb[0].mxu0
    %v2492 = vadd.f32 %v2282, %v2491
    %v2493 = vpop.f32.mrb[0].mxu0
    %v2494 = vpop.f32.mrb[0].mxu0
    %v2495 = vadd.f32 %v2282, %v2494
    %v2496 = vpop.f32.mrb[0].mxu0
    %2497 = vdwg.mxu0
    %v2498 = vpack.c.bf16 %v2453, %v2449
    %v2499 = vpack.c.bf16 %v2455, %v2451
    %v2500 = vpack.c.bf16 %v2495, %v2492
    %v2502 = vunpack.c.l.b16 %v2498
    %v2503 = vunpack.c.h.b16 %v2498
    %v2504 = vpack.c.b16 %v2502, %v2502
    %v2505 = vpack.c.b16 %v2503, %v2503
    %2506 = vrot.lane.b32.xlu0 %v2504, 96
    %v2507 = vpop.permute.xlu0 %2506
    %2508 = vrot.lane.b32.xlu0 %v2505, 96
    %v2509 = vpop.permute.xlu0 %2508
    %2510 = vrot.lane.b32.xlu0 %v2504, 64
    %v2511 = vpop.permute.xlu0 %2510
    %2512 = vrot.lane.b32.xlu0 %v2505, 64
    %v2513 = vpop.permute.xlu0 %2512
    %2514 = vrot.lane.b32.xlu0 %v2504, 32
    %v2515 = vpop.permute.xlu0 %2514
    %2516 = vrot.lane.b32.xlu0 %v2505, 32
    %v2517 = vpop.permute.xlu0 %2516
    %v2519 = vunpack.c.l.b16 %v2499
    %v2520 = vunpack.c.h.b16 %v2499
    %v2521 = vpack.c.b16 %v2519, %v2519
    %v2522 = vpack.c.b16 %v2520, %v2520
    %2523 = vrot.lane.b32.xlu0 %v2521, 96
    %v2524 = vpop.permute.xlu0 %2523
    %2525 = vrot.lane.b32.xlu0 %v2522, 96
    %v2526 = vpop.permute.xlu0 %2525
    %2527 = vrot.lane.b32.xlu0 %v2521, 64
    %v2528 = vpop.permute.xlu0 %2527
    %2529 = vrot.lane.b32.xlu0 %v2522, 64
    %v2530 = vpop.permute.xlu0 %2529
    %2531 = vrot.lane.b32.xlu0 %v2521, 32
    %v2532 = vpop.permute.xlu0 %2531
    %2533 = vrot.lane.b32.xlu0 %v2522, 32
    %v2534 = vpop.permute.xlu0 %2533
    %v2536 = vunpack.c.l.b16 %v2500
    %v2537 = vunpack.c.h.b16 %v2500
    %v2538 = vpack.c.b16 %v2536, %v2536
    %v2539 = vpack.c.b16 %v2537, %v2537
    %2540 = vrot.lane.b32.xlu0 %v2538, 96
    %v2541 = vpop.permute.xlu0 %2540
    %2542 = vrot.lane.b32.xlu0 %v2539, 96
    %v2543 = vpop.permute.xlu0 %2542
    %2544 = vrot.lane.b32.xlu0 %v2538, 64
    %v2545 = vpop.permute.xlu0 %2544
    %2546 = vrot.lane.b32.xlu0 %v2539, 64
    %v2547 = vpop.permute.xlu0 %2546
    %2548 = vrot.lane.b32.xlu0 %v2538, 32
    %v2549 = vpop.permute.xlu0 %2548
    %2550 = vrot.lane.b32.xlu0 %v2539, 32
    %v2551 = vpop.permute.xlu0 %2550
    %v2553 = vsel %vm442, %v2504, 0
    %v2556 = vsel %vm442, %v2521, 0
    %2558 = vmatprep.subr.bf16.mxu0 0
    %2559 = vmatpush1.bf16.xpose.msra.mxu0 %v2556
    %2560 = vmatprep.subr.bf16.mxu0 0
    %2561 = vmatpush1.bf16.xpose.msra.mxu0 0
    %2562 = vmatprep.subr.bf16.mxu0 0
    %2563 = vmatpush1.bf16.xpose.msra.mxu0 0
    %2564 = vmatprep.subr.bf16.mxu0 0
    %2565 = vmatpush1.bf16.xpose.msra.mxu0 0
    %2566 = vmatprep.subr.bf16.mxu0 0
    %2567 = vmatpush1.bf16.xpose.msra.mxu0 0
    %2568 = vmatprep.subr.bf16.mxu0 0
    %2569 = vmatpush1.bf16.xpose.msra.mxu0 0
    %2570 = vmatprep.subr.bf16.mxu0 0
    %2571 = vmatpush1.bf16.xpose.msra.mxu0 0
    %2572 = vmatprep.subr.bf16.mxu0 0
    %2573 = vmatpush1.bf16.xpose.msra.mxu0 0
    %2574 = vmatprep.subr.bf16.mxu0 0
    %2575 = vmatpush1.bf16.xpose.msra.mxu0 0
    %2576 = vmatprep.subr.bf16.mxu0 0
    %2577 = vmatpush1.bf16.xpose.msra.mxu0 0
    %2578 = vmatprep.subr.bf16.mxu0 0
    %2579 = vmatpush1.bf16.xpose.msra.mxu0 0
    %2580 = vmatprep.subr.bf16.mxu0 0
    %2581 = vmatpush1.bf16.xpose.msra.mxu0 0
    %2582 = vmatprep.subr.bf16.mxu0 0
    %2583 = vmatpush1.bf16.xpose.msra.mxu0 0
    %2584 = vmatprep.subr.bf16.mxu0 0
    %2585 = vmatpush1.bf16.xpose.msra.mxu0 0
    %2586 = vmatprep.subr.bf16.mxu0 0
    %2587 = vmatpush1.bf16.xpose.msra.mxu0 0
    %2588 = vmatprep.subr.bf16.mxu0 0
    %2589 = vmatpush1.bf16.xpose.msra.mxu0 0
    %2590 = vmatprep.mubr.bf16.mxu0 0
    %2591 = vmatmul.mubr.bf16.gmra.mrb[0].mxu0 %v2553
    %v2592 = vpop.f32.mrb[0].mxu0
    %v2593 = vadd.f32 %v119, %v2592
    %v2594 = vpop.f32.mrb[0].mxu0
    %v2595 = vpop.f32.mrb[0].mxu0
    %v2596 = vpop.f32.mrb[0].mxu0
    %2597 = vdwg.mxu0
    %v2599 = vsel %vm442, %v2505, 0
    %v2602 = vsel %vm442, %v2522, 0
    %2604 = vmatprep.subr.bf16.mxu0 0
    %2605 = vmatpush1.bf16.xpose.msra.mxu0 %v2602
    %2606 = vmatprep.subr.bf16.mxu0 0
    %2607 = vmatpush1.bf16.xpose.msra.mxu0 0
    %2608 = vmatprep.subr.bf16.mxu0 0
    %2609 = vmatpush1.bf16.xpose.msra.mxu0 0
    %2610 = vmatprep.subr.bf16.mxu0 0
    %2611 = vmatpush1.bf16.xpose.msra.mxu0 0
    %2612 = vmatprep.subr.bf16.mxu0 0
    %2613 = vmatpush1.bf16.xpose.msra.mxu0 0
    %2614 = vmatprep.subr.bf16.mxu0 0
    %2615 = vmatpush1.bf16.xpose.msra.mxu0 0
    %2616 = vmatprep.subr.bf16.mxu0 0
    %2617 = vmatpush1.bf16.xpose.msra.mxu0 0
    %2618 = vmatprep.subr.bf16.mxu0 0
    %2619 = vmatpush1.bf16.xpose.msra.mxu0 0
    %2620 = vmatprep.subr.bf16.mxu0 0
    %2621 = vmatpush1.bf16.xpose.msra.mxu0 0
    %2622 = vmatprep.subr.bf16.mxu0 0
    %2623 = vmatpush1.bf16.xpose.msra.mxu0 0
    %2624 = vmatprep.subr.bf16.mxu0 0
    %2625 = vmatpush1.bf16.xpose.msra.mxu0 0
    %2626 = vmatprep.subr.bf16.mxu0 0
    %2627 = vmatpush1.bf16.xpose.msra.mxu0 0
    %2628 = vmatprep.subr.bf16.mxu0 0
    %2629 = vmatpush1.bf16.xpose.msra.mxu0 0
    %2630 = vmatprep.subr.bf16.mxu0 0
    %2631 = vmatpush1.bf16.xpose.msra.mxu0 0
    %2632 = vmatprep.subr.bf16.mxu0 0
    %2633 = vmatpush1.bf16.xpose.msra.mxu0 0
    %2634 = vmatprep.subr.bf16.mxu0 0
    %2635 = vmatpush1.bf16.xpose.msra.mxu0 0
    %2636 = vmatprep.mubr.bf16.mxu0 0
    %2637 = vmatmul.mubr.bf16.gmra.mrb[0].mxu0 %v2599
    %v2638 = vpop.f32.mrb[0].mxu0
    %v2639 = vadd.f32 %v123, %v2638
    %v2640 = vpop.f32.mrb[0].mxu0
    %v2641 = vpop.f32.mrb[0].mxu0
    %v2642 = vpop.f32.mrb[0].mxu0
    %2643 = vdwg.mxu0
    %v2645 = vsel %vm442, %v2507, 0
    %v2648 = vsel %vm442, %v2524, 0
    %2650 = vmatprep.subr.bf16.mxu0 0
    %2651 = vmatpush1.bf16.xpose.msra.mxu0 %v2648
    %2652 = vmatprep.subr.bf16.mxu0 0
    %2653 = vmatpush1.bf16.xpose.msra.mxu0 0
    %2654 = vmatprep.subr.bf16.mxu0 0
    %2655 = vmatpush1.bf16.xpose.msra.mxu0 0
    %2656 = vmatprep.subr.bf16.mxu0 0
    %2657 = vmatpush1.bf16.xpose.msra.mxu0 0
    %2658 = vmatprep.subr.bf16.mxu0 0
    %2659 = vmatpush1.bf16.xpose.msra.mxu0 0
    %2660 = vmatprep.subr.bf16.mxu0 0
    %2661 = vmatpush1.bf16.xpose.msra.mxu0 0
    %2662 = vmatprep.subr.bf16.mxu0 0
    %2663 = vmatpush1.bf16.xpose.msra.mxu0 0
    %2664 = vmatprep.subr.bf16.mxu0 0
    %2665 = vmatpush1.bf16.xpose.msra.mxu0 0
    %2666 = vmatprep.subr.bf16.mxu0 0
    %2667 = vmatpush1.bf16.xpose.msra.mxu0 0
    %2668 = vmatprep.subr.bf16.mxu0 0
    %2669 = vmatpush1.bf16.xpose.msra.mxu0 0
    %2670 = vmatprep.subr.bf16.mxu0 0
    %2671 = vmatpush1.bf16.xpose.msra.mxu0 0
    %2672 = vmatprep.subr.bf16.mxu0 0
    %2673 = vmatpush1.bf16.xpose.msra.mxu0 0
    %2674 = vmatprep.subr.bf16.mxu0 0
    %2675 = vmatpush1.bf16.xpose.msra.mxu0 0
    %2676 = vmatprep.subr.bf16.mxu0 0
    %2677 = vmatpush1.bf16.xpose.msra.mxu0 0
    %2678 = vmatprep.subr.bf16.mxu0 0
    %2679 = vmatpush1.bf16.xpose.msra.mxu0 0
    %2680 = vmatprep.subr.bf16.mxu0 0
    %2681 = vmatpush1.bf16.xpose.msra.mxu0 0
    %2682 = vmatprep.mubr.bf16.mxu0 0
    %2683 = vmatmul.mubr.bf16.gmra.mrb[0].mxu0 %v2645
    %v2684 = vpop.f32.mrb[0].mxu0
    %v2685 = vadd.f32 %v119, %v2684
    %v2686 = vpop.f32.mrb[0].mxu0
    %v2687 = vpop.f32.mrb[0].mxu0
    %v2688 = vpop.f32.mrb[0].mxu0
    %2689 = vdwg.mxu0
    %v2691 = vsel %vm442, %v2509, 0
    %v2694 = vsel %vm442, %v2526, 0
    %2696 = vmatprep.subr.bf16.mxu0 0
    %2697 = vmatpush1.bf16.xpose.msra.mxu0 %v2694
    %2698 = vmatprep.subr.bf16.mxu0 0
    %2699 = vmatpush1.bf16.xpose.msra.mxu0 0
    %2700 = vmatprep.subr.bf16.mxu0 0
    %2701 = vmatpush1.bf16.xpose.msra.mxu0 0
    %2702 = vmatprep.subr.bf16.mxu0 0
    %2703 = vmatpush1.bf16.xpose.msra.mxu0 0
    %2704 = vmatprep.subr.bf16.mxu0 0
    %2705 = vmatpush1.bf16.xpose.msra.mxu0 0
    %2706 = vmatprep.subr.bf16.mxu0 0
    %2707 = vmatpush1.bf16.xpose.msra.mxu0 0
    %2708 = vmatprep.subr.bf16.mxu0 0
    %2709 = vmatpush1.bf16.xpose.msra.mxu0 0
    %2710 = vmatprep.subr.bf16.mxu0 0
    %2711 = vmatpush1.bf16.xpose.msra.mxu0 0
    %2712 = vmatprep.subr.bf16.mxu0 0
    %2713 = vmatpush1.bf16.xpose.msra.mxu0 0
    %2714 = vmatprep.subr.bf16.mxu0 0
    %2715 = vmatpush1.bf16.xpose.msra.mxu0 0
    %2716 = vmatprep.subr.bf16.mxu0 0
    %2717 = vmatpush1.bf16.xpose.msra.mxu0 0
    %2718 = vmatprep.subr.bf16.mxu0 0
    %2719 = vmatpush1.bf16.xpose.msra.mxu0 0
    %2720 = vmatprep.subr.bf16.mxu0 0
    %2721 = vmatpush1.bf16.xpose.msra.mxu0 0
    %2722 = vmatprep.subr.bf16.mxu0 0
    %2723 = vmatpush1.bf16.xpose.msra.mxu0 0
    %2724 = vmatprep.subr.bf16.mxu0 0
    %2725 = vmatpush1.bf16.xpose.msra.mxu0 0
    %2726 = vmatprep.subr.bf16.mxu0 0
    %2727 = vmatpush1.bf16.xpose.msra.mxu0 0
    %2728 = vmatprep.mubr.bf16.mxu0 0
    %2729 = vmatmul.mubr.bf16.gmra.mrb[0].mxu0 %v2691
    %v2730 = vpop.f32.mrb[0].mxu0
    %v2731 = vadd.f32 %v123, %v2730
    %v2732 = vpop.f32.mrb[0].mxu0
    %v2733 = vpop.f32.mrb[0].mxu0
    %v2734 = vpop.f32.mrb[0].mxu0
    %2735 = vdwg.mxu0
    %v2737 = vsel %vm442, %v2511, 0
    %v2740 = vsel %vm442, %v2528, 0
    %2742 = vmatprep.subr.bf16.mxu0 0
    %2743 = vmatpush1.bf16.xpose.msra.mxu0 %v2740
    %2744 = vmatprep.subr.bf16.mxu0 0
    %2745 = vmatpush1.bf16.xpose.msra.mxu0 0
    %2746 = vmatprep.subr.bf16.mxu0 0
    %2747 = vmatpush1.bf16.xpose.msra.mxu0 0
    %2748 = vmatprep.subr.bf16.mxu0 0
    %2749 = vmatpush1.bf16.xpose.msra.mxu0 0
    %2750 = vmatprep.subr.bf16.mxu0 0
    %2751 = vmatpush1.bf16.xpose.msra.mxu0 0
    %2752 = vmatprep.subr.bf16.mxu0 0
    %2753 = vmatpush1.bf16.xpose.msra.mxu0 0
    %2754 = vmatprep.subr.bf16.mxu0 0
    %2755 = vmatpush1.bf16.xpose.msra.mxu0 0
    %2756 = vmatprep.subr.bf16.mxu0 0
    %2757 = vmatpush1.bf16.xpose.msra.mxu0 0
    %2758 = vmatprep.subr.bf16.mxu0 0
    %2759 = vmatpush1.bf16.xpose.msra.mxu0 0
    %2760 = vmatprep.subr.bf16.mxu0 0
    %2761 = vmatpush1.bf16.xpose.msra.mxu0 0
    %2762 = vmatprep.subr.bf16.mxu0 0
    %2763 = vmatpush1.bf16.xpose.msra.mxu0 0
    %2764 = vmatprep.subr.bf16.mxu0 0
    %2765 = vmatpush1.bf16.xpose.msra.mxu0 0
    %2766 = vmatprep.subr.bf16.mxu0 0
    %2767 = vmatpush1.bf16.xpose.msra.mxu0 0
    %2768 = vmatprep.subr.bf16.mxu0 0
    %2769 = vmatpush1.bf16.xpose.msra.mxu0 0
    %2770 = vmatprep.subr.bf16.mxu0 0
    %2771 = vmatpush1.bf16.xpose.msra.mxu0 0
    %2772 = vmatprep.subr.bf16.mxu0 0
    %2773 = vmatpush1.bf16.xpose.msra.mxu0 0
    %2774 = vmatprep.mubr.bf16.mxu0 0
    %2775 = vmatmul.mubr.bf16.gmra.mrb[0].mxu0 %v2737
    %v2776 = vpop.f32.mrb[0].mxu0
    %v2777 = vadd.f32 %v119, %v2776
    %v2778 = vpop.f32.mrb[0].mxu0
    %v2779 = vpop.f32.mrb[0].mxu0
    %v2780 = vpop.f32.mrb[0].mxu0
    %2781 = vdwg.mxu0
    %v2783 = vsel %vm442, %v2513, 0
    %v2786 = vsel %vm442, %v2530, 0
    %2788 = vmatprep.subr.bf16.mxu0 0
    %2789 = vmatpush1.bf16.xpose.msra.mxu0 %v2786
    %2790 = vmatprep.subr.bf16.mxu0 0
    %2791 = vmatpush1.bf16.xpose.msra.mxu0 0
    %2792 = vmatprep.subr.bf16.mxu0 0
    %2793 = vmatpush1.bf16.xpose.msra.mxu0 0
    %2794 = vmatprep.subr.bf16.mxu0 0
    %2795 = vmatpush1.bf16.xpose.msra.mxu0 0
    %2796 = vmatprep.subr.bf16.mxu0 0
    %2797 = vmatpush1.bf16.xpose.msra.mxu0 0
    %2798 = vmatprep.subr.bf16.mxu0 0
    %2799 = vmatpush1.bf16.xpose.msra.mxu0 0
    %2800 = vmatprep.subr.bf16.mxu0 0
    %2801 = vmatpush1.bf16.xpose.msra.mxu0 0
    %2802 = vmatprep.subr.bf16.mxu0 0
    %2803 = vmatpush1.bf16.xpose.msra.mxu0 0
    %2804 = vmatprep.subr.bf16.mxu0 0
    %2805 = vmatpush1.bf16.xpose.msra.mxu0 0
    %2806 = vmatprep.subr.bf16.mxu0 0
    %2807 = vmatpush1.bf16.xpose.msra.mxu0 0
    %2808 = vmatprep.subr.bf16.mxu0 0
    %2809 = vmatpush1.bf16.xpose.msra.mxu0 0
    %2810 = vmatprep.subr.bf16.mxu0 0
    %2811 = vmatpush1.bf16.xpose.msra.mxu0 0
    %2812 = vmatprep.subr.bf16.mxu0 0
    %2813 = vmatpush1.bf16.xpose.msra.mxu0 0
    %2814 = vmatprep.subr.bf16.mxu0 0
    %2815 = vmatpush1.bf16.xpose.msra.mxu0 0
    %2816 = vmatprep.subr.bf16.mxu0 0
    %2817 = vmatpush1.bf16.xpose.msra.mxu0 0
    %2818 = vmatprep.subr.bf16.mxu0 0
    %2819 = vmatpush1.bf16.xpose.msra.mxu0 0
    %2820 = vmatprep.mubr.bf16.mxu0 0
    %2821 = vmatmul.mubr.bf16.gmra.mrb[0].mxu0 %v2783
    %v2822 = vpop.f32.mrb[0].mxu0
    %v2823 = vadd.f32 %v123, %v2822
    %v2824 = vpop.f32.mrb[0].mxu0
    %v2825 = vpop.f32.mrb[0].mxu0
    %v2826 = vpop.f32.mrb[0].mxu0
    %2827 = vdwg.mxu0
    %v2829 = vsel %vm442, %v2515, 0
    %v2832 = vsel %vm442, %v2532, 0
    %2834 = vmatprep.subr.bf16.mxu0 0
    %2835 = vmatpush1.bf16.xpose.msra.mxu0 %v2832
    %2836 = vmatprep.subr.bf16.mxu0 0
    %2837 = vmatpush1.bf16.xpose.msra.mxu0 0
    %2838 = vmatprep.subr.bf16.mxu0 0
    %2839 = vmatpush1.bf16.xpose.msra.mxu0 0
    %2840 = vmatprep.subr.bf16.mxu0 0
    %2841 = vmatpush1.bf16.xpose.msra.mxu0 0
    %2842 = vmatprep.subr.bf16.mxu0 0
    %2843 = vmatpush1.bf16.xpose.msra.mxu0 0
    %2844 = vmatprep.subr.bf16.mxu0 0
    %2845 = vmatpush1.bf16.xpose.msra.mxu0 0
    %2846 = vmatprep.subr.bf16.mxu0 0
    %2847 = vmatpush1.bf16.xpose.msra.mxu0 0
    %2848 = vmatprep.subr.bf16.mxu0 0
    %2849 = vmatpush1.bf16.xpose.msra.mxu0 0
    %2850 = vmatprep.subr.bf16.mxu0 0
    %2851 = vmatpush1.bf16.xpose.msra.mxu0 0
    %2852 = vmatprep.subr.bf16.mxu0 0
    %2853 = vmatpush1.bf16.xpose.msra.mxu0 0
    %2854 = vmatprep.subr.bf16.mxu0 0
    %2855 = vmatpush1.bf16.xpose.msra.mxu0 0
    %2856 = vmatprep.subr.bf16.mxu0 0
    %2857 = vmatpush1.bf16.xpose.msra.mxu0 0
    %2858 = vmatprep.subr.bf16.mxu0 0
    %2859 = vmatpush1.bf16.xpose.msra.mxu0 0
    %2860 = vmatprep.subr.bf16.mxu0 0
    %2861 = vmatpush1.bf16.xpose.msra.mxu0 0
    %2862 = vmatprep.subr.bf16.mxu0 0
    %2863 = vmatpush1.bf16.xpose.msra.mxu0 0
    %2864 = vmatprep.subr.bf16.mxu0 0
    %2865 = vmatpush1.bf16.xpose.msra.mxu0 0
    %2866 = vmatprep.mubr.bf16.mxu0 0
    %2867 = vmatmul.mubr.bf16.gmra.mrb[0].mxu0 %v2829
    %v2868 = vpop.f32.mrb[0].mxu0
    %v2869 = vadd.f32 %v119, %v2868
    %v2870 = vpop.f32.mrb[0].mxu0
    %v2871 = vpop.f32.mrb[0].mxu0
    %v2872 = vpop.f32.mrb[0].mxu0
    %2873 = vdwg.mxu0
    %v2875 = vsel %vm442, %v2517, 0
    %v2878 = vsel %vm442, %v2534, 0
    %2880 = vmatprep.subr.bf16.mxu0 0
    %2881 = vmatpush1.bf16.xpose.msra.mxu0 %v2878
    %2882 = vmatprep.subr.bf16.mxu0 0
    %2883 = vmatpush1.bf16.xpose.msra.mxu0 0
    %2884 = vmatprep.subr.bf16.mxu0 0
    %2885 = vmatpush1.bf16.xpose.msra.mxu0 0
    %2886 = vmatprep.subr.bf16.mxu0 0
    %2887 = vmatpush1.bf16.xpose.msra.mxu0 0
    %2888 = vmatprep.subr.bf16.mxu0 0
    %2889 = vmatpush1.bf16.xpose.msra.mxu0 0
    %2890 = vmatprep.subr.bf16.mxu0 0
    %2891 = vmatpush1.bf16.xpose.msra.mxu0 0
    %2892 = vmatprep.subr.bf16.mxu0 0
    %2893 = vmatpush1.bf16.xpose.msra.mxu0 0
    %2894 = vmatprep.subr.bf16.mxu0 0
    %2895 = vmatpush1.bf16.xpose.msra.mxu0 0
    %2896 = vmatprep.subr.bf16.mxu0 0
    %2897 = vmatpush1.bf16.xpose.msra.mxu0 0
    %2898 = vmatprep.subr.bf16.mxu0 0
    %2899 = vmatpush1.bf16.xpose.msra.mxu0 0
    %2900 = vmatprep.subr.bf16.mxu0 0
    %2901 = vmatpush1.bf16.xpose.msra.mxu0 0
    %2902 = vmatprep.subr.bf16.mxu0 0
    %2903 = vmatpush1.bf16.xpose.msra.mxu0 0
    %2904 = vmatprep.subr.bf16.mxu0 0
    %2905 = vmatpush1.bf16.xpose.msra.mxu0 0
    %2906 = vmatprep.subr.bf16.mxu0 0
    %2907 = vmatpush1.bf16.xpose.msra.mxu0 0
    %2908 = vmatprep.subr.bf16.mxu0 0
    %2909 = vmatpush1.bf16.xpose.msra.mxu0 0
    %2910 = vmatprep.subr.bf16.mxu0 0
    %2911 = vmatpush1.bf16.xpose.msra.mxu0 0
    %2912 = vmatprep.mubr.bf16.mxu0 0
    %2913 = vmatmul.mubr.bf16.gmra.mrb[0].mxu0 %v2875
    %v2914 = vpop.f32.mrb[0].mxu0
    %v2915 = vadd.f32 %v123, %v2914
    %v2916 = vpop.f32.mrb[0].mxu0
    %v2917 = vpop.f32.mrb[0].mxu0
    %v2918 = vpop.f32.mrb[0].mxu0
    %2919 = vdwg.mxu0
    %v2920 = vsel %vm811, %v2593, -inf
    %2921 = vmax.xlane.f32.xlu0 %v2920
    %v2922 = vpop.xlane.xlu0 %2921
    %v2923 = vsel %vm811, %v2639, -inf
    %2924 = vmax.xlane.f32.xlu0 %v2923
    %v2925 = vpop.xlane.xlu0 %2924
    %v2926 = vsel %vm811, %v2685, -inf
    %2927 = vmax.xlane.f32.xlu0 %v2926
    %v2928 = vpop.xlane.xlu0 %2927
    %v2929 = vsel %vm811, %v2731, -inf
    %2930 = vmax.xlane.f32.xlu0 %v2929
    %v2931 = vpop.xlane.xlu0 %2930
    %v2932 = vsel %vm811, %v2777, -inf
    %2933 = vmax.xlane.f32.xlu0 %v2932
    %v2934 = vpop.xlane.xlu0 %2933
    %v2935 = vsel %vm811, %v2823, -inf
    %2936 = vmax.xlane.f32.xlu0 %v2935
    %v2937 = vpop.xlane.xlu0 %2936
    %v2938 = vsel %vm811, %v2869, -inf
    %2939 = vmax.xlane.f32.xlu0 %v2938
    %v2940 = vpop.xlane.xlu0 %2939
    %v2941 = vsel %vm811, %v2915, -inf
    %2942 = vmax.xlane.f32.xlu0 %v2941
    %v2943 = vpop.xlane.xlu0 %2942
    %v2944 = vsub.f32 %v2593, %v2922
    %v2945 = vsub.f32 %v2639, %v2925
    %v2946 = vsub.f32 %v2685, %v2928
    %v2947 = vsub.f32 %v2731, %v2931
    %v2948 = vsub.f32 %v2777, %v2934
    %v2949 = vsub.f32 %v2823, %v2937
    %v2950 = vsub.f32 %v2869, %v2940
    %v2951 = vsub.f32 %v2915, %v2943
    %v2952 = vmul.f32 %v2944, 1.442695
    %v2953 = vpow.pop %v2952
    %v2954 = vmul.f32 %v2945, 1.442695
    %v2955 = vpow.pop %v2954
    %v2956 = vmul.f32 %v2946, 1.442695
    %v2957 = vpow.pop %v2956
    %v2958 = vmul.f32 %v2947, 1.442695
    %v2959 = vpow.pop %v2958
    %v2960 = vmul.f32 %v2948, 1.442695
    %v2961 = vpow.pop %v2960
    %v2962 = vmul.f32 %v2949, 1.442695
    %v2963 = vpow.pop %v2962
    %v2964 = vmul.f32 %v2950, 1.442695
    %v2965 = vpow.pop %v2964
    %v2966 = vmul.f32 %v2951, 1.442695
    %v2967 = vpow.pop %v2966
    %v2968 = vsel %vm811, %v2953, 0.0
    %2969 = vadd.xlane.f32.xlu0 %v2968
    %v2970 = vpop.xlane.xlu0 %2969
    %v2971 = vsel %vm811, %v2955, 0.0
    %2972 = vadd.xlane.f32.xlu0 %v2971
    %v2973 = vpop.xlane.xlu0 %2972
    %v2974 = vsel %vm811, %v2957, 0.0
    %2975 = vadd.xlane.f32.xlu0 %v2974
    %v2976 = vpop.xlane.xlu0 %2975
    %v2977 = vsel %vm811, %v2959, 0.0
    %2978 = vadd.xlane.f32.xlu0 %v2977
    %v2979 = vpop.xlane.xlu0 %2978
    %v2980 = vsel %vm811, %v2961, 0.0
    %2981 = vadd.xlane.f32.xlu0 %v2980
    %v2982 = vpop.xlane.xlu0 %2981
    %v2983 = vsel %vm811, %v2963, 0.0
    %2984 = vadd.xlane.f32.xlu0 %v2983
    %v2985 = vpop.xlane.xlu0 %2984
    %v2986 = vsel %vm811, %v2965, 0.0
    %2987 = vadd.xlane.f32.xlu0 %v2986
    %v2988 = vpop.xlane.xlu0 %2987
    %v2989 = vsel %vm811, %v2967, 0.0
    %2990 = vadd.xlane.f32.xlu0 %v2989
    %v2991 = vpop.xlane.xlu0 %2990
    %v2992 = vrcp.pop %v2970
    %v2993 = vrcp.pop %v2973
    %v2994 = vrcp.pop %v2976
    %v2995 = vrcp.pop %v2979
    %v2996 = vrcp.pop %v2982
    %v2997 = vrcp.pop %v2985
    %v2998 = vrcp.pop %v2988
    %v2999 = vrcp.pop %v2991
    %v3000 = vmul.f32 %v2953, %v2992
    %v3001 = vmul.f32 %v2955, %v2993
    %v3002 = vmul.f32 %v2957, %v2994
    %v3003 = vmul.f32 %v2959, %v2995
    %v3004 = vmul.f32 %v2961, %v2996
    %v3005 = vmul.f32 %v2963, %v2997
    %v3006 = vmul.f32 %v2965, %v2998
    %v3007 = vmul.f32 %v2967, %v2999
    %v3008 = vpack.c.bf16 %v3000, %v3000
    %v3009 = vpack.c.bf16 %v3001, %v3001
    %v3010 = vpack.c.bf16 %v3002, %v3002
    %v3011 = vpack.c.bf16 %v3003, %v3003
    %v3012 = vpack.c.bf16 %v3004, %v3004
    %v3013 = vpack.c.bf16 %v3005, %v3005
    %v3014 = vpack.c.bf16 %v3006, %v3006
    %v3015 = vpack.c.bf16 %v3007, %v3007
    %v3017 = vsel %vm811, %v3008, 0
    %v3020 = vsel %vm911, %v2538, 0
    %3022 = vmatprep.subr.bf16.mxu0 0
    %3023 = vmatpush1.bf16.msra.mxu0 %v3020
    %3024 = vmatprep.subr.bf16.mxu0 0
    %3025 = vmatpush1.bf16.msra.mxu0 0
    %3026 = vmatprep.subr.bf16.mxu0 0
    %3027 = vmatpush1.bf16.msra.mxu0 0
    %3028 = vmatprep.subr.bf16.mxu0 0
    %3029 = vmatpush1.bf16.msra.mxu0 0
    %3030 = vmatprep.subr.bf16.mxu0 0
    %3031 = vmatpush1.bf16.msra.mxu0 0
    %3032 = vmatprep.subr.bf16.mxu0 0
    %3033 = vmatpush1.bf16.msra.mxu0 0
    %3034 = vmatprep.subr.bf16.mxu0 0
    %3035 = vmatpush1.bf16.msra.mxu0 0
    %3036 = vmatprep.subr.bf16.mxu0 0
    %3037 = vmatpush1.bf16.msra.mxu0 0
    %3038 = vmatprep.subr.bf16.mxu0 0
    %3039 = vmatpush1.bf16.msra.mxu0 0
    %3040 = vmatprep.subr.bf16.mxu0 0
    %3041 = vmatpush1.bf16.msra.mxu0 0
    %3042 = vmatprep.subr.bf16.mxu0 0
    %3043 = vmatpush1.bf16.msra.mxu0 0
    %3044 = vmatprep.subr.bf16.mxu0 0
    %3045 = vmatpush1.bf16.msra.mxu0 0
    %3046 = vmatprep.subr.bf16.mxu0 0
    %3047 = vmatpush1.bf16.msra.mxu0 0
    %3048 = vmatprep.subr.bf16.mxu0 0
    %3049 = vmatpush1.bf16.msra.mxu0 0
    %3050 = vmatprep.subr.bf16.mxu0 0
    %3051 = vmatpush1.bf16.msra.mxu0 0
    %3052 = vmatprep.subr.bf16.mxu0 0
    %3053 = vmatpush1.bf16.msra.mxu0 0
    %3054 = vmatprep.mubr.bf16.mxu0 0
    %3055 = vmatmul.mubr.bf16.gmra.mrb[0].mxu0 %v3017
    %v3056 = vpop.f32.mrb[0].mxu0
    %v3057 = vadd.f32 0.0, %v3056
    %v3058 = vpop.f32.mrb[0].mxu0
    %v3059 = vpop.f32.mrb[0].mxu0
    %v3060 = vpop.f32.mrb[0].mxu0
    %3061 = vdwg.mxu0
    %v3063 = vsel %vm811, %v3009, 0
    %v3066 = vsel %vm911, %v2539, 0
    %3068 = vmatprep.subr.bf16.mxu0 0
    %3069 = vmatpush1.bf16.msra.mxu0 %v3066
    %3070 = vmatprep.subr.bf16.mxu0 0
    %3071 = vmatpush1.bf16.msra.mxu0 0
    %3072 = vmatprep.subr.bf16.mxu0 0
    %3073 = vmatpush1.bf16.msra.mxu0 0
    %3074 = vmatprep.subr.bf16.mxu0 0
    %3075 = vmatpush1.bf16.msra.mxu0 0
    %3076 = vmatprep.subr.bf16.mxu0 0
    %3077 = vmatpush1.bf16.msra.mxu0 0
    %3078 = vmatprep.subr.bf16.mxu0 0
    %3079 = vmatpush1.bf16.msra.mxu0 0
    %3080 = vmatprep.subr.bf16.mxu0 0
    %3081 = vmatpush1.bf16.msra.mxu0 0
    %3082 = vmatprep.subr.bf16.mxu0 0
    %3083 = vmatpush1.bf16.msra.mxu0 0
    %3084 = vmatprep.subr.bf16.mxu0 0
    %3085 = vmatpush1.bf16.msra.mxu0 0
    %3086 = vmatprep.subr.bf16.mxu0 0
    %3087 = vmatpush1.bf16.msra.mxu0 0
    %3088 = vmatprep.subr.bf16.mxu0 0
    %3089 = vmatpush1.bf16.msra.mxu0 0
    %3090 = vmatprep.subr.bf16.mxu0 0
    %3091 = vmatpush1.bf16.msra.mxu0 0
    %3092 = vmatprep.subr.bf16.mxu0 0
    %3093 = vmatpush1.bf16.msra.mxu0 0
    %3094 = vmatprep.subr.bf16.mxu0 0
    %3095 = vmatpush1.bf16.msra.mxu0 0
    %3096 = vmatprep.subr.bf16.mxu0 0
    %3097 = vmatpush1.bf16.msra.mxu0 0
    %3098 = vmatprep.subr.bf16.mxu0 0
    %3099 = vmatpush1.bf16.msra.mxu0 0
    %3100 = vmatprep.mubr.bf16.mxu0 0
    %3101 = vmatmul.mubr.bf16.gmra.mrb[0].mxu0 %v3063
    %v3102 = vpop.f32.mrb[0].mxu0
    %v3103 = vadd.f32 0.0, %v3102
    %v3104 = vpop.f32.mrb[0].mxu0
    %v3105 = vpop.f32.mrb[0].mxu0
    %v3106 = vpop.f32.mrb[0].mxu0
    %3107 = vdwg.mxu0
    %v3109 = vsel %vm811, %v3010, 0
    %v3112 = vsel %vm911, %v2541, 0
    %3114 = vmatprep.subr.bf16.mxu0 0
    %3115 = vmatpush1.bf16.msra.mxu0 %v3112
    %3116 = vmatprep.subr.bf16.mxu0 0
    %3117 = vmatpush1.bf16.msra.mxu0 0
    %3118 = vmatprep.subr.bf16.mxu0 0
    %3119 = vmatpush1.bf16.msra.mxu0 0
    %3120 = vmatprep.subr.bf16.mxu0 0
    %3121 = vmatpush1.bf16.msra.mxu0 0
    %3122 = vmatprep.subr.bf16.mxu0 0
    %3123 = vmatpush1.bf16.msra.mxu0 0
    %3124 = vmatprep.subr.bf16.mxu0 0
    %3125 = vmatpush1.bf16.msra.mxu0 0
    %3126 = vmatprep.subr.bf16.mxu0 0
    %3127 = vmatpush1.bf16.msra.mxu0 0
    %3128 = vmatprep.subr.bf16.mxu0 0
    %3129 = vmatpush1.bf16.msra.mxu0 0
    %3130 = vmatprep.subr.bf16.mxu0 0
    %3131 = vmatpush1.bf16.msra.mxu0 0
    %3132 = vmatprep.subr.bf16.mxu0 0
    %3133 = vmatpush1.bf16.msra.mxu0 0
    %3134 = vmatprep.subr.bf16.mxu0 0
    %3135 = vmatpush1.bf16.msra.mxu0 0
    %3136 = vmatprep.subr.bf16.mxu0 0
    %3137 = vmatpush1.bf16.msra.mxu0 0
    %3138 = vmatprep.subr.bf16.mxu0 0
    %3139 = vmatpush1.bf16.msra.mxu0 0
    %3140 = vmatprep.subr.bf16.mxu0 0
    %3141 = vmatpush1.bf16.msra.mxu0 0
    %3142 = vmatprep.subr.bf16.mxu0 0
    %3143 = vmatpush1.bf16.msra.mxu0 0
    %3144 = vmatprep.subr.bf16.mxu0 0
    %3145 = vmatpush1.bf16.msra.mxu0 0
    %3146 = vmatprep.mubr.bf16.mxu0 0
    %3147 = vmatmul.mubr.bf16.gmra.mrb[0].mxu0 %v3109
    %v3148 = vpop.f32.mrb[0].mxu0
    %v3149 = vadd.f32 0.0, %v3148
    %v3150 = vpop.f32.mrb[0].mxu0
    %v3151 = vpop.f32.mrb[0].mxu0
    %v3152 = vpop.f32.mrb[0].mxu0
    %3153 = vdwg.mxu0
    %v3155 = vsel %vm811, %v3011, 0
    %v3158 = vsel %vm911, %v2543, 0
    %3160 = vmatprep.subr.bf16.mxu0 0
    %3161 = vmatpush1.bf16.msra.mxu0 %v3158
    %3162 = vmatprep.subr.bf16.mxu0 0
    %3163 = vmatpush1.bf16.msra.mxu0 0
    %3164 = vmatprep.subr.bf16.mxu0 0
    %3165 = vmatpush1.bf16.msra.mxu0 0
    %3166 = vmatprep.subr.bf16.mxu0 0
    %3167 = vmatpush1.bf16.msra.mxu0 0
    %3168 = vmatprep.subr.bf16.mxu0 0
    %3169 = vmatpush1.bf16.msra.mxu0 0
    %3170 = vmatprep.subr.bf16.mxu0 0
    %3171 = vmatpush1.bf16.msra.mxu0 0
    %3172 = vmatprep.subr.bf16.mxu0 0
    %3173 = vmatpush1.bf16.msra.mxu0 0
    %3174 = vmatprep.subr.bf16.mxu0 0
    %3175 = vmatpush1.bf16.msra.mxu0 0
    %3176 = vmatprep.subr.bf16.mxu0 0
    %3177 = vmatpush1.bf16.msra.mxu0 0
    %3178 = vmatprep.subr.bf16.mxu0 0
    %3179 = vmatpush1.bf16.msra.mxu0 0
    %3180 = vmatprep.subr.bf16.mxu0 0
    %3181 = vmatpush1.bf16.msra.mxu0 0
    %3182 = vmatprep.subr.bf16.mxu0 0
    %3183 = vmatpush1.bf16.msra.mxu0 0
    %3184 = vmatprep.subr.bf16.mxu0 0
    %3185 = vmatpush1.bf16.msra.mxu0 0
    %3186 = vmatprep.subr.bf16.mxu0 0
    %3187 = vmatpush1.bf16.msra.mxu0 0
    %3188 = vmatprep.subr.bf16.mxu0 0
    %3189 = vmatpush1.bf16.msra.mxu0 0
    %3190 = vmatprep.subr.bf16.mxu0 0
    %3191 = vmatpush1.bf16.msra.mxu0 0
    %3192 = vmatprep.mubr.bf16.mxu0 0
    %3193 = vmatmul.mubr.bf16.gmra.mrb[0].mxu0 %v3155
    %v3194 = vpop.f32.mrb[0].mxu0
    %v3195 = vadd.f32 0.0, %v3194
    %v3196 = vpop.f32.mrb[0].mxu0
    %v3197 = vpop.f32.mrb[0].mxu0
    %v3198 = vpop.f32.mrb[0].mxu0
    %3199 = vdwg.mxu0
    %v3201 = vsel %vm811, %v3012, 0
    %v3204 = vsel %vm911, %v2545, 0
    %3206 = vmatprep.subr.bf16.mxu0 0
    %3207 = vmatpush1.bf16.msra.mxu0 %v3204
    %3208 = vmatprep.subr.bf16.mxu0 0
    %3209 = vmatpush1.bf16.msra.mxu0 0
    %3210 = vmatprep.subr.bf16.mxu0 0
    %3211 = vmatpush1.bf16.msra.mxu0 0
    %3212 = vmatprep.subr.bf16.mxu0 0
    %3213 = vmatpush1.bf16.msra.mxu0 0
    %3214 = vmatprep.subr.bf16.mxu0 0
    %3215 = vmatpush1.bf16.msra.mxu0 0
    %3216 = vmatprep.subr.bf16.mxu0 0
    %3217 = vmatpush1.bf16.msra.mxu0 0
    %3218 = vmatprep.subr.bf16.mxu0 0
    %3219 = vmatpush1.bf16.msra.mxu0 0
    %3220 = vmatprep.subr.bf16.mxu0 0
    %3221 = vmatpush1.bf16.msra.mxu0 0
    %3222 = vmatprep.subr.bf16.mxu0 0
    %3223 = vmatpush1.bf16.msra.mxu0 0
    %3224 = vmatprep.subr.bf16.mxu0 0
    %3225 = vmatpush1.bf16.msra.mxu0 0
    %3226 = vmatprep.subr.bf16.mxu0 0
    %3227 = vmatpush1.bf16.msra.mxu0 0
    %3228 = vmatprep.subr.bf16.mxu0 0
    %3229 = vmatpush1.bf16.msra.mxu0 0
    %3230 = vmatprep.subr.bf16.mxu0 0
    %3231 = vmatpush1.bf16.msra.mxu0 0
    %3232 = vmatprep.subr.bf16.mxu0 0
    %3233 = vmatpush1.bf16.msra.mxu0 0
    %3234 = vmatprep.subr.bf16.mxu0 0
    %3235 = vmatpush1.bf16.msra.mxu0 0
    %3236 = vmatprep.subr.bf16.mxu0 0
    %3237 = vmatpush1.bf16.msra.mxu0 0
    %3238 = vmatprep.mubr.bf16.mxu0 0
    %3239 = vmatmul.mubr.bf16.gmra.mrb[0].mxu0 %v3201
    %v3240 = vpop.f32.mrb[0].mxu0
    %v3241 = vadd.f32 0.0, %v3240
    %v3242 = vpop.f32.mrb[0].mxu0
    %v3243 = vpop.f32.mrb[0].mxu0
    %v3244 = vpop.f32.mrb[0].mxu0
    %3245 = vdwg.mxu0
    %v3247 = vsel %vm811, %v3013, 0
    %v3250 = vsel %vm911, %v2547, 0
    %3252 = vmatprep.subr.bf16.mxu0 0
    %3253 = vmatpush1.bf16.msra.mxu0 %v3250
    %3254 = vmatprep.subr.bf16.mxu0 0
    %3255 = vmatpush1.bf16.msra.mxu0 0
    %3256 = vmatprep.subr.bf16.mxu0 0
    %3257 = vmatpush1.bf16.msra.mxu0 0
    %3258 = vmatprep.subr.bf16.mxu0 0
    %3259 = vmatpush1.bf16.msra.mxu0 0
    %3260 = vmatprep.subr.bf16.mxu0 0
    %3261 = vmatpush1.bf16.msra.mxu0 0
    %3262 = vmatprep.subr.bf16.mxu0 0
    %3263 = vmatpush1.bf16.msra.mxu0 0
    %3264 = vmatprep.subr.bf16.mxu0 0
    %3265 = vmatpush1.bf16.msra.mxu0 0
    %3266 = vmatprep.subr.bf16.mxu0 0
    %3267 = vmatpush1.bf16.msra.mxu0 0
    %3268 = vmatprep.subr.bf16.mxu0 0
    %3269 = vmatpush1.bf16.msra.mxu0 0
    %3270 = vmatprep.subr.bf16.mxu0 0
    %3271 = vmatpush1.bf16.msra.mxu0 0
    %3272 = vmatprep.subr.bf16.mxu0 0
    %3273 = vmatpush1.bf16.msra.mxu0 0
    %3274 = vmatprep.subr.bf16.mxu0 0
    %3275 = vmatpush1.bf16.msra.mxu0 0
    %3276 = vmatprep.subr.bf16.mxu0 0
    %3277 = vmatpush1.bf16.msra.mxu0 0
    %3278 = vmatprep.subr.bf16.mxu0 0
    %3279 = vmatpush1.bf16.msra.mxu0 0
    %3280 = vmatprep.subr.bf16.mxu0 0
    %3281 = vmatpush1.bf16.msra.mxu0 0
    %3282 = vmatprep.subr.bf16.mxu0 0
    %3283 = vmatpush1.bf16.msra.mxu0 0
    %3284 = vmatprep.mubr.bf16.mxu0 0
    %3285 = vmatmul.mubr.bf16.gmra.mrb[0].mxu0 %v3247
    %v3286 = vpop.f32.mrb[0].mxu0
    %v3287 = vadd.f32 0.0, %v3286
    %v3288 = vpop.f32.mrb[0].mxu0
    %v3289 = vpop.f32.mrb[0].mxu0
    %v3290 = vpop.f32.mrb[0].mxu0
    %3291 = vdwg.mxu0
    %v3293 = vsel %vm811, %v3014, 0
    %v3296 = vsel %vm911, %v2549, 0
    %3298 = vmatprep.subr.bf16.mxu0 0
    %3299 = vmatpush1.bf16.msra.mxu0 %v3296
    %3300 = vmatprep.subr.bf16.mxu0 0
    %3301 = vmatpush1.bf16.msra.mxu0 0
    %3302 = vmatprep.subr.bf16.mxu0 0
    %3303 = vmatpush1.bf16.msra.mxu0 0
    %3304 = vmatprep.subr.bf16.mxu0 0
    %3305 = vmatpush1.bf16.msra.mxu0 0
    %3306 = vmatprep.subr.bf16.mxu0 0
    %3307 = vmatpush1.bf16.msra.mxu0 0
    %3308 = vmatprep.subr.bf16.mxu0 0
    %3309 = vmatpush1.bf16.msra.mxu0 0
    %3310 = vmatprep.subr.bf16.mxu0 0
    %3311 = vmatpush1.bf16.msra.mxu0 0
    %3312 = vmatprep.subr.bf16.mxu0 0
    %3313 = vmatpush1.bf16.msra.mxu0 0
    %3314 = vmatprep.subr.bf16.mxu0 0
    %3315 = vmatpush1.bf16.msra.mxu0 0
    %3316 = vmatprep.subr.bf16.mxu0 0
    %3317 = vmatpush1.bf16.msra.mxu0 0
    %3318 = vmatprep.subr.bf16.mxu0 0
    %3319 = vmatpush1.bf16.msra.mxu0 0
    %3320 = vmatprep.subr.bf16.mxu0 0
    %3321 = vmatpush1.bf16.msra.mxu0 0
    %3322 = vmatprep.subr.bf16.mxu0 0
    %3323 = vmatpush1.bf16.msra.mxu0 0
    %3324 = vmatprep.subr.bf16.mxu0 0
    %3325 = vmatpush1.bf16.msra.mxu0 0
    %3326 = vmatprep.subr.bf16.mxu0 0
    %3327 = vmatpush1.bf16.msra.mxu0 0
    %3328 = vmatprep.subr.bf16.mxu0 0
    %3329 = vmatpush1.bf16.msra.mxu0 0
    %3330 = vmatprep.mubr.bf16.mxu0 0
    %3331 = vmatmul.mubr.bf16.gmra.mrb[0].mxu0 %v3293
    %v3332 = vpop.f32.mrb[0].mxu0
    %v3333 = vadd.f32 0.0, %v3332
    %v3334 = vpop.f32.mrb[0].mxu0
    %v3335 = vpop.f32.mrb[0].mxu0
    %v3336 = vpop.f32.mrb[0].mxu0
    %3337 = vdwg.mxu0
    %v3339 = vsel %vm811, %v3015, 0
    %v3342 = vsel %vm911, %v2551, 0
    %3344 = vmatprep.subr.bf16.mxu0 0
    %3345 = vmatpush1.bf16.msra.mxu0 %v3342
    %3346 = vmatprep.subr.bf16.mxu0 0
    %3347 = vmatpush1.bf16.msra.mxu0 0
    %3348 = vmatprep.subr.bf16.mxu0 0
    %3349 = vmatpush1.bf16.msra.mxu0 0
    %3350 = vmatprep.subr.bf16.mxu0 0
    %3351 = vmatpush1.bf16.msra.mxu0 0
    %3352 = vmatprep.subr.bf16.mxu0 0
    %3353 = vmatpush1.bf16.msra.mxu0 0
    %3354 = vmatprep.subr.bf16.mxu0 0
    %3355 = vmatpush1.bf16.msra.mxu0 0
    %3356 = vmatprep.subr.bf16.mxu0 0
    %3357 = vmatpush1.bf16.msra.mxu0 0
    %3358 = vmatprep.subr.bf16.mxu0 0
    %3359 = vmatpush1.bf16.msra.mxu0 0
    %3360 = vmatprep.subr.bf16.mxu0 0
    %3361 = vmatpush1.bf16.msra.mxu0 0
    %3362 = vmatprep.subr.bf16.mxu0 0
    %3363 = vmatpush1.bf16.msra.mxu0 0
    %3364 = vmatprep.subr.bf16.mxu0 0
    %3365 = vmatpush1.bf16.msra.mxu0 0
    %3366 = vmatprep.subr.bf16.mxu0 0
    %3367 = vmatpush1.bf16.msra.mxu0 0
    %3368 = vmatprep.subr.bf16.mxu0 0
    %3369 = vmatpush1.bf16.msra.mxu0 0
    %3370 = vmatprep.subr.bf16.mxu0 0
    %3371 = vmatpush1.bf16.msra.mxu0 0
    %3372 = vmatprep.subr.bf16.mxu0 0
    %3373 = vmatpush1.bf16.msra.mxu0 0
    %3374 = vmatprep.subr.bf16.mxu0 0
    %3375 = vmatpush1.bf16.msra.mxu0 0
    %3376 = vmatprep.mubr.bf16.mxu0 0
    %3377 = vmatmul.mubr.bf16.gmra.mrb[0].mxu0 %v3339
    %v3378 = vpop.f32.mrb[0].mxu0
    %v3379 = vadd.f32 0.0, %v3378
    %v3380 = vpop.f32.mrb[0].mxu0
    %v3381 = vpop.f32.mrb[0].mxu0
    %v3382 = vpop.f32.mrb[0].mxu0
    %3383 = vdwg.mxu0
    %3386 = vrot.lane.b32.xlu0 %v3149, 32
    %v3387 = vpop.permute.xlu0 %3386
    %3388 = vrot.lane.b32.xlu0 %v3195, 32
    %v3389 = vpop.permute.xlu0 %3388
    %3394 = vrot.lane.b32.xlu0 %v3241, 64
    %v3395 = vpop.permute.xlu0 %3394
    %3396 = vrot.lane.b32.xlu0 %v3287, 64
    %v3397 = vpop.permute.xlu0 %3396
    %3402 = vrot.lane.b32.xlu0 %v3333, 96
    %v3403 = vpop.permute.xlu0 %3402
    %3404 = vrot.lane.b32.xlu0 %v3379, 96
    %v3405 = vpop.permute.xlu0 %3404
    %v3408 = vsel %vm442, %v3057, %v3387
    %v3409 = vsel %vm442, %v3103, %v3389
    %v3410 = vsel %vm1303, %v3408, %v3395
    %v3411 = vsel %vm1303, %v3409, %v3397
    %v3412 = vsel %vm1306, %v3410, %v3403
    %v3413 = vsel %vm1306, %v3411, %v3405
    %v3414 = vpack.c.bf16 %v3413, %v3412
    %s3415 = scalar_lea.vmem %s4, 64
    %v3416 = vld [vmem:[%s3415] sm:$0xf]
    %v3417 = vld [vmem:[%s3415 + $0x4] sm:$0xf]
    %v3418 = vld [vmem:[%s3415 + $0x8] sm:$0xf]
    %v3419 = vld [vmem:[%s3415 + $0xc] sm:$0xf]
    %v3420 = vld [vmem:[%s3415 + $0x10] sm:$0xf]
    %v3421 = vld [vmem:[%s3415 + $0x14] sm:$0xf]
    %v3422 = vld [vmem:[%s3415 + $0x18] sm:$0xf]
    %v3423 = vld [vmem:[%s3415 + $0x1c] sm:$0xf]
    %v3424 = vld [vmem:[%s3415 + $0x20] sm:$0xf]
    %v3425 = vld [vmem:[%s3415 + $0x24] sm:$0xf]
    %v3426 = vld [vmem:[%s3415 + $0x28] sm:$0xf]
    %v3427 = vld [vmem:[%s3415 + $0x2c] sm:$0xf]
    %v3428 = vld [vmem:[%s3415 + $0x30] sm:$0xf]
    %v3429 = vld [vmem:[%s3415 + $0x34] sm:$0xf]
    %v3430 = vld [vmem:[%s3415 + $0x38] sm:$0xf]
    %v3431 = vld [vmem:[%s3415 + $0x3c] sm:$0xf]
    %s3432 = scalar_lea.vmem %s5, 1
    %v3433 = vld [vmem:[%s3432] sm:$0x1]
    %v3435 = vlaneseq
    %v3436 = vshrl.u32 %v3435, 7
    %v3437 = vsub.s32 0, %v3436
    %v3438 = vrot.slane %v3433, %v3437
    %v3456 = vunpack.c.l.b16 %v3416
    %v3457 = vunpack.c.l.b16 %v3417
    %v3458 = vunpack.c.l.b16 %v3418
    %v3459 = vunpack.c.l.b16 %v3419
    %v3460 = vunpack.c.l.b16 %v3420
    %v3461 = vunpack.c.l.b16 %v3421
    %v3462 = vunpack.c.l.b16 %v3422
    %v3463 = vunpack.c.l.b16 %v3423
    %v3464 = vunpack.c.l.b16 %v3424
    %v3465 = vunpack.c.l.b16 %v3425
    %v3466 = vunpack.c.l.b16 %v3426
    %v3467 = vunpack.c.l.b16 %v3427
    %v3468 = vunpack.c.l.b16 %v3428
    %v3469 = vunpack.c.l.b16 %v3429
    %v3470 = vunpack.c.l.b16 %v3430
    %v3471 = vunpack.c.l.b16 %v3431
    %v3472 = vpack.c.b16 %v3457, %v3456
    %v3473 = vpack.c.b16 %v3459, %v3458
    %v3474 = vpack.c.b16 %v3461, %v3460
    %v3475 = vpack.c.b16 %v3463, %v3462
    %v3476 = vpack.c.b16 %v3465, %v3464
    %v3477 = vpack.c.b16 %v3467, %v3466
    %v3478 = vpack.c.b16 %v3469, %v3468
    %v3479 = vpack.c.b16 %v3471, %v3470
    %3488 = vmatprep.subr.bf16.mxu0 0
    %3489 = vmatpush1.bf16.msra.mxu0 %v3472
    %3490 = vmatprep.subr.bf16.mxu0 0
    %3491 = vmatpush1.bf16.msra.mxu0 %v3473
    %3492 = vmatprep.subr.bf16.mxu0 0
    %3493 = vmatpush1.bf16.msra.mxu0 %v3474
    %3494 = vmatprep.subr.bf16.mxu0 0
    %3495 = vmatpush1.bf16.msra.mxu0 %v3475
    %3496 = vmatprep.subr.bf16.mxu0 0
    %3497 = vmatpush1.bf16.msra.mxu0 %v3476
    %3498 = vmatprep.subr.bf16.mxu0 0
    %3499 = vmatpush1.bf16.msra.mxu0 %v3477
    %3500 = vmatprep.subr.bf16.mxu0 0
    %3501 = vmatpush1.bf16.msra.mxu0 %v3478
    %3502 = vmatprep.subr.bf16.mxu0 0
    %3503 = vmatpush1.bf16.msra.mxu0 %v3479
    %3504 = vmatprep.subr.bf16.mxu0 0
    %3505 = vmatpush1.bf16.msra.mxu0 0
    %3506 = vmatprep.subr.bf16.mxu0 0
    %3507 = vmatpush1.bf16.msra.mxu0 0
    %3508 = vmatprep.subr.bf16.mxu0 0
    %3509 = vmatpush1.bf16.msra.mxu0 0
    %3510 = vmatprep.subr.bf16.mxu0 0
    %3511 = vmatpush1.bf16.msra.mxu0 0
    %3512 = vmatprep.subr.bf16.mxu0 0
    %3513 = vmatpush1.bf16.msra.mxu0 0
    %3514 = vmatprep.subr.bf16.mxu0 0
    %3515 = vmatpush1.bf16.msra.mxu0 0
    %3516 = vmatprep.subr.bf16.mxu0 0
    %3517 = vmatpush1.bf16.msra.mxu0 0
    %3518 = vmatprep.subr.bf16.mxu0 0
    %3519 = vmatpush1.bf16.msra.mxu0 0
    %3520 = vmatprep.mubr.bf16.mxu0 0
    %3521 = vmatmul.mubr.bf16.gmra.mrb[0].mxu0 %v3414
    %v3522 = vpop.f32.mrb[0].mxu0
    %v3523 = vadd.f32 %v3438, %v3522
    %v3524 = vpop.f32.mrb[0].mxu0
    %v3525 = vpop.f32.mrb[0].mxu0
    %v3526 = vadd.f32 %v3438, %v3525
    %v3527 = vpop.f32.mrb[0].mxu0
    %3528 = vdwg.mxu0
    %v3529 = vadd.f32 %v2227, %v3523
    %v3530 = vadd.f32 %v2228, %v3526
    %s3531 = scalar_lea.vmem %s6, 1
    %v3532 = vld [vmem:[%s3531] sm:$0x1]
    %s3533 = scalar_lea.vmem %s7, 1
    %v3534 = vld [vmem:[%s3533] sm:$0x1]
    %3535 = vadd.xlane.f32.xlu0 %v3529
    %v3536 = vpop.xlane.xlu0 %3535
    %3537 = vadd.xlane.f32.xlu0 %v3530
    %v3538 = vpop.xlane.xlu0 %3537
    %v3539 = vmul.f32 %v3536, %v1430
    %v3540 = vmul.f32 %v3538, %v1430
    %v3541 = vsub.f32 %v3529, %v3539
    %v3542 = vsub.f32 %v3530, %v3540
    %v3543 = vmul.f32 %v3541, %v3541
    %v3544 = vmul.f32 %v3542, %v3542
    %3545 = vadd.xlane.f32.xlu0 %v3543
    %v3546 = vpop.xlane.xlu0 %3545
    %3547 = vadd.xlane.f32.xlu0 %v3544
    %v3548 = vpop.xlane.xlu0 %3547
    %v3549 = vmul.f32 %v3546, %v1430
    %v3550 = vmul.f32 %v3548, %v1430
    %v3551 = vadd.f32 %v3549, 1e-12
    %v3552 = vadd.f32 %v3550, 1e-12
    %v3553 = vrsqrt.pop %v3551
    %v3554 = vrsqrt.pop %v3552
    %v3555 = vmul.f32 %v3541, %v3553
    %v3556 = vmul.f32 %v3542, %v3554
    %v3558 = vlaneseq
    %v3559 = vshrl.u32 %v3558, 7
    %v3560 = vsub.s32 0, %v3559
    %v3561 = vrot.slane %v3532, %v3560
    %v3563 = vmul.f32 %v3555, %v3561
    %v3564 = vmul.f32 %v3556, %v3561
    %v3566 = vlaneseq
    %v3567 = vshrl.u32 %v3566, 7
    %v3568 = vsub.s32 0, %v3567
    %v3569 = vrot.slane %v3534, %v3568
    %v3571 = vadd.f32 %v3563, %v3569
    %v3572 = vadd.f32 %v3564, %v3569
    %v3573 = vpack.c.bf16 %v3572, %v3571
    %s3574 = scalar_lea.vmem [#allocation5], 256
    %v3575 = vld [vmem:[%s3574] sm:$0xff]
    %v3576 = vld [vmem:[%s3574 + $0x8] sm:$0xff]
    %v3577 = vld [vmem:[%s3574 + $0x10] sm:$0xff]
    %v3578 = vld [vmem:[%s3574 + $0x18] sm:$0xff]
    %v3579 = vld [vmem:[%s3574 + $0x20] sm:$0xff]
    %v3580 = vld [vmem:[%s3574 + $0x28] sm:$0xff]
    %v3581 = vld [vmem:[%s3574 + $0x30] sm:$0xff]
    %v3582 = vld [vmem:[%s3574 + $0x38] sm:$0xff]
    %v3583 = vld [vmem:[%s3574 + $0x40] sm:$0xff]
    %v3584 = vld [vmem:[%s3574 + $0x48] sm:$0xff]
    %v3585 = vld [vmem:[%s3574 + $0x50] sm:$0xff]
    %v3586 = vld [vmem:[%s3574 + $0x58] sm:$0xff]
    %v3587 = vld [vmem:[%s3574 + $0x60] sm:$0xff]
    %v3588 = vld [vmem:[%s3574 + $0x68] sm:$0xff]
    %v3589 = vld [vmem:[%s3574 + $0x70] sm:$0xff]
    %v3590 = vld [vmem:[%s3574 + $0x78] sm:$0xff]
    %v3591 = vld [vmem:[%s3574 + $0x80] sm:$0xff]
    %v3592 = vld [vmem:[%s3574 + $0x88] sm:$0xff]
    %v3593 = vld [vmem:[%s3574 + $0x90] sm:$0xff]
    %v3594 = vld [vmem:[%s3574 + $0x98] sm:$0xff]
    %v3595 = vld [vmem:[%s3574 + $0xa0] sm:$0xff]
    %v3596 = vld [vmem:[%s3574 + $0xa8] sm:$0xff]
    %v3597 = vld [vmem:[%s3574 + $0xb0] sm:$0xff]
    %v3598 = vld [vmem:[%s3574 + $0xb8] sm:$0xff]
    %v3599 = vld [vmem:[%s3574 + $0xc0] sm:$0xff]
    %v3600 = vld [vmem:[%s3574 + $0xc8] sm:$0xff]
    %v3601 = vld [vmem:[%s3574 + $0xd0] sm:$0xff]
    %v3602 = vld [vmem:[%s3574 + $0xd8] sm:$0xff]
    %v3603 = vld [vmem:[%s3574 + $0xe0] sm:$0xff]
    %v3604 = vld [vmem:[%s3574 + $0xe8] sm:$0xff]
    %v3605 = vld [vmem:[%s3574 + $0xf0] sm:$0xff]
    %v3606 = vld [vmem:[%s3574 + $0xf8] sm:$0xff]
    %s3607 = scalar_lea.vmem %s9, 4
    %v3608 = vld [vmem:[%s3607] sm:$0xf]
    %v3610 = vlaneseq
    %v3611 = vshrl.u32 %v3610, 7
    %v3612 = vsub.s32 0, %v3611
    %v3613 = vrot.slane %v3608, %v3612
    %v3614 = vlaneseq
    %v3615 = vshrl.u32 %v3614, 7
    %v3616 = vsub.s32 1, %v3615
    %v3617 = vrot.slane %v3608, %v3616
    %v3618 = vlaneseq
    %v3619 = vshrl.u32 %v3618, 7
    %v3620 = vsub.s32 2, %v3619
    %v3621 = vrot.slane %v3608, %v3620
    %v3622 = vlaneseq
    %v3623 = vshrl.u32 %v3622, 7
    %v3624 = vsub.s32 3, %v3623
    %v3625 = vrot.slane %v3608, %v3624
    %v3662 = vunpack.c.l.b16 %v3575
    %v3663 = vunpack.c.h.b16 %v3575
    %v3664 = vunpack.c.l.b16 %v3576
    %v3665 = vunpack.c.h.b16 %v3576
    %v3666 = vunpack.c.l.b16 %v3577
    %v3667 = vunpack.c.h.b16 %v3577
    %v3668 = vunpack.c.l.b16 %v3578
    %v3669 = vunpack.c.h.b16 %v3578
    %v3670 = vunpack.c.l.b16 %v3579
    %v3671 = vunpack.c.h.b16 %v3579
    %v3672 = vunpack.c.l.b16 %v3580
    %v3673 = vunpack.c.h.b16 %v3580
    %v3674 = vunpack.c.l.b16 %v3581
    %v3675 = vunpack.c.h.b16 %v3581
    %v3676 = vunpack.c.l.b16 %v3582
    %v3677 = vunpack.c.h.b16 %v3582
    %v3678 = vunpack.c.l.b16 %v3583
    %v3679 = vunpack.c.h.b16 %v3583
    %v3680 = vunpack.c.l.b16 %v3584
    %v3681 = vunpack.c.h.b16 %v3584
    %v3682 = vunpack.c.l.b16 %v3585
    %v3683 = vunpack.c.h.b16 %v3585
    %v3684 = vunpack.c.l.b16 %v3586
    %v3685 = vunpack.c.h.b16 %v3586
    %v3686 = vunpack.c.l.b16 %v3587
    %v3687 = vunpack.c.h.b16 %v3587
    %v3688 = vunpack.c.l.b16 %v3588
    %v3689 = vunpack.c.h.b16 %v3588
    %v3690 = vunpack.c.l.b16 %v3589
    %v3691 = vunpack.c.h.b16 %v3589
    %v3692 = vunpack.c.l.b16 %v3590
    %v3693 = vunpack.c.h.b16 %v3590
    %v3694 = vunpack.c.l.b16 %v3591
    %v3695 = vunpack.c.h.b16 %v3591
    %v3696 = vunpack.c.l.b16 %v3592
    %v3697 = vunpack.c.h.b16 %v3592
    %v3698 = vunpack.c.l.b16 %v3593
    %v3699 = vunpack.c.h.b16 %v3593
    %v3700 = vunpack.c.l.b16 %v3594
    %v3701 = vunpack.c.h.b16 %v3594
    %v3702 = vunpack.c.l.b16 %v3595
    %v3703 = vunpack.c.h.b16 %v3595
    %v3704 = vunpack.c.l.b16 %v3596
    %v3705 = vunpack.c.h.b16 %v3596
    %v3706 = vunpack.c.l.b16 %v3597
    %v3707 = vunpack.c.h.b16 %v3597
    %v3708 = vunpack.c.l.b16 %v3598
    %v3709 = vunpack.c.h.b16 %v3598
    %v3710 = vunpack.c.l.b16 %v3599
    %v3711 = vunpack.c.h.b16 %v3599
    %v3712 = vunpack.c.l.b16 %v3600
    %v3713 = vunpack.c.h.b16 %v3600
    %v3714 = vunpack.c.l.b16 %v3601
    %v3715 = vunpack.c.h.b16 %v3601
    %v3716 = vunpack.c.l.b16 %v3602
    %v3717 = vunpack.c.h.b16 %v3602
    %v3718 = vunpack.c.l.b16 %v3603
    %v3719 = vunpack.c.h.b16 %v3603
    %v3720 = vunpack.c.l.b16 %v3604
    %v3721 = vunpack.c.h.b16 %v3604
    %v3722 = vunpack.c.l.b16 %v3605
    %v3723 = vunpack.c.h.b16 %v3605
    %v3724 = vunpack.c.l.b16 %v3606
    %v3725 = vunpack.c.h.b16 %v3606
    %v3726 = vpack.c.b16 %v3666, %v3662
    %v3727 = vpack.c.b16 %v3667, %v3663
    %v3728 = vpack.c.b16 %v3668, %v3664
    %v3729 = vpack.c.b16 %v3669, %v3665
    %v3730 = vpack.c.b16 %v3674, %v3670
    %v3731 = vpack.c.b16 %v3675, %v3671
    %v3732 = vpack.c.b16 %v3676, %v3672
    %v3733 = vpack.c.b16 %v3677, %v3673
    %v3734 = vpack.c.b16 %v3682, %v3678
    %v3735 = vpack.c.b16 %v3683, %v3679
    %v3736 = vpack.c.b16 %v3684, %v3680
    %v3737 = vpack.c.b16 %v3685, %v3681
    %v3738 = vpack.c.b16 %v3690, %v3686
    %v3739 = vpack.c.b16 %v3691, %v3687
    %v3740 = vpack.c.b16 %v3692, %v3688
    %v3741 = vpack.c.b16 %v3693, %v3689
    %v3742 = vpack.c.b16 %v3698, %v3694
    %v3743 = vpack.c.b16 %v3699, %v3695
    %v3744 = vpack.c.b16 %v3700, %v3696
    %v3745 = vpack.c.b16 %v3701, %v3697
    %v3746 = vpack.c.b16 %v3706, %v3702
    %v3747 = vpack.c.b16 %v3707, %v3703
    %v3748 = vpack.c.b16 %v3708, %v3704
    %v3749 = vpack.c.b16 %v3709, %v3705
    %v3750 = vpack.c.b16 %v3714, %v3710
    %v3751 = vpack.c.b16 %v3715, %v3711
    %v3752 = vpack.c.b16 %v3716, %v3712
    %v3753 = vpack.c.b16 %v3717, %v3713
    %v3754 = vpack.c.b16 %v3722, %v3718
    %v3755 = vpack.c.b16 %v3723, %v3719
    %v3756 = vpack.c.b16 %v3724, %v3720
    %v3757 = vpack.c.b16 %v3725, %v3721
    %3790 = vmatprep.subr.bf16.mxu0 %v3727
    %3791 = vmatpush1.bf16.msra.mxu0 %v3726
    %3792 = vmatprep.subr.bf16.mxu0 %v3731
    %3793 = vmatpush1.bf16.msra.mxu0 %v3730
    %3794 = vmatprep.subr.bf16.mxu0 %v3735
    %3795 = vmatpush1.bf16.msra.mxu0 %v3734
    %3796 = vmatprep.subr.bf16.mxu0 %v3739
    %3797 = vmatpush1.bf16.msra.mxu0 %v3738
    %3798 = vmatprep.subr.bf16.mxu0 %v3743
    %3799 = vmatpush1.bf16.msra.mxu0 %v3742
    %3800 = vmatprep.subr.bf16.mxu0 %v3747
    %3801 = vmatpush1.bf16.msra.mxu0 %v3746
    %3802 = vmatprep.subr.bf16.mxu0 %v3751
    %3803 = vmatpush1.bf16.msra.mxu0 %v3750
    %3804 = vmatprep.subr.bf16.mxu0 %v3755
    %3805 = vmatpush1.bf16.msra.mxu0 %v3754
    %3806 = vmatprep.subr.bf16.mxu0 0
    %3807 = vmatpush1.bf16.msra.mxu0 0
    %3808 = vmatprep.subr.bf16.mxu0 0
    %3809 = vmatpush1.bf16.msra.mxu0 0
    %3810 = vmatprep.subr.bf16.mxu0 0
    %3811 = vmatpush1.bf16.msra.mxu0 0
    %3812 = vmatprep.subr.bf16.mxu0 0
    %3813 = vmatpush1.bf16.msra.mxu0 0
    %3814 = vmatprep.subr.bf16.mxu0 0
    %3815 = vmatpush1.bf16.msra.mxu0 0
    %3816 = vmatprep.subr.bf16.mxu0 0
    %3817 = vmatpush1.bf16.msra.mxu0 0
    %3818 = vmatprep.subr.bf16.mxu0 0
    %3819 = vmatpush1.bf16.msra.mxu0 0
    %3820 = vmatprep.subr.bf16.mxu0 0
    %3821 = vmatpush1.bf16.msra.mxu0 0
    %3822 = vmatprep.mubr.bf16.mxu0 0
    %3823 = vmatmul.mubr.bf16.gmra.mrb[0].mxu0 %v3573
    %v3824 = vpop.f32.mrb[0].mxu0
    %v3825 = vadd.f32 %v3613, %v3824
    %v3826 = vpop.f32.mrb[0].mxu0
    %v3827 = vadd.f32 %v3617, %v3826
    %v3828 = vpop.f32.mrb[0].mxu0
    %v3829 = vadd.f32 %v3613, %v3828
    %v3830 = vpop.f32.mrb[0].mxu0
    %v3831 = vadd.f32 %v3617, %v3830
    %3832 = vdwg.mxu0
    %3833 = vmatprep.subr.bf16.mxu0 %v3729
    %3834 = vmatpush1.bf16.msra.mxu0 %v3728
    %3835 = vmatprep.subr.bf16.mxu0 %v3733
    %3836 = vmatpush1.bf16.msra.mxu0 %v3732
    %3837 = vmatprep.subr.bf16.mxu0 %v3737
    %3838 = vmatpush1.bf16.msra.mxu0 %v3736
    %3839 = vmatprep.subr.bf16.mxu0 %v3741
    %3840 = vmatpush1.bf16.msra.mxu0 %v3740
    %3841 = vmatprep.subr.bf16.mxu0 %v3745
    %3842 = vmatpush1.bf16.msra.mxu0 %v3744
    %3843 = vmatprep.subr.bf16.mxu0 %v3749
    %3844 = vmatpush1.bf16.msra.mxu0 %v3748
    %3845 = vmatprep.subr.bf16.mxu0 %v3753
    %3846 = vmatpush1.bf16.msra.mxu0 %v3752
    %3847 = vmatprep.subr.bf16.mxu0 %v3757
    %3848 = vmatpush1.bf16.msra.mxu0 %v3756
    %3849 = vmatprep.subr.bf16.mxu0 0
    %3850 = vmatpush1.bf16.msra.mxu0 0
    %3851 = vmatprep.subr.bf16.mxu0 0
    %3852 = vmatpush1.bf16.msra.mxu0 0
    %3853 = vmatprep.subr.bf16.mxu0 0
    %3854 = vmatpush1.bf16.msra.mxu0 0
    %3855 = vmatprep.subr.bf16.mxu0 0
    %3856 = vmatpush1.bf16.msra.mxu0 0
    %3857 = vmatprep.subr.bf16.mxu0 0
    %3858 = vmatpush1.bf16.msra.mxu0 0
    %3859 = vmatprep.subr.bf16.mxu0 0
    %3860 = vmatpush1.bf16.msra.mxu0 0
    %3861 = vmatprep.subr.bf16.mxu0 0
    %3862 = vmatpush1.bf16.msra.mxu0 0
    %3863 = vmatprep.subr.bf16.mxu0 0
    %3864 = vmatpush1.bf16.msra.mxu0 0
    %3865 = vmatprep.mubr.bf16.mxu0 0
    %3866 = vmatmul.mubr.bf16.gmra.mrb[0].mxu0 %v3573
    %v3867 = vpop.f32.mrb[0].mxu0
    %v3868 = vadd.f32 %v3621, %v3867
    %v3869 = vpop.f32.mrb[0].mxu0
    %v3870 = vadd.f32 %v3625, %v3869
    %v3871 = vpop.f32.mrb[0].mxu0
    %v3872 = vadd.f32 %v3621, %v3871
    %v3873 = vpop.f32.mrb[0].mxu0
    %v3874 = vadd.f32 %v3625, %v3873
    %3875 = vdwg.mxu0
    %v3876 = vmul.f32 %v3825, 0.5
    %v3877 = vmul.f32 %v3827, 0.5
    %v3878 = vmul.f32 %v3868, 0.5
    %v3879 = vmul.f32 %v3870, 0.5
    %v3880 = vmul.f32 %v3829, 0.5
    %v3881 = vmul.f32 %v3831, 0.5
    %v3882 = vmul.f32 %v3872, 0.5
    %v3883 = vmul.f32 %v3874, 0.5
    %v3884 = vmul.f32 %v3825, 0.044715
    %v3885 = vmul.f32 %v3827, 0.044715
    %v3886 = vmul.f32 %v3868, 0.044715
    %v3887 = vmul.f32 %v3870, 0.044715
    %v3888 = vmul.f32 %v3829, 0.044715
    %v3889 = vmul.f32 %v3831, 0.044715
    %v3890 = vmul.f32 %v3872, 0.044715
    %v3891 = vmul.f32 %v3874, 0.044715
    %v3892 = vmul.f32 %v3884, %v3825
    %v3893 = vmul.f32 %v3885, %v3827
    %v3894 = vmul.f32 %v3886, %v3868
    %v3895 = vmul.f32 %v3887, %v3870
    %v3896 = vmul.f32 %v3888, %v3829
    %v3897 = vmul.f32 %v3889, %v3831
    %v3898 = vmul.f32 %v3890, %v3872
    %v3899 = vmul.f32 %v3891, %v3874
    %v3900 = vmul.f32 %v3892, %v3825
    %v3901 = vmul.f32 %v3893, %v3827
    %v3902 = vmul.f32 %v3894, %v3868
    %v3903 = vmul.f32 %v3895, %v3870
    %v3904 = vmul.f32 %v3896, %v3829
    %v3905 = vmul.f32 %v3897, %v3831
    %v3906 = vmul.f32 %v3898, %v3872
    %v3907 = vmul.f32 %v3899, %v3874
    %v3908 = vadd.f32 %v3825, %v3900
    %v3909 = vadd.f32 %v3827, %v3901
    %v3910 = vadd.f32 %v3868, %v3902
    %v3911 = vadd.f32 %v3870, %v3903
    %v3912 = vadd.f32 %v3829, %v3904
    %v3913 = vadd.f32 %v3831, %v3905
    %v3914 = vadd.f32 %v3872, %v3906
    %v3915 = vadd.f32 %v3874, %v3907
    %v3916 = vmul.f32 %v3908, 0.7978846
    %v3917 = vmul.f32 %v3909, 0.7978846
    %v3918 = vmul.f32 %v3910, 0.7978846
    %v3919 = vmul.f32 %v3911, 0.7978846
    %v3920 = vmul.f32 %v3912, 0.7978846
    %v3921 = vmul.f32 %v3913, 0.7978846
    %v3922 = vmul.f32 %v3914, 0.7978846
    %v3923 = vmul.f32 %v3915, 0.7978846
    %v3924 = vtanh.pop %v3916
    %v3925 = vtanh.pop %v3917
    %v3926 = vtanh.pop %v3918
    %v3927 = vtanh.pop %v3919
    %v3928 = vtanh.pop %v3920
    %v3929 = vtanh.pop %v3921
    %v3930 = vtanh.pop %v3922
    %v3931 = vtanh.pop %v3923
    %v3932 = vadd.f32 %v3924, 1.0
    %v3933 = vadd.f32 %v3925, 1.0
    %v3934 = vadd.f32 %v3926, 1.0
    %v3935 = vadd.f32 %v3927, 1.0
    %v3936 = vadd.f32 %v3928, 1.0
    %v3937 = vadd.f32 %v3929, 1.0
    %v3938 = vadd.f32 %v3930, 1.0
    %v3939 = vadd.f32 %v3931, 1.0
    %v3940 = vmul.f32 %v3876, %v3932
    %v3941 = vmul.f32 %v3877, %v3933
    %v3942 = vmul.f32 %v3878, %v3934
    %v3943 = vmul.f32 %v3879, %v3935
    %v3944 = vmul.f32 %v3880, %v3936
    %v3945 = vmul.f32 %v3881, %v3937
    %v3946 = vmul.f32 %v3882, %v3938
    %v3947 = vmul.f32 %v3883, %v3939
    %v3948 = vpack.c.bf16 %v3944, %v3940
    %v3949 = vpack.c.bf16 %v3945, %v3941
    %v3950 = vpack.c.bf16 %v3946, %v3942
    %v3951 = vpack.c.bf16 %v3947, %v3943
    %s3952 = scalar_lea.vmem [#allocation7], 256
    %v3953 = vld [vmem:[%s3952] sm:$0xf]
    %v3954 = vld [vmem:[%s3952 + $0x4] sm:$0xf]
    %v3955 = vld [vmem:[%s3952 + $0x8] sm:$0xf]
    %v3956 = vld [vmem:[%s3952 + $0xc] sm:$0xf]
    %v3957 = vld [vmem:[%s3952 + $0x10] sm:$0xf]
    %v3958 = vld [vmem:[%s3952 + $0x14] sm:$0xf]
    %v3959 = vld [vmem:[%s3952 + $0x18] sm:$0xf]
    %v3960 = vld [vmem:[%s3952 + $0x1c] sm:$0xf]
    %v3961 = vld [vmem:[%s3952 + $0x20] sm:$0xf]
    %v3962 = vld [vmem:[%s3952 + $0x24] sm:$0xf]
    %v3963 = vld [vmem:[%s3952 + $0x28] sm:$0xf]
    %v3964 = vld [vmem:[%s3952 + $0x2c] sm:$0xf]
    %v3965 = vld [vmem:[%s3952 + $0x30] sm:$0xf]
    %v3966 = vld [vmem:[%s3952 + $0x34] sm:$0xf]
    %v3967 = vld [vmem:[%s3952 + $0x38] sm:$0xf]
    %v3968 = vld [vmem:[%s3952 + $0x3c] sm:$0xf]
    %v3969 = vld [vmem:[%s3952 + $0x40] sm:$0xf]
    %v3970 = vld [vmem:[%s3952 + $0x44] sm:$0xf]
    %v3971 = vld [vmem:[%s3952 + $0x48] sm:$0xf]
    %v3972 = vld [vmem:[%s3952 + $0x4c] sm:$0xf]
    %v3973 = vld [vmem:[%s3952 + $0x50] sm:$0xf]
    %v3974 = vld [vmem:[%s3952 + $0x54] sm:$0xf]
    %v3975 = vld [vmem:[%s3952 + $0x58] sm:$0xf]
    %v3976 = vld [vmem:[%s3952 + $0x5c] sm:$0xf]
    %v3977 = vld [vmem:[%s3952 + $0x60] sm:$0xf]
    %v3978 = vld [vmem:[%s3952 + $0x64] sm:$0xf]
    %v3979 = vld [vmem:[%s3952 + $0x68] sm:$0xf]
    %v3980 = vld [vmem:[%s3952 + $0x6c] sm:$0xf]
    %v3981 = vld [vmem:[%s3952 + $0x70] sm:$0xf]
    %v3982 = vld [vmem:[%s3952 + $0x74] sm:$0xf]
    %v3983 = vld [vmem:[%s3952 + $0x78] sm:$0xf]
    %v3984 = vld [vmem:[%s3952 + $0x7c] sm:$0xf]
    %v3985 = vld [vmem:[%s3952 + $0x80] sm:$0xf]
    %v3986 = vld [vmem:[%s3952 + $0x84] sm:$0xf]
    %v3987 = vld [vmem:[%s3952 + $0x88] sm:$0xf]
    %v3988 = vld [vmem:[%s3952 + $0x8c] sm:$0xf]
    %v3989 = vld [vmem:[%s3952 + $0x90] sm:$0xf]
    %v3990 = vld [vmem:[%s3952 + $0x94] sm:$0xf]
    %v3991 = vld [vmem:[%s3952 + $0x98] sm:$0xf]
    %v3992 = vld [vmem:[%s3952 + $0x9c] sm:$0xf]
    %v3993 = vld [vmem:[%s3952 + $0xa0] sm:$0xf]
    %v3994 = vld [vmem:[%s3952 + $0xa4] sm:$0xf]
    %v3995 = vld [vmem:[%s3952 + $0xa8] sm:$0xf]
    %v3996 = vld [vmem:[%s3952 + $0xac] sm:$0xf]
    %v3997 = vld [vmem:[%s3952 + $0xb0] sm:$0xf]
    %v3998 = vld [vmem:[%s3952 + $0xb4] sm:$0xf]
    %v3999 = vld [vmem:[%s3952 + $0xb8] sm:$0xf]
    %v4000 = vld [vmem:[%s3952 + $0xbc] sm:$0xf]
    %v4001 = vld [vmem:[%s3952 + $0xc0] sm:$0xf]
    %v4002 = vld [vmem:[%s3952 + $0xc4] sm:$0xf]
    %v4003 = vld [vmem:[%s3952 + $0xc8] sm:$0xf]
    %v4004 = vld [vmem:[%s3952 + $0xcc] sm:$0xf]
    %v4005 = vld [vmem:[%s3952 + $0xd0] sm:$0xf]
    %v4006 = vld [vmem:[%s3952 + $0xd4] sm:$0xf]
    %v4007 = vld [vmem:[%s3952 + $0xd8] sm:$0xf]
    %v4008 = vld [vmem:[%s3952 + $0xdc] sm:$0xf]
    %v4009 = vld [vmem:[%s3952 + $0xe0] sm:$0xf]
    %v4010 = vld [vmem:[%s3952 + $0xe4] sm:$0xf]
    %v4011 = vld [vmem:[%s3952 + $0xe8] sm:$0xf]
    %v4012 = vld [vmem:[%s3952 + $0xec] sm:$0xf]
    %v4013 = vld [vmem:[%s3952 + $0xf0] sm:$0xf]
    %v4014 = vld [vmem:[%s3952 + $0xf4] sm:$0xf]
    %v4015 = vld [vmem:[%s3952 + $0xf8] sm:$0xf]
    %v4016 = vld [vmem:[%s3952 + $0xfc] sm:$0xf]
    %s4017 = scalar_lea.vmem %s11, 1
    %v4018 = vld [vmem:[%s4017] sm:$0x1]
    %v4020 = vlaneseq
    %v4021 = vshrl.u32 %v4020, 7
    %v4022 = vsub.s32 0, %v4021
    %v4023 = vrot.slane %v4018, %v4022
    %v4089 = vunpack.c.l.b16 %v3953
    %v4090 = vunpack.c.l.b16 %v3954
    %v4091 = vunpack.c.l.b16 %v3955
    %v4092 = vunpack.c.l.b16 %v3956
    %v4093 = vunpack.c.l.b16 %v3957
    %v4094 = vunpack.c.l.b16 %v3958
    %v4095 = vunpack.c.l.b16 %v3959
    %v4096 = vunpack.c.l.b16 %v3960
    %v4097 = vunpack.c.l.b16 %v3961
    %v4098 = vunpack.c.l.b16 %v3962
    %v4099 = vunpack.c.l.b16 %v3963
    %v4100 = vunpack.c.l.b16 %v3964
    %v4101 = vunpack.c.l.b16 %v3965
    %v4102 = vunpack.c.l.b16 %v3966
    %v4103 = vunpack.c.l.b16 %v3967
    %v4104 = vunpack.c.l.b16 %v3968
    %v4105 = vunpack.c.l.b16 %v3969
    %v4106 = vunpack.c.l.b16 %v3970
    %v4107 = vunpack.c.l.b16 %v3971
    %v4108 = vunpack.c.l.b16 %v3972
    %v4109 = vunpack.c.l.b16 %v3973
    %v4110 = vunpack.c.l.b16 %v3974
    %v4111 = vunpack.c.l.b16 %v3975
    %v4112 = vunpack.c.l.b16 %v3976
    %v4113 = vunpack.c.l.b16 %v3977
    %v4114 = vunpack.c.l.b16 %v3978
    %v4115 = vunpack.c.l.b16 %v3979
    %v4116 = vunpack.c.l.b16 %v3980
    %v4117 = vunpack.c.l.b16 %v3981
    %v4118 = vunpack.c.l.b16 %v3982
    %v4119 = vunpack.c.l.b16 %v3983
    %v4120 = vunpack.c.l.b16 %v3984
    %v4121 = vunpack.c.l.b16 %v3985
    %v4122 = vunpack.c.l.b16 %v3986
    %v4123 = vunpack.c.l.b16 %v3987
    %v4124 = vunpack.c.l.b16 %v3988
    %v4125 = vunpack.c.l.b16 %v3989
    %v4126 = vunpack.c.l.b16 %v3990
    %v4127 = vunpack.c.l.b16 %v3991
    %v4128 = vunpack.c.l.b16 %v3992
    %v4129 = vunpack.c.l.b16 %v3993
    %v4130 = vunpack.c.l.b16 %v3994
    %v4131 = vunpack.c.l.b16 %v3995
    %v4132 = vunpack.c.l.b16 %v3996
    %v4133 = vunpack.c.l.b16 %v3997
    %v4134 = vunpack.c.l.b16 %v3998
    %v4135 = vunpack.c.l.b16 %v3999
    %v4136 = vunpack.c.l.b16 %v4000
    %v4137 = vunpack.c.l.b16 %v4001
    %v4138 = vunpack.c.l.b16 %v4002
    %v4139 = vunpack.c.l.b16 %v4003
    %v4140 = vunpack.c.l.b16 %v4004
    %v4141 = vunpack.c.l.b16 %v4005
    %v4142 = vunpack.c.l.b16 %v4006
    %v4143 = vunpack.c.l.b16 %v4007
    %v4144 = vunpack.c.l.b16 %v4008
    %v4145 = vunpack.c.l.b16 %v4009
    %v4146 = vunpack.c.l.b16 %v4010
    %v4147 = vunpack.c.l.b16 %v4011
    %v4148 = vunpack.c.l.b16 %v4012
    %v4149 = vunpack.c.l.b16 %v4013
    %v4150 = vunpack.c.l.b16 %v4014
    %v4151 = vunpack.c.l.b16 %v4015
    %v4152 = vunpack.c.l.b16 %v4016
    %v4153 = vpack.c.b16 %v4090, %v4089
    %v4154 = vpack.c.b16 %v4092, %v4091
    %v4155 = vpack.c.b16 %v4094, %v4093
    %v4156 = vpack.c.b16 %v4096, %v4095
    %v4157 = vpack.c.b16 %v4098, %v4097
    %v4158 = vpack.c.b16 %v4100, %v4099
    %v4159 = vpack.c.b16 %v4102, %v4101
    %v4160 = vpack.c.b16 %v4104, %v4103
    %v4161 = vpack.c.b16 %v4106, %v4105
    %v4162 = vpack.c.b16 %v4108, %v4107
    %v4163 = vpack.c.b16 %v4110, %v4109
    %v4164 = vpack.c.b16 %v4112, %v4111
    %v4165 = vpack.c.b16 %v4114, %v4113
    %v4166 = vpack.c.b16 %v4116, %v4115
    %v4167 = vpack.c.b16 %v4118, %v4117
    %v4168 = vpack.c.b16 %v4120, %v4119
    %v4169 = vpack.c.b16 %v4122, %v4121
    %v4170 = vpack.c.b16 %v4124, %v4123
    %v4171 = vpack.c.b16 %v4126, %v4125
    %v4172 = vpack.c.b16 %v4128, %v4127
    %v4173 = vpack.c.b16 %v4130, %v4129
    %v4174 = vpack.c.b16 %v4132, %v4131
    %v4175 = vpack.c.b16 %v4134, %v4133
    %v4176 = vpack.c.b16 %v4136, %v4135
    %v4177 = vpack.c.b16 %v4138, %v4137
    %v4178 = vpack.c.b16 %v4140, %v4139
    %v4179 = vpack.c.b16 %v4142, %v4141
    %v4180 = vpack.c.b16 %v4144, %v4143
    %v4181 = vpack.c.b16 %v4146, %v4145
    %v4182 = vpack.c.b16 %v4148, %v4147
    %v4183 = vpack.c.b16 %v4150, %v4149
    %v4184 = vpack.c.b16 %v4152, %v4151
    %4217 = vmatprep.subr.bf16.mxu0 0
    %4218 = vmatpush1.bf16.msra.mxu0 %v4153
    %4219 = vmatprep.subr.bf16.mxu0 0
    %4220 = vmatpush1.bf16.msra.mxu0 %v4154
    %4221 = vmatprep.subr.bf16.mxu0 0
    %4222 = vmatpush1.bf16.msra.mxu0 %v4155
    %4223 = vmatprep.subr.bf16.mxu0 0
    %4224 = vmatpush1.bf16.msra.mxu0 %v4156
    %4225 = vmatprep.subr.bf16.mxu0 0
    %4226 = vmatpush1.bf16.msra.mxu0 %v4157
    %4227 = vmatprep.subr.bf16.mxu0 0
    %4228 = vmatpush1.bf16.msra.mxu0 %v4158
    %4229 = vmatprep.subr.bf16.mxu0 0
    %4230 = vmatpush1.bf16.msra.mxu0 %v4159
    %4231 = vmatprep.subr.bf16.mxu0 0
    %4232 = vmatpush1.bf16.msra.mxu0 %v4160
    %4233 = vmatprep.subr.bf16.mxu0 0
    %4234 = vmatpush1.bf16.msra.mxu0 %v4161
    %4235 = vmatprep.subr.bf16.mxu0 0
    %4236 = vmatpush1.bf16.msra.mxu0 %v4162
    %4237 = vmatprep.subr.bf16.mxu0 0
    %4238 = vmatpush1.bf16.msra.mxu0 %v4163
    %4239 = vmatprep.subr.bf16.mxu0 0
    %4240 = vmatpush1.bf16.msra.mxu0 %v4164
    %4241 = vmatprep.subr.bf16.mxu0 0
    %4242 = vmatpush1.bf16.msra.mxu0 %v4165
    %4243 = vmatprep.subr.bf16.mxu0 0
    %4244 = vmatpush1.bf16.msra.mxu0 %v4166
    %4245 = vmatprep.subr.bf16.mxu0 0
    %4246 = vmatpush1.bf16.msra.mxu0 %v4167
    %4247 = vmatprep.subr.bf16.mxu0 0
    %4248 = vmatpush1.bf16.msra.mxu0 %v4168
    %4249 = vmatprep.mubr.bf16.mxu0 %v3949
    %4250 = vmatmul.mubr.bf16.gmra.mrb[0].mxu0 %v3948
    %v4251 = vpop.f32.mrb[0].mxu0
    %v4252 = vadd.f32 %v4023, %v4251
    %v4253 = vpop.f32.mrb[0].mxu0
    %v4254 = vpop.f32.mrb[0].mxu0
    %v4255 = vadd.f32 %v4023, %v4254
    %v4256 = vpop.f32.mrb[0].mxu0
    %4257 = vdwg.mxu0
    %4258 = vmatprep.subr.bf16.mxu0 0
    %4259 = vmatpush1.bf16.msra.mxu0 %v4169
    %4260 = vmatprep.subr.bf16.mxu0 0
    %4261 = vmatpush1.bf16.msra.mxu0 %v4170
    %4262 = vmatprep.subr.bf16.mxu0 0
    %4263 = vmatpush1.bf16.msra.mxu0 %v4171
    %4264 = vmatprep.subr.bf16.mxu0 0
    %4265 = vmatpush1.bf16.msra.mxu0 %v4172
    %4266 = vmatprep.subr.bf16.mxu0 0
    %4267 = vmatpush1.bf16.msra.mxu0 %v4173
    %4268 = vmatprep.subr.bf16.mxu0 0
    %4269 = vmatpush1.bf16.msra.mxu0 %v4174
    %4270 = vmatprep.subr.bf16.mxu0 0
    %4271 = vmatpush1.bf16.msra.mxu0 %v4175
    %4272 = vmatprep.subr.bf16.mxu0 0
    %4273 = vmatpush1.bf16.msra.mxu0 %v4176
    %4274 = vmatprep.subr.bf16.mxu0 0
    %4275 = vmatpush1.bf16.msra.mxu0 %v4177
    %4276 = vmatprep.subr.bf16.mxu0 0
    %4277 = vmatpush1.bf16.msra.mxu0 %v4178
    %4278 = vmatprep.subr.bf16.mxu0 0
    %4279 = vmatpush1.bf16.msra.mxu0 %v4179
    %4280 = vmatprep.subr.bf16.mxu0 0
    %4281 = vmatpush1.bf16.msra.mxu0 %v4180
    %4282 = vmatprep.subr.bf16.mxu0 0
    %4283 = vmatpush1.bf16.msra.mxu0 %v4181
    %4284 = vmatprep.subr.bf16.mxu0 0
    %4285 = vmatpush1.bf16.msra.mxu0 %v4182
    %4286 = vmatprep.subr.bf16.mxu0 0
    %4287 = vmatpush1.bf16.msra.mxu0 %v4183
    %4288 = vmatprep.subr.bf16.mxu0 0
    %4289 = vmatpush1.bf16.msra.mxu0 %v4184
    %4290 = vmatprep.mubr.bf16.mxu0 %v3951
    %4291 = vmatmul.mubr.bf16.gmra.mrb[0].mxu0 %v3950
    %v4292 = vpop.f32.mrb[0].mxu0
    %v4293 = vadd.f32 %v4252, %v4292
    %v4294 = vpop.f32.mrb[0].mxu0
    %v4295 = vpop.f32.mrb[0].mxu0
    %v4296 = vadd.f32 %v4255, %v4295
    %v4297 = vpop.f32.mrb[0].mxu0
    %4298 = vdwg.mxu0
    %v4299 = vadd.f32 %v3571, %v4293
    %v4300 = vadd.f32 %v3572, %v4296
    %s4301 = scalar_lea.vmem %s12, 1
    %v4302 = vld [vmem:[%s4301] sm:$0x1]
    %s4303 = scalar_lea.vmem %s13, 1
    %v4304 = vld [vmem:[%s4303] sm:$0x1]
    %4305 = vadd.xlane.f32.xlu0 %v4299
    %v4306 = vpop.xlane.xlu0 %4305
    %4307 = vadd.xlane.f32.xlu0 %v4300
    %v4308 = vpop.xlane.xlu0 %4307
    %v4309 = vmul.f32 %v4306, %v1430
    %v4310 = vmul.f32 %v4308, %v1430
    %v4311 = vsub.f32 %v4299, %v4309
    %v4312 = vsub.f32 %v4300, %v4310
    %v4313 = vmul.f32 %v4311, %v4311
    %v4314 = vmul.f32 %v4312, %v4312
    %4315 = vadd.xlane.f32.xlu0 %v4313
    %v4316 = vpop.xlane.xlu0 %4315
    %4317 = vadd.xlane.f32.xlu0 %v4314
    %v4318 = vpop.xlane.xlu0 %4317
    %v4319 = vmul.f32 %v4316, %v1430
    %v4320 = vmul.f32 %v4318, %v1430
    %v4321 = vadd.f32 %v4319, 1e-12
    %v4322 = vadd.f32 %v4320, 1e-12
    %v4323 = vrsqrt.pop %v4321
    %v4324 = vrsqrt.pop %v4322
    %v4325 = vmul.f32 %v4311, %v4323
    %v4326 = vmul.f32 %v4312, %v4324
    %v4328 = vlaneseq
    %v4329 = vshrl.u32 %v4328, 7
    %v4330 = vsub.s32 0, %v4329
    %v4331 = vrot.slane %v4302, %v4330
    %v4333 = vmul.f32 %v4325, %v4331
    %v4334 = vmul.f32 %v4326, %v4331
    %v4336 = vlaneseq
    %v4337 = vshrl.u32 %v4336, 7
    %v4338 = vsub.s32 0, %v4337
    %v4339 = vrot.slane %v4304, %v4338
    %v4341 = vadd.f32 %v4333, %v4339
    %v4342 = vadd.f32 %v4334, %v4339
    %v4344 = vrot.slane %v4342, 7
    %v4346 = vsel %vm2232, %v4341, %v4344
    %v4347 = vpack.c.bf16 %v4342, %v4341
    %s4348 = scalar_lea.vmem [#allocation2], 384
    %v4349 = vld [vmem:[%s4348] sm:$0xff]
    %v4350 = vld [vmem:[%s4348 + $0x8] sm:$0xf]
    %v4351 = vld [vmem:[%s4348 + $0xc] sm:$0xff]
    %v4352 = vld [vmem:[%s4348 + $0x14] sm:$0xf]
    %v4353 = vld [vmem:[%s4348 + $0x18] sm:$0xff]
    %v4354 = vld [vmem:[%s4348 + $0x20] sm:$0xf]
    %v4355 = vld [vmem:[%s4348 + $0x24] sm:$0xff]
    %v4356 = vld [vmem:[%s4348 + $0x2c] sm:$0xf]
    %v4357 = vld [vmem:[%s4348 + $0x30] sm:$0xff]
    %v4358 = vld [vmem:[%s4348 + $0x38] sm:$0xf]
    %v4359 = vld [vmem:[%s4348 + $0x3c] sm:$0xff]
    %v4360 = vld [vmem:[%s4348 + $0x44] sm:$0xf]
    %v4361 = vld [vmem:[%s4348 + $0x48] sm:$0xff]
    %v4362 = vld [vmem:[%s4348 + $0x50] sm:$0xf]
    %v4363 = vld [vmem:[%s4348 + $0x54] sm:$0xff]
    %v4364 = vld [vmem:[%s4348 + $0x5c] sm:$0xf]
    %v4365 = vld [vmem:[%s4348 + $0x60] sm:$0xff]
    %v4366 = vld [vmem:[%s4348 + $0x68] sm:$0xf]
    %v4367 = vld [vmem:[%s4348 + $0x6c] sm:$0xff]
    %v4368 = vld [vmem:[%s4348 + $0x74] sm:$0xf]
    %v4369 = vld [vmem:[%s4348 + $0x78] sm:$0xff]
    %v4370 = vld [vmem:[%s4348 + $0x80] sm:$0xf]
    %v4371 = vld [vmem:[%s4348 + $0x84] sm:$0xff]
    %v4372 = vld [vmem:[%s4348 + $0x8c] sm:$0xf]
    %v4373 = vld [vmem:[%s4348 + $0x90] sm:$0xff]
    %v4374 = vld [vmem:[%s4348 + $0x98] sm:$0xf]
    %v4375 = vld [vmem:[%s4348 + $0x9c] sm:$0xff]
    %v4376 = vld [vmem:[%s4348 + $0xa4] sm:$0xf]
    %v4377 = vld [vmem:[%s4348 + $0xa8] sm:$0xff]
    %v4378 = vld [vmem:[%s4348 + $0xb0] sm:$0xf]
    %v4379 = vld [vmem:[%s4348 + $0xb4] sm:$0xff]
    %v4380 = vld [vmem:[%s4348 + $0xbc] sm:$0xf]
    %s4381 = scalar_lea.vmem %s3, 6
    %v4382 = vld [vmem:[%s4381] sm:$0x7]
    %v4384 = vlaneseq
    %v4385 = vshrl.u32 %v4384, 7
    %v4386 = vsub.s32 0, %v4385
    %v4387 = vrot.slane %v4382, %v4386
    %v4388 = vlaneseq
    %v4389 = vshrl.u32 %v4388, 7
    %v4390 = vsub.s32 1, %v4389
    %v4391 = vrot.slane %v4382, %v4390
    %v4392 = vlaneseq
    %v4393 = vshrl.u32 %v4392, 7
    %v4394 = vsub.s32 2, %v4393
    %v4395 = vrot.slane %v4382, %v4394
    %v4431 = vunpack.c.l.b16 %v4349
    %v4432 = vunpack.c.h.b16 %v4349
    %v4433 = vunpack.c.l.b16 %v4350
    %v4434 = vunpack.c.l.b16 %v4351
    %v4435 = vunpack.c.h.b16 %v4351
    %v4436 = vunpack.c.l.b16 %v4352
    %v4437 = vunpack.c.l.b16 %v4353
    %v4438 = vunpack.c.h.b16 %v4353
    %v4439 = vunpack.c.l.b16 %v4354
    %v4440 = vunpack.c.l.b16 %v4355
    %v4441 = vunpack.c.h.b16 %v4355
    %v4442 = vunpack.c.l.b16 %v4356
    %v4443 = vunpack.c.l.b16 %v4357
    %v4444 = vunpack.c.h.b16 %v4357
    %v4445 = vunpack.c.l.b16 %v4358
    %v4446 = vunpack.c.l.b16 %v4359
    %v4447 = vunpack.c.h.b16 %v4359
    %v4448 = vunpack.c.l.b16 %v4360
    %v4449 = vunpack.c.l.b16 %v4361
    %v4450 = vunpack.c.h.b16 %v4361
    %v4451 = vunpack.c.l.b16 %v4362
    %v4452 = vunpack.c.l.b16 %v4363
    %v4453 = vunpack.c.h.b16 %v4363
    %v4454 = vunpack.c.l.b16 %v4364
    %v4455 = vunpack.c.l.b16 %v4365
    %v4456 = vunpack.c.h.b16 %v4365
    %v4457 = vunpack.c.l.b16 %v4366
    %v4458 = vunpack.c.l.b16 %v4367
    %v4459 = vunpack.c.h.b16 %v4367
    %v4460 = vunpack.c.l.b16 %v4368
    %v4461 = vunpack.c.l.b16 %v4369
    %v4462 = vunpack.c.h.b16 %v4369
    %v4463 = vunpack.c.l.b16 %v4370
    %v4464 = vunpack.c.l.b16 %v4371
    %v4465 = vunpack.c.h.b16 %v4371
    %v4466 = vunpack.c.l.b16 %v4372
    %v4467 = vunpack.c.l.b16 %v4373
    %v4468 = vunpack.c.h.b16 %v4373
    %v4469 = vunpack.c.l.b16 %v4374
    %v4470 = vunpack.c.l.b16 %v4375
    %v4471 = vunpack.c.h.b16 %v4375
    %v4472 = vunpack.c.l.b16 %v4376
    %v4473 = vunpack.c.l.b16 %v4377
    %v4474 = vunpack.c.h.b16 %v4377
    %v4475 = vunpack.c.l.b16 %v4378
    %v4476 = vunpack.c.l.b16 %v4379
    %v4477 = vunpack.c.h.b16 %v4379
    %v4478 = vunpack.c.l.b16 %v4380
    %v4479 = vpack.c.b16 %v4434, %v4431
    %v4480 = vpack.c.b16 %v4435, %v4432
    %v4481 = vpack.c.b16 %v4436, %v4433
    %v4482 = vpack.c.b16 %v4440, %v4437
    %v4483 = vpack.c.b16 %v4441, %v4438
    %v4484 = vpack.c.b16 %v4442, %v4439
    %v4485 = vpack.c.b16 %v4446, %v4443
    %v4486 = vpack.c.b16 %v4447, %v4444
    %v4487 = vpack.c.b16 %v4448, %v4445
    %v4488 = vpack.c.b16 %v4452, %v4449
    %v4489 = vpack.c.b16 %v4453, %v4450
    %v4490 = vpack.c.b16 %v4454, %v4451
    %v4491 = vpack.c.b16 %v4458, %v4455
    %v4492 = vpack.c.b16 %v4459, %v4456
    %v4493 = vpack.c.b16 %v4460, %v4457
    %v4494 = vpack.c.b16 %v4464, %v4461
    %v4495 = vpack.c.b16 %v4465, %v4462
    %v4496 = vpack.c.b16 %v4466, %v4463
    %v4497 = vpack.c.b16 %v4470, %v4467
    %v4498 = vpack.c.b16 %v4471, %v4468
    %v4499 = vpack.c.b16 %v4472, %v4469
    %v4500 = vpack.c.b16 %v4476, %v4473
    %v4501 = vpack.c.b16 %v4477, %v4474
    %v4502 = vpack.c.b16 %v4478, %v4475
    %4527 = vmatprep.subr.bf16.mxu0 %v4480
    %4528 = vmatpush1.bf16.msra.mxu0 %v4479
    %4529 = vmatprep.subr.bf16.mxu0 %v4483
    %4530 = vmatpush1.bf16.msra.mxu0 %v4482
    %4531 = vmatprep.subr.bf16.mxu0 %v4486
    %4532 = vmatpush1.bf16.msra.mxu0 %v4485
    %4533 = vmatprep.subr.bf16.mxu0 %v4489
    %4534 = vmatpush1.bf16.msra.mxu0 %v4488
    %4535 = vmatprep.subr.bf16.mxu0 %v4492
    %4536 = vmatpush1.bf16.msra.mxu0 %v4491
    %4537 = vmatprep.subr.bf16.mxu0 %v4495
    %4538 = vmatpush1.bf16.msra.mxu0 %v4494
    %4539 = vmatprep.subr.bf16.mxu0 %v4498
    %4540 = vmatpush1.bf16.msra.mxu0 %v4497
    %4541 = vmatprep.subr.bf16.mxu0 %v4501
    %4542 = vmatpush1.bf16.msra.mxu0 %v4500
    %4543 = vmatprep.subr.bf16.mxu0 0
    %4544 = vmatpush1.bf16.msra.mxu0 0
    %4545 = vmatprep.subr.bf16.mxu0 0
    %4546 = vmatpush1.bf16.msra.mxu0 0
    %4547 = vmatprep.subr.bf16.mxu0 0
    %4548 = vmatpush1.bf16.msra.mxu0 0
    %4549 = vmatprep.subr.bf16.mxu0 0
    %4550 = vmatpush1.bf16.msra.mxu0 0
    %4551 = vmatprep.subr.bf16.mxu0 0
    %4552 = vmatpush1.bf16.msra.mxu0 0
    %4553 = vmatprep.subr.bf16.mxu0 0
    %4554 = vmatpush1.bf16.msra.mxu0 0
    %4555 = vmatprep.subr.bf16.mxu0 0
    %4556 = vmatpush1.bf16.msra.mxu0 0
    %4557 = vmatprep.subr.bf16.mxu0 0
    %4558 = vmatpush1.bf16.msra.mxu0 0
    %4559 = vmatprep.mubr.bf16.mxu0 0
    %4560 = vmatmul.mubr.bf16.gmra.mrb[0].mxu0 %v4347
    %v4561 = vpop.f32.mrb[0].mxu0
    %v4562 = vadd.f32 %v4387, %v4561
    %v4563 = vpop.f32.mrb[0].mxu0
    %v4564 = vadd.f32 %v4391, %v4563
    %v4565 = vpop.f32.mrb[0].mxu0
    %v4566 = vadd.f32 %v4387, %v4565
    %v4567 = vpop.f32.mrb[0].mxu0
    %v4568 = vadd.f32 %v4391, %v4567
    %4569 = vdwg.mxu0
    %4570 = vmatprep.subr.bf16.mxu0 0
    %4571 = vmatpush1.bf16.msra.mxu0 %v4481
    %4572 = vmatprep.subr.bf16.mxu0 0
    %4573 = vmatpush1.bf16.msra.mxu0 %v4484
    %4574 = vmatprep.subr.bf16.mxu0 0
    %4575 = vmatpush1.bf16.msra.mxu0 %v4487
    %4576 = vmatprep.subr.bf16.mxu0 0
    %4577 = vmatpush1.bf16.msra.mxu0 %v4490
    %4578 = vmatprep.subr.bf16.mxu0 0
    %4579 = vmatpush1.bf16.msra.mxu0 %v4493
    %4580 = vmatprep.subr.bf16.mxu0 0
    %4581 = vmatpush1.bf16.msra.mxu0 %v4496
    %4582 = vmatprep.subr.bf16.mxu0 0
    %4583 = vmatpush1.bf16.msra.mxu0 %v4499
    %4584 = vmatprep.subr.bf16.mxu0 0
    %4585 = vmatpush1.bf16.msra.mxu0 %v4502
    %4586 = vmatprep.subr.bf16.mxu0 0
    %4587 = vmatpush1.bf16.msra.mxu0 0
    %4588 = vmatprep.subr.bf16.mxu0 0
    %4589 = vmatpush1.bf16.msra.mxu0 0
    %4590 = vmatprep.subr.bf16.mxu0 0
    %4591 = vmatpush1.bf16.msra.mxu0 0
    %4592 = vmatprep.subr.bf16.mxu0 0
    %4593 = vmatpush1.bf16.msra.mxu0 0
    %4594 = vmatprep.subr.bf16.mxu0 0
    %4595 = vmatpush1.bf16.msra.mxu0 0
    %4596 = vmatprep.subr.bf16.mxu0 0
    %4597 = vmatpush1.bf16.msra.mxu0 0
    %4598 = vmatprep.subr.bf16.mxu0 0
    %4599 = vmatpush1.bf16.msra.mxu0 0
    %4600 = vmatprep.subr.bf16.mxu0 0
    %4601 = vmatpush1.bf16.msra.mxu0 0
    %4602 = vmatprep.mubr.bf16.mxu0 0
    %4603 = vmatmul.mubr.bf16.gmra.mrb[0].mxu0 %v4347
    %v4604 = vpop.f32.mrb[0].mxu0
    %v4605 = vadd.f32 %v4395, %v4604
    %v4606 = vpop.f32.mrb[0].mxu0
    %v4607 = vpop.f32.mrb[0].mxu0
    %v4608 = vadd.f32 %v4395, %v4607
    %v4609 = vpop.f32.mrb[0].mxu0
    %4610 = vdwg.mxu0
    %v4611 = vpack.c.bf16 %v4566, %v4562
    %v4612 = vpack.c.bf16 %v4568, %v4564
    %v4613 = vpack.c.bf16 %v4608, %v4605
    %v4615 = vunpack.c.l.b16 %v4611
    %v4616 = vunpack.c.h.b16 %v4611
    %v4617 = vpack.c.b16 %v4615, %v4615
    %v4618 = vpack.c.b16 %v4616, %v4616
    %4619 = vrot.lane.b32.xlu0 %v4617, 96
    %v4620 = vpop.permute.xlu0 %4619
    %4621 = vrot.lane.b32.xlu0 %v4618, 96
    %v4622 = vpop.permute.xlu0 %4621
    %4623 = vrot.lane.b32.xlu0 %v4617, 64
    %v4624 = vpop.permute.xlu0 %4623
    %4625 = vrot.lane.b32.xlu0 %v4618, 64
    %v4626 = vpop.permute.xlu0 %4625
    %4627 = vrot.lane.b32.xlu0 %v4617, 32
    %v4628 = vpop.permute.xlu0 %4627
    %4629 = vrot.lane.b32.xlu0 %v4618, 32
    %v4630 = vpop.permute.xlu0 %4629
    %v4632 = vunpack.c.l.b16 %v4612
    %v4633 = vunpack.c.h.b16 %v4612
    %v4634 = vpack.c.b16 %v4632, %v4632
    %v4635 = vpack.c.b16 %v4633, %v4633
    %4636 = vrot.lane.b32.xlu0 %v4634, 96
    %v4637 = vpop.permute.xlu0 %4636
    %4638 = vrot.lane.b32.xlu0 %v4635, 96
    %v4639 = vpop.permute.xlu0 %4638
    %4640 = vrot.lane.b32.xlu0 %v4634, 64
    %v4641 = vpop.permute.xlu0 %4640
    %4642 = vrot.lane.b32.xlu0 %v4635, 64
    %v4643 = vpop.permute.xlu0 %4642
    %4644 = vrot.lane.b32.xlu0 %v4634, 32
    %v4645 = vpop.permute.xlu0 %4644
    %4646 = vrot.lane.b32.xlu0 %v4635, 32
    %v4647 = vpop.permute.xlu0 %4646
    %v4649 = vunpack.c.l.b16 %v4613
    %v4650 = vunpack.c.h.b16 %v4613
    %v4651 = vpack.c.b16 %v4649, %v4649
    %v4652 = vpack.c.b16 %v4650, %v4650
    %4653 = vrot.lane.b32.xlu0 %v4651, 96
    %v4654 = vpop.permute.xlu0 %4653
    %4655 = vrot.lane.b32.xlu0 %v4652, 96
    %v4656 = vpop.permute.xlu0 %4655
    %4657 = vrot.lane.b32.xlu0 %v4651, 64
    %v4658 = vpop.permute.xlu0 %4657
    %4659 = vrot.lane.b32.xlu0 %v4652, 64
    %v4660 = vpop.permute.xlu0 %4659
    %4661 = vrot.lane.b32.xlu0 %v4651, 32
    %v4662 = vpop.permute.xlu0 %4661
    %4663 = vrot.lane.b32.xlu0 %v4652, 32
    %v4664 = vpop.permute.xlu0 %4663
    %v4666 = vsel %vm442, %v4617, 0
    %v4669 = vsel %vm442, %v4634, 0
    %4671 = vmatprep.subr.bf16.mxu0 0
    %4672 = vmatpush1.bf16.xpose.msra.mxu0 %v4669
    %4673 = vmatprep.subr.bf16.mxu0 0
    %4674 = vmatpush1.bf16.xpose.msra.mxu0 0
    %4675 = vmatprep.subr.bf16.mxu0 0
    %4676 = vmatpush1.bf16.xpose.msra.mxu0 0
    %4677 = vmatprep.subr.bf16.mxu0 0
    %4678 = vmatpush1.bf16.xpose.msra.mxu0 0
    %4679 = vmatprep.subr.bf16.mxu0 0
    %4680 = vmatpush1.bf16.xpose.msra.mxu0 0
    %4681 = vmatprep.subr.bf16.mxu0 0
    %4682 = vmatpush1.bf16.xpose.msra.mxu0 0
    %4683 = vmatprep.subr.bf16.mxu0 0
    %4684 = vmatpush1.bf16.xpose.msra.mxu0 0
    %4685 = vmatprep.subr.bf16.mxu0 0
    %4686 = vmatpush1.bf16.xpose.msra.mxu0 0
    %4687 = vmatprep.subr.bf16.mxu0 0
    %4688 = vmatpush1.bf16.xpose.msra.mxu0 0
    %4689 = vmatprep.subr.bf16.mxu0 0
    %4690 = vmatpush1.bf16.xpose.msra.mxu0 0
    %4691 = vmatprep.subr.bf16.mxu0 0
    %4692 = vmatpush1.bf16.xpose.msra.mxu0 0
    %4693 = vmatprep.subr.bf16.mxu0 0
    %4694 = vmatpush1.bf16.xpose.msra.mxu0 0
    %4695 = vmatprep.subr.bf16.mxu0 0
    %4696 = vmatpush1.bf16.xpose.msra.mxu0 0
    %4697 = vmatprep.subr.bf16.mxu0 0
    %4698 = vmatpush1.bf16.xpose.msra.mxu0 0
    %4699 = vmatprep.subr.bf16.mxu0 0
    %4700 = vmatpush1.bf16.xpose.msra.mxu0 0
    %4701 = vmatprep.subr.bf16.mxu0 0
    %4702 = vmatpush1.bf16.xpose.msra.mxu0 0
    %4703 = vmatprep.mubr.bf16.mxu0 0
    %4704 = vmatmul.mubr.bf16.gmra.mrb[0].mxu0 %v4666
    %v4705 = vpop.f32.mrb[0].mxu0
    %v4706 = vadd.f32 %v119, %v4705
    %v4707 = vpop.f32.mrb[0].mxu0
    %v4708 = vpop.f32.mrb[0].mxu0
    %v4709 = vpop.f32.mrb[0].mxu0
    %4710 = vdwg.mxu0
    %v4712 = vsel %vm442, %v4618, 0
    %v4715 = vsel %vm442, %v4635, 0
    %4717 = vmatprep.subr.bf16.mxu0 0
    %4718 = vmatpush1.bf16.xpose.msra.mxu0 %v4715
    %4719 = vmatprep.subr.bf16.mxu0 0
    %4720 = vmatpush1.bf16.xpose.msra.mxu0 0
    %4721 = vmatprep.subr.bf16.mxu0 0
    %4722 = vmatpush1.bf16.xpose.msra.mxu0 0
    %4723 = vmatprep.subr.bf16.mxu0 0
    %4724 = vmatpush1.bf16.xpose.msra.mxu0 0
    %4725 = vmatprep.subr.bf16.mxu0 0
    %4726 = vmatpush1.bf16.xpose.msra.mxu0 0
    %4727 = vmatprep.subr.bf16.mxu0 0
    %4728 = vmatpush1.bf16.xpose.msra.mxu0 0
    %4729 = vmatprep.subr.bf16.mxu0 0
    %4730 = vmatpush1.bf16.xpose.msra.mxu0 0
    %4731 = vmatprep.subr.bf16.mxu0 0
    %4732 = vmatpush1.bf16.xpose.msra.mxu0 0
    %4733 = vmatprep.subr.bf16.mxu0 0
    %4734 = vmatpush1.bf16.xpose.msra.mxu0 0
    %4735 = vmatprep.subr.bf16.mxu0 0
    %4736 = vmatpush1.bf16.xpose.msra.mxu0 0
    %4737 = vmatprep.subr.bf16.mxu0 0
    %4738 = vmatpush1.bf16.xpose.msra.mxu0 0
    %4739 = vmatprep.subr.bf16.mxu0 0
    %4740 = vmatpush1.bf16.xpose.msra.mxu0 0
    %4741 = vmatprep.subr.bf16.mxu0 0
    %4742 = vmatpush1.bf16.xpose.msra.mxu0 0
    %4743 = vmatprep.subr.bf16.mxu0 0
    %4744 = vmatpush1.bf16.xpose.msra.mxu0 0
    %4745 = vmatprep.subr.bf16.mxu0 0
    %4746 = vmatpush1.bf16.xpose.msra.mxu0 0
    %4747 = vmatprep.subr.bf16.mxu0 0
    %4748 = vmatpush1.bf16.xpose.msra.mxu0 0
    %4749 = vmatprep.mubr.bf16.mxu0 0
    %4750 = vmatmul.mubr.bf16.gmra.mrb[0].mxu0 %v4712
    %v4751 = vpop.f32.mrb[0].mxu0
    %v4752 = vadd.f32 %v123, %v4751
    %v4753 = vpop.f32.mrb[0].mxu0
    %v4754 = vpop.f32.mrb[0].mxu0
    %v4755 = vpop.f32.mrb[0].mxu0
    %4756 = vdwg.mxu0
    %v4758 = vsel %vm442, %v4620, 0
    %v4761 = vsel %vm442, %v4637, 0
    %4763 = vmatprep.subr.bf16.mxu0 0
    %4764 = vmatpush1.bf16.xpose.msra.mxu0 %v4761
    %4765 = vmatprep.subr.bf16.mxu0 0
    %4766 = vmatpush1.bf16.xpose.msra.mxu0 0
    %4767 = vmatprep.subr.bf16.mxu0 0
    %4768 = vmatpush1.bf16.xpose.msra.mxu0 0
    %4769 = vmatprep.subr.bf16.mxu0 0
    %4770 = vmatpush1.bf16.xpose.msra.mxu0 0
    %4771 = vmatprep.subr.bf16.mxu0 0
    %4772 = vmatpush1.bf16.xpose.msra.mxu0 0
    %4773 = vmatprep.subr.bf16.mxu0 0
    %4774 = vmatpush1.bf16.xpose.msra.mxu0 0
    %4775 = vmatprep.subr.bf16.mxu0 0
    %4776 = vmatpush1.bf16.xpose.msra.mxu0 0
    %4777 = vmatprep.subr.bf16.mxu0 0
    %4778 = vmatpush1.bf16.xpose.msra.mxu0 0
    %4779 = vmatprep.subr.bf16.mxu0 0
    %4780 = vmatpush1.bf16.xpose.msra.mxu0 0
    %4781 = vmatprep.subr.bf16.mxu0 0
    %4782 = vmatpush1.bf16.xpose.msra.mxu0 0
    %4783 = vmatprep.subr.bf16.mxu0 0
    %4784 = vmatpush1.bf16.xpose.msra.mxu0 0
    %4785 = vmatprep.subr.bf16.mxu0 0
    %4786 = vmatpush1.bf16.xpose.msra.mxu0 0
    %4787 = vmatprep.subr.bf16.mxu0 0
    %4788 = vmatpush1.bf16.xpose.msra.mxu0 0
    %4789 = vmatprep.subr.bf16.mxu0 0
    %4790 = vmatpush1.bf16.xpose.msra.mxu0 0
    %4791 = vmatprep.subr.bf16.mxu0 0
    %4792 = vmatpush1.bf16.xpose.msra.mxu0 0
    %4793 = vmatprep.subr.bf16.mxu0 0
    %4794 = vmatpush1.bf16.xpose.msra.mxu0 0
    %4795 = vmatprep.mubr.bf16.mxu0 0
    %4796 = vmatmul.mubr.bf16.gmra.mrb[0].mxu0 %v4758
    %v4797 = vpop.f32.mrb[0].mxu0
    %v4798 = vadd.f32 %v119, %v4797
    %v4799 = vpop.f32.mrb[0].mxu0
    %v4800 = vpop.f32.mrb[0].mxu0
    %v4801 = vpop.f32.mrb[0].mxu0
    %4802 = vdwg.mxu0
    %v4804 = vsel %vm442, %v4622, 0
    %v4807 = vsel %vm442, %v4639, 0
    %4809 = vmatprep.subr.bf16.mxu0 0
    %4810 = vmatpush1.bf16.xpose.msra.mxu0 %v4807
    %4811 = vmatprep.subr.bf16.mxu0 0
    %4812 = vmatpush1.bf16.xpose.msra.mxu0 0
    %4813 = vmatprep.subr.bf16.mxu0 0
    %4814 = vmatpush1.bf16.xpose.msra.mxu0 0
    %4815 = vmatprep.subr.bf16.mxu0 0
    %4816 = vmatpush1.bf16.xpose.msra.mxu0 0
    %4817 = vmatprep.subr.bf16.mxu0 0
    %4818 = vmatpush1.bf16.xpose.msra.mxu0 0
    %4819 = vmatprep.subr.bf16.mxu0 0
    %4820 = vmatpush1.bf16.xpose.msra.mxu0 0
    %4821 = vmatprep.subr.bf16.mxu0 0
    %4822 = vmatpush1.bf16.xpose.msra.mxu0 0
    %4823 = vmatprep.subr.bf16.mxu0 0
    %4824 = vmatpush1.bf16.xpose.msra.mxu0 0
    %4825 = vmatprep.subr.bf16.mxu0 0
    %4826 = vmatpush1.bf16.xpose.msra.mxu0 0
    %4827 = vmatprep.subr.bf16.mxu0 0
    %4828 = vmatpush1.bf16.xpose.msra.mxu0 0
    %4829 = vmatprep.subr.bf16.mxu0 0
    %4830 = vmatpush1.bf16.xpose.msra.mxu0 0
    %4831 = vmatprep.subr.bf16.mxu0 0
    %4832 = vmatpush1.bf16.xpose.msra.mxu0 0
    %4833 = vmatprep.subr.bf16.mxu0 0
    %4834 = vmatpush1.bf16.xpose.msra.mxu0 0
    %4835 = vmatprep.subr.bf16.mxu0 0
    %4836 = vmatpush1.bf16.xpose.msra.mxu0 0
    %4837 = vmatprep.subr.bf16.mxu0 0
    %4838 = vmatpush1.bf16.xpose.msra.mxu0 0
    %4839 = vmatprep.subr.bf16.mxu0 0
    %4840 = vmatpush1.bf16.xpose.msra.mxu0 0
    %4841 = vmatprep.mubr.bf16.mxu0 0
    %4842 = vmatmul.mubr.bf16.gmra.mrb[0].mxu0 %v4804
    %v4843 = vpop.f32.mrb[0].mxu0
    %v4844 = vadd.f32 %v123, %v4843
    %v4845 = vpop.f32.mrb[0].mxu0
    %v4846 = vpop.f32.mrb[0].mxu0
    %v4847 = vpop.f32.mrb[0].mxu0
    %4848 = vdwg.mxu0
    %v4850 = vsel %vm442, %v4624, 0
    %v4853 = vsel %vm442, %v4641, 0
    %4855 = vmatprep.subr.bf16.mxu0 0
    %4856 = vmatpush1.bf16.xpose.msra.mxu0 %v4853
    %4857 = vmatprep.subr.bf16.mxu0 0
    %4858 = vmatpush1.bf16.xpose.msra.mxu0 0
    %4859 = vmatprep.subr.bf16.mxu0 0
    %4860 = vmatpush1.bf16.xpose.msra.mxu0 0
    %4861 = vmatprep.subr.bf16.mxu0 0
    %4862 = vmatpush1.bf16.xpose.msra.mxu0 0
    %4863 = vmatprep.subr.bf16.mxu0 0
    %4864 = vmatpush1.bf16.xpose.msra.mxu0 0
    %4865 = vmatprep.subr.bf16.mxu0 0
    %4866 = vmatpush1.bf16.xpose.msra.mxu0 0
    %4867 = vmatprep.subr.bf16.mxu0 0
    %4868 = vmatpush1.bf16.xpose.msra.mxu0 0
    %4869 = vmatprep.subr.bf16.mxu0 0
    %4870 = vmatpush1.bf16.xpose.msra.mxu0 0
    %4871 = vmatprep.subr.bf16.mxu0 0
    %4872 = vmatpush1.bf16.xpose.msra.mxu0 0
    %4873 = vmatprep.subr.bf16.mxu0 0
    %4874 = vmatpush1.bf16.xpose.msra.mxu0 0
    %4875 = vmatprep.subr.bf16.mxu0 0
    %4876 = vmatpush1.bf16.xpose.msra.mxu0 0
    %4877 = vmatprep.subr.bf16.mxu0 0
    %4878 = vmatpush1.bf16.xpose.msra.mxu0 0
    %4879 = vmatprep.subr.bf16.mxu0 0
    %4880 = vmatpush1.bf16.xpose.msra.mxu0 0
    %4881 = vmatprep.subr.bf16.mxu0 0
    %4882 = vmatpush1.bf16.xpose.msra.mxu0 0
    %4883 = vmatprep.subr.bf16.mxu0 0
    %4884 = vmatpush1.bf16.xpose.msra.mxu0 0
    %4885 = vmatprep.subr.bf16.mxu0 0
    %4886 = vmatpush1.bf16.xpose.msra.mxu0 0
    %4887 = vmatprep.mubr.bf16.mxu0 0
    %4888 = vmatmul.mubr.bf16.gmra.mrb[0].mxu0 %v4850
    %v4889 = vpop.f32.mrb[0].mxu0
    %v4890 = vadd.f32 %v119, %v4889
    %v4891 = vpop.f32.mrb[0].mxu0
    %v4892 = vpop.f32.mrb[0].mxu0
    %v4893 = vpop.f32.mrb[0].mxu0
    %4894 = vdwg.mxu0
    %v4896 = vsel %vm442, %v4626, 0
    %v4899 = vsel %vm442, %v4643, 0
    %4901 = vmatprep.subr.bf16.mxu0 0
    %4902 = vmatpush1.bf16.xpose.msra.mxu0 %v4899
    %4903 = vmatprep.subr.bf16.mxu0 0
    %4904 = vmatpush1.bf16.xpose.msra.mxu0 0
    %4905 = vmatprep.subr.bf16.mxu0 0
    %4906 = vmatpush1.bf16.xpose.msra.mxu0 0
    %4907 = vmatprep.subr.bf16.mxu0 0
    %4908 = vmatpush1.bf16.xpose.msra.mxu0 0
    %4909 = vmatprep.subr.bf16.mxu0 0
    %4910 = vmatpush1.bf16.xpose.msra.mxu0 0
    %4911 = vmatprep.subr.bf16.mxu0 0
    %4912 = vmatpush1.bf16.xpose.msra.mxu0 0
    %4913 = vmatprep.subr.bf16.mxu0 0
    %4914 = vmatpush1.bf16.xpose.msra.mxu0 0
    %4915 = vmatprep.subr.bf16.mxu0 0
    %4916 = vmatpush1.bf16.xpose.msra.mxu0 0
    %4917 = vmatprep.subr.bf16.mxu0 0
    %4918 = vmatpush1.bf16.xpose.msra.mxu0 0
    %4919 = vmatprep.subr.bf16.mxu0 0
    %4920 = vmatpush1.bf16.xpose.msra.mxu0 0
    %4921 = vmatprep.subr.bf16.mxu0 0
    %4922 = vmatpush1.bf16.xpose.msra.mxu0 0
    %4923 = vmatprep.subr.bf16.mxu0 0
    %4924 = vmatpush1.bf16.xpose.msra.mxu0 0
    %4925 = vmatprep.subr.bf16.mxu0 0
    %4926 = vmatpush1.bf16.xpose.msra.mxu0 0
    %4927 = vmatprep.subr.bf16.mxu0 0
    %4928 = vmatpush1.bf16.xpose.msra.mxu0 0
    %4929 = vmatprep.subr.bf16.mxu0 0
    %4930 = vmatpush1.bf16.xpose.msra.mxu0 0
    %4931 = vmatprep.subr.bf16.mxu0 0
    %4932 = vmatpush1.bf16.xpose.msra.mxu0 0
    %4933 = vmatprep.mubr.bf16.mxu0 0
    %4934 = vmatmul.mubr.bf16.gmra.mrb[0].mxu0 %v4896
    %v4935 = vpop.f32.mrb[0].mxu0
    %v4936 = vadd.f32 %v123, %v4935
    %v4937 = vpop.f32.mrb[0].mxu0
    %v4938 = vpop.f32.mrb[0].mxu0
    %v4939 = vpop.f32.mrb[0].mxu0
    %4940 = vdwg.mxu0
    %v4942 = vsel %vm442, %v4628, 0
    %v4945 = vsel %vm442, %v4645, 0
    %4947 = vmatprep.subr.bf16.mxu0 0
    %4948 = vmatpush1.bf16.xpose.msra.mxu0 %v4945
    %4949 = vmatprep.subr.bf16.mxu0 0
    %4950 = vmatpush1.bf16.xpose.msra.mxu0 0
    %4951 = vmatprep.subr.bf16.mxu0 0
    %4952 = vmatpush1.bf16.xpose.msra.mxu0 0
    %4953 = vmatprep.subr.bf16.mxu0 0
    %4954 = vmatpush1.bf16.xpose.msra.mxu0 0
    %4955 = vmatprep.subr.bf16.mxu0 0
    %4956 = vmatpush1.bf16.xpose.msra.mxu0 0
    %4957 = vmatprep.subr.bf16.mxu0 0
    %4958 = vmatpush1.bf16.xpose.msra.mxu0 0
    %4959 = vmatprep.subr.bf16.mxu0 0
    %4960 = vmatpush1.bf16.xpose.msra.mxu0 0
    %4961 = vmatprep.subr.bf16.mxu0 0
    %4962 = vmatpush1.bf16.xpose.msra.mxu0 0
    %4963 = vmatprep.subr.bf16.mxu0 0
    %4964 = vmatpush1.bf16.xpose.msra.mxu0 0
    %4965 = vmatprep.subr.bf16.mxu0 0
    %4966 = vmatpush1.bf16.xpose.msra.mxu0 0
    %4967 = vmatprep.subr.bf16.mxu0 0
    %4968 = vmatpush1.bf16.xpose.msra.mxu0 0
    %4969 = vmatprep.subr.bf16.mxu0 0
    %4970 = vmatpush1.bf16.xpose.msra.mxu0 0
    %4971 = vmatprep.subr.bf16.mxu0 0
    %4972 = vmatpush1.bf16.xpose.msra.mxu0 0
    %4973 = vmatprep.subr.bf16.mxu0 0
    %4974 = vmatpush1.bf16.xpose.msra.mxu0 0
    %4975 = vmatprep.subr.bf16.mxu0 0
    %4976 = vmatpush1.bf16.xpose.msra.mxu0 0
    %4977 = vmatprep.subr.bf16.mxu0 0
    %4978 = vmatpush1.bf16.xpose.msra.mxu0 0
    %4979 = vmatprep.mubr.bf16.mxu0 0
    %4980 = vmatmul.mubr.bf16.gmra.mrb[0].mxu0 %v4942
    %v4981 = vpop.f32.mrb[0].mxu0
    %v4982 = vadd.f32 %v119, %v4981
    %v4983 = vpop.f32.mrb[0].mxu0
    %v4984 = vpop.f32.mrb[0].mxu0
    %v4985 = vpop.f32.mrb[0].mxu0
    %4986 = vdwg.mxu0
    %v4988 = vsel %vm442, %v4630, 0
    %v4991 = vsel %vm442, %v4647, 0
    %4993 = vmatprep.subr.bf16.mxu0 0
    %4994 = vmatpush1.bf16.xpose.msra.mxu0 %v4991
    %4995 = vmatprep.subr.bf16.mxu0 0
    %4996 = vmatpush1.bf16.xpose.msra.mxu0 0
    %4997 = vmatprep.subr.bf16.mxu0 0
    %4998 = vmatpush1.bf16.xpose.msra.mxu0 0
    %4999 = vmatprep.subr.bf16.mxu0 0
    %5000 = vmatpush1.bf16.xpose.msra.mxu0 0
    %5001 = vmatprep.subr.bf16.mxu0 0
    %5002 = vmatpush1.bf16.xpose.msra.mxu0 0
    %5003 = vmatprep.subr.bf16.mxu0 0
    %5004 = vmatpush1.bf16.xpose.msra.mxu0 0
    %5005 = vmatprep.subr.bf16.mxu0 0
    %5006 = vmatpush1.bf16.xpose.msra.mxu0 0
    %5007 = vmatprep.subr.bf16.mxu0 0
    %5008 = vmatpush1.bf16.xpose.msra.mxu0 0
    %5009 = vmatprep.subr.bf16.mxu0 0
    %5010 = vmatpush1.bf16.xpose.msra.mxu0 0
    %5011 = vmatprep.subr.bf16.mxu0 0
    %5012 = vmatpush1.bf16.xpose.msra.mxu0 0
    %5013 = vmatprep.subr.bf16.mxu0 0
    %5014 = vmatpush1.bf16.xpose.msra.mxu0 0
    %5015 = vmatprep.subr.bf16.mxu0 0
    %5016 = vmatpush1.bf16.xpose.msra.mxu0 0
    %5017 = vmatprep.subr.bf16.mxu0 0
    %5018 = vmatpush1.bf16.xpose.msra.mxu0 0
    %5019 = vmatprep.subr.bf16.mxu0 0
    %5020 = vmatpush1.bf16.xpose.msra.mxu0 0
    %5021 = vmatprep.subr.bf16.mxu0 0
    %5022 = vmatpush1.bf16.xpose.msra.mxu0 0
    %5023 = vmatprep.subr.bf16.mxu0 0
    %5024 = vmatpush1.bf16.xpose.msra.mxu0 0
    %5025 = vmatprep.mubr.bf16.mxu0 0
    %5026 = vmatmul.mubr.bf16.gmra.mrb[0].mxu0 %v4988
    %v5027 = vpop.f32.mrb[0].mxu0
    %v5028 = vadd.f32 %v123, %v5027
    %v5029 = vpop.f32.mrb[0].mxu0
    %v5030 = vpop.f32.mrb[0].mxu0
    %v5031 = vpop.f32.mrb[0].mxu0
    %5032 = vdwg.mxu0
    %v5033 = vsel %vm811, %v4706, -inf
    %5034 = vmax.xlane.f32.xlu0 %v5033
    %v5035 = vpop.xlane.xlu0 %5034
    %v5036 = vsel %vm811, %v4752, -inf
    %5037 = vmax.xlane.f32.xlu0 %v5036
    %v5038 = vpop.xlane.xlu0 %5037
    %v5039 = vsel %vm811, %v4798, -inf
    %5040 = vmax.xlane.f32.xlu0 %v5039
    %v5041 = vpop.xlane.xlu0 %5040
    %v5042 = vsel %vm811, %v4844, -inf
    %5043 = vmax.xlane.f32.xlu0 %v5042
    %v5044 = vpop.xlane.xlu0 %5043
    %v5045 = vsel %vm811, %v4890, -inf
    %5046 = vmax.xlane.f32.xlu0 %v5045
    %v5047 = vpop.xlane.xlu0 %5046
    %v5048 = vsel %vm811, %v4936, -inf
    %5049 = vmax.xlane.f32.xlu0 %v5048
    %v5050 = vpop.xlane.xlu0 %5049
    %v5051 = vsel %vm811, %v4982, -inf
    %5052 = vmax.xlane.f32.xlu0 %v5051
    %v5053 = vpop.xlane.xlu0 %5052
    %v5054 = vsel %vm811, %v5028, -inf
    %5055 = vmax.xlane.f32.xlu0 %v5054
    %v5056 = vpop.xlane.xlu0 %5055
    %v5057 = vsub.f32 %v4706, %v5035
    %v5058 = vsub.f32 %v4752, %v5038
    %v5059 = vsub.f32 %v4798, %v5041
    %v5060 = vsub.f32 %v4844, %v5044
    %v5061 = vsub.f32 %v4890, %v5047
    %v5062 = vsub.f32 %v4936, %v5050
    %v5063 = vsub.f32 %v4982, %v5053
    %v5064 = vsub.f32 %v5028, %v5056
    %v5065 = vmul.f32 %v5057, 1.442695
    %v5066 = vpow.pop %v5065
    %v5067 = vmul.f32 %v5058, 1.442695
    %v5068 = vpow.pop %v5067
    %v5069 = vmul.f32 %v5059, 1.442695
    %v5070 = vpow.pop %v5069
    %v5071 = vmul.f32 %v5060, 1.442695
    %v5072 = vpow.pop %v5071
    %v5073 = vmul.f32 %v5061, 1.442695
    %v5074 = vpow.pop %v5073
    %v5075 = vmul.f32 %v5062, 1.442695
    %v5076 = vpow.pop %v5075
    %v5077 = vmul.f32 %v5063, 1.442695
    %v5078 = vpow.pop %v5077
    %v5079 = vmul.f32 %v5064, 1.442695
    %v5080 = vpow.pop %v5079
    %v5081 = vsel %vm811, %v5066, 0.0
    %5082 = vadd.xlane.f32.xlu0 %v5081
    %v5083 = vpop.xlane.xlu0 %5082
    %v5084 = vsel %vm811, %v5068, 0.0
    %5085 = vadd.xlane.f32.xlu0 %v5084
    %v5086 = vpop.xlane.xlu0 %5085
    %v5087 = vsel %vm811, %v5070, 0.0
    %5088 = vadd.xlane.f32.xlu0 %v5087
    %v5089 = vpop.xlane.xlu0 %5088
    %v5090 = vsel %vm811, %v5072, 0.0
    %5091 = vadd.xlane.f32.xlu0 %v5090
    %v5092 = vpop.xlane.xlu0 %5091
    %v5093 = vsel %vm811, %v5074, 0.0
    %5094 = vadd.xlane.f32.xlu0 %v5093
    %v5095 = vpop.xlane.xlu0 %5094
    %v5096 = vsel %vm811, %v5076, 0.0
    %5097 = vadd.xlane.f32.xlu0 %v5096
    %v5098 = vpop.xlane.xlu0 %5097
    %v5099 = vsel %vm811, %v5078, 0.0
    %5100 = vadd.xlane.f32.xlu0 %v5099
    %v5101 = vpop.xlane.xlu0 %5100
    %v5102 = vsel %vm811, %v5080, 0.0
    %5103 = vadd.xlane.f32.xlu0 %v5102
    %v5104 = vpop.xlane.xlu0 %5103
    %v5105 = vrcp.pop %v5083
    %v5106 = vrcp.pop %v5086
    %v5107 = vrcp.pop %v5089
    %v5108 = vrcp.pop %v5092
    %v5109 = vrcp.pop %v5095
    %v5110 = vrcp.pop %v5098
    %v5111 = vrcp.pop %v5101
    %v5112 = vrcp.pop %v5104
    %v5113 = vmul.f32 %v5066, %v5105
    %v5114 = vmul.f32 %v5068, %v5106
    %v5115 = vmul.f32 %v5070, %v5107
    %v5116 = vmul.f32 %v5072, %v5108
    %v5117 = vmul.f32 %v5074, %v5109
    %v5118 = vmul.f32 %v5076, %v5110
    %v5119 = vmul.f32 %v5078, %v5111
    %v5120 = vmul.f32 %v5080, %v5112
    %v5121 = vpack.c.bf16 %v5113, %v5113
    %v5122 = vpack.c.bf16 %v5114, %v5114
    %v5123 = vpack.c.bf16 %v5115, %v5115
    %v5124 = vpack.c.bf16 %v5116, %v5116
    %v5125 = vpack.c.bf16 %v5117, %v5117
    %v5126 = vpack.c.bf16 %v5118, %v5118
    %v5127 = vpack.c.bf16 %v5119, %v5119
    %v5128 = vpack.c.bf16 %v5120, %v5120
    %v5130 = vsel %vm811, %v5121, 0
    %v5133 = vsel %vm911, %v4651, 0
    %5135 = vmatprep.subr.bf16.mxu0 0
    %5136 = vmatpush1.bf16.msra.mxu0 %v5133
    %5137 = vmatprep.subr.bf16.mxu0 0
    %5138 = vmatpush1.bf16.msra.mxu0 0
    %5139 = vmatprep.subr.bf16.mxu0 0
    %5140 = vmatpush1.bf16.msra.mxu0 0
    %5141 = vmatprep.subr.bf16.mxu0 0
    %5142 = vmatpush1.bf16.msra.mxu0 0
    %5143 = vmatprep.subr.bf16.mxu0 0
    %5144 = vmatpush1.bf16.msra.mxu0 0
    %5145 = vmatprep.subr.bf16.mxu0 0
    %5146 = vmatpush1.bf16.msra.mxu0 0
    %5147 = vmatprep.subr.bf16.mxu0 0
    %5148 = vmatpush1.bf16.msra.mxu0 0
    %5149 = vmatprep.subr.bf16.mxu0 0
    %5150 = vmatpush1.bf16.msra.mxu0 0
    %5151 = vmatprep.subr.bf16.mxu0 0
    %5152 = vmatpush1.bf16.msra.mxu0 0
    %5153 = vmatprep.subr.bf16.mxu0 0
    %5154 = vmatpush1.bf16.msra.mxu0 0
    %5155 = vmatprep.subr.bf16.mxu0 0
    %5156 = vmatpush1.bf16.msra.mxu0 0
    %5157 = vmatprep.subr.bf16.mxu0 0
    %5158 = vmatpush1.bf16.msra.mxu0 0
    %5159 = vmatprep.subr.bf16.mxu0 0
    %5160 = vmatpush1.bf16.msra.mxu0 0
    %5161 = vmatprep.subr.bf16.mxu0 0
    %5162 = vmatpush1.bf16.msra.mxu0 0
    %5163 = vmatprep.subr.bf16.mxu0 0
    %5164 = vmatpush1.bf16.msra.mxu0 0
    %5165 = vmatprep.subr.bf16.mxu0 0
    %5166 = vmatpush1.bf16.msra.mxu0 0
    %5167 = vmatprep.mubr.bf16.mxu0 0
    %5168 = vmatmul.mubr.bf16.gmra.mrb[0].mxu0 %v5130
    %v5169 = vpop.f32.mrb[0].mxu0
    %v5170 = vadd.f32 0.0, %v5169
    %v5171 = vpop.f32.mrb[0].mxu0
    %v5172 = vpop.f32.mrb[0].mxu0
    %v5173 = vpop.f32.mrb[0].mxu0
    %5174 = vdwg.mxu0
    %v5176 = vsel %vm811, %v5122, 0
    %v5179 = vsel %vm911, %v4652, 0
    %5181 = vmatprep.subr.bf16.mxu0 0
    %5182 = vmatpush1.bf16.msra.mxu0 %v5179
    %5183 = vmatprep.subr.bf16.mxu0 0
    %5184 = vmatpush1.bf16.msra.mxu0 0
    %5185 = vmatprep.subr.bf16.mxu0 0
    %5186 = vmatpush1.bf16.msra.mxu0 0
    %5187 = vmatprep.subr.bf16.mxu0 0
    %5188 = vmatpush1.bf16.msra.mxu0 0
    %5189 = vmatprep.subr.bf16.mxu0 0
    %5190 = vmatpush1.bf16.msra.mxu0 0
    %5191 = vmatprep.subr.bf16.mxu0 0
    %5192 = vmatpush1.bf16.msra.mxu0 0
    %5193 = vmatprep.subr.bf16.mxu0 0
    %5194 = vmatpush1.bf16.msra.mxu0 0
    %5195 = vmatprep.subr.bf16.mxu0 0
    %5196 = vmatpush1.bf16.msra.mxu0 0
    %5197 = vmatprep.subr.bf16.mxu0 0
    %5198 = vmatpush1.bf16.msra.mxu0 0
    %5199 = vmatprep.subr.bf16.mxu0 0
    %5200 = vmatpush1.bf16.msra.mxu0 0
    %5201 = vmatprep.subr.bf16.mxu0 0
    %5202 = vmatpush1.bf16.msra.mxu0 0
    %5203 = vmatprep.subr.bf16.mxu0 0
    %5204 = vmatpush1.bf16.msra.mxu0 0
    %5205 = vmatprep.subr.bf16.mxu0 0
    %5206 = vmatpush1.bf16.msra.mxu0 0
    %5207 = vmatprep.subr.bf16.mxu0 0
    %5208 = vmatpush1.bf16.msra.mxu0 0
    %5209 = vmatprep.subr.bf16.mxu0 0
    %5210 = vmatpush1.bf16.msra.mxu0 0
    %5211 = vmatprep.subr.bf16.mxu0 0
    %5212 = vmatpush1.bf16.msra.mxu0 0
    %5213 = vmatprep.mubr.bf16.mxu0 0
    %5214 = vmatmul.mubr.bf16.gmra.mrb[0].mxu0 %v5176
    %v5215 = vpop.f32.mrb[0].mxu0
    %v5216 = vadd.f32 0.0, %v5215
    %v5217 = vpop.f32.mrb[0].mxu0
    %v5218 = vpop.f32.mrb[0].mxu0
    %v5219 = vpop.f32.mrb[0].mxu0
    %5220 = vdwg.mxu0
    %v5222 = vsel %vm811, %v5123, 0
    %v5225 = vsel %vm911, %v4654, 0
    %5227 = vmatprep.subr.bf16.mxu0 0
    %5228 = vmatpush1.bf16.msra.mxu0 %v5225
    %5229 = vmatprep.subr.bf16.mxu0 0
    %5230 = vmatpush1.bf16.msra.mxu0 0
    %5231 = vmatprep.subr.bf16.mxu0 0
    %5232 = vmatpush1.bf16.msra.mxu0 0
    %5233 = vmatprep.subr.bf16.mxu0 0
    %5234 = vmatpush1.bf16.msra.mxu0 0
    %5235 = vmatprep.subr.bf16.mxu0 0
    %5236 = vmatpush1.bf16.msra.mxu0 0
    %5237 = vmatprep.subr.bf16.mxu0 0
    %5238 = vmatpush1.bf16.msra.mxu0 0
    %5239 = vmatprep.subr.bf16.mxu0 0
    %5240 = vmatpush1.bf16.msra.mxu0 0
    %5241 = vmatprep.subr.bf16.mxu0 0
    %5242 = vmatpush1.bf16.msra.mxu0 0
    %5243 = vmatprep.subr.bf16.mxu0 0
    %5244 = vmatpush1.bf16.msra.mxu0 0
    %5245 = vmatprep.subr.bf16.mxu0 0
    %5246 = vmatpush1.bf16.msra.mxu0 0
    %5247 = vmatprep.subr.bf16.mxu0 0
    %5248 = vmatpush1.bf16.msra.mxu0 0
    %5249 = vmatprep.subr.bf16.mxu0 0
    %5250 = vmatpush1.bf16.msra.mxu0 0
    %5251 = vmatprep.subr.bf16.mxu0 0
    %5252 = vmatpush1.bf16.msra.mxu0 0
    %5253 = vmatprep.subr.bf16.mxu0 0
    %5254 = vmatpush1.bf16.msra.mxu0 0
    %5255 = vmatprep.subr.bf16.mxu0 0
    %5256 = vmatpush1.bf16.msra.mxu0 0
    %5257 = vmatprep.subr.bf16.mxu0 0
    %5258 = vmatpush1.bf16.msra.mxu0 0
    %5259 = vmatprep.mubr.bf16.mxu0 0
    %5260 = vmatmul.mubr.bf16.gmra.mrb[0].mxu0 %v5222
    %v5261 = vpop.f32.mrb[0].mxu0
    %v5262 = vadd.f32 0.0, %v5261
    %v5263 = vpop.f32.mrb[0].mxu0
    %v5264 = vpop.f32.mrb[0].mxu0
    %v5265 = vpop.f32.mrb[0].mxu0
    %5266 = vdwg.mxu0
    %v5268 = vsel %vm811, %v5124, 0
    %v5271 = vsel %vm911, %v4656, 0
    %5273 = vmatprep.subr.bf16.mxu0 0
    %5274 = vmatpush1.bf16.msra.mxu0 %v5271
    %5275 = vmatprep.subr.bf16.mxu0 0
    %5276 = vmatpush1.bf16.msra.mxu0 0
    %5277 = vmatprep.subr.bf16.mxu0 0
    %5278 = vmatpush1.bf16.msra.mxu0 0
    %5279 = vmatprep.subr.bf16.mxu0 0
    %5280 = vmatpush1.bf16.msra.mxu0 0
    %5281 = vmatprep.subr.bf16.mxu0 0
    %5282 = vmatpush1.bf16.msra.mxu0 0
    %5283 = vmatprep.subr.bf16.mxu0 0
    %5284 = vmatpush1.bf16.msra.mxu0 0
    %5285 = vmatprep.subr.bf16.mxu0 0
    %5286 = vmatpush1.bf16.msra.mxu0 0
    %5287 = vmatprep.subr.bf16.mxu0 0
    %5288 = vmatpush1.bf16.msra.mxu0 0
    %5289 = vmatprep.subr.bf16.mxu0 0
    %5290 = vmatpush1.bf16.msra.mxu0 0
    %5291 = vmatprep.subr.bf16.mxu0 0
    %5292 = vmatpush1.bf16.msra.mxu0 0
    %5293 = vmatprep.subr.bf16.mxu0 0
    %5294 = vmatpush1.bf16.msra.mxu0 0
    %5295 = vmatprep.subr.bf16.mxu0 0
    %5296 = vmatpush1.bf16.msra.mxu0 0
    %5297 = vmatprep.subr.bf16.mxu0 0
    %5298 = vmatpush1.bf16.msra.mxu0 0
    %5299 = vmatprep.subr.bf16.mxu0 0
    %5300 = vmatpush1.bf16.msra.mxu0 0
    %5301 = vmatprep.subr.bf16.mxu0 0
    %5302 = vmatpush1.bf16.msra.mxu0 0
    %5303 = vmatprep.subr.bf16.mxu0 0
    %5304 = vmatpush1.bf16.msra.mxu0 0
    %5305 = vmatprep.mubr.bf16.mxu0 0
    %5306 = vmatmul.mubr.bf16.gmra.mrb[0].mxu0 %v5268
    %v5307 = vpop.f32.mrb[0].mxu0
    %v5308 = vadd.f32 0.0, %v5307
    %v5309 = vpop.f32.mrb[0].mxu0
    %v5310 = vpop.f32.mrb[0].mxu0
    %v5311 = vpop.f32.mrb[0].mxu0
    %5312 = vdwg.mxu0
    %v5314 = vsel %vm811, %v5125, 0
    %v5317 = vsel %vm911, %v4658, 0
    %5319 = vmatprep.subr.bf16.mxu0 0
    %5320 = vmatpush1.bf16.msra.mxu0 %v5317
    %5321 = vmatprep.subr.bf16.mxu0 0
    %5322 = vmatpush1.bf16.msra.mxu0 0
    %5323 = vmatprep.subr.bf16.mxu0 0
    %5324 = vmatpush1.bf16.msra.mxu0 0
    %5325 = vmatprep.subr.bf16.mxu0 0
    %5326 = vmatpush1.bf16.msra.mxu0 0
    %5327 = vmatprep.subr.bf16.mxu0 0
    %5328 = vmatpush1.bf16.msra.mxu0 0
    %5329 = vmatprep.subr.bf16.mxu0 0
    %5330 = vmatpush1.bf16.msra.mxu0 0
    %5331 = vmatprep.subr.bf16.mxu0 0
    %5332 = vmatpush1.bf16.msra.mxu0 0
    %5333 = vmatprep.subr.bf16.mxu0 0
    %5334 = vmatpush1.bf16.msra.mxu0 0
    %5335 = vmatprep.subr.bf16.mxu0 0
    %5336 = vmatpush1.bf16.msra.mxu0 0
    %5337 = vmatprep.subr.bf16.mxu0 0
    %5338 = vmatpush1.bf16.msra.mxu0 0
    %5339 = vmatprep.subr.bf16.mxu0 0
    %5340 = vmatpush1.bf16.msra.mxu0 0
    %5341 = vmatprep.subr.bf16.mxu0 0
    %5342 = vmatpush1.bf16.msra.mxu0 0
    %5343 = vmatprep.subr.bf16.mxu0 0
    %5344 = vmatpush1.bf16.msra.mxu0 0
    %5345 = vmatprep.subr.bf16.mxu0 0
    %5346 = vmatpush1.bf16.msra.mxu0 0
    %5347 = vmatprep.subr.bf16.mxu0 0
    %5348 = vmatpush1.bf16.msra.mxu0 0
    %5349 = vmatprep.subr.bf16.mxu0 0
    %5350 = vmatpush1.bf16.msra.mxu0 0
    %5351 = vmatprep.mubr.bf16.mxu0 0
    %5352 = vmatmul.mubr.bf16.gmra.mrb[0].mxu0 %v5314
    %v5353 = vpop.f32.mrb[0].mxu0
    %v5354 = vadd.f32 0.0, %v5353
    %v5355 = vpop.f32.mrb[0].mxu0
    %v5356 = vpop.f32.mrb[0].mxu0
    %v5357 = vpop.f32.mrb[0].mxu0
    %5358 = vdwg.mxu0
    %v5360 = vsel %vm811, %v5126, 0
    %v5363 = vsel %vm911, %v4660, 0
    %5365 = vmatprep.subr.bf16.mxu0 0
    %5366 = vmatpush1.bf16.msra.mxu0 %v5363
    %5367 = vmatprep.subr.bf16.mxu0 0
    %5368 = vmatpush1.bf16.msra.mxu0 0
    %5369 = vmatprep.subr.bf16.mxu0 0
    %5370 = vmatpush1.bf16.msra.mxu0 0
    %5371 = vmatprep.subr.bf16.mxu0 0
    %5372 = vmatpush1.bf16.msra.mxu0 0
    %5373 = vmatprep.subr.bf16.mxu0 0
    %5374 = vmatpush1.bf16.msra.mxu0 0
    %5375 = vmatprep.subr.bf16.mxu0 0
    %5376 = vmatpush1.bf16.msra.mxu0 0
    %5377 = vmatprep.subr.bf16.mxu0 0
    %5378 = vmatpush1.bf16.msra.mxu0 0
    %5379 = vmatprep.subr.bf16.mxu0 0
    %5380 = vmatpush1.bf16.msra.mxu0 0
    %5381 = vmatprep.subr.bf16.mxu0 0
    %5382 = vmatpush1.bf16.msra.mxu0 0
    %5383 = vmatprep.subr.bf16.mxu0 0
    %5384 = vmatpush1.bf16.msra.mxu0 0
    %5385 = vmatprep.subr.bf16.mxu0 0
    %5386 = vmatpush1.bf16.msra.mxu0 0
    %5387 = vmatprep.subr.bf16.mxu0 0
    %5388 = vmatpush1.bf16.msra.mxu0 0
    %5389 = vmatprep.subr.bf16.mxu0 0
    %5390 = vmatpush1.bf16.msra.mxu0 0
    %5391 = vmatprep.subr.bf16.mxu0 0
    %5392 = vmatpush1.bf16.msra.mxu0 0
    %5393 = vmatprep.subr.bf16.mxu0 0
    %5394 = vmatpush1.bf16.msra.mxu0 0
    %5395 = vmatprep.subr.bf16.mxu0 0
    %5396 = vmatpush1.bf16.msra.mxu0 0
    %5397 = vmatprep.mubr.bf16.mxu0 0
    %5398 = vmatmul.mubr.bf16.gmra.mrb[0].mxu0 %v5360
    %v5399 = vpop.f32.mrb[0].mxu0
    %v5400 = vadd.f32 0.0, %v5399
    %v5401 = vpop.f32.mrb[0].mxu0
    %v5402 = vpop.f32.mrb[0].mxu0
    %v5403 = vpop.f32.mrb[0].mxu0
    %5404 = vdwg.mxu0
    %v5406 = vsel %vm811, %v5127, 0
    %v5409 = vsel %vm911, %v4662, 0
    %5411 = vmatprep.subr.bf16.mxu0 0
    %5412 = vmatpush1.bf16.msra.mxu0 %v5409
    %5413 = vmatprep.subr.bf16.mxu0 0
    %5414 = vmatpush1.bf16.msra.mxu0 0
    %5415 = vmatprep.subr.bf16.mxu0 0
    %5416 = vmatpush1.bf16.msra.mxu0 0
    %5417 = vmatprep.subr.bf16.mxu0 0
    %5418 = vmatpush1.bf16.msra.mxu0 0
    %5419 = vmatprep.subr.bf16.mxu0 0
    %5420 = vmatpush1.bf16.msra.mxu0 0
    %5421 = vmatprep.subr.bf16.mxu0 0
    %5422 = vmatpush1.bf16.msra.mxu0 0
    %5423 = vmatprep.subr.bf16.mxu0 0
    %5424 = vmatpush1.bf16.msra.mxu0 0
    %5425 = vmatprep.subr.bf16.mxu0 0
    %5426 = vmatpush1.bf16.msra.mxu0 0
    %5427 = vmatprep.subr.bf16.mxu0 0
    %5428 = vmatpush1.bf16.msra.mxu0 0
    %5429 = vmatprep.subr.bf16.mxu0 0
    %5430 = vmatpush1.bf16.msra.mxu0 0
    %5431 = vmatprep.subr.bf16.mxu0 0
    %5432 = vmatpush1.bf16.msra.mxu0 0
    %5433 = vmatprep.subr.bf16.mxu0 0
    %5434 = vmatpush1.bf16.msra.mxu0 0
    %5435 = vmatprep.subr.bf16.mxu0 0
    %5436 = vmatpush1.bf16.msra.mxu0 0
    %5437 = vmatprep.subr.bf16.mxu0 0
    %5438 = vmatpush1.bf16.msra.mxu0 0
    %5439 = vmatprep.subr.bf16.mxu0 0
    %5440 = vmatpush1.bf16.msra.mxu0 0
    %5441 = vmatprep.subr.bf16.mxu0 0
    %5442 = vmatpush1.bf16.msra.mxu0 0
    %5443 = vmatprep.mubr.bf16.mxu0 0
    %5444 = vmatmul.mubr.bf16.gmra.mrb[0].mxu0 %v5406
    %v5445 = vpop.f32.mrb[0].mxu0
    %v5446 = vadd.f32 0.0, %v5445
    %v5447 = vpop.f32.mrb[0].mxu0
    %v5448 = vpop.f32.mrb[0].mxu0
    %v5449 = vpop.f32.mrb[0].mxu0
    %5450 = vdwg.mxu0
    %v5452 = vsel %vm811, %v5128, 0
    %v5455 = vsel %vm911, %v4664, 0
    %5457 = vmatprep.subr.bf16.mxu0 0
    %5458 = vmatpush1.bf16.msra.mxu0 %v5455
    %5459 = vmatprep.subr.bf16.mxu0 0
    %5460 = vmatpush1.bf16.msra.mxu0 0
    %5461 = vmatprep.subr.bf16.mxu0 0
    %5462 = vmatpush1.bf16.msra.mxu0 0
    %5463 = vmatprep.subr.bf16.mxu0 0
    %5464 = vmatpush1.bf16.msra.mxu0 0
    %5465 = vmatprep.subr.bf16.mxu0 0
    %5466 = vmatpush1.bf16.msra.mxu0 0
    %5467 = vmatprep.subr.bf16.mxu0 0
    %5468 = vmatpush1.bf16.msra.mxu0 0
    %5469 = vmatprep.subr.bf16.mxu0 0
    %5470 = vmatpush1.bf16.msra.mxu0 0
    %5471 = vmatprep.subr.bf16.mxu0 0
    %5472 = vmatpush1.bf16.msra.mxu0 0
    %5473 = vmatprep.subr.bf16.mxu0 0
    %5474 = vmatpush1.bf16.msra.mxu0 0
    %5475 = vmatprep.subr.bf16.mxu0 0
    %5476 = vmatpush1.bf16.msra.mxu0 0
    %5477 = vmatprep.subr.bf16.mxu0 0
    %5478 = vmatpush1.bf16.msra.mxu0 0
    %5479 = vmatprep.subr.bf16.mxu0 0
    %5480 = vmatpush1.bf16.msra.mxu0 0
    %5481 = vmatprep.subr.bf16.mxu0 0
    %5482 = vmatpush1.bf16.msra.mxu0 0
    %5483 = vmatprep.subr.bf16.mxu0 0
    %5484 = vmatpush1.bf16.msra.mxu0 0
    %5485 = vmatprep.subr.bf16.mxu0 0
    %5486 = vmatpush1.bf16.msra.mxu0 0
    %5487 = vmatprep.subr.bf16.mxu0 0
    %5488 = vmatpush1.bf16.msra.mxu0 0
    %5489 = vmatprep.mubr.bf16.mxu0 0
    %5490 = vmatmul.mubr.bf16.gmra.mrb[0].mxu0 %v5452
    %v5491 = vpop.f32.mrb[0].mxu0
    %v5492 = vadd.f32 0.0, %v5491
    %v5493 = vpop.f32.mrb[0].mxu0
    %v5494 = vpop.f32.mrb[0].mxu0
    %v5495 = vpop.f32.mrb[0].mxu0
    %5496 = vdwg.mxu0
    %5499 = vrot.lane.b32.xlu0 %v5262, 32
    %v5500 = vpop.permute.xlu0 %5499
    %5501 = vrot.lane.b32.xlu0 %v5308, 32
    %v5502 = vpop.permute.xlu0 %5501
    %5507 = vrot.lane.b32.xlu0 %v5354, 64
    %v5508 = vpop.permute.xlu0 %5507
    %5509 = vrot.lane.b32.xlu0 %v5400, 64
    %v5510 = vpop.permute.xlu0 %5509
    %5515 = vrot.lane.b32.xlu0 %v5446, 96
    %v5516 = vpop.permute.xlu0 %5515
    %5517 = vrot.lane.b32.xlu0 %v5492, 96
    %v5518 = vpop.permute.xlu0 %5517
    %v5521 = vsel %vm442, %v5170, %v5500
    %v5522 = vsel %vm442, %v5216, %v5502
    %v5523 = vsel %vm1303, %v5521, %v5508
    %v5524 = vsel %vm1303, %v5522, %v5510
    %v5525 = vsel %vm1306, %v5523, %v5516
    %v5526 = vsel %vm1306, %v5524, %v5518
    %v5527 = vpack.c.bf16 %v5526, %v5525
    %s5528 = scalar_lea.vmem %s4, 128
    %v5529 = vld [vmem:[%s5528] sm:$0xf]
    %v5530 = vld [vmem:[%s5528 + $0x4] sm:$0xf]
    %v5531 = vld [vmem:[%s5528 + $0x8] sm:$0xf]
    %v5532 = vld [vmem:[%s5528 + $0xc] sm:$0xf]
    %v5533 = vld [vmem:[%s5528 + $0x10] sm:$0xf]
    %v5534 = vld [vmem:[%s5528 + $0x14] sm:$0xf]
    %v5535 = vld [vmem:[%s5528 + $0x18] sm:$0xf]
    %v5536 = vld [vmem:[%s5528 + $0x1c] sm:$0xf]
    %v5537 = vld [vmem:[%s5528 + $0x20] sm:$0xf]
    %v5538 = vld [vmem:[%s5528 + $0x24] sm:$0xf]
    %v5539 = vld [vmem:[%s5528 + $0x28] sm:$0xf]
    %v5540 = vld [vmem:[%s5528 + $0x2c] sm:$0xf]
    %v5541 = vld [vmem:[%s5528 + $0x30] sm:$0xf]
    %v5542 = vld [vmem:[%s5528 + $0x34] sm:$0xf]
    %v5543 = vld [vmem:[%s5528 + $0x38] sm:$0xf]
    %v5544 = vld [vmem:[%s5528 + $0x3c] sm:$0xf]
    %s5545 = scalar_lea.vmem %s5, 2
    %v5546 = vld [vmem:[%s5545] sm:$0x1]
    %v5548 = vlaneseq
    %v5549 = vshrl.u32 %v5548, 7
    %v5550 = vsub.s32 0, %v5549
    %v5551 = vrot.slane %v5546, %v5550
    %v5569 = vunpack.c.l.b16 %v5529
    %v5570 = vunpack.c.l.b16 %v5530
    %v5571 = vunpack.c.l.b16 %v5531
    %v5572 = vunpack.c.l.b16 %v5532
    %v5573 = vunpack.c.l.b16 %v5533
    %v5574 = vunpack.c.l.b16 %v5534
    %v5575 = vunpack.c.l.b16 %v5535
    %v5576 = vunpack.c.l.b16 %v5536
    %v5577 = vunpack.c.l.b16 %v5537
    %v5578 = vunpack.c.l.b16 %v5538
    %v5579 = vunpack.c.l.b16 %v5539
    %v5580 = vunpack.c.l.b16 %v5540
    %v5581 = vunpack.c.l.b16 %v5541
    %v5582 = vunpack.c.l.b16 %v5542
    %v5583 = vunpack.c.l.b16 %v5543
    %v5584 = vunpack.c.l.b16 %v5544
    %v5585 = vpack.c.b16 %v5570, %v5569
    %v5586 = vpack.c.b16 %v5572, %v5571
    %v5587 = vpack.c.b16 %v5574, %v5573
    %v5588 = vpack.c.b16 %v5576, %v5575
    %v5589 = vpack.c.b16 %v5578, %v5577
    %v5590 = vpack.c.b16 %v5580, %v5579
    %v5591 = vpack.c.b16 %v5582, %v5581
    %v5592 = vpack.c.b16 %v5584, %v5583
    %5601 = vmatprep.subr.bf16.mxu0 0
    %5602 = vmatpush1.bf16.msra.mxu0 %v5585
    %5603 = vmatprep.subr.bf16.mxu0 0
    %5604 = vmatpush1.bf16.msra.mxu0 %v5586
    %5605 = vmatprep.subr.bf16.mxu0 0
    %5606 = vmatpush1.bf16.msra.mxu0 %v5587
    %5607 = vmatprep.subr.bf16.mxu0 0
    %5608 = vmatpush1.bf16.msra.mxu0 %v5588
    %5609 = vmatprep.subr.bf16.mxu0 0
    %5610 = vmatpush1.bf16.msra.mxu0 %v5589
    %5611 = vmatprep.subr.bf16.mxu0 0
    %5612 = vmatpush1.bf16.msra.mxu0 %v5590
    %5613 = vmatprep.subr.bf16.mxu0 0
    %5614 = vmatpush1.bf16.msra.mxu0 %v5591
    %5615 = vmatprep.subr.bf16.mxu0 0
    %5616 = vmatpush1.bf16.msra.mxu0 %v5592
    %5617 = vmatprep.subr.bf16.mxu0 0
    %5618 = vmatpush1.bf16.msra.mxu0 0
    %5619 = vmatprep.subr.bf16.mxu0 0
    %5620 = vmatpush1.bf16.msra.mxu0 0
    %5621 = vmatprep.subr.bf16.mxu0 0
    %5622 = vmatpush1.bf16.msra.mxu0 0
    %5623 = vmatprep.subr.bf16.mxu0 0
    %5624 = vmatpush1.bf16.msra.mxu0 0
    %5625 = vmatprep.subr.bf16.mxu0 0
    %5626 = vmatpush1.bf16.msra.mxu0 0
    %5627 = vmatprep.subr.bf16.mxu0 0
    %5628 = vmatpush1.bf16.msra.mxu0 0
    %5629 = vmatprep.subr.bf16.mxu0 0
    %5630 = vmatpush1.bf16.msra.mxu0 0
    %5631 = vmatprep.subr.bf16.mxu0 0
    %5632 = vmatpush1.bf16.msra.mxu0 0
    %5633 = vmatprep.mubr.bf16.mxu0 0
    %5634 = vmatmul.mubr.bf16.gmra.mrb[0].mxu0 %v5527
    %v5635 = vpop.f32.mrb[0].mxu0
    %v5636 = vadd.f32 %v5551, %v5635
    %v5637 = vpop.f32.mrb[0].mxu0
    %v5638 = vpop.f32.mrb[0].mxu0
    %v5639 = vadd.f32 %v5551, %v5638
    %v5640 = vpop.f32.mrb[0].mxu0
    %5641 = vdwg.mxu0
    %v5642 = vadd.f32 %v4341, %v5636
    %v5643 = vadd.f32 %v4342, %v5639
    %s5644 = scalar_lea.vmem %s6, 2
    %v5645 = vld [vmem:[%s5644] sm:$0x1]
    %s5646 = scalar_lea.vmem %s7, 2
    %v5647 = vld [vmem:[%s5646] sm:$0x1]
    %5648 = vadd.xlane.f32.xlu0 %v5642
    %v5649 = vpop.xlane.xlu0 %5648
    %5650 = vadd.xlane.f32.xlu0 %v5643
    %v5651 = vpop.xlane.xlu0 %5650
    %v5652 = vmul.f32 %v5649, %v1430
    %v5653 = vmul.f32 %v5651, %v1430
    %v5654 = vsub.f32 %v5642, %v5652
    %v5655 = vsub.f32 %v5643, %v5653
    %v5656 = vmul.f32 %v5654, %v5654
    %v5657 = vmul.f32 %v5655, %v5655
    %5658 = vadd.xlane.f32.xlu0 %v5656
    %v5659 = vpop.xlane.xlu0 %5658
    %5660 = vadd.xlane.f32.xlu0 %v5657
    %v5661 = vpop.xlane.xlu0 %5660
    %v5662 = vmul.f32 %v5659, %v1430
    %v5663 = vmul.f32 %v5661, %v1430
    %v5664 = vadd.f32 %v5662, 1e-12
    %v5665 = vadd.f32 %v5663, 1e-12
    %v5666 = vrsqrt.pop %v5664
    %v5667 = vrsqrt.pop %v5665
    %v5668 = vmul.f32 %v5654, %v5666
    %v5669 = vmul.f32 %v5655, %v5667
    %v5671 = vlaneseq
    %v5672 = vshrl.u32 %v5671, 7
    %v5673 = vsub.s32 0, %v5672
    %v5674 = vrot.slane %v5645, %v5673
    %v5676 = vmul.f32 %v5668, %v5674
    %v5677 = vmul.f32 %v5669, %v5674
    %v5679 = vlaneseq
    %v5680 = vshrl.u32 %v5679, 7
    %v5681 = vsub.s32 0, %v5680
    %v5682 = vrot.slane %v5647, %v5681
    %v5684 = vadd.f32 %v5676, %v5682
    %v5685 = vadd.f32 %v5677, %v5682
    %v5686 = vpack.c.bf16 %v5685, %v5684
    %s5687 = scalar_lea.vmem [#allocation5], 512
    %v5688 = vld [vmem:[%s5687] sm:$0xff]
    %v5689 = vld [vmem:[%s5687 + $0x8] sm:$0xff]
    %v5690 = vld [vmem:[%s5687 + $0x10] sm:$0xff]
    %v5691 = vld [vmem:[%s5687 + $0x18] sm:$0xff]
    %v5692 = vld [vmem:[%s5687 + $0x20] sm:$0xff]
    %v5693 = vld [vmem:[%s5687 + $0x28] sm:$0xff]
    %v5694 = vld [vmem:[%s5687 + $0x30] sm:$0xff]
    %v5695 = vld [vmem:[%s5687 + $0x38] sm:$0xff]
    %v5696 = vld [vmem:[%s5687 + $0x40] sm:$0xff]
    %v5697 = vld [vmem:[%s5687 + $0x48] sm:$0xff]
    %v5698 = vld [vmem:[%s5687 + $0x50] sm:$0xff]
    %v5699 = vld [vmem:[%s5687 + $0x58] sm:$0xff]
    %v5700 = vld [vmem:[%s5687 + $0x60] sm:$0xff]
    %v5701 = vld [vmem:[%s5687 + $0x68] sm:$0xff]
    %v5702 = vld [vmem:[%s5687 + $0x70] sm:$0xff]
    %v5703 = vld [vmem:[%s5687 + $0x78] sm:$0xff]
    %v5704 = vld [vmem:[%s5687 + $0x80] sm:$0xff]
    %v5705 = vld [vmem:[%s5687 + $0x88] sm:$0xff]
    %v5706 = vld [vmem:[%s5687 + $0x90] sm:$0xff]
    %v5707 = vld [vmem:[%s5687 + $0x98] sm:$0xff]
    %v5708 = vld [vmem:[%s5687 + $0xa0] sm:$0xff]
    %v5709 = vld [vmem:[%s5687 + $0xa8] sm:$0xff]
    %v5710 = vld [vmem:[%s5687 + $0xb0] sm:$0xff]
    %v5711 = vld [vmem:[%s5687 + $0xb8] sm:$0xff]
    %v5712 = vld [vmem:[%s5687 + $0xc0] sm:$0xff]
    %v5713 = vld [vmem:[%s5687 + $0xc8] sm:$0xff]
    %v5714 = vld [vmem:[%s5687 + $0xd0] sm:$0xff]
    %v5715 = vld [vmem:[%s5687 + $0xd8] sm:$0xff]
    %v5716 = vld [vmem:[%s5687 + $0xe0] sm:$0xff]
    %v5717 = vld [vmem:[%s5687 + $0xe8] sm:$0xff]
    %v5718 = vld [vmem:[%s5687 + $0xf0] sm:$0xff]
    %v5719 = vld [vmem:[%s5687 + $0xf8] sm:$0xff]
    %s5720 = scalar_lea.vmem %s9, 8
    %v5721 = vld [vmem:[%s5720] sm:$0xf]
    %v5723 = vlaneseq
    %v5724 = vshrl.u32 %v5723, 7
    %v5725 = vsub.s32 0, %v5724
    %v5726 = vrot.slane %v5721, %v5725
    %v5727 = vlaneseq
    %v5728 = vshrl.u32 %v5727, 7
    %v5729 = vsub.s32 1, %v5728
    %v5730 = vrot.slane %v5721, %v5729
    %v5731 = vlaneseq
    %v5732 = vshrl.u32 %v5731, 7
    %v5733 = vsub.s32 2, %v5732
    %v5734 = vrot.slane %v5721, %v5733
    %v5735 = vlaneseq
    %v5736 = vshrl.u32 %v5735, 7
    %v5737 = vsub.s32 3, %v5736
    %v5738 = vrot.slane %v5721, %v5737
    %v5775 = vunpack.c.l.b16 %v5688
    %v5776 = vunpack.c.h.b16 %v5688
    %v5777 = vunpack.c.l.b16 %v5689
    %v5778 = vunpack.c.h.b16 %v5689
    %v5779 = vunpack.c.l.b16 %v5690
    %v5780 = vunpack.c.h.b16 %v5690
    %v5781 = vunpack.c.l.b16 %v5691
    %v5782 = vunpack.c.h.b16 %v5691
    %v5783 = vunpack.c.l.b16 %v5692
    %v5784 = vunpack.c.h.b16 %v5692
    %v5785 = vunpack.c.l.b16 %v5693
    %v5786 = vunpack.c.h.b16 %v5693
    %v5787 = vunpack.c.l.b16 %v5694
    %v5788 = vunpack.c.h.b16 %v5694
    %v5789 = vunpack.c.l.b16 %v5695
    %v5790 = vunpack.c.h.b16 %v5695
    %v5791 = vunpack.c.l.b16 %v5696
    %v5792 = vunpack.c.h.b16 %v5696
    %v5793 = vunpack.c.l.b16 %v5697
    %v5794 = vunpack.c.h.b16 %v5697
    %v5795 = vunpack.c.l.b16 %v5698
    %v5796 = vunpack.c.h.b16 %v5698
    %v5797 = vunpack.c.l.b16 %v5699
    %v5798 = vunpack.c.h.b16 %v5699
    %v5799 = vunpack.c.l.b16 %v5700
    %v5800 = vunpack.c.h.b16 %v5700
    %v5801 = vunpack.c.l.b16 %v5701
    %v5802 = vunpack.c.h.b16 %v5701
    %v5803 = vunpack.c.l.b16 %v5702
    %v5804 = vunpack.c.h.b16 %v5702
    %v5805 = vunpack.c.l.b16 %v5703
    %v5806 = vunpack.c.h.b16 %v5703
    %v5807 = vunpack.c.l.b16 %v5704
    %v5808 = vunpack.c.h.b16 %v5704
    %v5809 = vunpack.c.l.b16 %v5705
    %v5810 = vunpack.c.h.b16 %v5705
    %v5811 = vunpack.c.l.b16 %v5706
    %v5812 = vunpack.c.h.b16 %v5706
    %v5813 = vunpack.c.l.b16 %v5707
    %v5814 = vunpack.c.h.b16 %v5707
    %v5815 = vunpack.c.l.b16 %v5708
    %v5816 = vunpack.c.h.b16 %v5708
    %v5817 = vunpack.c.l.b16 %v5709
    %v5818 = vunpack.c.h.b16 %v5709
    %v5819 = vunpack.c.l.b16 %v5710
    %v5820 = vunpack.c.h.b16 %v5710
    %v5821 = vunpack.c.l.b16 %v5711
    %v5822 = vunpack.c.h.b16 %v5711
    %v5823 = vunpack.c.l.b16 %v5712
    %v5824 = vunpack.c.h.b16 %v5712
    %v5825 = vunpack.c.l.b16 %v5713
    %v5826 = vunpack.c.h.b16 %v5713
    %v5827 = vunpack.c.l.b16 %v5714
    %v5828 = vunpack.c.h.b16 %v5714
    %v5829 = vunpack.c.l.b16 %v5715
    %v5830 = vunpack.c.h.b16 %v5715
    %v5831 = vunpack.c.l.b16 %v5716
    %v5832 = vunpack.c.h.b16 %v5716
    %v5833 = vunpack.c.l.b16 %v5717
    %v5834 = vunpack.c.h.b16 %v5717
    %v5835 = vunpack.c.l.b16 %v5718
    %v5836 = vunpack.c.h.b16 %v5718
    %v5837 = vunpack.c.l.b16 %v5719
    %v5838 = vunpack.c.h.b16 %v5719
    %v5839 = vpack.c.b16 %v5779, %v5775
    %v5840 = vpack.c.b16 %v5780, %v5776
    %v5841 = vpack.c.b16 %v5781, %v5777
    %v5842 = vpack.c.b16 %v5782, %v5778
    %v5843 = vpack.c.b16 %v5787, %v5783
    %v5844 = vpack.c.b16 %v5788, %v5784
    %v5845 = vpack.c.b16 %v5789, %v5785
    %v5846 = vpack.c.b16 %v5790, %v5786
    %v5847 = vpack.c.b16 %v5795, %v5791
    %v5848 = vpack.c.b16 %v5796, %v5792
    %v5849 = vpack.c.b16 %v5797, %v5793
    %v5850 = vpack.c.b16 %v5798, %v5794
    %v5851 = vpack.c.b16 %v5803, %v5799
    %v5852 = vpack.c.b16 %v5804, %v5800
    %v5853 = vpack.c.b16 %v5805, %v5801
    %v5854 = vpack.c.b16 %v5806, %v5802
    %v5855 = vpack.c.b16 %v5811, %v5807
    %v5856 = vpack.c.b16 %v5812, %v5808
    %v5857 = vpack.c.b16 %v5813, %v5809
    %v5858 = vpack.c.b16 %v5814, %v5810
    %v5859 = vpack.c.b16 %v5819, %v5815
    %v5860 = vpack.c.b16 %v5820, %v5816
    %v5861 = vpack.c.b16 %v5821, %v5817
    %v5862 = vpack.c.b16 %v5822, %v5818
    %v5863 = vpack.c.b16 %v5827, %v5823
    %v5864 = vpack.c.b16 %v5828, %v5824
    %v5865 = vpack.c.b16 %v5829, %v5825
    %v5866 = vpack.c.b16 %v5830, %v5826
    %v5867 = vpack.c.b16 %v5835, %v5831
    %v5868 = vpack.c.b16 %v5836, %v5832
    %v5869 = vpack.c.b16 %v5837, %v5833
    %v5870 = vpack.c.b16 %v5838, %v5834
    %5903 = vmatprep.subr.bf16.mxu0 %v5840
    %5904 = vmatpush1.bf16.msra.mxu0 %v5839
    %5905 = vmatprep.subr.bf16.mxu0 %v5844
    %5906 = vmatpush1.bf16.msra.mxu0 %v5843
    %5907 = vmatprep.subr.bf16.mxu0 %v5848
    %5908 = vmatpush1.bf16.msra.mxu0 %v5847
    %5909 = vmatprep.subr.bf16.mxu0 %v5852
    %5910 = vmatpush1.bf16.msra.mxu0 %v5851
    %5911 = vmatprep.subr.bf16.mxu0 %v5856
    %5912 = vmatpush1.bf16.msra.mxu0 %v5855
    %5913 = vmatprep.subr.bf16.mxu0 %v5860
    %5914 = vmatpush1.bf16.msra.mxu0 %v5859
    %5915 = vmatprep.subr.bf16.mxu0 %v5864
    %5916 = vmatpush1.bf16.msra.mxu0 %v5863
    %5917 = vmatprep.subr.bf16.mxu0 %v5868
    %5918 = vmatpush1.bf16.msra.mxu0 %v5867
    %5919 = vmatprep.subr.bf16.mxu0 0
    %5920 = vmatpush1.bf16.msra.mxu0 0
    %5921 = vmatprep.subr.bf16.mxu0 0
    %5922 = vmatpush1.bf16.msra.mxu0 0
    %5923 = vmatprep.subr.bf16.mxu0 0
    %5924 = vmatpush1.bf16.msra.mxu0 0
    %5925 = vmatprep.subr.bf16.mxu0 0
    %5926 = vmatpush1.bf16.msra.mxu0 0
    %5927 = vmatprep.subr.bf16.mxu0 0
    %5928 = vmatpush1.bf16.msra.mxu0 0
    %5929 = vmatprep.subr.bf16.mxu0 0
    %5930 = vmatpush1.bf16.msra.mxu0 0
    %5931 = vmatprep.subr.bf16.mxu0 0
    %5932 = vmatpush1.bf16.msra.mxu0 0
    %5933 = vmatprep.subr.bf16.mxu0 0
    %5934 = vmatpush1.bf16.msra.mxu0 0
    %5935 = vmatprep.mubr.bf16.mxu0 0
    %5936 = vmatmul.mubr.bf16.gmra.mrb[0].mxu0 %v5686
    %v5937 = vpop.f32.mrb[0].mxu0
    %v5938 = vadd.f32 %v5726, %v5937
    %v5939 = vpop.f32.mrb[0].mxu0
    %v5940 = vadd.f32 %v5730, %v5939
    %v5941 = vpop.f32.mrb[0].mxu0
    %v5942 = vadd.f32 %v5726, %v5941
    %v5943 = vpop.f32.mrb[0].mxu0
    %v5944 = vadd.f32 %v5730, %v5943
    %5945 = vdwg.mxu0
    %5946 = vmatprep.subr.bf16.mxu0 %v5842
    %5947 = vmatpush1.bf16.msra.mxu0 %v5841
    %5948 = vmatprep.subr.bf16.mxu0 %v5846
    %5949 = vmatpush1.bf16.msra.mxu0 %v5845
    %5950 = vmatprep.subr.bf16.mxu0 %v5850
    %5951 = vmatpush1.bf16.msra.mxu0 %v5849
    %5952 = vmatprep.subr.bf16.mxu0 %v5854
    %5953 = vmatpush1.bf16.msra.mxu0 %v5853
    %5954 = vmatprep.subr.bf16.mxu0 %v5858
    %5955 = vmatpush1.bf16.msra.mxu0 %v5857
    %5956 = vmatprep.subr.bf16.mxu0 %v5862
    %5957 = vmatpush1.bf16.msra.mxu0 %v5861
    %5958 = vmatprep.subr.bf16.mxu0 %v5866
    %5959 = vmatpush1.bf16.msra.mxu0 %v5865
    %5960 = vmatprep.subr.bf16.mxu0 %v5870
    %5961 = vmatpush1.bf16.msra.mxu0 %v5869
    %5962 = vmatprep.subr.bf16.mxu0 0
    %5963 = vmatpush1.bf16.msra.mxu0 0
    %5964 = vmatprep.subr.bf16.mxu0 0
    %5965 = vmatpush1.bf16.msra.mxu0 0
    %5966 = vmatprep.subr.bf16.mxu0 0
    %5967 = vmatpush1.bf16.msra.mxu0 0
    %5968 = vmatprep.subr.bf16.mxu0 0
    %5969 = vmatpush1.bf16.msra.mxu0 0
    %5970 = vmatprep.subr.bf16.mxu0 0
    %5971 = vmatpush1.bf16.msra.mxu0 0
    %5972 = vmatprep.subr.bf16.mxu0 0
    %5973 = vmatpush1.bf16.msra.mxu0 0
    %5974 = vmatprep.subr.bf16.mxu0 0
    %5975 = vmatpush1.bf16.msra.mxu0 0
    %5976 = vmatprep.subr.bf16.mxu0 0
    %5977 = vmatpush1.bf16.msra.mxu0 0
    %5978 = vmatprep.mubr.bf16.mxu0 0
    %5979 = vmatmul.mubr.bf16.gmra.mrb[0].mxu0 %v5686
    %v5980 = vpop.f32.mrb[0].mxu0
    %v5981 = vadd.f32 %v5734, %v5980
    %v5982 = vpop.f32.mrb[0].mxu0
    %v5983 = vadd.f32 %v5738, %v5982
    %v5984 = vpop.f32.mrb[0].mxu0
    %v5985 = vadd.f32 %v5734, %v5984
    %v5986 = vpop.f32.mrb[0].mxu0
    %v5987 = vadd.f32 %v5738, %v5986
    %5988 = vdwg.mxu0
    %v5989 = vmul.f32 %v5938, 0.5
    %v5990 = vmul.f32 %v5940, 0.5
    %v5991 = vmul.f32 %v5981, 0.5
    %v5992 = vmul.f32 %v5983, 0.5
    %v5993 = vmul.f32 %v5942, 0.5
    %v5994 = vmul.f32 %v5944, 0.5
    %v5995 = vmul.f32 %v5985, 0.5
    %v5996 = vmul.f32 %v5987, 0.5
    %v5997 = vmul.f32 %v5938, 0.044715
    %v5998 = vmul.f32 %v5940, 0.044715
    %v5999 = vmul.f32 %v5981, 0.044715
    %v6000 = vmul.f32 %v5983, 0.044715
    %v6001 = vmul.f32 %v5942, 0.044715
    %v6002 = vmul.f32 %v5944, 0.044715
    %v6003 = vmul.f32 %v5985, 0.044715
    %v6004 = vmul.f32 %v5987, 0.044715
    %v6005 = vmul.f32 %v5997, %v5938
    %v6006 = vmul.f32 %v5998, %v5940
    %v6007 = vmul.f32 %v5999, %v5981
    %v6008 = vmul.f32 %v6000, %v5983
    %v6009 = vmul.f32 %v6001, %v5942
    %v6010 = vmul.f32 %v6002, %v5944
    %v6011 = vmul.f32 %v6003, %v5985
    %v6012 = vmul.f32 %v6004, %v5987
    %v6013 = vmul.f32 %v6005, %v5938
    %v6014 = vmul.f32 %v6006, %v5940
    %v6015 = vmul.f32 %v6007, %v5981
    %v6016 = vmul.f32 %v6008, %v5983
    %v6017 = vmul.f32 %v6009, %v5942
    %v6018 = vmul.f32 %v6010, %v5944
    %v6019 = vmul.f32 %v6011, %v5985
    %v6020 = vmul.f32 %v6012, %v5987
    %v6021 = vadd.f32 %v5938, %v6013
    %v6022 = vadd.f32 %v5940, %v6014
    %v6023 = vadd.f32 %v5981, %v6015
    %v6024 = vadd.f32 %v5983, %v6016
    %v6025 = vadd.f32 %v5942, %v6017
    %v6026 = vadd.f32 %v5944, %v6018
    %v6027 = vadd.f32 %v5985, %v6019
    %v6028 = vadd.f32 %v5987, %v6020
    %v6029 = vmul.f32 %v6021, 0.7978846
    %v6030 = vmul.f32 %v6022, 0.7978846
    %v6031 = vmul.f32 %v6023, 0.7978846
    %v6032 = vmul.f32 %v6024, 0.7978846
    %v6033 = vmul.f32 %v6025, 0.7978846
    %v6034 = vmul.f32 %v6026, 0.7978846
    %v6035 = vmul.f32 %v6027, 0.7978846
    %v6036 = vmul.f32 %v6028, 0.7978846
    %v6037 = vtanh.pop %v6029
    %v6038 = vtanh.pop %v6030
    %v6039 = vtanh.pop %v6031
    %v6040 = vtanh.pop %v6032
    %v6041 = vtanh.pop %v6033
    %v6042 = vtanh.pop %v6034
    %v6043 = vtanh.pop %v6035
    %v6044 = vtanh.pop %v6036
    %v6045 = vadd.f32 %v6037, 1.0
    %v6046 = vadd.f32 %v6038, 1.0
    %v6047 = vadd.f32 %v6039, 1.0
    %v6048 = vadd.f32 %v6040, 1.0
    %v6049 = vadd.f32 %v6041, 1.0
    %v6050 = vadd.f32 %v6042, 1.0
    %v6051 = vadd.f32 %v6043, 1.0
    %v6052 = vadd.f32 %v6044, 1.0
    %v6053 = vmul.f32 %v5989, %v6045
    %v6054 = vmul.f32 %v5990, %v6046
    %v6055 = vmul.f32 %v5991, %v6047
    %v6056 = vmul.f32 %v5992, %v6048
    %v6057 = vmul.f32 %v5993, %v6049
    %v6058 = vmul.f32 %v5994, %v6050
    %v6059 = vmul.f32 %v5995, %v6051
    %v6060 = vmul.f32 %v5996, %v6052
    %v6061 = vpack.c.bf16 %v6057, %v6053
    %v6062 = vpack.c.bf16 %v6058, %v6054
    %v6063 = vpack.c.bf16 %v6059, %v6055
    %v6064 = vpack.c.bf16 %v6060, %v6056
    %s6065 = scalar_lea.vmem [#allocation7], 512
    %v6066 = vld [vmem:[%s6065] sm:$0xf]
    %v6067 = vld [vmem:[%s6065 + $0x4] sm:$0xf]
    %v6068 = vld [vmem:[%s6065 + $0x8] sm:$0xf]
    %v6069 = vld [vmem:[%s6065 + $0xc] sm:$0xf]
    %v6070 = vld [vmem:[%s6065 + $0x10] sm:$0xf]
    %v6071 = vld [vmem:[%s6065 + $0x14] sm:$0xf]
    %v6072 = vld [vmem:[%s6065 + $0x18] sm:$0xf]
    %v6073 = vld [vmem:[%s6065 + $0x1c] sm:$0xf]
    %v6074 = vld [vmem:[%s6065 + $0x20] sm:$0xf]
    %v6075 = vld [vmem:[%s6065 + $0x24] sm:$0xf]
    %v6076 = vld [vmem:[%s6065 + $0x28] sm:$0xf]
    %v6077 = vld [vmem:[%s6065 + $0x2c] sm:$0xf]
    %v6078 = vld [vmem:[%s6065 + $0x30] sm:$0xf]
    %v6079 = vld [vmem:[%s6065 + $0x34] sm:$0xf]
    %v6080 = vld [vmem:[%s6065 + $0x38] sm:$0xf]
    %v6081 = vld [vmem:[%s6065 + $0x3c] sm:$0xf]
    %v6082 = vld [vmem:[%s6065 + $0x40] sm:$0xf]
    %v6083 = vld [vmem:[%s6065 + $0x44] sm:$0xf]
    %v6084 = vld [vmem:[%s6065 + $0x48] sm:$0xf]
    %v6085 = vld [vmem:[%s6065 + $0x4c] sm:$0xf]
    %v6086 = vld [vmem:[%s6065 + $0x50] sm:$0xf]
    %v6087 = vld [vmem:[%s6065 + $0x54] sm:$0xf]
    %v6088 = vld [vmem:[%s6065 + $0x58] sm:$0xf]
    %v6089 = vld [vmem:[%s6065 + $0x5c] sm:$0xf]
    %v6090 = vld [vmem:[%s6065 + $0x60] sm:$0xf]
    %v6091 = vld [vmem:[%s6065 + $0x64] sm:$0xf]
    %v6092 = vld [vmem:[%s6065 + $0x68] sm:$0xf]
    %v6093 = vld [vmem:[%s6065 + $0x6c] sm:$0xf]
    %v6094 = vld [vmem:[%s6065 + $0x70] sm:$0xf]
    %v6095 = vld [vmem:[%s6065 + $0x74] sm:$0xf]
    %v6096 = vld [vmem:[%s6065 + $0x78] sm:$0xf]
    %v6097 = vld [vmem:[%s6065 + $0x7c] sm:$0xf]
    %v6098 = vld [vmem:[%s6065 + $0x80] sm:$0xf]
    %v6099 = vld [vmem:[%s6065 + $0x84] sm:$0xf]
    %v6100 = vld [vmem:[%s6065 + $0x88] sm:$0xf]
    %v6101 = vld [vmem:[%s6065 + $0x8c] sm:$0xf]
    %v6102 = vld [vmem:[%s6065 + $0x90] sm:$0xf]
    %v6103 = vld [vmem:[%s6065 + $0x94] sm:$0xf]
    %v6104 = vld [vmem:[%s6065 + $0x98] sm:$0xf]
    %v6105 = vld [vmem:[%s6065 + $0x9c] sm:$0xf]
    %v6106 = vld [vmem:[%s6065 + $0xa0] sm:$0xf]
    %v6107 = vld [vmem:[%s6065 + $0xa4] sm:$0xf]
    %v6108 = vld [vmem:[%s6065 + $0xa8] sm:$0xf]
    %v6109 = vld [vmem:[%s6065 + $0xac] sm:$0xf]
    %v6110 = vld [vmem:[%s6065 + $0xb0] sm:$0xf]
    %v6111 = vld [vmem:[%s6065 + $0xb4] sm:$0xf]
    %v6112 = vld [vmem:[%s6065 + $0xb8] sm:$0xf]
    %v6113 = vld [vmem:[%s6065 + $0xbc] sm:$0xf]
    %v6114 = vld [vmem:[%s6065 + $0xc0] sm:$0xf]
    %v6115 = vld [vmem:[%s6065 + $0xc4] sm:$0xf]
    %v6116 = vld [vmem:[%s6065 + $0xc8] sm:$0xf]
    %v6117 = vld [vmem:[%s6065 + $0xcc] sm:$0xf]
    %v6118 = vld [vmem:[%s6065 + $0xd0] sm:$0xf]
    %v6119 = vld [vmem:[%s6065 + $0xd4] sm:$0xf]
    %v6120 = vld [vmem:[%s6065 + $0xd8] sm:$0xf]
    %v6121 = vld [vmem:[%s6065 + $0xdc] sm:$0xf]
    %v6122 = vld [vmem:[%s6065 + $0xe0] sm:$0xf]
    %v6123 = vld [vmem:[%s6065 + $0xe4] sm:$0xf]
    %v6124 = vld [vmem:[%s6065 + $0xe8] sm:$0xf]
    %v6125 = vld [vmem:[%s6065 + $0xec] sm:$0xf]
    %v6126 = vld [vmem:[%s6065 + $0xf0] sm:$0xf]
    %v6127 = vld [vmem:[%s6065 + $0xf4] sm:$0xf]
    %v6128 = vld [vmem:[%s6065 + $0xf8] sm:$0xf]
    %v6129 = vld [vmem:[%s6065 + $0xfc] sm:$0xf]
    %s6130 = scalar_lea.vmem %s11, 2
    %v6131 = vld [vmem:[%s6130] sm:$0x1]
    %v6133 = vlaneseq
    %v6134 = vshrl.u32 %v6133, 7
    %v6135 = vsub.s32 0, %v6134
    %v6136 = vrot.slane %v6131, %v6135
    %v6202 = vunpack.c.l.b16 %v6066
    %v6203 = vunpack.c.l.b16 %v6067
    %v6204 = vunpack.c.l.b16 %v6068
    %v6205 = vunpack.c.l.b16 %v6069
    %v6206 = vunpack.c.l.b16 %v6070
    %v6207 = vunpack.c.l.b16 %v6071
    %v6208 = vunpack.c.l.b16 %v6072
    %v6209 = vunpack.c.l.b16 %v6073
    %v6210 = vunpack.c.l.b16 %v6074
    %v6211 = vunpack.c.l.b16 %v6075
    %v6212 = vunpack.c.l.b16 %v6076
    %v6213 = vunpack.c.l.b16 %v6077
    %v6214 = vunpack.c.l.b16 %v6078
    %v6215 = vunpack.c.l.b16 %v6079
    %v6216 = vunpack.c.l.b16 %v6080
    %v6217 = vunpack.c.l.b16 %v6081
    %v6218 = vunpack.c.l.b16 %v6082
    %v6219 = vunpack.c.l.b16 %v6083
    %v6220 = vunpack.c.l.b16 %v6084
    %v6221 = vunpack.c.l.b16 %v6085
    %v6222 = vunpack.c.l.b16 %v6086
    %v6223 = vunpack.c.l.b16 %v6087
    %v6224 = vunpack.c.l.b16 %v6088
    %v6225 = vunpack.c.l.b16 %v6089
    %v6226 = vunpack.c.l.b16 %v6090
    %v6227 = vunpack.c.l.b16 %v6091
    %v6228 = vunpack.c.l.b16 %v6092
    %v6229 = vunpack.c.l.b16 %v6093
    %v6230 = vunpack.c.l.b16 %v6094
    %v6231 = vunpack.c.l.b16 %v6095
    %v6232 = vunpack.c.l.b16 %v6096
    %v6233 = vunpack.c.l.b16 %v6097
    %v6234 = vunpack.c.l.b16 %v6098
    %v6235 = vunpack.c.l.b16 %v6099
    %v6236 = vunpack.c.l.b16 %v6100
    %v6237 = vunpack.c.l.b16 %v6101
    %v6238 = vunpack.c.l.b16 %v6102
    %v6239 = vunpack.c.l.b16 %v6103
    %v6240 = vunpack.c.l.b16 %v6104
    %v6241 = vunpack.c.l.b16 %v6105
    %v6242 = vunpack.c.l.b16 %v6106
    %v6243 = vunpack.c.l.b16 %v6107
    %v6244 = vunpack.c.l.b16 %v6108
    %v6245 = vunpack.c.l.b16 %v6109
    %v6246 = vunpack.c.l.b16 %v6110
    %v6247 = vunpack.c.l.b16 %v6111
    %v6248 = vunpack.c.l.b16 %v6112
    %v6249 = vunpack.c.l.b16 %v6113
    %v6250 = vunpack.c.l.b16 %v6114
    %v6251 = vunpack.c.l.b16 %v6115
    %v6252 = vunpack.c.l.b16 %v6116
    %v6253 = vunpack.c.l.b16 %v6117
    %v6254 = vunpack.c.l.b16 %v6118
    %v6255 = vunpack.c.l.b16 %v6119
    %v6256 = vunpack.c.l.b16 %v6120
    %v6257 = vunpack.c.l.b16 %v6121
    %v6258 = vunpack.c.l.b16 %v6122
    %v6259 = vunpack.c.l.b16 %v6123
    %v6260 = vunpack.c.l.b16 %v6124
    %v6261 = vunpack.c.l.b16 %v6125
    %v6262 = vunpack.c.l.b16 %v6126
    %v6263 = vunpack.c.l.b16 %v6127
    %v6264 = vunpack.c.l.b16 %v6128
    %v6265 = vunpack.c.l.b16 %v6129
    %v6266 = vpack.c.b16 %v6203, %v6202
    %v6267 = vpack.c.b16 %v6205, %v6204
    %v6268 = vpack.c.b16 %v6207, %v6206
    %v6269 = vpack.c.b16 %v6209, %v6208
    %v6270 = vpack.c.b16 %v6211, %v6210
    %v6271 = vpack.c.b16 %v6213, %v6212
    %v6272 = vpack.c.b16 %v6215, %v6214
    %v6273 = vpack.c.b16 %v6217, %v6216
    %v6274 = vpack.c.b16 %v6219, %v6218
    %v6275 = vpack.c.b16 %v6221, %v6220
    %v6276 = vpack.c.b16 %v6223, %v6222
    %v6277 = vpack.c.b16 %v6225, %v6224
    %v6278 = vpack.c.b16 %v6227, %v6226
    %v6279 = vpack.c.b16 %v6229, %v6228
    %v6280 = vpack.c.b16 %v6231, %v6230
    %v6281 = vpack.c.b16 %v6233, %v6232
    %v6282 = vpack.c.b16 %v6235, %v6234
    %v6283 = vpack.c.b16 %v6237, %v6236
    %v6284 = vpack.c.b16 %v6239, %v6238
    %v6285 = vpack.c.b16 %v6241, %v6240
    %v6286 = vpack.c.b16 %v6243, %v6242
    %v6287 = vpack.c.b16 %v6245, %v6244
    %v6288 = vpack.c.b16 %v6247, %v6246
    %v6289 = vpack.c.b16 %v6249, %v6248
    %v6290 = vpack.c.b16 %v6251, %v6250
    %v6291 = vpack.c.b16 %v6253, %v6252
    %v6292 = vpack.c.b16 %v6255, %v6254
    %v6293 = vpack.c.b16 %v6257, %v6256
    %v6294 = vpack.c.b16 %v6259, %v6258
    %v6295 = vpack.c.b16 %v6261, %v6260
    %v6296 = vpack.c.b16 %v6263, %v6262
    %v6297 = vpack.c.b16 %v6265, %v6264
    %6330 = vmatprep.subr.bf16.mxu0 0
    %6331 = vmatpush1.bf16.msra.mxu0 %v6266
    %6332 = vmatprep.subr.bf16.mxu0 0
    %6333 = vmatpush1.bf16.msra.mxu0 %v6267
    %6334 = vmatprep.subr.bf16.mxu0 0
    %6335 = vmatpush1.bf16.msra.mxu0 %v6268
    %6336 = vmatprep.subr.bf16.mxu0 0
    %6337 = vmatpush1.bf16.msra.mxu0 %v6269
    %6338 = vmatprep.subr.bf16.mxu0 0
    %6339 = vmatpush1.bf16.msra.mxu0 %v6270
    %6340 = vmatprep.subr.bf16.mxu0 0
    %6341 = vmatpush1.bf16.msra.mxu0 %v6271
    %6342 = vmatprep.subr.bf16.mxu0 0
    %6343 = vmatpush1.bf16.msra.mxu0 %v6272
    %6344 = vmatprep.subr.bf16.mxu0 0
    %6345 = vmatpush1.bf16.msra.mxu0 %v6273
    %6346 = vmatprep.subr.bf16.mxu0 0
    %6347 = vmatpush1.bf16.msra.mxu0 %v6274
    %6348 = vmatprep.subr.bf16.mxu0 0
    %6349 = vmatpush1.bf16.msra.mxu0 %v6275
    %6350 = vmatprep.subr.bf16.mxu0 0
    %6351 = vmatpush1.bf16.msra.mxu0 %v6276
    %6352 = vmatprep.subr.bf16.mxu0 0
    %6353 = vmatpush1.bf16.msra.mxu0 %v6277
    %6354 = vmatprep.subr.bf16.mxu0 0
    %6355 = vmatpush1.bf16.msra.mxu0 %v6278
    %6356 = vmatprep.subr.bf16.mxu0 0
    %6357 = vmatpush1.bf16.msra.mxu0 %v6279
    %6358 = vmatprep.subr.bf16.mxu0 0
    %6359 = vmatpush1.bf16.msra.mxu0 %v6280
    %6360 = vmatprep.subr.bf16.mxu0 0
    %6361 = vmatpush1.bf16.msra.mxu0 %v6281
    %6362 = vmatprep.mubr.bf16.mxu0 %v6062
    %6363 = vmatmul.mubr.bf16.gmra.mrb[0].mxu0 %v6061
    %v6364 = vpop.f32.mrb[0].mxu0
    %v6365 = vadd.f32 %v6136, %v6364
    %v6366 = vpop.f32.mrb[0].mxu0
    %v6367 = vpop.f32.mrb[0].mxu0
    %v6368 = vadd.f32 %v6136, %v6367
    %v6369 = vpop.f32.mrb[0].mxu0
    %6370 = vdwg.mxu0
    %6371 = vmatprep.subr.bf16.mxu0 0
    %6372 = vmatpush1.bf16.msra.mxu0 %v6282
    %6373 = vmatprep.subr.bf16.mxu0 0
    %6374 = vmatpush1.bf16.msra.mxu0 %v6283
    %6375 = vmatprep.subr.bf16.mxu0 0
    %6376 = vmatpush1.bf16.msra.mxu0 %v6284
    %6377 = vmatprep.subr.bf16.mxu0 0
    %6378 = vmatpush1.bf16.msra.mxu0 %v6285
    %6379 = vmatprep.subr.bf16.mxu0 0
    %6380 = vmatpush1.bf16.msra.mxu0 %v6286
    %6381 = vmatprep.subr.bf16.mxu0 0
    %6382 = vmatpush1.bf16.msra.mxu0 %v6287
    %6383 = vmatprep.subr.bf16.mxu0 0
    %6384 = vmatpush1.bf16.msra.mxu0 %v6288
    %6385 = vmatprep.subr.bf16.mxu0 0
    %6386 = vmatpush1.bf16.msra.mxu0 %v6289
    %6387 = vmatprep.subr.bf16.mxu0 0
    %6388 = vmatpush1.bf16.msra.mxu0 %v6290
    %6389 = vmatprep.subr.bf16.mxu0 0
    %6390 = vmatpush1.bf16.msra.mxu0 %v6291
    %6391 = vmatprep.subr.bf16.mxu0 0
    %6392 = vmatpush1.bf16.msra.mxu0 %v6292
    %6393 = vmatprep.subr.bf16.mxu0 0
    %6394 = vmatpush1.bf16.msra.mxu0 %v6293
    %6395 = vmatprep.subr.bf16.mxu0 0
    %6396 = vmatpush1.bf16.msra.mxu0 %v6294
    %6397 = vmatprep.subr.bf16.mxu0 0
    %6398 = vmatpush1.bf16.msra.mxu0 %v6295
    %6399 = vmatprep.subr.bf16.mxu0 0
    %6400 = vmatpush1.bf16.msra.mxu0 %v6296
    %6401 = vmatprep.subr.bf16.mxu0 0
    %6402 = vmatpush1.bf16.msra.mxu0 %v6297
    %6403 = vmatprep.mubr.bf16.mxu0 %v6064
    %6404 = vmatmul.mubr.bf16.gmra.mrb[0].mxu0 %v6063
    %v6405 = vpop.f32.mrb[0].mxu0
    %v6406 = vadd.f32 %v6365, %v6405
    %v6407 = vpop.f32.mrb[0].mxu0
    %v6408 = vpop.f32.mrb[0].mxu0
    %v6409 = vadd.f32 %v6368, %v6408
    %v6410 = vpop.f32.mrb[0].mxu0
    %6411 = vdwg.mxu0
    %v6412 = vadd.f32 %v5684, %v6406
    %v6413 = vadd.f32 %v5685, %v6409
    %s6414 = scalar_lea.vmem %s12, 2
    %v6415 = vld [vmem:[%s6414] sm:$0x1]
    %s6416 = scalar_lea.vmem %s13, 2
    %v6417 = vld [vmem:[%s6416] sm:$0x1]
    %6418 = vadd.xlane.f32.xlu0 %v6412
    %v6419 = vpop.xlane.xlu0 %6418
    %6420 = vadd.xlane.f32.xlu0 %v6413
    %v6421 = vpop.xlane.xlu0 %6420
    %v6422 = vmul.f32 %v6419, %v1430
    %v6423 = vmul.f32 %v6421, %v1430
    %v6424 = vsub.f32 %v6412, %v6422
    %v6425 = vsub.f32 %v6413, %v6423
    %v6426 = vmul.f32 %v6424, %v6424
    %v6427 = vmul.f32 %v6425, %v6425
    %6428 = vadd.xlane.f32.xlu0 %v6426
    %v6429 = vpop.xlane.xlu0 %6428
    %6430 = vadd.xlane.f32.xlu0 %v6427
    %v6431 = vpop.xlane.xlu0 %6430
    %v6432 = vmul.f32 %v6429, %v1430
    %v6433 = vmul.f32 %v6431, %v1430
    %v6434 = vadd.f32 %v6432, 1e-12
    %v6435 = vadd.f32 %v6433, 1e-12
    %v6436 = vrsqrt.pop %v6434
    %v6437 = vrsqrt.pop %v6435
    %v6438 = vmul.f32 %v6424, %v6436
    %v6439 = vmul.f32 %v6425, %v6437
    %v6441 = vlaneseq
    %v6442 = vshrl.u32 %v6441, 7
    %v6443 = vsub.s32 0, %v6442
    %v6444 = vrot.slane %v6415, %v6443
    %v6446 = vmul.f32 %v6438, %v6444
    %v6447 = vmul.f32 %v6439, %v6444
    %v6449 = vlaneseq
    %v6450 = vshrl.u32 %v6449, 7
    %v6451 = vsub.s32 0, %v6450
    %v6452 = vrot.slane %v6417, %v6451
    %v6454 = vadd.f32 %v6446, %v6452
    %v6455 = vadd.f32 %v6447, %v6452
    %v6457 = vrot.slane %v6455, 7
    %v6459 = vsel %vm2232, %v6454, %v6457
    %v6460 = vpack.c.bf16 %v6455, %v6454
    %s6461 = scalar_lea.vmem [#allocation2], 576
    %v6462 = vld [vmem:[%s6461] sm:$0xff]
    %v6463 = vld [vmem:[%s6461 + $0x8] sm:$0xf]
    %v6464 = vld [vmem:[%s6461 + $0xc] sm:$0xff]
    %v6465 = vld [vmem:[%s6461 + $0x14] sm:$0xf]
    %v6466 = vld [vmem:[%s6461 + $0x18] sm:$0xff]
    %v6467 = vld [vmem:[%s6461 + $0x20] sm:$0xf]
    %v6468 = vld [vmem:[%s6461 + $0x24] sm:$0xff]
    %v6469 = vld [vmem:[%s6461 + $0x2c] sm:$0xf]
    %v6470 = vld [vmem:[%s6461 + $0x30] sm:$0xff]
    %v6471 = vld [vmem:[%s6461 + $0x38] sm:$0xf]
    %v6472 = vld [vmem:[%s6461 + $0x3c] sm:$0xff]
    %v6473 = vld [vmem:[%s6461 + $0x44] sm:$0xf]
    %v6474 = vld [vmem:[%s6461 + $0x48] sm:$0xff]
    %v6475 = vld [vmem:[%s6461 + $0x50] sm:$0xf]
    %v6476 = vld [vmem:[%s6461 + $0x54] sm:$0xff]
    %v6477 = vld [vmem:[%s6461 + $0x5c] sm:$0xf]
    %v6478 = vld [vmem:[%s6461 + $0x60] sm:$0xff]
    %v6479 = vld [vmem:[%s6461 + $0x68] sm:$0xf]
    %v6480 = vld [vmem:[%s6461 + $0x6c] sm:$0xff]
    %v6481 = vld [vmem:[%s6461 + $0x74] sm:$0xf]
    %v6482 = vld [vmem:[%s6461 + $0x78] sm:$0xff]
    %v6483 = vld [vmem:[%s6461 + $0x80] sm:$0xf]
    %v6484 = vld [vmem:[%s6461 + $0x84] sm:$0xff]
    %v6485 = vld [vmem:[%s6461 + $0x8c] sm:$0xf]
    %v6486 = vld [vmem:[%s6461 + $0x90] sm:$0xff]
    %v6487 = vld [vmem:[%s6461 + $0x98] sm:$0xf]
    %v6488 = vld [vmem:[%s6461 + $0x9c] sm:$0xff]
    %v6489 = vld [vmem:[%s6461 + $0xa4] sm:$0xf]
    %v6490 = vld [vmem:[%s6461 + $0xa8] sm:$0xff]
    %v6491 = vld [vmem:[%s6461 + $0xb0] sm:$0xf]
    %v6492 = vld [vmem:[%s6461 + $0xb4] sm:$0xff]
    %v6493 = vld [vmem:[%s6461 + $0xbc] sm:$0xf]
    %s6494 = scalar_lea.vmem %s3, 9
    %v6495 = vld [vmem:[%s6494] sm:$0x7]
    %v6497 = vlaneseq
    %v6498 = vshrl.u32 %v6497, 7
    %v6499 = vsub.s32 0, %v6498
    %v6500 = vrot.slane %v6495, %v6499
    %v6501 = vlaneseq
    %v6502 = vshrl.u32 %v6501, 7
    %v6503 = vsub.s32 1, %v6502
    %v6504 = vrot.slane %v6495, %v6503
    %v6505 = vlaneseq
    %v6506 = vshrl.u32 %v6505, 7
    %v6507 = vsub.s32 2, %v6506
    %v6508 = vrot.slane %v6495, %v6507
    %v6544 = vunpack.c.l.b16 %v6462
    %v6545 = vunpack.c.h.b16 %v6462
    %v6546 = vunpack.c.l.b16 %v6463
    %v6547 = vunpack.c.l.b16 %v6464
    %v6548 = vunpack.c.h.b16 %v6464
    %v6549 = vunpack.c.l.b16 %v6465
    %v6550 = vunpack.c.l.b16 %v6466
    %v6551 = vunpack.c.h.b16 %v6466
    %v6552 = vunpack.c.l.b16 %v6467
    %v6553 = vunpack.c.l.b16 %v6468
    %v6554 = vunpack.c.h.b16 %v6468
    %v6555 = vunpack.c.l.b16 %v6469
    %v6556 = vunpack.c.l.b16 %v6470
    %v6557 = vunpack.c.h.b16 %v6470
    %v6558 = vunpack.c.l.b16 %v6471
    %v6559 = vunpack.c.l.b16 %v6472
    %v6560 = vunpack.c.h.b16 %v6472
    %v6561 = vunpack.c.l.b16 %v6473
    %v6562 = vunpack.c.l.b16 %v6474
    %v6563 = vunpack.c.h.b16 %v6474
    %v6564 = vunpack.c.l.b16 %v6475
    %v6565 = vunpack.c.l.b16 %v6476
    %v6566 = vunpack.c.h.b16 %v6476
    %v6567 = vunpack.c.l.b16 %v6477
    %v6568 = vunpack.c.l.b16 %v6478
    %v6569 = vunpack.c.h.b16 %v6478
    %v6570 = vunpack.c.l.b16 %v6479
    %v6571 = vunpack.c.l.b16 %v6480
    %v6572 = vunpack.c.h.b16 %v6480
    %v6573 = vunpack.c.l.b16 %v6481
    %v6574 = vunpack.c.l.b16 %v6482
    %v6575 = vunpack.c.h.b16 %v6482
    %v6576 = vunpack.c.l.b16 %v6483
    %v6577 = vunpack.c.l.b16 %v6484
    %v6578 = vunpack.c.h.b16 %v6484
    %v6579 = vunpack.c.l.b16 %v6485
    %v6580 = vunpack.c.l.b16 %v6486
    %v6581 = vunpack.c.h.b16 %v6486
    %v6582 = vunpack.c.l.b16 %v6487
    %v6583 = vunpack.c.l.b16 %v6488
    %v6584 = vunpack.c.h.b16 %v6488
    %v6585 = vunpack.c.l.b16 %v6489
    %v6586 = vunpack.c.l.b16 %v6490
    %v6587 = vunpack.c.h.b16 %v6490
    %v6588 = vunpack.c.l.b16 %v6491
    %v6589 = vunpack.c.l.b16 %v6492
    %v6590 = vunpack.c.h.b16 %v6492
    %v6591 = vunpack.c.l.b16 %v6493
    %v6592 = vpack.c.b16 %v6547, %v6544
    %v6593 = vpack.c.b16 %v6548, %v6545
    %v6594 = vpack.c.b16 %v6549, %v6546
    %v6595 = vpack.c.b16 %v6553, %v6550
    %v6596 = vpack.c.b16 %v6554, %v6551
    %v6597 = vpack.c.b16 %v6555, %v6552
    %v6598 = vpack.c.b16 %v6559, %v6556
    %v6599 = vpack.c.b16 %v6560, %v6557
    %v6600 = vpack.c.b16 %v6561, %v6558
    %v6601 = vpack.c.b16 %v6565, %v6562
    %v6602 = vpack.c.b16 %v6566, %v6563
    %v6603 = vpack.c.b16 %v6567, %v6564
    %v6604 = vpack.c.b16 %v6571, %v6568
    %v6605 = vpack.c.b16 %v6572, %v6569
    %v6606 = vpack.c.b16 %v6573, %v6570
    %v6607 = vpack.c.b16 %v6577, %v6574
    %v6608 = vpack.c.b16 %v6578, %v6575
    %v6609 = vpack.c.b16 %v6579, %v6576
    %v6610 = vpack.c.b16 %v6583, %v6580
    %v6611 = vpack.c.b16 %v6584, %v6581
    %v6612 = vpack.c.b16 %v6585, %v6582
    %v6613 = vpack.c.b16 %v6589, %v6586
    %v6614 = vpack.c.b16 %v6590, %v6587
    %v6615 = vpack.c.b16 %v6591, %v6588
    %6640 = vmatprep.subr.bf16.mxu0 %v6593
    %6641 = vmatpush1.bf16.msra.mxu0 %v6592
    %6642 = vmatprep.subr.bf16.mxu0 %v6596
    %6643 = vmatpush1.bf16.msra.mxu0 %v6595
    %6644 = vmatprep.subr.bf16.mxu0 %v6599
    %6645 = vmatpush1.bf16.msra.mxu0 %v6598
    %6646 = vmatprep.subr.bf16.mxu0 %v6602
    %6647 = vmatpush1.bf16.msra.mxu0 %v6601
    %6648 = vmatprep.subr.bf16.mxu0 %v6605
    %6649 = vmatpush1.bf16.msra.mxu0 %v6604
    %6650 = vmatprep.subr.bf16.mxu0 %v6608
    %6651 = vmatpush1.bf16.msra.mxu0 %v6607
    %6652 = vmatprep.subr.bf16.mxu0 %v6611
    %6653 = vmatpush1.bf16.msra.mxu0 %v6610
    %6654 = vmatprep.subr.bf16.mxu0 %v6614
    %6655 = vmatpush1.bf16.msra.mxu0 %v6613
    %6656 = vmatprep.subr.bf16.mxu0 0
    %6657 = vmatpush1.bf16.msra.mxu0 0
    %6658 = vmatprep.subr.bf16.mxu0 0
    %6659 = vmatpush1.bf16.msra.mxu0 0
    %6660 = vmatprep.subr.bf16.mxu0 0
    %6661 = vmatpush1.bf16.msra.mxu0 0
    %6662 = vmatprep.subr.bf16.mxu0 0
    %6663 = vmatpush1.bf16.msra.mxu0 0
    %6664 = vmatprep.subr.bf16.mxu0 0
    %6665 = vmatpush1.bf16.msra.mxu0 0
    %6666 = vmatprep.subr.bf16.mxu0 0
    %6667 = vmatpush1.bf16.msra.mxu0 0
    %6668 = vmatprep.subr.bf16.mxu0 0
    %6669 = vmatpush1.bf16.msra.mxu0 0
    %6670 = vmatprep.subr.bf16.mxu0 0
    %6671 = vmatpush1.bf16.msra.mxu0 0
    %6672 = vmatprep.mubr.bf16.mxu0 0
    %6673 = vmatmul.mubr.bf16.gmra.mrb[0].mxu0 %v6460
    %v6674 = vpop.f32.mrb[0].mxu0
    %v6675 = vadd.f32 %v6500, %v6674
    %v6676 = vpop.f32.mrb[0].mxu0
    %v6677 = vadd.f32 %v6504, %v6676
    %v6678 = vpop.f32.mrb[0].mxu0
    %v6679 = vadd.f32 %v6500, %v6678
    %v6680 = vpop.f32.mrb[0].mxu0
    %v6681 = vadd.f32 %v6504, %v6680
    %6682 = vdwg.mxu0
    %6683 = vmatprep.subr.bf16.mxu0 0
    %6684 = vmatpush1.bf16.msra.mxu0 %v6594
    %6685 = vmatprep.subr.bf16.mxu0 0
    %6686 = vmatpush1.bf16.msra.mxu0 %v6597
    %6687 = vmatprep.subr.bf16.mxu0 0
    %6688 = vmatpush1.bf16.msra.mxu0 %v6600
    %6689 = vmatprep.subr.bf16.mxu0 0
    %6690 = vmatpush1.bf16.msra.mxu0 %v6603
    %6691 = vmatprep.subr.bf16.mxu0 0
    %6692 = vmatpush1.bf16.msra.mxu0 %v6606
    %6693 = vmatprep.subr.bf16.mxu0 0
    %6694 = vmatpush1.bf16.msra.mxu0 %v6609
    %6695 = vmatprep.subr.bf16.mxu0 0
    %6696 = vmatpush1.bf16.msra.mxu0 %v6612
    %6697 = vmatprep.subr.bf16.mxu0 0
    %6698 = vmatpush1.bf16.msra.mxu0 %v6615
    %6699 = vmatprep.subr.bf16.mxu0 0
    %6700 = vmatpush1.bf16.msra.mxu0 0
    %6701 = vmatprep.subr.bf16.mxu0 0
    %6702 = vmatpush1.bf16.msra.mxu0 0
    %6703 = vmatprep.subr.bf16.mxu0 0
    %6704 = vmatpush1.bf16.msra.mxu0 0
    %6705 = vmatprep.subr.bf16.mxu0 0
    %6706 = vmatpush1.bf16.msra.mxu0 0
    %6707 = vmatprep.subr.bf16.mxu0 0
    %6708 = vmatpush1.bf16.msra.mxu0 0
    %6709 = vmatprep.subr.bf16.mxu0 0
    %6710 = vmatpush1.bf16.msra.mxu0 0
    %6711 = vmatprep.subr.bf16.mxu0 0
    %6712 = vmatpush1.bf16.msra.mxu0 0
    %6713 = vmatprep.subr.bf16.mxu0 0
    %6714 = vmatpush1.bf16.msra.mxu0 0
    %6715 = vmatprep.mubr.bf16.mxu0 0
    %6716 = vmatmul.mubr.bf16.gmra.mrb[0].mxu0 %v6460
    %v6717 = vpop.f32.mrb[0].mxu0
    %v6718 = vadd.f32 %v6508, %v6717
    %v6719 = vpop.f32.mrb[0].mxu0
    %v6720 = vpop.f32.mrb[0].mxu0
    %v6721 = vadd.f32 %v6508, %v6720
    %v6722 = vpop.f32.mrb[0].mxu0
    %6723 = vdwg.mxu0
    %v6724 = vpack.c.bf16 %v6679, %v6675
    %v6725 = vpack.c.bf16 %v6681, %v6677
    %v6726 = vpack.c.bf16 %v6721, %v6718
    %v6728 = vunpack.c.l.b16 %v6724
    %v6729 = vunpack.c.h.b16 %v6724
    %v6730 = vpack.c.b16 %v6728, %v6728
    %v6731 = vpack.c.b16 %v6729, %v6729
    %6732 = vrot.lane.b32.xlu0 %v6730, 96
    %v6733 = vpop.permute.xlu0 %6732
    %6734 = vrot.lane.b32.xlu0 %v6731, 96
    %v6735 = vpop.permute.xlu0 %6734
    %6736 = vrot.lane.b32.xlu0 %v6730, 64
    %v6737 = vpop.permute.xlu0 %6736
    %6738 = vrot.lane.b32.xlu0 %v6731, 64
    %v6739 = vpop.permute.xlu0 %6738
    %6740 = vrot.lane.b32.xlu0 %v6730, 32
    %v6741 = vpop.permute.xlu0 %6740
    %6742 = vrot.lane.b32.xlu0 %v6731, 32
    %v6743 = vpop.permute.xlu0 %6742
    %v6745 = vunpack.c.l.b16 %v6725
    %v6746 = vunpack.c.h.b16 %v6725
    %v6747 = vpack.c.b16 %v6745, %v6745
    %v6748 = vpack.c.b16 %v6746, %v6746
    %6749 = vrot.lane.b32.xlu0 %v6747, 96
    %v6750 = vpop.permute.xlu0 %6749
    %6751 = vrot.lane.b32.xlu0 %v6748, 96
    %v6752 = vpop.permute.xlu0 %6751
    %6753 = vrot.lane.b32.xlu0 %v6747, 64
    %v6754 = vpop.permute.xlu0 %6753
    %6755 = vrot.lane.b32.xlu0 %v6748, 64
    %v6756 = vpop.permute.xlu0 %6755
    %6757 = vrot.lane.b32.xlu0 %v6747, 32
    %v6758 = vpop.permute.xlu0 %6757
    %6759 = vrot.lane.b32.xlu0 %v6748, 32
    %v6760 = vpop.permute.xlu0 %6759
    %v6762 = vunpack.c.l.b16 %v6726
    %v6763 = vunpack.c.h.b16 %v6726
    %v6764 = vpack.c.b16 %v6762, %v6762
    %v6765 = vpack.c.b16 %v6763, %v6763
    %6766 = vrot.lane.b32.xlu0 %v6764, 96
    %v6767 = vpop.permute.xlu0 %6766
    %6768 = vrot.lane.b32.xlu0 %v6765, 96
    %v6769 = vpop.permute.xlu0 %6768
    %6770 = vrot.lane.b32.xlu0 %v6764, 64
    %v6771 = vpop.permute.xlu0 %6770
    %6772 = vrot.lane.b32.xlu0 %v6765, 64
    %v6773 = vpop.permute.xlu0 %6772
    %6774 = vrot.lane.b32.xlu0 %v6764, 32
    %v6775 = vpop.permute.xlu0 %6774
    %6776 = vrot.lane.b32.xlu0 %v6765, 32
    %v6777 = vpop.permute.xlu0 %6776
    %v6779 = vsel %vm442, %v6730, 0
    %v6782 = vsel %vm442, %v6747, 0
    %6784 = vmatprep.subr.bf16.mxu0 0
    %6785 = vmatpush1.bf16.xpose.msra.mxu0 %v6782
    %6786 = vmatprep.subr.bf16.mxu0 0
    %6787 = vmatpush1.bf16.xpose.msra.mxu0 0
    %6788 = vmatprep.subr.bf16.mxu0 0
    %6789 = vmatpush1.bf16.xpose.msra.mxu0 0
    %6790 = vmatprep.subr.bf16.mxu0 0
    %6791 = vmatpush1.bf16.xpose.msra.mxu0 0
    %6792 = vmatprep.subr.bf16.mxu0 0
    %6793 = vmatpush1.bf16.xpose.msra.mxu0 0
    %6794 = vmatprep.subr.bf16.mxu0 0
    %6795 = vmatpush1.bf16.xpose.msra.mxu0 0
    %6796 = vmatprep.subr.bf16.mxu0 0
    %6797 = vmatpush1.bf16.xpose.msra.mxu0 0
    %6798 = vmatprep.subr.bf16.mxu0 0
    %6799 = vmatpush1.bf16.xpose.msra.mxu0 0
    %6800 = vmatprep.subr.bf16.mxu0 0
    %6801 = vmatpush1.bf16.xpose.msra.mxu0 0
    %6802 = vmatprep.subr.bf16.mxu0 0
    %6803 = vmatpush1.bf16.xpose.msra.mxu0 0
    %6804 = vmatprep.subr.bf16.mxu0 0
    %6805 = vmatpush1.bf16.xpose.msra.mxu0 0
    %6806 = vmatprep.subr.bf16.mxu0 0
    %6807 = vmatpush1.bf16.xpose.msra.mxu0 0
    %6808 = vmatprep.subr.bf16.mxu0 0
    %6809 = vmatpush1.bf16.xpose.msra.mxu0 0
    %6810 = vmatprep.subr.bf16.mxu0 0
    %6811 = vmatpush1.bf16.xpose.msra.mxu0 0
    %6812 = vmatprep.subr.bf16.mxu0 0
    %6813 = vmatpush1.bf16.xpose.msra.mxu0 0
    %6814 = vmatprep.subr.bf16.mxu0 0
    %6815 = vmatpush1.bf16.xpose.msra.mxu0 0
    %6816 = vmatprep.mubr.bf16.mxu0 0
    %6817 = vmatmul.mubr.bf16.gmra.mrb[0].mxu0 %v6779
    %v6818 = vpop.f32.mrb[0].mxu0
    %v6819 = vadd.f32 %v119, %v6818
    %v6820 = vpop.f32.mrb[0].mxu0
    %v6821 = vpop.f32.mrb[0].mxu0
    %v6822 = vpop.f32.mrb[0].mxu0
    %6823 = vdwg.mxu0
    %v6825 = vsel %vm442, %v6731, 0
    %v6828 = vsel %vm442, %v6748, 0
    %6830 = vmatprep.subr.bf16.mxu0 0
    %6831 = vmatpush1.bf16.xpose.msra.mxu0 %v6828
    %6832 = vmatprep.subr.bf16.mxu0 0
    %6833 = vmatpush1.bf16.xpose.msra.mxu0 0
    %6834 = vmatprep.subr.bf16.mxu0 0
    %6835 = vmatpush1.bf16.xpose.msra.mxu0 0
    %6836 = vmatprep.subr.bf16.mxu0 0
    %6837 = vmatpush1.bf16.xpose.msra.mxu0 0
    %6838 = vmatprep.subr.bf16.mxu0 0
    %6839 = vmatpush1.bf16.xpose.msra.mxu0 0
    %6840 = vmatprep.subr.bf16.mxu0 0
    %6841 = vmatpush1.bf16.xpose.msra.mxu0 0
    %6842 = vmatprep.subr.bf16.mxu0 0
    %6843 = vmatpush1.bf16.xpose.msra.mxu0 0
    %6844 = vmatprep.subr.bf16.mxu0 0
    %6845 = vmatpush1.bf16.xpose.msra.mxu0 0
    %6846 = vmatprep.subr.bf16.mxu0 0
    %6847 = vmatpush1.bf16.xpose.msra.mxu0 0
    %6848 = vmatprep.subr.bf16.mxu0 0
    %6849 = vmatpush1.bf16.xpose.msra.mxu0 0
    %6850 = vmatprep.subr.bf16.mxu0 0
    %6851 = vmatpush1.bf16.xpose.msra.mxu0 0
    %6852 = vmatprep.subr.bf16.mxu0 0
    %6853 = vmatpush1.bf16.xpose.msra.mxu0 0
    %6854 = vmatprep.subr.bf16.mxu0 0
    %6855 = vmatpush1.bf16.xpose.msra.mxu0 0
    %6856 = vmatprep.subr.bf16.mxu0 0
    %6857 = vmatpush1.bf16.xpose.msra.mxu0 0
    %6858 = vmatprep.subr.bf16.mxu0 0
    %6859 = vmatpush1.bf16.xpose.msra.mxu0 0
    %6860 = vmatprep.subr.bf16.mxu0 0
    %6861 = vmatpush1.bf16.xpose.msra.mxu0 0
    %6862 = vmatprep.mubr.bf16.mxu0 0
    %6863 = vmatmul.mubr.bf16.gmra.mrb[0].mxu0 %v6825
    %v6864 = vpop.f32.mrb[0].mxu0
    %v6865 = vadd.f32 %v123, %v6864
    %v6866 = vpop.f32.mrb[0].mxu0
    %v6867 = vpop.f32.mrb[0].mxu0
    %v6868 = vpop.f32.mrb[0].mxu0
    %6869 = vdwg.mxu0
    %v6871 = vsel %vm442, %v6733, 0
    %v6874 = vsel %vm442, %v6750, 0
    %6876 = vmatprep.subr.bf16.mxu0 0
    %6877 = vmatpush1.bf16.xpose.msra.mxu0 %v6874
    %6878 = vmatprep.subr.bf16.mxu0 0
    %6879 = vmatpush1.bf16.xpose.msra.mxu0 0
    %6880 = vmatprep.subr.bf16.mxu0 0
    %6881 = vmatpush1.bf16.xpose.msra.mxu0 0
    %6882 = vmatprep.subr.bf16.mxu0 0
    %6883 = vmatpush1.bf16.xpose.msra.mxu0 0
    %6884 = vmatprep.subr.bf16.mxu0 0
    %6885 = vmatpush1.bf16.xpose.msra.mxu0 0
    %6886 = vmatprep.subr.bf16.mxu0 0
    %6887 = vmatpush1.bf16.xpose.msra.mxu0 0
    %6888 = vmatprep.subr.bf16.mxu0 0
    %6889 = vmatpush1.bf16.xpose.msra.mxu0 0
    %6890 = vmatprep.subr.bf16.mxu0 0
    %6891 = vmatpush1.bf16.xpose.msra.mxu0 0
    %6892 = vmatprep.subr.bf16.mxu0 0
    %6893 = vmatpush1.bf16.xpose.msra.mxu0 0
    %6894 = vmatprep.subr.bf16.mxu0 0
    %6895 = vmatpush1.bf16.xpose.msra.mxu0 0
    %6896 = vmatprep.subr.bf16.mxu0 0
    %6897 = vmatpush1.bf16.xpose.msra.mxu0 0
    %6898 = vmatprep.subr.bf16.mxu0 0
    %6899 = vmatpush1.bf16.xpose.msra.mxu0 0
    %6900 = vmatprep.subr.bf16.mxu0 0
    %6901 = vmatpush1.bf16.xpose.msra.mxu0 0
    %6902 = vmatprep.subr.bf16.mxu0 0
    %6903 = vmatpush1.bf16.xpose.msra.mxu0 0
    %6904 = vmatprep.subr.bf16.mxu0 0
    %6905 = vmatpush1.bf16.xpose.msra.mxu0 0
    %6906 = vmatprep.subr.bf16.mxu0 0
    %6907 = vmatpush1.bf16.xpose.msra.mxu0 0
    %6908 = vmatprep.mubr.bf16.mxu0 0
    %6909 = vmatmul.mubr.bf16.gmra.mrb[0].mxu0 %v6871
    %v6910 = vpop.f32.mrb[0].mxu0
    %v6911 = vadd.f32 %v119, %v6910
    %v6912 = vpop.f32.mrb[0].mxu0
    %v6913 = vpop.f32.mrb[0].mxu0
    %v6914 = vpop.f32.mrb[0].mxu0
    %6915 = vdwg.mxu0
    %v6917 = vsel %vm442, %v6735, 0
    %v6920 = vsel %vm442, %v6752, 0
    %6922 = vmatprep.subr.bf16.mxu0 0
    %6923 = vmatpush1.bf16.xpose.msra.mxu0 %v6920
    %6924 = vmatprep.subr.bf16.mxu0 0
    %6925 = vmatpush1.bf16.xpose.msra.mxu0 0
    %6926 = vmatprep.subr.bf16.mxu0 0
    %6927 = vmatpush1.bf16.xpose.msra.mxu0 0
    %6928 = vmatprep.subr.bf16.mxu0 0
    %6929 = vmatpush1.bf16.xpose.msra.mxu0 0
    %6930 = vmatprep.subr.bf16.mxu0 0
    %6931 = vmatpush1.bf16.xpose.msra.mxu0 0
    %6932 = vmatprep.subr.bf16.mxu0 0
    %6933 = vmatpush1.bf16.xpose.msra.mxu0 0
    %6934 = vmatprep.subr.bf16.mxu0 0
    %6935 = vmatpush1.bf16.xpose.msra.mxu0 0
    %6936 = vmatprep.subr.bf16.mxu0 0
    %6937 = vmatpush1.bf16.xpose.msra.mxu0 0
    %6938 = vmatprep.subr.bf16.mxu0 0
    %6939 = vmatpush1.bf16.xpose.msra.mxu0 0
    %6940 = vmatprep.subr.bf16.mxu0 0
    %6941 = vmatpush1.bf16.xpose.msra.mxu0 0
    %6942 = vmatprep.subr.bf16.mxu0 0
    %6943 = vmatpush1.bf16.xpose.msra.mxu0 0
    %6944 = vmatprep.subr.bf16.mxu0 0
    %6945 = vmatpush1.bf16.xpose.msra.mxu0 0
    %6946 = vmatprep.subr.bf16.mxu0 0
    %6947 = vmatpush1.bf16.xpose.msra.mxu0 0
    %6948 = vmatprep.subr.bf16.mxu0 0
    %6949 = vmatpush1.bf16.xpose.msra.mxu0 0
    %6950 = vmatprep.subr.bf16.mxu0 0
    %6951 = vmatpush1.bf16.xpose.msra.mxu0 0
    %6952 = vmatprep.subr.bf16.mxu0 0
    %6953 = vmatpush1.bf16.xpose.msra.mxu0 0
    %6954 = vmatprep.mubr.bf16.mxu0 0
    %6955 = vmatmul.mubr.bf16.gmra.mrb[0].mxu0 %v6917
    %v6956 = vpop.f32.mrb[0].mxu0
    %v6957 = vadd.f32 %v123, %v6956
    %v6958 = vpop.f32.mrb[0].mxu0
    %v6959 = vpop.f32.mrb[0].mxu0
    %v6960 = vpop.f32.mrb[0].mxu0
    %6961 = vdwg.mxu0
    %v6963 = vsel %vm442, %v6737, 0
    %v6966 = vsel %vm442, %v6754, 0
    %6968 = vmatprep.subr.bf16.mxu0 0
    %6969 = vmatpush1.bf16.xpose.msra.mxu0 %v6966
    %6970 = vmatprep.subr.bf16.mxu0 0
    %6971 = vmatpush1.bf16.xpose.msra.mxu0 0
    %6972 = vmatprep.subr.bf16.mxu0 0
    %6973 = vmatpush1.bf16.xpose.msra.mxu0 0
    %6974 = vmatprep.subr.bf16.mxu0 0
    %6975 = vmatpush1.bf16.xpose.msra.mxu0 0
    %6976 = vmatprep.subr.bf16.mxu0 0
    %6977 = vmatpush1.bf16.xpose.msra.mxu0 0
    %6978 = vmatprep.subr.bf16.mxu0 0
    %6979 = vmatpush1.bf16.xpose.msra.mxu0 0
    %6980 = vmatprep.subr.bf16.mxu0 0
    %6981 = vmatpush1.bf16.xpose.msra.mxu0 0
    %6982 = vmatprep.subr.bf16.mxu0 0
    %6983 = vmatpush1.bf16.xpose.msra.mxu0 0
    %6984 = vmatprep.subr.bf16.mxu0 0
    %6985 = vmatpush1.bf16.xpose.msra.mxu0 0
    %6986 = vmatprep.subr.bf16.mxu0 0
    %6987 = vmatpush1.bf16.xpose.msra.mxu0 0
    %6988 = vmatprep.subr.bf16.mxu0 0
    %6989 = vmatpush1.bf16.xpose.msra.mxu0 0
    %6990 = vmatprep.subr.bf16.mxu0 0
    %6991 = vmatpush1.bf16.xpose.msra.mxu0 0
    %6992 = vmatprep.subr.bf16.mxu0 0
    %6993 = vmatpush1.bf16.xpose.msra.mxu0 0
    %6994 = vmatprep.subr.bf16.mxu0 0
    %6995 = vmatpush1.bf16.xpose.msra.mxu0 0
    %6996 = vmatprep.subr.bf16.mxu0 0
    %6997 = vmatpush1.bf16.xpose.msra.mxu0 0
    %6998 = vmatprep.subr.bf16.mxu0 0
    %6999 = vmatpush1.bf16.xpose.msra.mxu0 0
    %7000 = vmatprep.mubr.bf16.mxu0 0
    %7001 = vmatmul.mubr.bf16.gmra.mrb[0].mxu0 %v6963
    %v7002 = vpop.f32.mrb[0].mxu0
    %v7003 = vadd.f32 %v119, %v7002
    %v7004 = vpop.f32.mrb[0].mxu0
    %v7005 = vpop.f32.mrb[0].mxu0
    %v7006 = vpop.f32.mrb[0].mxu0
    %7007 = vdwg.mxu0
    %v7009 = vsel %vm442, %v6739, 0
    %v7012 = vsel %vm442, %v6756, 0
    %7014 = vmatprep.subr.bf16.mxu0 0
    %7015 = vmatpush1.bf16.xpose.msra.mxu0 %v7012
    %7016 = vmatprep.subr.bf16.mxu0 0
    %7017 = vmatpush1.bf16.xpose.msra.mxu0 0
    %7018 = vmatprep.subr.bf16.mxu0 0
    %7019 = vmatpush1.bf16.xpose.msra.mxu0 0
    %7020 = vmatprep.subr.bf16.mxu0 0
    %7021 = vmatpush1.bf16.xpose.msra.mxu0 0
    %7022 = vmatprep.subr.bf16.mxu0 0
    %7023 = vmatpush1.bf16.xpose.msra.mxu0 0
    %7024 = vmatprep.subr.bf16.mxu0 0
    %7025 = vmatpush1.bf16.xpose.msra.mxu0 0
    %7026 = vmatprep.subr.bf16.mxu0 0
    %7027 = vmatpush1.bf16.xpose.msra.mxu0 0
    %7028 = vmatprep.subr.bf16.mxu0 0
    %7029 = vmatpush1.bf16.xpose.msra.mxu0 0
    %7030 = vmatprep.subr.bf16.mxu0 0
    %7031 = vmatpush1.bf16.xpose.msra.mxu0 0
    %7032 = vmatprep.subr.bf16.mxu0 0
    %7033 = vmatpush1.bf16.xpose.msra.mxu0 0
    %7034 = vmatprep.subr.bf16.mxu0 0
    %7035 = vmatpush1.bf16.xpose.msra.mxu0 0
    %7036 = vmatprep.subr.bf16.mxu0 0
    %7037 = vmatpush1.bf16.xpose.msra.mxu0 0
    %7038 = vmatprep.subr.bf16.mxu0 0
    %7039 = vmatpush1.bf16.xpose.msra.mxu0 0
    %7040 = vmatprep.subr.bf16.mxu0 0
    %7041 = vmatpush1.bf16.xpose.msra.mxu0 0
    %7042 = vmatprep.subr.bf16.mxu0 0
    %7043 = vmatpush1.bf16.xpose.msra.mxu0 0
    %7044 = vmatprep.subr.bf16.mxu0 0
    %7045 = vmatpush1.bf16.xpose.msra.mxu0 0
    %7046 = vmatprep.mubr.bf16.mxu0 0
    %7047 = vmatmul.mubr.bf16.gmra.mrb[0].mxu0 %v7009
    %v7048 = vpop.f32.mrb[0].mxu0
    %v7049 = vadd.f32 %v123, %v7048
    %v7050 = vpop.f32.mrb[0].mxu0
    %v7051 = vpop.f32.mrb[0].mxu0
    %v7052 = vpop.f32.mrb[0].mxu0
    %7053 = vdwg.mxu0
    %v7055 = vsel %vm442, %v6741, 0
    %v7058 = vsel %vm442, %v6758, 0
    %7060 = vmatprep.subr.bf16.mxu0 0
    %7061 = vmatpush1.bf16.xpose.msra.mxu0 %v7058
    %7062 = vmatprep.subr.bf16.mxu0 0
    %7063 = vmatpush1.bf16.xpose.msra.mxu0 0
    %7064 = vmatprep.subr.bf16.mxu0 0
    %7065 = vmatpush1.bf16.xpose.msra.mxu0 0
    %7066 = vmatprep.subr.bf16.mxu0 0
    %7067 = vmatpush1.bf16.xpose.msra.mxu0 0
    %7068 = vmatprep.subr.bf16.mxu0 0
    %7069 = vmatpush1.bf16.xpose.msra.mxu0 0
    %7070 = vmatprep.subr.bf16.mxu0 0
    %7071 = vmatpush1.bf16.xpose.msra.mxu0 0
    %7072 = vmatprep.subr.bf16.mxu0 0
    %7073 = vmatpush1.bf16.xpose.msra.mxu0 0
    %7074 = vmatprep.subr.bf16.mxu0 0
    %7075 = vmatpush1.bf16.xpose.msra.mxu0 0
    %7076 = vmatprep.subr.bf16.mxu0 0
    %7077 = vmatpush1.bf16.xpose.msra.mxu0 0
    %7078 = vmatprep.subr.bf16.mxu0 0
    %7079 = vmatpush1.bf16.xpose.msra.mxu0 0
    %7080 = vmatprep.subr.bf16.mxu0 0
    %7081 = vmatpush1.bf16.xpose.msra.mxu0 0
    %7082 = vmatprep.subr.bf16.mxu0 0
    %7083 = vmatpush1.bf16.xpose.msra.mxu0 0
    %7084 = vmatprep.subr.bf16.mxu0 0
    %7085 = vmatpush1.bf16.xpose.msra.mxu0 0
    %7086 = vmatprep.subr.bf16.mxu0 0
    %7087 = vmatpush1.bf16.xpose.msra.mxu0 0
    %7088 = vmatprep.subr.bf16.mxu0 0
    %7089 = vmatpush1.bf16.xpose.msra.mxu0 0
    %7090 = vmatprep.subr.bf16.mxu0 0
    %7091 = vmatpush1.bf16.xpose.msra.mxu0 0
    %7092 = vmatprep.mubr.bf16.mxu0 0
    %7093 = vmatmul.mubr.bf16.gmra.mrb[0].mxu0 %v7055
    %v7094 = vpop.f32.mrb[0].mxu0
    %v7095 = vadd.f32 %v119, %v7094
    %v7096 = vpop.f32.mrb[0].mxu0
    %v7097 = vpop.f32.mrb[0].mxu0
    %v7098 = vpop.f32.mrb[0].mxu0
    %7099 = vdwg.mxu0
    %v7101 = vsel %vm442, %v6743, 0
    %v7104 = vsel %vm442, %v6760, 0
    %7106 = vmatprep.subr.bf16.mxu0 0
    %7107 = vmatpush1.bf16.xpose.msra.mxu0 %v7104
    %7108 = vmatprep.subr.bf16.mxu0 0
    %7109 = vmatpush1.bf16.xpose.msra.mxu0 0
    %7110 = vmatprep.subr.bf16.mxu0 0
    %7111 = vmatpush1.bf16.xpose.msra.mxu0 0
    %7112 = vmatprep.subr.bf16.mxu0 0
    %7113 = vmatpush1.bf16.xpose.msra.mxu0 0
    %7114 = vmatprep.subr.bf16.mxu0 0
    %7115 = vmatpush1.bf16.xpose.msra.mxu0 0
    %7116 = vmatprep.subr.bf16.mxu0 0
    %7117 = vmatpush1.bf16.xpose.msra.mxu0 0
    %7118 = vmatprep.subr.bf16.mxu0 0
    %7119 = vmatpush1.bf16.xpose.msra.mxu0 0
    %7120 = vmatprep.subr.bf16.mxu0 0
    %7121 = vmatpush1.bf16.xpose.msra.mxu0 0
    %7122 = vmatprep.subr.bf16.mxu0 0
    %7123 = vmatpush1.bf16.xpose.msra.mxu0 0
    %7124 = vmatprep.subr.bf16.mxu0 0
    %7125 = vmatpush1.bf16.xpose.msra.mxu0 0
    %7126 = vmatprep.subr.bf16.mxu0 0
    %7127 = vmatpush1.bf16.xpose.msra.mxu0 0
    %7128 = vmatprep.subr.bf16.mxu0 0
    %7129 = vmatpush1.bf16.xpose.msra.mxu0 0
    %7130 = vmatprep.subr.bf16.mxu0 0
    %7131 = vmatpush1.bf16.xpose.msra.mxu0 0
    %7132 = vmatprep.subr.bf16.mxu0 0
    %7133 = vmatpush1.bf16.xpose.msra.mxu0 0
    %7134 = vmatprep.subr.bf16.mxu0 0
    %7135 = vmatpush1.bf16.xpose.msra.mxu0 0
    %7136 = vmatprep.subr.bf16.mxu0 0
    %7137 = vmatpush1.bf16.xpose.msra.mxu0 0
    %7138 = vmatprep.mubr.bf16.mxu0 0
    %7139 = vmatmul.mubr.bf16.gmra.mrb[0].mxu0 %v7101
    %v7140 = vpop.f32.mrb[0].mxu0
    %v7141 = vadd.f32 %v123, %v7140
    %v7142 = vpop.f32.mrb[0].mxu0
    %v7143 = vpop.f32.mrb[0].mxu0
    %v7144 = vpop.f32.mrb[0].mxu0
    %7145 = vdwg.mxu0
    %v7146 = vsel %vm811, %v6819, -inf
    %7147 = vmax.xlane.f32.xlu0 %v7146
    %v7148 = vpop.xlane.xlu0 %7147
    %v7149 = vsel %vm811, %v6865, -inf
    %7150 = vmax.xlane.f32.xlu0 %v7149
    %v7151 = vpop.xlane.xlu0 %7150
    %v7152 = vsel %vm811, %v6911, -inf
    %7153 = vmax.xlane.f32.xlu0 %v7152
    %v7154 = vpop.xlane.xlu0 %7153
    %v7155 = vsel %vm811, %v6957, -inf
    %7156 = vmax.xlane.f32.xlu0 %v7155
    %v7157 = vpop.xlane.xlu0 %7156
    %v7158 = vsel %vm811, %v7003, -inf
    %7159 = vmax.xlane.f32.xlu0 %v7158
    %v7160 = vpop.xlane.xlu0 %7159
    %v7161 = vsel %vm811, %v7049, -inf
    %7162 = vmax.xlane.f32.xlu0 %v7161
    %v7163 = vpop.xlane.xlu0 %7162
    %v7164 = vsel %vm811, %v7095, -inf
    %7165 = vmax.xlane.f32.xlu0 %v7164
    %v7166 = vpop.xlane.xlu0 %7165
    %v7167 = vsel %vm811, %v7141, -inf
    %7168 = vmax.xlane.f32.xlu0 %v7167
    %v7169 = vpop.xlane.xlu0 %7168
    %v7170 = vsub.f32 %v6819, %v7148
    %v7171 = vsub.f32 %v6865, %v7151
    %v7172 = vsub.f32 %v6911, %v7154
    %v7173 = vsub.f32 %v6957, %v7157
    %v7174 = vsub.f32 %v7003, %v7160
    %v7175 = vsub.f32 %v7049, %v7163
    %v7176 = vsub.f32 %v7095, %v7166
    %v7177 = vsub.f32 %v7141, %v7169
    %v7178 = vmul.f32 %v7170, 1.442695
    %v7179 = vpow.pop %v7178
    %v7180 = vmul.f32 %v7171, 1.442695
    %v7181 = vpow.pop %v7180
    %v7182 = vmul.f32 %v7172, 1.442695
    %v7183 = vpow.pop %v7182
    %v7184 = vmul.f32 %v7173, 1.442695
    %v7185 = vpow.pop %v7184
    %v7186 = vmul.f32 %v7174, 1.442695
    %v7187 = vpow.pop %v7186
    %v7188 = vmul.f32 %v7175, 1.442695
    %v7189 = vpow.pop %v7188
    %v7190 = vmul.f32 %v7176, 1.442695
    %v7191 = vpow.pop %v7190
    %v7192 = vmul.f32 %v7177, 1.442695
    %v7193 = vpow.pop %v7192
    %v7194 = vsel %vm811, %v7179, 0.0
    %7195 = vadd.xlane.f32.xlu0 %v7194
    %v7196 = vpop.xlane.xlu0 %7195
    %v7197 = vsel %vm811, %v7181, 0.0
    %7198 = vadd.xlane.f32.xlu0 %v7197
    %v7199 = vpop.xlane.xlu0 %7198
    %v7200 = vsel %vm811, %v7183, 0.0
    %7201 = vadd.xlane.f32.xlu0 %v7200
    %v7202 = vpop.xlane.xlu0 %7201
    %v7203 = vsel %vm811, %v7185, 0.0
    %7204 = vadd.xlane.f32.xlu0 %v7203
    %v7205 = vpop.xlane.xlu0 %7204
    %v7206 = vsel %vm811, %v7187, 0.0
    %7207 = vadd.xlane.f32.xlu0 %v7206
    %v7208 = vpop.xlane.xlu0 %7207
    %v7209 = vsel %vm811, %v7189, 0.0
    %7210 = vadd.xlane.f32.xlu0 %v7209
    %v7211 = vpop.xlane.xlu0 %7210
    %v7212 = vsel %vm811, %v7191, 0.0
    %7213 = vadd.xlane.f32.xlu0 %v7212
    %v7214 = vpop.xlane.xlu0 %7213
    %v7215 = vsel %vm811, %v7193, 0.0
    %7216 = vadd.xlane.f32.xlu0 %v7215
    %v7217 = vpop.xlane.xlu0 %7216
    %v7218 = vrcp.pop %v7196
    %v7219 = vrcp.pop %v7199
    %v7220 = vrcp.pop %v7202
    %v7221 = vrcp.pop %v7205
    %v7222 = vrcp.pop %v7208
    %v7223 = vrcp.pop %v7211
    %v7224 = vrcp.pop %v7214
    %v7225 = vrcp.pop %v7217
    %v7226 = vmul.f32 %v7179, %v7218
    %v7227 = vmul.f32 %v7181, %v7219
    %v7228 = vmul.f32 %v7183, %v7220
    %v7229 = vmul.f32 %v7185, %v7221
    %v7230 = vmul.f32 %v7187, %v7222
    %v7231 = vmul.f32 %v7189, %v7223
    %v7232 = vmul.f32 %v7191, %v7224
    %v7233 = vmul.f32 %v7193, %v7225
    %v7234 = vpack.c.bf16 %v7226, %v7226
    %v7235 = vpack.c.bf16 %v7227, %v7227
    %v7236 = vpack.c.bf16 %v7228, %v7228
    %v7237 = vpack.c.bf16 %v7229, %v7229
    %v7238 = vpack.c.bf16 %v7230, %v7230
    %v7239 = vpack.c.bf16 %v7231, %v7231
    %v7240 = vpack.c.bf16 %v7232, %v7232
    %v7241 = vpack.c.bf16 %v7233, %v7233
    %v7243 = vsel %vm811, %v7234, 0
    %v7246 = vsel %vm911, %v6764, 0
    %7248 = vmatprep.subr.bf16.mxu0 0
    %7249 = vmatpush1.bf16.msra.mxu0 %v7246
    %7250 = vmatprep.subr.bf16.mxu0 0
    %7251 = vmatpush1.bf16.msra.mxu0 0
    %7252 = vmatprep.subr.bf16.mxu0 0
    %7253 = vmatpush1.bf16.msra.mxu0 0
    %7254 = vmatprep.subr.bf16.mxu0 0
    %7255 = vmatpush1.bf16.msra.mxu0 0
    %7256 = vmatprep.subr.bf16.mxu0 0
    %7257 = vmatpush1.bf16.msra.mxu0 0
    %7258 = vmatprep.subr.bf16.mxu0 0
    %7259 = vmatpush1.bf16.msra.mxu0 0
    %7260 = vmatprep.subr.bf16.mxu0 0
    %7261 = vmatpush1.bf16.msra.mxu0 0
    %7262 = vmatprep.subr.bf16.mxu0 0
    %7263 = vmatpush1.bf16.msra.mxu0 0
    %7264 = vmatprep.subr.bf16.mxu0 0
    %7265 = vmatpush1.bf16.msra.mxu0 0
    %7266 = vmatprep.subr.bf16.mxu0 0
    %7267 = vmatpush1.bf16.msra.mxu0 0
    %7268 = vmatprep.subr.bf16.mxu0 0
    %7269 = vmatpush1.bf16.msra.mxu0 0
    %7270 = vmatprep.subr.bf16.mxu0 0
    %7271 = vmatpush1.bf16.msra.mxu0 0
    %7272 = vmatprep.subr.bf16.mxu0 0
    %7273 = vmatpush1.bf16.msra.mxu0 0
    %7274 = vmatprep.subr.bf16.mxu0 0
    %7275 = vmatpush1.bf16.msra.mxu0 0
    %7276 = vmatprep.subr.bf16.mxu0 0
    %7277 = vmatpush1.bf16.msra.mxu0 0
    %7278 = vmatprep.subr.bf16.mxu0 0
    %7279 = vmatpush1.bf16.msra.mxu0 0
    %7280 = vmatprep.mubr.bf16.mxu0 0
    %7281 = vmatmul.mubr.bf16.gmra.mrb[0].mxu0 %v7243
    %v7282 = vpop.f32.mrb[0].mxu0
    %v7283 = vadd.f32 0.0, %v7282
    %v7284 = vpop.f32.mrb[0].mxu0
    %v7285 = vpop.f32.mrb[0].mxu0
    %v7286 = vpop.f32.mrb[0].mxu0
    %7287 = vdwg.mxu0
    %v7289 = vsel %vm811, %v7235, 0
    %v7292 = vsel %vm911, %v6765, 0
    %7294 = vmatprep.subr.bf16.mxu0 0
    %7295 = vmatpush1.bf16.msra.mxu0 %v7292
    %7296 = vmatprep.subr.bf16.mxu0 0
    %7297 = vmatpush1.bf16.msra.mxu0 0
    %7298 = vmatprep.subr.bf16.mxu0 0
    %7299 = vmatpush1.bf16.msra.mxu0 0
    %7300 = vmatprep.subr.bf16.mxu0 0
    %7301 = vmatpush1.bf16.msra.mxu0 0
    %7302 = vmatprep.subr.bf16.mxu0 0
    %7303 = vmatpush1.bf16.msra.mxu0 0
    %7304 = vmatprep.subr.bf16.mxu0 0
    %7305 = vmatpush1.bf16.msra.mxu0 0
    %7306 = vmatprep.subr.bf16.mxu0 0
    %7307 = vmatpush1.bf16.msra.mxu0 0
    %7308 = vmatprep.subr.bf16.mxu0 0
    %7309 = vmatpush1.bf16.msra.mxu0 0
    %7310 = vmatprep.subr.bf16.mxu0 0
    %7311 = vmatpush1.bf16.msra.mxu0 0
    %7312 = vmatprep.subr.bf16.mxu0 0
    %7313 = vmatpush1.bf16.msra.mxu0 0
    %7314 = vmatprep.subr.bf16.mxu0 0
    %7315 = vmatpush1.bf16.msra.mxu0 0
    %7316 = vmatprep.subr.bf16.mxu0 0
    %7317 = vmatpush1.bf16.msra.mxu0 0
    %7318 = vmatprep.subr.bf16.mxu0 0
    %7319 = vmatpush1.bf16.msra.mxu0 0
    %7320 = vmatprep.subr.bf16.mxu0 0
    %7321 = vmatpush1.bf16.msra.mxu0 0
    %7322 = vmatprep.subr.bf16.mxu0 0
    %7323 = vmatpush1.bf16.msra.mxu0 0
    %7324 = vmatprep.subr.bf16.mxu0 0
    %7325 = vmatpush1.bf16.msra.mxu0 0
    %7326 = vmatprep.mubr.bf16.mxu0 0
    %7327 = vmatmul.mubr.bf16.gmra.mrb[0].mxu0 %v7289
    %v7328 = vpop.f32.mrb[0].mxu0
    %v7329 = vadd.f32 0.0, %v7328
    %v7330 = vpop.f32.mrb[0].mxu0
    %v7331 = vpop.f32.mrb[0].mxu0
    %v7332 = vpop.f32.mrb[0].mxu0
    %7333 = vdwg.mxu0
    %v7335 = vsel %vm811, %v7236, 0
    %v7338 = vsel %vm911, %v6767, 0
    %7340 = vmatprep.subr.bf16.mxu0 0
    %7341 = vmatpush1.bf16.msra.mxu0 %v7338
    %7342 = vmatprep.subr.bf16.mxu0 0
    %7343 = vmatpush1.bf16.msra.mxu0 0
    %7344 = vmatprep.subr.bf16.mxu0 0
    %7345 = vmatpush1.bf16.msra.mxu0 0
    %7346 = vmatprep.subr.bf16.mxu0 0
    %7347 = vmatpush1.bf16.msra.mxu0 0
    %7348 = vmatprep.subr.bf16.mxu0 0
    %7349 = vmatpush1.bf16.msra.mxu0 0
    %7350 = vmatprep.subr.bf16.mxu0 0
    %7351 = vmatpush1.bf16.msra.mxu0 0
    %7352 = vmatprep.subr.bf16.mxu0 0
    %7353 = vmatpush1.bf16.msra.mxu0 0
    %7354 = vmatprep.subr.bf16.mxu0 0
    %7355 = vmatpush1.bf16.msra.mxu0 0
    %7356 = vmatprep.subr.bf16.mxu0 0
    %7357 = vmatpush1.bf16.msra.mxu0 0
    %7358 = vmatprep.subr.bf16.mxu0 0
    %7359 = vmatpush1.bf16.msra.mxu0 0
    %7360 = vmatprep.subr.bf16.mxu0 0
    %7361 = vmatpush1.bf16.msra.mxu0 0
    %7362 = vmatprep.subr.bf16.mxu0 0
    %7363 = vmatpush1.bf16.msra.mxu0 0
    %7364 = vmatprep.subr.bf16.mxu0 0
    %7365 = vmatpush1.bf16.msra.mxu0 0
    %7366 = vmatprep.subr.bf16.mxu0 0
    %7367 = vmatpush1.bf16.msra.mxu0 0
    %7368 = vmatprep.subr.bf16.mxu0 0
    %7369 = vmatpush1.bf16.msra.mxu0 0
    %7370 = vmatprep.subr.bf16.mxu0 0
    %7371 = vmatpush1.bf16.msra.mxu0 0
    %7372 = vmatprep.mubr.bf16.mxu0 0
    %7373 = vmatmul.mubr.bf16.gmra.mrb[0].mxu0 %v7335
    %v7374 = vpop.f32.mrb[0].mxu0
    %v7375 = vadd.f32 0.0, %v7374
    %v7376 = vpop.f32.mrb[0].mxu0
    %v7377 = vpop.f32.mrb[0].mxu0
    %v7378 = vpop.f32.mrb[0].mxu0
    %7379 = vdwg.mxu0
    %v7381 = vsel %vm811, %v7237, 0
    %v7384 = vsel %vm911, %v6769, 0
    %7386 = vmatprep.subr.bf16.mxu0 0
    %7387 = vmatpush1.bf16.msra.mxu0 %v7384
    %7388 = vmatprep.subr.bf16.mxu0 0
    %7389 = vmatpush1.bf16.msra.mxu0 0
    %7390 = vmatprep.subr.bf16.mxu0 0
    %7391 = vmatpush1.bf16.msra.mxu0 0
    %7392 = vmatprep.subr.bf16.mxu0 0
    %7393 = vmatpush1.bf16.msra.mxu0 0
    %7394 = vmatprep.subr.bf16.mxu0 0
    %7395 = vmatpush1.bf16.msra.mxu0 0
    %7396 = vmatprep.subr.bf16.mxu0 0
    %7397 = vmatpush1.bf16.msra.mxu0 0
    %7398 = vmatprep.subr.bf16.mxu0 0
    %7399 = vmatpush1.bf16.msra.mxu0 0
    %7400 = vmatprep.subr.bf16.mxu0 0
    %7401 = vmatpush1.bf16.msra.mxu0 0
    %7402 = vmatprep.subr.bf16.mxu0 0
    %7403 = vmatpush1.bf16.msra.mxu0 0
    %7404 = vmatprep.subr.bf16.mxu0 0
    %7405 = vmatpush1.bf16.msra.mxu0 0
    %7406 = vmatprep.subr.bf16.mxu0 0
    %7407 = vmatpush1.bf16.msra.mxu0 0
    %7408 = vmatprep.subr.bf16.mxu0 0
    %7409 = vmatpush1.bf16.msra.mxu0 0
    %7410 = vmatprep.subr.bf16.mxu0 0
    %7411 = vmatpush1.bf16.msra.mxu0 0
    %7412 = vmatprep.subr.bf16.mxu0 0
    %7413 = vmatpush1.bf16.msra.mxu0 0
    %7414 = vmatprep.subr.bf16.mxu0 0
    %7415 = vmatpush1.bf16.msra.mxu0 0
    %7416 = vmatprep.subr.bf16.mxu0 0
    %7417 = vmatpush1.bf16.msra.mxu0 0
    %7418 = vmatprep.mubr.bf16.mxu0 0
    %7419 = vmatmul.mubr.bf16.gmra.mrb[0].mxu0 %v7381
    %v7420 = vpop.f32.mrb[0].mxu0
    %v7421 = vadd.f32 0.0, %v7420
    %v7422 = vpop.f32.mrb[0].mxu0
    %v7423 = vpop.f32.mrb[0].mxu0
    %v7424 = vpop.f32.mrb[0].mxu0
    %7425 = vdwg.mxu0
    %v7427 = vsel %vm811, %v7238, 0
    %v7430 = vsel %vm911, %v6771, 0
    %7432 = vmatprep.subr.bf16.mxu0 0
    %7433 = vmatpush1.bf16.msra.mxu0 %v7430
    %7434 = vmatprep.subr.bf16.mxu0 0
    %7435 = vmatpush1.bf16.msra.mxu0 0
    %7436 = vmatprep.subr.bf16.mxu0 0
    %7437 = vmatpush1.bf16.msra.mxu0 0
    %7438 = vmatprep.subr.bf16.mxu0 0
    %7439 = vmatpush1.bf16.msra.mxu0 0
    %7440 = vmatprep.subr.bf16.mxu0 0
    %7441 = vmatpush1.bf16.msra.mxu0 0
    %7442 = vmatprep.subr.bf16.mxu0 0
    %7443 = vmatpush1.bf16.msra.mxu0 0
    %7444 = vmatprep.subr.bf16.mxu0 0
    %7445 = vmatpush1.bf16.msra.mxu0 0
    %7446 = vmatprep.subr.bf16.mxu0 0
    %7447 = vmatpush1.bf16.msra.mxu0 0
    %7448 = vmatprep.subr.bf16.mxu0 0
    %7449 = vmatpush1.bf16.msra.mxu0 0
    %7450 = vmatprep.subr.bf16.mxu0 0
    %7451 = vmatpush1.bf16.msra.mxu0 0
    %7452 = vmatprep.subr.bf16.mxu0 0
    %7453 = vmatpush1.bf16.msra.mxu0 0
    %7454 = vmatprep.subr.bf16.mxu0 0
    %7455 = vmatpush1.bf16.msra.mxu0 0
    %7456 = vmatprep.subr.bf16.mxu0 0
    %7457 = vmatpush1.bf16.msra.mxu0 0
    %7458 = vmatprep.subr.bf16.mxu0 0
    %7459 = vmatpush1.bf16.msra.mxu0 0
    %7460 = vmatprep.subr.bf16.mxu0 0
    %7461 = vmatpush1.bf16.msra.mxu0 0
    %7462 = vmatprep.subr.bf16.mxu0 0
    %7463 = vmatpush1.bf16.msra.mxu0 0
    %7464 = vmatprep.mubr.bf16.mxu0 0
    %7465 = vmatmul.mubr.bf16.gmra.mrb[0].mxu0 %v7427
    %v7466 = vpop.f32.mrb[0].mxu0
    %v7467 = vadd.f32 0.0, %v7466
    %v7468 = vpop.f32.mrb[0].mxu0
    %v7469 = vpop.f32.mrb[0].mxu0
    %v7470 = vpop.f32.mrb[0].mxu0
    %7471 = vdwg.mxu0
    %v7473 = vsel %vm811, %v7239, 0
    %v7476 = vsel %vm911, %v6773, 0
    %7478 = vmatprep.subr.bf16.mxu0 0
    %7479 = vmatpush1.bf16.msra.mxu0 %v7476
    %7480 = vmatprep.subr.bf16.mxu0 0
    %7481 = vmatpush1.bf16.msra.mxu0 0
    %7482 = vmatprep.subr.bf16.mxu0 0
    %7483 = vmatpush1.bf16.msra.mxu0 0
    %7484 = vmatprep.subr.bf16.mxu0 0
    %7485 = vmatpush1.bf16.msra.mxu0 0
    %7486 = vmatprep.subr.bf16.mxu0 0
    %7487 = vmatpush1.bf16.msra.mxu0 0
    %7488 = vmatprep.subr.bf16.mxu0 0
    %7489 = vmatpush1.bf16.msra.mxu0 0
    %7490 = vmatprep.subr.bf16.mxu0 0
    %7491 = vmatpush1.bf16.msra.mxu0 0
    %7492 = vmatprep.subr.bf16.mxu0 0
    %7493 = vmatpush1.bf16.msra.mxu0 0
    %7494 = vmatprep.subr.bf16.mxu0 0
    %7495 = vmatpush1.bf16.msra.mxu0 0
    %7496 = vmatprep.subr.bf16.mxu0 0
    %7497 = vmatpush1.bf16.msra.mxu0 0
    %7498 = vmatprep.subr.bf16.mxu0 0
    %7499 = vmatpush1.bf16.msra.mxu0 0
    %7500 = vmatprep.subr.bf16.mxu0 0
    %7501 = vmatpush1.bf16.msra.mxu0 0
    %7502 = vmatprep.subr.bf16.mxu0 0
    %7503 = vmatpush1.bf16.msra.mxu0 0
    %7504 = vmatprep.subr.bf16.mxu0 0
    %7505 = vmatpush1.bf16.msra.mxu0 0
    %7506 = vmatprep.subr.bf16.mxu0 0
    %7507 = vmatpush1.bf16.msra.mxu0 0
    %7508 = vmatprep.subr.bf16.mxu0 0
    %7509 = vmatpush1.bf16.msra.mxu0 0
    %7510 = vmatprep.mubr.bf16.mxu0 0
    %7511 = vmatmul.mubr.bf16.gmra.mrb[0].mxu0 %v7473
    %v7512 = vpop.f32.mrb[0].mxu0
    %v7513 = vadd.f32 0.0, %v7512
    %v7514 = vpop.f32.mrb[0].mxu0
    %v7515 = vpop.f32.mrb[0].mxu0
    %v7516 = vpop.f32.mrb[0].mxu0
    %7517 = vdwg.mxu0
    %v7519 = vsel %vm811, %v7240, 0
    %v7522 = vsel %vm911, %v6775, 0
    %7524 = vmatprep.subr.bf16.mxu0 0
    %7525 = vmatpush1.bf16.msra.mxu0 %v7522
    %7526 = vmatprep.subr.bf16.mxu0 0
    %7527 = vmatpush1.bf16.msra.mxu0 0
    %7528 = vmatprep.subr.bf16.mxu0 0
    %7529 = vmatpush1.bf16.msra.mxu0 0
    %7530 = vmatprep.subr.bf16.mxu0 0
    %7531 = vmatpush1.bf16.msra.mxu0 0
    %7532 = vmatprep.subr.bf16.mxu0 0
    %7533 = vmatpush1.bf16.msra.mxu0 0
    %7534 = vmatprep.subr.bf16.mxu0 0
    %7535 = vmatpush1.bf16.msra.mxu0 0
    %7536 = vmatprep.subr.bf16.mxu0 0
    %7537 = vmatpush1.bf16.msra.mxu0 0
    %7538 = vmatprep.subr.bf16.mxu0 0
    %7539 = vmatpush1.bf16.msra.mxu0 0
    %7540 = vmatprep.subr.bf16.mxu0 0
    %7541 = vmatpush1.bf16.msra.mxu0 0
    %7542 = vmatprep.subr.bf16.mxu0 0
    %7543 = vmatpush1.bf16.msra.mxu0 0
    %7544 = vmatprep.subr.bf16.mxu0 0
    %7545 = vmatpush1.bf16.msra.mxu0 0
    %7546 = vmatprep.subr.bf16.mxu0 0
    %7547 = vmatpush1.bf16.msra.mxu0 0
    %7548 = vmatprep.subr.bf16.mxu0 0
    %7549 = vmatpush1.bf16.msra.mxu0 0
    %7550 = vmatprep.subr.bf16.mxu0 0
    %7551 = vmatpush1.bf16.msra.mxu0 0
    %7552 = vmatprep.subr.bf16.mxu0 0
    %7553 = vmatpush1.bf16.msra.mxu0 0
    %7554 = vmatprep.subr.bf16.mxu0 0
    %7555 = vmatpush1.bf16.msra.mxu0 0
    %7556 = vmatprep.mubr.bf16.mxu0 0
    %7557 = vmatmul.mubr.bf16.gmra.mrb[0].mxu0 %v7519
    %v7558 = vpop.f32.mrb[0].mxu0
    %v7559 = vadd.f32 0.0, %v7558
    %v7560 = vpop.f32.mrb[0].mxu0
    %v7561 = vpop.f32.mrb[0].mxu0
    %v7562 = vpop.f32.mrb[0].mxu0
    %7563 = vdwg.mxu0
    %v7565 = vsel %vm811, %v7241, 0
    %v7568 = vsel %vm911, %v6777, 0
    %7570 = vmatprep.subr.bf16.mxu0 0
    %7571 = vmatpush1.bf16.msra.mxu0 %v7568
    %7572 = vmatprep.subr.bf16.mxu0 0
    %7573 = vmatpush1.bf16.msra.mxu0 0
    %7574 = vmatprep.subr.bf16.mxu0 0
    %7575 = vmatpush1.bf16.msra.mxu0 0
    %7576 = vmatprep.subr.bf16.mxu0 0
    %7577 = vmatpush1.bf16.msra.mxu0 0
    %7578 = vmatprep.subr.bf16.mxu0 0
    %7579 = vmatpush1.bf16.msra.mxu0 0
    %7580 = vmatprep.subr.bf16.mxu0 0
    %7581 = vmatpush1.bf16.msra.mxu0 0
    %7582 = vmatprep.subr.bf16.mxu0 0
    %7583 = vmatpush1.bf16.msra.mxu0 0
    %7584 = vmatprep.subr.bf16.mxu0 0
    %7585 = vmatpush1.bf16.msra.mxu0 0
    %7586 = vmatprep.subr.bf16.mxu0 0
    %7587 = vmatpush1.bf16.msra.mxu0 0
    %7588 = vmatprep.subr.bf16.mxu0 0
    %7589 = vmatpush1.bf16.msra.mxu0 0
    %7590 = vmatprep.subr.bf16.mxu0 0
    %7591 = vmatpush1.bf16.msra.mxu0 0
    %7592 = vmatprep.subr.bf16.mxu0 0
    %7593 = vmatpush1.bf16.msra.mxu0 0
    %7594 = vmatprep.subr.bf16.mxu0 0
    %7595 = vmatpush1.bf16.msra.mxu0 0
    %7596 = vmatprep.subr.bf16.mxu0 0
    %7597 = vmatpush1.bf16.msra.mxu0 0
    %7598 = vmatprep.subr.bf16.mxu0 0
    %7599 = vmatpush1.bf16.msra.mxu0 0
    %7600 = vmatprep.subr.bf16.mxu0 0
    %7601 = vmatpush1.bf16.msra.mxu0 0
    %7602 = vmatprep.mubr.bf16.mxu0 0
    %7603 = vmatmul.mubr.bf16.gmra.mrb[0].mxu0 %v7565
    %v7604 = vpop.f32.mrb[0].mxu0
    %v7605 = vadd.f32 0.0, %v7604
    %v7606 = vpop.f32.mrb[0].mxu0
    %v7607 = vpop.f32.mrb[0].mxu0
    %v7608 = vpop.f32.mrb[0].mxu0
    %7609 = vdwg.mxu0
    %7612 = vrot.lane.b32.xlu0 %v7375, 32
    %v7613 = vpop.permute.xlu0 %7612
    %7614 = vrot.lane.b32.xlu0 %v7421, 32
    %v7615 = vpop.permute.xlu0 %7614
    %7620 = vrot.lane.b32.xlu0 %v7467, 64
    %v7621 = vpop.permute.xlu0 %7620
    %7622 = vrot.lane.b32.xlu0 %v7513, 64
    %v7623 = vpop.permute.xlu0 %7622
    %7628 = vrot.lane.b32.xlu0 %v7559, 96
    %v7629 = vpop.permute.xlu0 %7628
    %7630 = vrot.lane.b32.xlu0 %v7605, 96
    %v7631 = vpop.permute.xlu0 %7630
    %v7634 = vsel %vm442, %v7283, %v7613
    %v7635 = vsel %vm442, %v7329, %v7615
    %v7636 = vsel %vm1303, %v7634, %v7621
    %v7637 = vsel %vm1303, %v7635, %v7623
    %v7638 = vsel %vm1306, %v7636, %v7629
    %v7639 = vsel %vm1306, %v7637, %v7631
    %v7640 = vpack.c.bf16 %v7639, %v7638
    %s7641 = scalar_lea.vmem %s4, 192
    %v7642 = vld [vmem:[%s7641] sm:$0xf]
    %v7643 = vld [vmem:[%s7641 + $0x4] sm:$0xf]
    %v7644 = vld [vmem:[%s7641 + $0x8] sm:$0xf]
    %v7645 = vld [vmem:[%s7641 + $0xc] sm:$0xf]
    %v7646 = vld [vmem:[%s7641 + $0x10] sm:$0xf]
    %v7647 = vld [vmem:[%s7641 + $0x14] sm:$0xf]
    %v7648 = vld [vmem:[%s7641 + $0x18] sm:$0xf]
    %v7649 = vld [vmem:[%s7641 + $0x1c] sm:$0xf]
    %v7650 = vld [vmem:[%s7641 + $0x20] sm:$0xf]
    %v7651 = vld [vmem:[%s7641 + $0x24] sm:$0xf]
    %v7652 = vld [vmem:[%s7641 + $0x28] sm:$0xf]
    %v7653 = vld [vmem:[%s7641 + $0x2c] sm:$0xf]
    %v7654 = vld [vmem:[%s7641 + $0x30] sm:$0xf]
    %v7655 = vld [vmem:[%s7641 + $0x34] sm:$0xf]
    %v7656 = vld [vmem:[%s7641 + $0x38] sm:$0xf]
    %v7657 = vld [vmem:[%s7641 + $0x3c] sm:$0xf]
    %s7658 = scalar_lea.vmem %s5, 3
    %v7659 = vld [vmem:[%s7658] sm:$0x1]
    %v7661 = vlaneseq
    %v7662 = vshrl.u32 %v7661, 7
    %v7663 = vsub.s32 0, %v7662
    %v7664 = vrot.slane %v7659, %v7663
    %v7682 = vunpack.c.l.b16 %v7642
    %v7683 = vunpack.c.l.b16 %v7643
    %v7684 = vunpack.c.l.b16 %v7644
    %v7685 = vunpack.c.l.b16 %v7645
    %v7686 = vunpack.c.l.b16 %v7646
    %v7687 = vunpack.c.l.b16 %v7647
    %v7688 = vunpack.c.l.b16 %v7648
    %v7689 = vunpack.c.l.b16 %v7649
    %v7690 = vunpack.c.l.b16 %v7650
    %v7691 = vunpack.c.l.b16 %v7651
    %v7692 = vunpack.c.l.b16 %v7652
    %v7693 = vunpack.c.l.b16 %v7653
    %v7694 = vunpack.c.l.b16 %v7654
    %v7695 = vunpack.c.l.b16 %v7655
    %v7696 = vunpack.c.l.b16 %v7656
    %v7697 = vunpack.c.l.b16 %v7657
    %v7698 = vpack.c.b16 %v7683, %v7682
    %v7699 = vpack.c.b16 %v7685, %v7684
    %v7700 = vpack.c.b16 %v7687, %v7686
    %v7701 = vpack.c.b16 %v7689, %v7688
    %v7702 = vpack.c.b16 %v7691, %v7690
    %v7703 = vpack.c.b16 %v7693, %v7692
    %v7704 = vpack.c.b16 %v7695, %v7694
    %v7705 = vpack.c.b16 %v7697, %v7696
    %7714 = vmatprep.subr.bf16.mxu0 0
    %7715 = vmatpush1.bf16.msra.mxu0 %v7698
    %7716 = vmatprep.subr.bf16.mxu0 0
    %7717 = vmatpush1.bf16.msra.mxu0 %v7699
    %7718 = vmatprep.subr.bf16.mxu0 0
    %7719 = vmatpush1.bf16.msra.mxu0 %v7700
    %7720 = vmatprep.subr.bf16.mxu0 0
    %7721 = vmatpush1.bf16.msra.mxu0 %v7701
    %7722 = vmatprep.subr.bf16.mxu0 0
    %7723 = vmatpush1.bf16.msra.mxu0 %v7702
    %7724 = vmatprep.subr.bf16.mxu0 0
    %7725 = vmatpush1.bf16.msra.mxu0 %v7703
    %7726 = vmatprep.subr.bf16.mxu0 0
    %7727 = vmatpush1.bf16.msra.mxu0 %v7704
    %7728 = vmatprep.subr.bf16.mxu0 0
    %7729 = vmatpush1.bf16.msra.mxu0 %v7705
    %7730 = vmatprep.subr.bf16.mxu0 0
    %7731 = vmatpush1.bf16.msra.mxu0 0
    %7732 = vmatprep.subr.bf16.mxu0 0
    %7733 = vmatpush1.bf16.msra.mxu0 0
    %7734 = vmatprep.subr.bf16.mxu0 0
    %7735 = vmatpush1.bf16.msra.mxu0 0
    %7736 = vmatprep.subr.bf16.mxu0 0
    %7737 = vmatpush1.bf16.msra.mxu0 0
    %7738 = vmatprep.subr.bf16.mxu0 0
    %7739 = vmatpush1.bf16.msra.mxu0 0
    %7740 = vmatprep.subr.bf16.mxu0 0
    %7741 = vmatpush1.bf16.msra.mxu0 0
    %7742 = vmatprep.subr.bf16.mxu0 0
    %7743 = vmatpush1.bf16.msra.mxu0 0
    %7744 = vmatprep.subr.bf16.mxu0 0
    %7745 = vmatpush1.bf16.msra.mxu0 0
    %7746 = vmatprep.mubr.bf16.mxu0 0
    %7747 = vmatmul.mubr.bf16.gmra.mrb[0].mxu0 %v7640
    %v7748 = vpop.f32.mrb[0].mxu0
    %v7749 = vadd.f32 %v7664, %v7748
    %v7750 = vpop.f32.mrb[0].mxu0
    %v7751 = vpop.f32.mrb[0].mxu0
    %v7752 = vadd.f32 %v7664, %v7751
    %v7753 = vpop.f32.mrb[0].mxu0
    %7754 = vdwg.mxu0
    %v7755 = vadd.f32 %v6454, %v7749
    %v7756 = vadd.f32 %v6455, %v7752
    %s7757 = scalar_lea.vmem %s6, 3
    %v7758 = vld [vmem:[%s7757] sm:$0x1]
    %s7759 = scalar_lea.vmem %s7, 3
    %v7760 = vld [vmem:[%s7759] sm:$0x1]
    %7761 = vadd.xlane.f32.xlu0 %v7755
    %v7762 = vpop.xlane.xlu0 %7761
    %7763 = vadd.xlane.f32.xlu0 %v7756
    %v7764 = vpop.xlane.xlu0 %7763
    %v7765 = vmul.f32 %v7762, %v1430
    %v7766 = vmul.f32 %v7764, %v1430
    %v7767 = vsub.f32 %v7755, %v7765
    %v7768 = vsub.f32 %v7756, %v7766
    %v7769 = vmul.f32 %v7767, %v7767
    %v7770 = vmul.f32 %v7768, %v7768
    %7771 = vadd.xlane.f32.xlu0 %v7769
    %v7772 = vpop.xlane.xlu0 %7771
    %7773 = vadd.xlane.f32.xlu0 %v7770
    %v7774 = vpop.xlane.xlu0 %7773
    %v7775 = vmul.f32 %v7772, %v1430
    %v7776 = vmul.f32 %v7774, %v1430
    %v7777 = vadd.f32 %v7775, 1e-12
    %v7778 = vadd.f32 %v7776, 1e-12
    %v7779 = vrsqrt.pop %v7777
    %v7780 = vrsqrt.pop %v7778
    %v7781 = vmul.f32 %v7767, %v7779
    %v7782 = vmul.f32 %v7768, %v7780
    %v7784 = vlaneseq
    %v7785 = vshrl.u32 %v7784, 7
    %v7786 = vsub.s32 0, %v7785
    %v7787 = vrot.slane %v7758, %v7786
    %v7789 = vmul.f32 %v7781, %v7787
    %v7790 = vmul.f32 %v7782, %v7787
    %v7792 = vlaneseq
    %v7793 = vshrl.u32 %v7792, 7
    %v7794 = vsub.s32 0, %v7793
    %v7795 = vrot.slane %v7760, %v7794
    %v7797 = vadd.f32 %v7789, %v7795
    %v7798 = vadd.f32 %v7790, %v7795
    %v7799 = vpack.c.bf16 %v7798, %v7797
    %s7800 = scalar_lea.vmem [#allocation5], 768
    %v7801 = vld [vmem:[%s7800] sm:$0xff]
    %v7802 = vld [vmem:[%s7800 + $0x8] sm:$0xff]
    %v7803 = vld [vmem:[%s7800 + $0x10] sm:$0xff]
    %v7804 = vld [vmem:[%s7800 + $0x18] sm:$0xff]
    %v7805 = vld [vmem:[%s7800 + $0x20] sm:$0xff]
    %v7806 = vld [vmem:[%s7800 + $0x28] sm:$0xff]
    %v7807 = vld [vmem:[%s7800 + $0x30] sm:$0xff]
    %v7808 = vld [vmem:[%s7800 + $0x38] sm:$0xff]
    %v7809 = vld [vmem:[%s7800 + $0x40] sm:$0xff]
    %v7810 = vld [vmem:[%s7800 + $0x48] sm:$0xff]
    %v7811 = vld [vmem:[%s7800 + $0x50] sm:$0xff]
    %v7812 = vld [vmem:[%s7800 + $0x58] sm:$0xff]
    %v7813 = vld [vmem:[%s7800 + $0x60] sm:$0xff]
    %v7814 = vld [vmem:[%s7800 + $0x68] sm:$0xff]
    %v7815 = vld [vmem:[%s7800 + $0x70] sm:$0xff]
    %v7816 = vld [vmem:[%s7800 + $0x78] sm:$0xff]
    %v7817 = vld [vmem:[%s7800 + $0x80] sm:$0xff]
    %v7818 = vld [vmem:[%s7800 + $0x88] sm:$0xff]
    %v7819 = vld [vmem:[%s7800 + $0x90] sm:$0xff]
    %v7820 = vld [vmem:[%s7800 + $0x98] sm:$0xff]
    %v7821 = vld [vmem:[%s7800 + $0xa0] sm:$0xff]
    %v7822 = vld [vmem:[%s7800 + $0xa8] sm:$0xff]
    %v7823 = vld [vmem:[%s7800 + $0xb0] sm:$0xff]
    %v7824 = vld [vmem:[%s7800 + $0xb8] sm:$0xff]
    %v7825 = vld [vmem:[%s7800 + $0xc0] sm:$0xff]
    %v7826 = vld [vmem:[%s7800 + $0xc8] sm:$0xff]
    %v7827 = vld [vmem:[%s7800 + $0xd0] sm:$0xff]
    %v7828 = vld [vmem:[%s7800 + $0xd8] sm:$0xff]
    %v7829 = vld [vmem:[%s7800 + $0xe0] sm:$0xff]
    %v7830 = vld [vmem:[%s7800 + $0xe8] sm:$0xff]
    %v7831 = vld [vmem:[%s7800 + $0xf0] sm:$0xff]
    %v7832 = vld [vmem:[%s7800 + $0xf8] sm:$0xff]
    %s7833 = scalar_lea.vmem %s9, 12
    %v7834 = vld [vmem:[%s7833] sm:$0xf]
    %v7836 = vlaneseq
    %v7837 = vshrl.u32 %v7836, 7
    %v7838 = vsub.s32 0, %v7837
    %v7839 = vrot.slane %v7834, %v7838
    %v7840 = vlaneseq
    %v7841 = vshrl.u32 %v7840, 7
    %v7842 = vsub.s32 1, %v7841
    %v7843 = vrot.slane %v7834, %v7842
    %v7844 = vlaneseq
    %v7845 = vshrl.u32 %v7844, 7
    %v7846 = vsub.s32 2, %v7845
    %v7847 = vrot.slane %v7834, %v7846
    %v7848 = vlaneseq
    %v7849 = vshrl.u32 %v7848, 7
    %v7850 = vsub.s32 3, %v7849
    %v7851 = vrot.slane %v7834, %v7850
    %v7888 = vunpack.c.l.b16 %v7801
    %v7889 = vunpack.c.h.b16 %v7801
    %v7890 = vunpack.c.l.b16 %v7802
    %v7891 = vunpack.c.h.b16 %v7802
    %v7892 = vunpack.c.l.b16 %v7803
    %v7893 = vunpack.c.h.b16 %v7803
    %v7894 = vunpack.c.l.b16 %v7804
    %v7895 = vunpack.c.h.b16 %v7804
    %v7896 = vunpack.c.l.b16 %v7805
    %v7897 = vunpack.c.h.b16 %v7805
    %v7898 = vunpack.c.l.b16 %v7806
    %v7899 = vunpack.c.h.b16 %v7806
    %v7900 = vunpack.c.l.b16 %v7807
    %v7901 = vunpack.c.h.b16 %v7807
    %v7902 = vunpack.c.l.b16 %v7808
    %v7903 = vunpack.c.h.b16 %v7808
    %v7904 = vunpack.c.l.b16 %v7809
    %v7905 = vunpack.c.h.b16 %v7809
    %v7906 = vunpack.c.l.b16 %v7810
    %v7907 = vunpack.c.h.b16 %v7810
    %v7908 = vunpack.c.l.b16 %v7811
    %v7909 = vunpack.c.h.b16 %v7811
    %v7910 = vunpack.c.l.b16 %v7812
    %v7911 = vunpack.c.h.b16 %v7812
    %v7912 = vunpack.c.l.b16 %v7813
    %v7913 = vunpack.c.h.b16 %v7813
    %v7914 = vunpack.c.l.b16 %v7814
    %v7915 = vunpack.c.h.b16 %v7814
    %v7916 = vunpack.c.l.b16 %v7815
    %v7917 = vunpack.c.h.b16 %v7815
    %v7918 = vunpack.c.l.b16 %v7816
    %v7919 = vunpack.c.h.b16 %v7816
    %v7920 = vunpack.c.l.b16 %v7817
    %v7921 = vunpack.c.h.b16 %v7817
    %v7922 = vunpack.c.l.b16 %v7818
    %v7923 = vunpack.c.h.b16 %v7818
    %v7924 = vunpack.c.l.b16 %v7819
    %v7925 = vunpack.c.h.b16 %v7819
    %v7926 = vunpack.c.l.b16 %v7820
    %v7927 = vunpack.c.h.b16 %v7820
    %v7928 = vunpack.c.l.b16 %v7821
    %v7929 = vunpack.c.h.b16 %v7821
    %v7930 = vunpack.c.l.b16 %v7822
    %v7931 = vunpack.c.h.b16 %v7822
    %v7932 = vunpack.c.l.b16 %v7823
    %v7933 = vunpack.c.h.b16 %v7823
    %v7934 = vunpack.c.l.b16 %v7824
    %v7935 = vunpack.c.h.b16 %v7824
    %v7936 = vunpack.c.l.b16 %v7825
    %v7937 = vunpack.c.h.b16 %v7825
    %v7938 = vunpack.c.l.b16 %v7826
    %v7939 = vunpack.c.h.b16 %v7826
    %v7940 = vunpack.c.l.b16 %v7827
    %v7941 = vunpack.c.h.b16 %v7827
    %v7942 = vunpack.c.l.b16 %v7828
    %v7943 = vunpack.c.h.b16 %v7828
    %v7944 = vunpack.c.l.b16 %v7829
    %v7945 = vunpack.c.h.b16 %v7829
    %v7946 = vunpack.c.l.b16 %v7830
    %v7947 = vunpack.c.h.b16 %v7830
    %v7948 = vunpack.c.l.b16 %v7831
    %v7949 = vunpack.c.h.b16 %v7831
    %v7950 = vunpack.c.l.b16 %v7832
    %v7951 = vunpack.c.h.b16 %v7832
    %v7952 = vpack.c.b16 %v7892, %v7888
    %v7953 = vpack.c.b16 %v7893, %v7889
    %v7954 = vpack.c.b16 %v7894, %v7890
    %v7955 = vpack.c.b16 %v7895, %v7891
    %v7956 = vpack.c.b16 %v7900, %v7896
    %v7957 = vpack.c.b16 %v7901, %v7897
    %v7958 = vpack.c.b16 %v7902, %v7898
    %v7959 = vpack.c.b16 %v7903, %v7899
    %v7960 = vpack.c.b16 %v7908, %v7904
    %v7961 = vpack.c.b16 %v7909, %v7905
    %v7962 = vpack.c.b16 %v7910, %v7906
    %v7963 = vpack.c.b16 %v7911, %v7907
    %v7964 = vpack.c.b16 %v7916, %v7912
    %v7965 = vpack.c.b16 %v7917, %v7913
    %v7966 = vpack.c.b16 %v7918, %v7914
    %v7967 = vpack.c.b16 %v7919, %v7915
    %v7968 = vpack.c.b16 %v7924, %v7920
    %v7969 = vpack.c.b16 %v7925, %v7921
    %v7970 = vpack.c.b16 %v7926, %v7922
    %v7971 = vpack.c.b16 %v7927, %v7923
    %v7972 = vpack.c.b16 %v7932, %v7928
    %v7973 = vpack.c.b16 %v7933, %v7929
    %v7974 = vpack.c.b16 %v7934, %v7930
    %v7975 = vpack.c.b16 %v7935, %v7931
    %v7976 = vpack.c.b16 %v7940, %v7936
    %v7977 = vpack.c.b16 %v7941, %v7937
    %v7978 = vpack.c.b16 %v7942, %v7938
    %v7979 = vpack.c.b16 %v7943, %v7939
    %v7980 = vpack.c.b16 %v7948, %v7944
    %v7981 = vpack.c.b16 %v7949, %v7945
    %v7982 = vpack.c.b16 %v7950, %v7946
    %v7983 = vpack.c.b16 %v7951, %v7947
    %8016 = vmatprep.subr.bf16.mxu0 %v7953
    %8017 = vmatpush1.bf16.msra.mxu0 %v7952
    %8018 = vmatprep.subr.bf16.mxu0 %v7957
    %8019 = vmatpush1.bf16.msra.mxu0 %v7956
    %8020 = vmatprep.subr.bf16.mxu0 %v7961
    %8021 = vmatpush1.bf16.msra.mxu0 %v7960
    %8022 = vmatprep.subr.bf16.mxu0 %v7965
    %8023 = vmatpush1.bf16.msra.mxu0 %v7964
    %8024 = vmatprep.subr.bf16.mxu0 %v7969
    %8025 = vmatpush1.bf16.msra.mxu0 %v7968
    %8026 = vmatprep.subr.bf16.mxu0 %v7973
    %8027 = vmatpush1.bf16.msra.mxu0 %v7972
    %8028 = vmatprep.subr.bf16.mxu0 %v7977
    %8029 = vmatpush1.bf16.msra.mxu0 %v7976
    %8030 = vmatprep.subr.bf16.mxu0 %v7981
    %8031 = vmatpush1.bf16.msra.mxu0 %v7980
    %8032 = vmatprep.subr.bf16.mxu0 0
    %8033 = vmatpush1.bf16.msra.mxu0 0
    %8034 = vmatprep.subr.bf16.mxu0 0
    %8035 = vmatpush1.bf16.msra.mxu0 0
    %8036 = vmatprep.subr.bf16.mxu0 0
    %8037 = vmatpush1.bf16.msra.mxu0 0
    %8038 = vmatprep.subr.bf16.mxu0 0
    %8039 = vmatpush1.bf16.msra.mxu0 0
    %8040 = vmatprep.subr.bf16.mxu0 0
    %8041 = vmatpush1.bf16.msra.mxu0 0
    %8042 = vmatprep.subr.bf16.mxu0 0
    %8043 = vmatpush1.bf16.msra.mxu0 0
    %8044 = vmatprep.subr.bf16.mxu0 0
    %8045 = vmatpush1.bf16.msra.mxu0 0
    %8046 = vmatprep.subr.bf16.mxu0 0
    %8047 = vmatpush1.bf16.msra.mxu0 0
    %8048 = vmatprep.mubr.bf16.mxu0 0
    %8049 = vmatmul.mubr.bf16.gmra.mrb[0].mxu0 %v7799
    %v8050 = vpop.f32.mrb[0].mxu0
    %v8051 = vadd.f32 %v7839, %v8050
    %v8052 = vpop.f32.mrb[0].mxu0
    %v8053 = vadd.f32 %v7843, %v8052
    %v8054 = vpop.f32.mrb[0].mxu0
    %v8055 = vadd.f32 %v7839, %v8054
    %v8056 = vpop.f32.mrb[0].mxu0
    %v8057 = vadd.f32 %v7843, %v8056
    %8058 = vdwg.mxu0
    %8059 = vmatprep.subr.bf16.mxu0 %v7955
    %8060 = vmatpush1.bf16.msra.mxu0 %v7954
    %8061 = vmatprep.subr.bf16.mxu0 %v7959
    %8062 = vmatpush1.bf16.msra.mxu0 %v7958
    %8063 = vmatprep.subr.bf16.mxu0 %v7963
    %8064 = vmatpush1.bf16.msra.mxu0 %v7962
    %8065 = vmatprep.subr.bf16.mxu0 %v7967
    %8066 = vmatpush1.bf16.msra.mxu0 %v7966
    %8067 = vmatprep.subr.bf16.mxu0 %v7971
    %8068 = vmatpush1.bf16.msra.mxu0 %v7970
    %8069 = vmatprep.subr.bf16.mxu0 %v7975
    %8070 = vmatpush1.bf16.msra.mxu0 %v7974
    %8071 = vmatprep.subr.bf16.mxu0 %v7979
    %8072 = vmatpush1.bf16.msra.mxu0 %v7978
    %8073 = vmatprep.subr.bf16.mxu0 %v7983
    %8074 = vmatpush1.bf16.msra.mxu0 %v7982
    %8075 = vmatprep.subr.bf16.mxu0 0
    %8076 = vmatpush1.bf16.msra.mxu0 0
    %8077 = vmatprep.subr.bf16.mxu0 0
    %8078 = vmatpush1.bf16.msra.mxu0 0
    %8079 = vmatprep.subr.bf16.mxu0 0
    %8080 = vmatpush1.bf16.msra.mxu0 0
    %8081 = vmatprep.subr.bf16.mxu0 0
    %8082 = vmatpush1.bf16.msra.mxu0 0
    %8083 = vmatprep.subr.bf16.mxu0 0
    %8084 = vmatpush1.bf16.msra.mxu0 0
    %8085 = vmatprep.subr.bf16.mxu0 0
    %8086 = vmatpush1.bf16.msra.mxu0 0
    %8087 = vmatprep.subr.bf16.mxu0 0
    %8088 = vmatpush1.bf16.msra.mxu0 0
    %8089 = vmatprep.subr.bf16.mxu0 0
    %8090 = vmatpush1.bf16.msra.mxu0 0
    %8091 = vmatprep.mubr.bf16.mxu0 0
    %8092 = vmatmul.mubr.bf16.gmra.mrb[0].mxu0 %v7799
    %v8093 = vpop.f32.mrb[0].mxu0
    %v8094 = vadd.f32 %v7847, %v8093
    %v8095 = vpop.f32.mrb[0].mxu0
    %v8096 = vadd.f32 %v7851, %v8095
    %v8097 = vpop.f32.mrb[0].mxu0
    %v8098 = vadd.f32 %v7847, %v8097
    %v8099 = vpop.f32.mrb[0].mxu0
    %v8100 = vadd.f32 %v7851, %v8099
    %8101 = vdwg.mxu0
    %v8102 = vmul.f32 %v8051, 0.5
    %v8103 = vmul.f32 %v8053, 0.5
    %v8104 = vmul.f32 %v8094, 0.5
    %v8105 = vmul.f32 %v8096, 0.5
    %v8106 = vmul.f32 %v8055, 0.5
    %v8107 = vmul.f32 %v8057, 0.5
    %v8108 = vmul.f32 %v8098, 0.5
    %v8109 = vmul.f32 %v8100, 0.5
    %v8110 = vmul.f32 %v8051, 0.044715
    %v8111 = vmul.f32 %v8053, 0.044715
    %v8112 = vmul.f32 %v8094, 0.044715
    %v8113 = vmul.f32 %v8096, 0.044715
    %v8114 = vmul.f32 %v8055, 0.044715
    %v8115 = vmul.f32 %v8057, 0.044715
    %v8116 = vmul.f32 %v8098, 0.044715
    %v8117 = vmul.f32 %v8100, 0.044715
    %v8118 = vmul.f32 %v8110, %v8051
    %v8119 = vmul.f32 %v8111, %v8053
    %v8120 = vmul.f32 %v8112, %v8094
    %v8121 = vmul.f32 %v8113, %v8096
    %v8122 = vmul.f32 %v8114, %v8055
    %v8123 = vmul.f32 %v8115, %v8057
    %v8124 = vmul.f32 %v8116, %v8098
    %v8125 = vmul.f32 %v8117, %v8100
    %v8126 = vmul.f32 %v8118, %v8051
    %v8127 = vmul.f32 %v8119, %v8053
    %v8128 = vmul.f32 %v8120, %v8094
    %v8129 = vmul.f32 %v8121, %v8096
    %v8130 = vmul.f32 %v8122, %v8055
    %v8131 = vmul.f32 %v8123, %v8057
    %v8132 = vmul.f32 %v8124, %v8098
    %v8133 = vmul.f32 %v8125, %v8100
    %v8134 = vadd.f32 %v8051, %v8126
    %v8135 = vadd.f32 %v8053, %v8127
    %v8136 = vadd.f32 %v8094, %v8128
    %v8137 = vadd.f32 %v8096, %v8129
    %v8138 = vadd.f32 %v8055, %v8130
    %v8139 = vadd.f32 %v8057, %v8131
    %v8140 = vadd.f32 %v8098, %v8132
    %v8141 = vadd.f32 %v8100, %v8133
    %v8142 = vmul.f32 %v8134, 0.7978846
    %v8143 = vmul.f32 %v8135, 0.7978846
    %v8144 = vmul.f32 %v8136, 0.7978846
    %v8145 = vmul.f32 %v8137, 0.7978846
    %v8146 = vmul.f32 %v8138, 0.7978846
    %v8147 = vmul.f32 %v8139, 0.7978846
    %v8148 = vmul.f32 %v8140, 0.7978846
    %v8149 = vmul.f32 %v8141, 0.7978846
    %v8150 = vtanh.pop %v8142
    %v8151 = vtanh.pop %v8143
    %v8152 = vtanh.pop %v8144
    %v8153 = vtanh.pop %v8145
    %v8154 = vtanh.pop %v8146
    %v8155 = vtanh.pop %v8147
    %v8156 = vtanh.pop %v8148
    %v8157 = vtanh.pop %v8149
    %v8158 = vadd.f32 %v8150, 1.0
    %v8159 = vadd.f32 %v8151, 1.0
    %v8160 = vadd.f32 %v8152, 1.0
    %v8161 = vadd.f32 %v8153, 1.0
    %v8162 = vadd.f32 %v8154, 1.0
    %v8163 = vadd.f32 %v8155, 1.0
    %v8164 = vadd.f32 %v8156, 1.0
    %v8165 = vadd.f32 %v8157, 1.0
    %v8166 = vmul.f32 %v8102, %v8158
    %v8167 = vmul.f32 %v8103, %v8159
    %v8168 = vmul.f32 %v8104, %v8160
    %v8169 = vmul.f32 %v8105, %v8161
    %v8170 = vmul.f32 %v8106, %v8162
    %v8171 = vmul.f32 %v8107, %v8163
    %v8172 = vmul.f32 %v8108, %v8164
    %v8173 = vmul.f32 %v8109, %v8165
    %v8174 = vpack.c.bf16 %v8170, %v8166
    %v8175 = vpack.c.bf16 %v8171, %v8167
    %v8176 = vpack.c.bf16 %v8172, %v8168
    %v8177 = vpack.c.bf16 %v8173, %v8169
    %s8178 = scalar_lea.vmem [#allocation7], 768
    %v8179 = vld [vmem:[%s8178] sm:$0xf]
    %v8180 = vld [vmem:[%s8178 + $0x4] sm:$0xf]
    %v8181 = vld [vmem:[%s8178 + $0x8] sm:$0xf]
    %v8182 = vld [vmem:[%s8178 + $0xc] sm:$0xf]
    %v8183 = vld [vmem:[%s8178 + $0x10] sm:$0xf]
    %v8184 = vld [vmem:[%s8178 + $0x14] sm:$0xf]
    %v8185 = vld [vmem:[%s8178 + $0x18] sm:$0xf]
    %v8186 = vld [vmem:[%s8178 + $0x1c] sm:$0xf]
    %v8187 = vld [vmem:[%s8178 + $0x20] sm:$0xf]
    %v8188 = vld [vmem:[%s8178 + $0x24] sm:$0xf]
    %v8189 = vld [vmem:[%s8178 + $0x28] sm:$0xf]
    %v8190 = vld [vmem:[%s8178 + $0x2c] sm:$0xf]
    %v8191 = vld [vmem:[%s8178 + $0x30] sm:$0xf]
    %v8192 = vld [vmem:[%s8178 + $0x34] sm:$0xf]
    %v8193 = vld [vmem:[%s8178 + $0x38] sm:$0xf]
    %v8194 = vld [vmem:[%s8178 + $0x3c] sm:$0xf]
    %v8195 = vld [vmem:[%s8178 + $0x40] sm:$0xf]
    %v8196 = vld [vmem:[%s8178 + $0x44] sm:$0xf]
    %v8197 = vld [vmem:[%s8178 + $0x48] sm:$0xf]
    %v8198 = vld [vmem:[%s8178 + $0x4c] sm:$0xf]
    %v8199 = vld [vmem:[%s8178 + $0x50] sm:$0xf]
    %v8200 = vld [vmem:[%s8178 + $0x54] sm:$0xf]
    %v8201 = vld [vmem:[%s8178 + $0x58] sm:$0xf]
    %v8202 = vld [vmem:[%s8178 + $0x5c] sm:$0xf]
    %v8203 = vld [vmem:[%s8178 + $0x60] sm:$0xf]
    %v8204 = vld [vmem:[%s8178 + $0x64] sm:$0xf]
    %v8205 = vld [vmem:[%s8178 + $0x68] sm:$0xf]
    %v8206 = vld [vmem:[%s8178 + $0x6c] sm:$0xf]
    %v8207 = vld [vmem:[%s8178 + $0x70] sm:$0xf]
    %v8208 = vld [vmem:[%s8178 + $0x74] sm:$0xf]
    %v8209 = vld [vmem:[%s8178 + $0x78] sm:$0xf]
    %v8210 = vld [vmem:[%s8178 + $0x7c] sm:$0xf]
    %v8211 = vld [vmem:[%s8178 + $0x80] sm:$0xf]
    %v8212 = vld [vmem:[%s8178 + $0x84] sm:$0xf]
    %v8213 = vld [vmem:[%s8178 + $0x88] sm:$0xf]
    %v8214 = vld [vmem:[%s8178 + $0x8c] sm:$0xf]
    %v8215 = vld [vmem:[%s8178 + $0x90] sm:$0xf]
    %v8216 = vld [vmem:[%s8178 + $0x94] sm:$0xf]
    %v8217 = vld [vmem:[%s8178 + $0x98] sm:$0xf]
    %v8218 = vld [vmem:[%s8178 + $0x9c] sm:$0xf]
    %v8219 = vld [vmem:[%s8178 + $0xa0] sm:$0xf]
    %v8220 = vld [vmem:[%s8178 + $0xa4] sm:$0xf]
    %v8221 = vld [vmem:[%s8178 + $0xa8] sm:$0xf]
    %v8222 = vld [vmem:[%s8178 + $0xac] sm:$0xf]
    %v8223 = vld [vmem:[%s8178 + $0xb0] sm:$0xf]
    %v8224 = vld [vmem:[%s8178 + $0xb4] sm:$0xf]
    %v8225 = vld [vmem:[%s8178 + $0xb8] sm:$0xf]
    %v8226 = vld [vmem:[%s8178 + $0xbc] sm:$0xf]
    %v8227 = vld [vmem:[%s8178 + $0xc0] sm:$0xf]
    %v8228 = vld [vmem:[%s8178 + $0xc4] sm:$0xf]
    %v8229 = vld [vmem:[%s8178 + $0xc8] sm:$0xf]
    %v8230 = vld [vmem:[%s8178 + $0xcc] sm:$0xf]
    %v8231 = vld [vmem:[%s8178 + $0xd0] sm:$0xf]
    %v8232 = vld [vmem:[%s8178 + $0xd4] sm:$0xf]
    %v8233 = vld [vmem:[%s8178 + $0xd8] sm:$0xf]
    %v8234 = vld [vmem:[%s8178 + $0xdc] sm:$0xf]
    %v8235 = vld [vmem:[%s8178 + $0xe0] sm:$0xf]
    %v8236 = vld [vmem:[%s8178 + $0xe4] sm:$0xf]
    %v8237 = vld [vmem:[%s8178 + $0xe8] sm:$0xf]
    %v8238 = vld [vmem:[%s8178 + $0xec] sm:$0xf]
    %v8239 = vld [vmem:[%s8178 + $0xf0] sm:$0xf]
    %v8240 = vld [vmem:[%s8178 + $0xf4] sm:$0xf]
    %v8241 = vld [vmem:[%s8178 + $0xf8] sm:$0xf]
    %v8242 = vld [vmem:[%s8178 + $0xfc] sm:$0xf]
    %s8243 = scalar_lea.vmem %s11, 3
    %v8244 = vld [vmem:[%s8243] sm:$0x1]
    %v8246 = vlaneseq
    %v8247 = vshrl.u32 %v8246, 7
    %v8248 = vsub.s32 0, %v8247
    %v8249 = vrot.slane %v8244, %v8248
    %v8315 = vunpack.c.l.b16 %v8179
    %v8316 = vunpack.c.l.b16 %v8180
    %v8317 = vunpack.c.l.b16 %v8181
    %v8318 = vunpack.c.l.b16 %v8182
    %v8319 = vunpack.c.l.b16 %v8183
    %v8320 = vunpack.c.l.b16 %v8184
    %v8321 = vunpack.c.l.b16 %v8185
    %v8322 = vunpack.c.l.b16 %v8186
    %v8323 = vunpack.c.l.b16 %v8187
    %v8324 = vunpack.c.l.b16 %v8188
    %v8325 = vunpack.c.l.b16 %v8189
    %v8326 = vunpack.c.l.b16 %v8190
    %v8327 = vunpack.c.l.b16 %v8191
    %v8328 = vunpack.c.l.b16 %v8192
    %v8329 = vunpack.c.l.b16 %v8193
    %v8330 = vunpack.c.l.b16 %v8194
    %v8331 = vunpack.c.l.b16 %v8195
    %v8332 = vunpack.c.l.b16 %v8196
    %v8333 = vunpack.c.l.b16 %v8197
    %v8334 = vunpack.c.l.b16 %v8198
    %v8335 = vunpack.c.l.b16 %v8199
    %v8336 = vunpack.c.l.b16 %v8200
    %v8337 = vunpack.c.l.b16 %v8201
    %v8338 = vunpack.c.l.b16 %v8202
    %v8339 = vunpack.c.l.b16 %v8203
    %v8340 = vunpack.c.l.b16 %v8204
    %v8341 = vunpack.c.l.b16 %v8205
    %v8342 = vunpack.c.l.b16 %v8206
    %v8343 = vunpack.c.l.b16 %v8207
    %v8344 = vunpack.c.l.b16 %v8208
    %v8345 = vunpack.c.l.b16 %v8209
    %v8346 = vunpack.c.l.b16 %v8210
    %v8347 = vunpack.c.l.b16 %v8211
    %v8348 = vunpack.c.l.b16 %v8212
    %v8349 = vunpack.c.l.b16 %v8213
    %v8350 = vunpack.c.l.b16 %v8214
    %v8351 = vunpack.c.l.b16 %v8215
    %v8352 = vunpack.c.l.b16 %v8216
    %v8353 = vunpack.c.l.b16 %v8217
    %v8354 = vunpack.c.l.b16 %v8218
    %v8355 = vunpack.c.l.b16 %v8219
    %v8356 = vunpack.c.l.b16 %v8220
    %v8357 = vunpack.c.l.b16 %v8221
    %v8358 = vunpack.c.l.b16 %v8222
    %v8359 = vunpack.c.l.b16 %v8223
    %v8360 = vunpack.c.l.b16 %v8224
    %v8361 = vunpack.c.l.b16 %v8225
    %v8362 = vunpack.c.l.b16 %v8226
    %v8363 = vunpack.c.l.b16 %v8227
    %v8364 = vunpack.c.l.b16 %v8228
    %v8365 = vunpack.c.l.b16 %v8229
    %v8366 = vunpack.c.l.b16 %v8230
    %v8367 = vunpack.c.l.b16 %v8231
    %v8368 = vunpack.c.l.b16 %v8232
    %v8369 = vunpack.c.l.b16 %v8233
    %v8370 = vunpack.c.l.b16 %v8234
    %v8371 = vunpack.c.l.b16 %v8235
    %v8372 = vunpack.c.l.b16 %v8236
    %v8373 = vunpack.c.l.b16 %v8237
    %v8374 = vunpack.c.l.b16 %v8238
    %v8375 = vunpack.c.l.b16 %v8239
    %v8376 = vunpack.c.l.b16 %v8240
    %v8377 = vunpack.c.l.b16 %v8241
    %v8378 = vunpack.c.l.b16 %v8242
    %v8379 = vpack.c.b16 %v8316, %v8315
    %v8380 = vpack.c.b16 %v8318, %v8317
    %v8381 = vpack.c.b16 %v8320, %v8319
    %v8382 = vpack.c.b16 %v8322, %v8321
    %v8383 = vpack.c.b16 %v8324, %v8323
    %v8384 = vpack.c.b16 %v8326, %v8325
    %v8385 = vpack.c.b16 %v8328, %v8327
    %v8386 = vpack.c.b16 %v8330, %v8329
    %v8387 = vpack.c.b16 %v8332, %v8331
    %v8388 = vpack.c.b16 %v8334, %v8333
    %v8389 = vpack.c.b16 %v8336, %v8335
    %v8390 = vpack.c.b16 %v8338, %v8337
    %v8391 = vpack.c.b16 %v8340, %v8339
    %v8392 = vpack.c.b16 %v8342, %v8341
    %v8393 = vpack.c.b16 %v8344, %v8343
    %v8394 = vpack.c.b16 %v8346, %v8345
    %v8395 = vpack.c.b16 %v8348, %v8347
    %v8396 = vpack.c.b16 %v8350, %v8349
    %v8397 = vpack.c.b16 %v8352, %v8351
    %v8398 = vpack.c.b16 %v8354, %v8353
    %v8399 = vpack.c.b16 %v8356, %v8355
    %v8400 = vpack.c.b16 %v8358, %v8357
    %v8401 = vpack.c.b16 %v8360, %v8359
    %v8402 = vpack.c.b16 %v8362, %v8361
    %v8403 = vpack.c.b16 %v8364, %v8363
    %v8404 = vpack.c.b16 %v8366, %v8365
    %v8405 = vpack.c.b16 %v8368, %v8367
    %v8406 = vpack.c.b16 %v8370, %v8369
    %v8407 = vpack.c.b16 %v8372, %v8371
    %v8408 = vpack.c.b16 %v8374, %v8373
    %v8409 = vpack.c.b16 %v8376, %v8375
    %v8410 = vpack.c.b16 %v8378, %v8377
    %8443 = vmatprep.subr.bf16.mxu0 0
    %8444 = vmatpush1.bf16.msra.mxu0 %v8379
    %8445 = vmatprep.subr.bf16.mxu0 0
    %8446 = vmatpush1.bf16.msra.mxu0 %v8380
    %8447 = vmatprep.subr.bf16.mxu0 0
    %8448 = vmatpush1.bf16.msra.mxu0 %v8381
    %8449 = vmatprep.subr.bf16.mxu0 0
    %8450 = vmatpush1.bf16.msra.mxu0 %v8382
    %8451 = vmatprep.subr.bf16.mxu0 0
    %8452 = vmatpush1.bf16.msra.mxu0 %v8383
    %8453 = vmatprep.subr.bf16.mxu0 0
    %8454 = vmatpush1.bf16.msra.mxu0 %v8384
    %8455 = vmatprep.subr.bf16.mxu0 0
    %8456 = vmatpush1.bf16.msra.mxu0 %v8385
    %8457 = vmatprep.subr.bf16.mxu0 0
    %8458 = vmatpush1.bf16.msra.mxu0 %v8386
    %8459 = vmatprep.subr.bf16.mxu0 0
    %8460 = vmatpush1.bf16.msra.mxu0 %v8387
    %8461 = vmatprep.subr.bf16.mxu0 0
    %8462 = vmatpush1.bf16.msra.mxu0 %v8388
    %8463 = vmatprep.subr.bf16.mxu0 0
    %8464 = vmatpush1.bf16.msra.mxu0 %v8389
    %8465 = vmatprep.subr.bf16.mxu0 0
    %8466 = vmatpush1.bf16.msra.mxu0 %v8390
    %8467 = vmatprep.subr.bf16.mxu0 0
    %8468 = vmatpush1.bf16.msra.mxu0 %v8391
    %8469 = vmatprep.subr.bf16.mxu0 0
    %8470 = vmatpush1.bf16.msra.mxu0 %v8392
    %8471 = vmatprep.subr.bf16.mxu0 0
    %8472 = vmatpush1.bf16.msra.mxu0 %v8393
    %8473 = vmatprep.subr.bf16.mxu0 0
    %8474 = vmatpush1.bf16.msra.mxu0 %v8394
    %8475 = vmatprep.mubr.bf16.mxu0 %v8175
    %8476 = vmatmul.mubr.bf16.gmra.mrb[0].mxu0 %v8174
    %v8477 = vpop.f32.mrb[0].mxu0
    %v8478 = vadd.f32 %v8249, %v8477
    %v8479 = vpop.f32.mrb[0].mxu0
    %v8480 = vpop.f32.mrb[0].mxu0
    %v8481 = vadd.f32 %v8249, %v8480
    %v8482 = vpop.f32.mrb[0].mxu0
    %8483 = vdwg.mxu0
    %8484 = vmatprep.subr.bf16.mxu0 0
    %8485 = vmatpush1.bf16.msra.mxu0 %v8395
    %8486 = vmatprep.subr.bf16.mxu0 0
    %8487 = vmatpush1.bf16.msra.mxu0 %v8396
    %8488 = vmatprep.subr.bf16.mxu0 0
    %8489 = vmatpush1.bf16.msra.mxu0 %v8397
    %8490 = vmatprep.subr.bf16.mxu0 0
    %8491 = vmatpush1.bf16.msra.mxu0 %v8398
    %8492 = vmatprep.subr.bf16.mxu0 0
    %8493 = vmatpush1.bf16.msra.mxu0 %v8399
    %8494 = vmatprep.subr.bf16.mxu0 0
    %8495 = vmatpush1.bf16.msra.mxu0 %v8400
    %8496 = vmatprep.subr.bf16.mxu0 0
    %8497 = vmatpush1.bf16.msra.mxu0 %v8401
    %8498 = vmatprep.subr.bf16.mxu0 0
    %8499 = vmatpush1.bf16.msra.mxu0 %v8402
    %8500 = vmatprep.subr.bf16.mxu0 0
    %8501 = vmatpush1.bf16.msra.mxu0 %v8403
    %8502 = vmatprep.subr.bf16.mxu0 0
    %8503 = vmatpush1.bf16.msra.mxu0 %v8404
    %8504 = vmatprep.subr.bf16.mxu0 0
    %8505 = vmatpush1.bf16.msra.mxu0 %v8405
    %8506 = vmatprep.subr.bf16.mxu0 0
    %8507 = vmatpush1.bf16.msra.mxu0 %v8406
    %8508 = vmatprep.subr.bf16.mxu0 0
    %8509 = vmatpush1.bf16.msra.mxu0 %v8407
    %8510 = vmatprep.subr.bf16.mxu0 0
    %8511 = vmatpush1.bf16.msra.mxu0 %v8408
    %8512 = vmatprep.subr.bf16.mxu0 0
    %8513 = vmatpush1.bf16.msra.mxu0 %v8409
    %8514 = vmatprep.subr.bf16.mxu0 0
    %8515 = vmatpush1.bf16.msra.mxu0 %v8410
    %8516 = vmatprep.mubr.bf16.mxu0 %v8177
    %8517 = vmatmul.mubr.bf16.gmra.mrb[0].mxu0 %v8176
    %v8518 = vpop.f32.mrb[0].mxu0
    %v8519 = vadd.f32 %v8478, %v8518
    %v8520 = vpop.f32.mrb[0].mxu0
    %v8521 = vpop.f32.mrb[0].mxu0
    %v8522 = vadd.f32 %v8481, %v8521
    %v8523 = vpop.f32.mrb[0].mxu0
    %8524 = vdwg.mxu0
    %v8525 = vadd.f32 %v7797, %v8519
    %v8526 = vadd.f32 %v7798, %v8522
    %s8527 = scalar_lea.vmem %s12, 3
    %v8528 = vld [vmem:[%s8527] sm:$0x1]
    %s8529 = scalar_lea.vmem %s13, 3
    %v8530 = vld [vmem:[%s8529] sm:$0x1]
    %8531 = vadd.xlane.f32.xlu0 %v8525
    %v8532 = vpop.xlane.xlu0 %8531
    %8533 = vadd.xlane.f32.xlu0 %v8526
    %v8534 = vpop.xlane.xlu0 %8533
    %v8535 = vmul.f32 %v8532, %v1430
    %v8536 = vmul.f32 %v8534, %v1430
    %v8537 = vsub.f32 %v8525, %v8535
    %v8538 = vsub.f32 %v8526, %v8536
    %v8539 = vmul.f32 %v8537, %v8537
    %v8540 = vmul.f32 %v8538, %v8538
    %8541 = vadd.xlane.f32.xlu0 %v8539
    %v8542 = vpop.xlane.xlu0 %8541
    %8543 = vadd.xlane.f32.xlu0 %v8540
    %v8544 = vpop.xlane.xlu0 %8543
    %v8545 = vmul.f32 %v8542, %v1430
    %v8546 = vmul.f32 %v8544, %v1430
    %v8547 = vadd.f32 %v8545, 1e-12
    %v8548 = vadd.f32 %v8546, 1e-12
    %v8549 = vrsqrt.pop %v8547
    %v8550 = vrsqrt.pop %v8548
    %v8551 = vmul.f32 %v8537, %v8549
    %v8552 = vmul.f32 %v8538, %v8550
    %v8554 = vlaneseq
    %v8555 = vshrl.u32 %v8554, 7
    %v8556 = vsub.s32 0, %v8555
    %v8557 = vrot.slane %v8528, %v8556
    %v8559 = vmul.f32 %v8551, %v8557
    %v8560 = vmul.f32 %v8552, %v8557
    %v8562 = vlaneseq
    %v8563 = vshrl.u32 %v8562, 7
    %v8564 = vsub.s32 0, %v8563
    %v8565 = vrot.slane %v8530, %v8564
    %v8567 = vadd.f32 %v8559, %v8565
    %v8568 = vadd.f32 %v8560, %v8565
    %v8570 = vrot.slane %v8568, 7
    %v8572 = vsel %vm2232, %v8567, %v8570
    %v8573 = vpack.c.bf16 %v2233, %v2233
    %v8574 = vpack.c.bf16 %v4346, %v4346
    %v8575 = vpack.c.bf16 %v6459, %v6459
    %v8576 = vpack.c.bf16 %v8572, %v8572
    %v8577 = vld [vmem:[#allocation8] sm:$0xf]
    %v8578 = vld [vmem:[#allocation8 + $0x4] sm:$0xf]
    %v8579 = vld [vmem:[#allocation8 + $0x8] sm:$0xf]
    %v8580 = vld [vmem:[#allocation8 + $0xc] sm:$0xf]
    %v8581 = vld [vmem:[#allocation8 + $0x10] sm:$0xf]
    %v8582 = vld [vmem:[#allocation8 + $0x14] sm:$0xf]
    %v8583 = vld [vmem:[#allocation8 + $0x18] sm:$0xf]
    %v8584 = vld [vmem:[#allocation8 + $0x1c] sm:$0xf]
    %v8585 = vld [vmem:[#allocation8 + $0x20] sm:$0xf]
    %v8586 = vld [vmem:[#allocation8 + $0x24] sm:$0xf]
    %v8587 = vld [vmem:[#allocation8 + $0x28] sm:$0xf]
    %v8588 = vld [vmem:[#allocation8 + $0x2c] sm:$0xf]
    %v8589 = vld [vmem:[#allocation8 + $0x30] sm:$0xf]
    %v8590 = vld [vmem:[#allocation8 + $0x34] sm:$0xf]
    %v8591 = vld [vmem:[#allocation8 + $0x38] sm:$0xf]
    %v8592 = vld [vmem:[#allocation8 + $0x3c] sm:$0xf]
    %v8593 = vld [vmem:[#allocation8 + $0x40] sm:$0xf]
    %v8594 = vld [vmem:[#allocation8 + $0x44] sm:$0xf]
    %v8595 = vld [vmem:[#allocation8 + $0x48] sm:$0xf]
    %v8596 = vld [vmem:[#allocation8 + $0x4c] sm:$0xf]
    %v8597 = vld [vmem:[#allocation8 + $0x50] sm:$0xf]
    %v8598 = vld [vmem:[#allocation8 + $0x54] sm:$0xf]
    %v8599 = vld [vmem:[#allocation8 + $0x58] sm:$0xf]
    %v8600 = vld [vmem:[#allocation8 + $0x5c] sm:$0xf]
    %v8601 = vld [vmem:[#allocation8 + $0x60] sm:$0xf]
    %v8602 = vld [vmem:[#allocation8 + $0x64] sm:$0xf]
    %v8603 = vld [vmem:[#allocation8 + $0x68] sm:$0xf]
    %v8604 = vld [vmem:[#allocation8 + $0x6c] sm:$0xf]
    %v8605 = vld [vmem:[#allocation8 + $0x70] sm:$0xf]
    %v8606 = vld [vmem:[#allocation8 + $0x74] sm:$0xf]
    %v8607 = vld [vmem:[#allocation8 + $0x78] sm:$0xf]
    %v8608 = vld [vmem:[#allocation8 + $0x7c] sm:$0xf]
    %v8609 = vld [vmem:[#allocation8 + $0x80] sm:$0xf]
    %v8610 = vld [vmem:[#allocation8 + $0x84] sm:$0xf]
    %v8611 = vld [vmem:[#allocation8 + $0x88] sm:$0xf]
    %v8612 = vld [vmem:[#allocation8 + $0x8c] sm:$0xf]
    %v8613 = vld [vmem:[#allocation8 + $0x90] sm:$0xf]
    %v8614 = vld [vmem:[#allocation8 + $0x94] sm:$0xf]
    %v8615 = vld [vmem:[#allocation8 + $0x98] sm:$0xf]
    %v8616 = vld [vmem:[#allocation8 + $0x9c] sm:$0xf]
    %v8617 = vld [vmem:[#allocation8 + $0xa0] sm:$0xf]
    %v8618 = vld [vmem:[#allocation8 + $0xa4] sm:$0xf]
    %v8619 = vld [vmem:[#allocation8 + $0xa8] sm:$0xf]
    %v8620 = vld [vmem:[#allocation8 + $0xac] sm:$0xf]
    %v8621 = vld [vmem:[#allocation8 + $0xb0] sm:$0xf]
    %v8622 = vld [vmem:[#allocation8 + $0xb4] sm:$0xf]
    %v8623 = vld [vmem:[#allocation8 + $0xb8] sm:$0xf]
    %v8624 = vld [vmem:[#allocation8 + $0xbc] sm:$0xf]
    %v8625 = vld [vmem:[#allocation8 + $0xc0] sm:$0xf]
    %v8626 = vld [vmem:[#allocation8 + $0xc4] sm:$0xf]
    %v8627 = vld [vmem:[#allocation8 + $0xc8] sm:$0xf]
    %v8628 = vld [vmem:[#allocation8 + $0xcc] sm:$0xf]
    %v8629 = vld [vmem:[#allocation8 + $0xd0] sm:$0xf]
    %v8630 = vld [vmem:[#allocation8 + $0xd4] sm:$0xf]
    %v8631 = vld [vmem:[#allocation8 + $0xd8] sm:$0xf]
    %v8632 = vld [vmem:[#allocation8 + $0xdc] sm:$0xf]
    %v8633 = vld [vmem:[#allocation8 + $0xe0] sm:$0xf]
    %v8634 = vld [vmem:[#allocation8 + $0xe4] sm:$0xf]
    %v8635 = vld [vmem:[#allocation8 + $0xe8] sm:$0xf]
    %v8636 = vld [vmem:[#allocation8 + $0xec] sm:$0xf]
    %v8637 = vld [vmem:[#allocation8 + $0xf0] sm:$0xf]
    %v8638 = vld [vmem:[#allocation8 + $0xf4] sm:$0xf]
    %v8639 = vld [vmem:[#allocation8 + $0xf8] sm:$0xf]
    %v8640 = vld [vmem:[#allocation8 + $0xfc] sm:$0xf]
    %v8641 = vld [vmem:[%s15] sm:$0x1]
    %v8643 = vlaneseq
    %v8644 = vshrl.u32 %v8643, 7
    %v8645 = vsub.s32 0, %v8644
    %v8646 = vrot.slane %v8641, %v8645
    %v8712 = vunpack.c.l.b16 %v8577
    %v8713 = vunpack.c.l.b16 %v8578
    %v8714 = vunpack.c.l.b16 %v8579
    %v8715 = vunpack.c.l.b16 %v8580
    %v8716 = vunpack.c.l.b16 %v8581
    %v8717 = vunpack.c.l.b16 %v8582
    %v8718 = vunpack.c.l.b16 %v8583
    %v8719 = vunpack.c.l.b16 %v8584
    %v8720 = vunpack.c.l.b16 %v8585
    %v8721 = vunpack.c.l.b16 %v8586
    %v8722 = vunpack.c.l.b16 %v8587
    %v8723 = vunpack.c.l.b16 %v8588
    %v8724 = vunpack.c.l.b16 %v8589
    %v8725 = vunpack.c.l.b16 %v8590
    %v8726 = vunpack.c.l.b16 %v8591
    %v8727 = vunpack.c.l.b16 %v8592
    %v8728 = vunpack.c.l.b16 %v8593
    %v8729 = vunpack.c.l.b16 %v8594
    %v8730 = vunpack.c.l.b16 %v8595
    %v8731 = vunpack.c.l.b16 %v8596
    %v8732 = vunpack.c.l.b16 %v8597
    %v8733 = vunpack.c.l.b16 %v8598
    %v8734 = vunpack.c.l.b16 %v8599
    %v8735 = vunpack.c.l.b16 %v8600
    %v8736 = vunpack.c.l.b16 %v8601
    %v8737 = vunpack.c.l.b16 %v8602
    %v8738 = vunpack.c.l.b16 %v8603
    %v8739 = vunpack.c.l.b16 %v8604
    %v8740 = vunpack.c.l.b16 %v8605
    %v8741 = vunpack.c.l.b16 %v8606
    %v8742 = vunpack.c.l.b16 %v8607
    %v8743 = vunpack.c.l.b16 %v8608
    %v8744 = vunpack.c.l.b16 %v8609
    %v8745 = vunpack.c.l.b16 %v8610
    %v8746 = vunpack.c.l.b16 %v8611
    %v8747 = vunpack.c.l.b16 %v8612
    %v8748 = vunpack.c.l.b16 %v8613
    %v8749 = vunpack.c.l.b16 %v8614
    %v8750 = vunpack.c.l.b16 %v8615
    %v8751 = vunpack.c.l.b16 %v8616
    %v8752 = vunpack.c.l.b16 %v8617
    %v8753 = vunpack.c.l.b16 %v8618
    %v8754 = vunpack.c.l.b16 %v8619
    %v8755 = vunpack.c.l.b16 %v8620
    %v8756 = vunpack.c.l.b16 %v8621
    %v8757 = vunpack.c.l.b16 %v8622
    %v8758 = vunpack.c.l.b16 %v8623
    %v8759 = vunpack.c.l.b16 %v8624
    %v8760 = vunpack.c.l.b16 %v8625
    %v8761 = vunpack.c.l.b16 %v8626
    %v8762 = vunpack.c.l.b16 %v8627
    %v8763 = vunpack.c.l.b16 %v8628
    %v8764 = vunpack.c.l.b16 %v8629
    %v8765 = vunpack.c.l.b16 %v8630
    %v8766 = vunpack.c.l.b16 %v8631
    %v8767 = vunpack.c.l.b16 %v8632
    %v8768 = vunpack.c.l.b16 %v8633
    %v8769 = vunpack.c.l.b16 %v8634
    %v8770 = vunpack.c.l.b16 %v8635
    %v8771 = vunpack.c.l.b16 %v8636
    %v8772 = vunpack.c.l.b16 %v8637
    %v8773 = vunpack.c.l.b16 %v8638
    %v8774 = vunpack.c.l.b16 %v8639
    %v8775 = vunpack.c.l.b16 %v8640
    %v8776 = vpack.c.b16 %v8713, %v8712
    %v8777 = vpack.c.b16 %v8715, %v8714
    %v8778 = vpack.c.b16 %v8717, %v8716
    %v8779 = vpack.c.b16 %v8719, %v8718
    %v8780 = vpack.c.b16 %v8721, %v8720
    %v8781 = vpack.c.b16 %v8723, %v8722
    %v8782 = vpack.c.b16 %v8725, %v8724
    %v8783 = vpack.c.b16 %v8727, %v8726
    %v8784 = vpack.c.b16 %v8729, %v8728
    %v8785 = vpack.c.b16 %v8731, %v8730
    %v8786 = vpack.c.b16 %v8733, %v8732
    %v8787 = vpack.c.b16 %v8735, %v8734
    %v8788 = vpack.c.b16 %v8737, %v8736
    %v8789 = vpack.c.b16 %v8739, %v8738
    %v8790 = vpack.c.b16 %v8741, %v8740
    %v8791 = vpack.c.b16 %v8743, %v8742
    %v8792 = vpack.c.b16 %v8745, %v8744
    %v8793 = vpack.c.b16 %v8747, %v8746
    %v8794 = vpack.c.b16 %v8749, %v8748
    %v8795 = vpack.c.b16 %v8751, %v8750
    %v8796 = vpack.c.b16 %v8753, %v8752
    %v8797 = vpack.c.b16 %v8755, %v8754
    %v8798 = vpack.c.b16 %v8757, %v8756
    %v8799 = vpack.c.b16 %v8759, %v8758
    %v8800 = vpack.c.b16 %v8761, %v8760
    %v8801 = vpack.c.b16 %v8763, %v8762
    %v8802 = vpack.c.b16 %v8765, %v8764
    %v8803 = vpack.c.b16 %v8767, %v8766
    %v8804 = vpack.c.b16 %v8769, %v8768
    %v8805 = vpack.c.b16 %v8771, %v8770
    %v8806 = vpack.c.b16 %v8773, %v8772
    %v8807 = vpack.c.b16 %v8775, %v8774
    %8840 = vmatprep.subr.bf16.mxu0 0
    %8841 = vmatpush1.bf16.msra.mxu0 %v8776
    %8842 = vmatprep.subr.bf16.mxu0 0
    %8843 = vmatpush1.bf16.msra.mxu0 %v8777
    %8844 = vmatprep.subr.bf16.mxu0 0
    %8845 = vmatpush1.bf16.msra.mxu0 %v8778
    %8846 = vmatprep.subr.bf16.mxu0 0
    %8847 = vmatpush1.bf16.msra.mxu0 %v8779
    %8848 = vmatprep.subr.bf16.mxu0 0
    %8849 = vmatpush1.bf16.msra.mxu0 %v8780
    %8850 = vmatprep.subr.bf16.mxu0 0
    %8851 = vmatpush1.bf16.msra.mxu0 %v8781
    %8852 = vmatprep.subr.bf16.mxu0 0
    %8853 = vmatpush1.bf16.msra.mxu0 %v8782
    %8854 = vmatprep.subr.bf16.mxu0 0
    %8855 = vmatpush1.bf16.msra.mxu0 %v8783
    %8856 = vmatprep.subr.bf16.mxu0 0
    %8857 = vmatpush1.bf16.msra.mxu0 %v8784
    %8858 = vmatprep.subr.bf16.mxu0 0
    %8859 = vmatpush1.bf16.msra.mxu0 %v8785
    %8860 = vmatprep.subr.bf16.mxu0 0
    %8861 = vmatpush1.bf16.msra.mxu0 %v8786
    %8862 = vmatprep.subr.bf16.mxu0 0
    %8863 = vmatpush1.bf16.msra.mxu0 %v8787
    %8864 = vmatprep.subr.bf16.mxu0 0
    %8865 = vmatpush1.bf16.msra.mxu0 %v8788
    %8866 = vmatprep.subr.bf16.mxu0 0
    %8867 = vmatpush1.bf16.msra.mxu0 %v8789
    %8868 = vmatprep.subr.bf16.mxu0 0
    %8869 = vmatpush1.bf16.msra.mxu0 %v8790
    %8870 = vmatprep.subr.bf16.mxu0 0
    %8871 = vmatpush1.bf16.msra.mxu0 %v8791
    %8872 = vmatprep.mubr.bf16.mxu0 %v8574
    %8873 = vmatmul.mubr.bf16.gmra.mrb[0].mxu0 %v8573
    %v8874 = vpop.f32.mrb[0].mxu0
    %v8875 = vadd.f32 %v8646, %v8874
    %v8876 = vpop.f32.mrb[0].mxu0
    %v8877 = vpop.f32.mrb[0].mxu0
    %v8878 = vpop.f32.mrb[0].mxu0
    %8879 = vdwg.mxu0
    %8880 = vmatprep.subr.bf16.mxu0 0
    %8881 = vmatpush1.bf16.msra.mxu0 %v8792
    %8882 = vmatprep.subr.bf16.mxu0 0
    %8883 = vmatpush1.bf16.msra.mxu0 %v8793
    %8884 = vmatprep.subr.bf16.mxu0 0
    %8885 = vmatpush1.bf16.msra.mxu0 %v8794
    %8886 = vmatprep.subr.bf16.mxu0 0
    %8887 = vmatpush1.bf16.msra.mxu0 %v8795
    %8888 = vmatprep.subr.bf16.mxu0 0
    %8889 = vmatpush1.bf16.msra.mxu0 %v8796
    %8890 = vmatprep.subr.bf16.mxu0 0
    %8891 = vmatpush1.bf16.msra.mxu0 %v8797
    %8892 = vmatprep.subr.bf16.mxu0 0
    %8893 = vmatpush1.bf16.msra.mxu0 %v8798
    %8894 = vmatprep.subr.bf16.mxu0 0
    %8895 = vmatpush1.bf16.msra.mxu0 %v8799
    %8896 = vmatprep.subr.bf16.mxu0 0
    %8897 = vmatpush1.bf16.msra.mxu0 %v8800
    %8898 = vmatprep.subr.bf16.mxu0 0
    %8899 = vmatpush1.bf16.msra.mxu0 %v8801
    %8900 = vmatprep.subr.bf16.mxu0 0
    %8901 = vmatpush1.bf16.msra.mxu0 %v8802
    %8902 = vmatprep.subr.bf16.mxu0 0
    %8903 = vmatpush1.bf16.msra.mxu0 %v8803
    %8904 = vmatprep.subr.bf16.mxu0 0
    %8905 = vmatpush1.bf16.msra.mxu0 %v8804
    %8906 = vmatprep.subr.bf16.mxu0 0
    %8907 = vmatpush1.bf16.msra.mxu0 %v8805
    %8908 = vmatprep.subr.bf16.mxu0 0
    %8909 = vmatpush1.bf16.msra.mxu0 %v8806
    %8910 = vmatprep.subr.bf16.mxu0 0
    %8911 = vmatpush1.bf16.msra.mxu0 %v8807
    %8912 = vmatprep.mubr.bf16.mxu0 %v8576
    %8913 = vmatmul.mubr.bf16.gmra.mrb[0].mxu0 %v8575
    %v8914 = vpop.f32.mrb[0].mxu0
    %v8915 = vadd.f32 %v8875, %v8914
    %v8916 = vpop.f32.mrb[0].mxu0
    %v8917 = vpop.f32.mrb[0].mxu0
    %v8918 = vpop.f32.mrb[0].mxu0
    %8919 = vdwg.mxu0
    %v8922 = vunpack.c.l.s4 1966171168
    %v8923 = vunpack.c.0.s8 %v8922
    %v8924 = vlaneseq
    %v8925 = vshrl.u32 %v8924, 7
    %v8926 = vsub.s32 %v8923, %v8925
    %v8927 = vrot.slane %v8915, %v8926
    %v8928 = vcombine.high %v8927, %v8927
    %v8930 = vunpack.c.l.s4 1966171168
    %v8931 = vunpack.c.0.s8 %v8930
    %v8932 = vlaneseq
    %v8933 = vshrl.u32 %v8932, 7
    %v8934 = vsub.s32 %v8931, %v8933
    %v8935 = vrot.slane %v8927, %v8934
    %v8937 = vunpack.c.l.s4 1966171168
    %v8938 = vunpack.c.0.s8 %v8937
    %v8939 = vlaneseq
    %v8940 = vshrl.u32 %v8939, 7
    %v8941 = vsub.s32 %v8938, %v8940
    %v8942 = vrot.slane %v8928, %v8941
    %8945 = vst [vmem:[#allocation10] sm:$0x1] %v8935
    %8946 = vst [vmem:[#allocation10 + $0x1] sm:$0x1] %v8942
    // Predicated region
    $region82: #{gen0_forward.1} parent=1 // pred_check
      _
    $region83: #{gen0_forward.1} parent=1 // pred_check_branch
      %8948 = sbr.rel (0) target = $region85
    $region84: #{gen0_forward.1} parent=1 // pred_region
      %s8950 = ssub.s32 32, 32
      %8951 = vsyncadd [#allocation4], %s8950
      %s8952 = sshll.u32 [#allocation10], 4
      %s8953 = int_to_ptr.vmem [resolvable:$true] %s8952
      %8958 = dma.vmem_to_hbm [thread:$0]  %s8953, 32, %s16, [#allocation4], 16, 16, 1
    $region85: #{gen0_forward.1} parent=1 // pred_fallthru
      _
    // Predicated region
    $region86: #{gen0_forward.1} parent=1 // pred_check
      _
    $region87: #{gen0_forward.1} parent=1 // pred_check_branch
      %8960 = sbr.rel (0) target = $region89
    $region88: #{gen0_forward.1} parent=1 // pred_region
      %8961 = dma.done [#allocation4], 32
    $region89: #{gen0_forward.1} parent=1 // pred_fallthru
      _
    %8962 = vsyncpa [#allocation3], 1
    %8963 = vsyncpa [#allocation6], 1
    %8964 = vsyncpa [#allocation9], 1
    %8965 = vsyncpa [#allocation4], 1

</llo_original>
